<compile_context>
chip_gen: v7x
topology: tpu7x:2x2x1
jax: 0.10.0
libtpu: 0.0.40
codegen_flags: <defaults>
</compile_context>

<pallas_src>
import math
import functools

import jax
import jax.numpy as jnp
from jax.experimental import pallas as pl
from jax.experimental.pallas import tpu as pltpu


# Below this many interpolation intervals (L - 1) the unrolled VPU select
# path is used; above it, the one-hot MXU gather path.
_SELECT_PATH_MAX_LEVELS = 16


def _levels_select_kernel(x_ref, w_ref, f_ref, o_ref, *, low, high, randomness):
    """Small-L path: unrolled per-level VPU selects (no MXU, no 3*D temp)."""
    Lm1 = f_ref.shape[0]                                     # L - 1

    x = x_ref[...]                                           # (TN, 1) f32
    # torchhd.map_range(x, low, high, 0, randomness - 1) + clamp
    scale = (randomness - 1.0) / (high - low)
    value = jnp.clip((x - low) * scale, 0.0, randomness - 1.0)
    start_value = jnp.minimum(jnp.floor(value), float(Lm1 - 1))  # clamp_max(L-2)
    start_idx = start_value.astype(jnp.int32)                # (TN, 1)
    frac = value - start_value                               # (TN, 1) f32

    w = w_ref[...]                                           # (L,   D) f32
    f = f_ref[...]                                           # (L-1, D) f32

    # Unrolled at trace time; each per-level broadcast happens exactly once.
    result = None
    for l in range(Lm1):
        # Per-level select: frac <= filter[l] ? weight[l] : weight[l+1]
        level_out = jnp.where(frac <= f[l], w[l], w[l + 1])  # (TN, D) f32
        if result is None:
            result = level_out
        else:
            result = jnp.where(start_idx == l, level_out, result)
    o_ref[...] = result.astype(o_ref.dtype)


def _levels_matmul_kernel(x_ref, wtab_ref, f_ref, o_ref, *, low, high,
                          randomness):
    """Large-L path: one-hot row gather on the MXU.

    wtab_ref: (L-1, 2*D) bf16 fused [weight[:-1] | weight[1:]] (exact in bf16).
    f_ref:    (L-1, D)   f32 filter (comparison must stay f32-exact).
    """
    Lm1 = f_ref.shape[0]
    D = o_ref.shape[1]
    TN = x_ref.shape[0]

    x = x_ref[...]                                           # (TN, 1) f32
    scale = (randomness - 1.0) / (high - low)
    value = jnp.clip((x - low) * scale, 0.0, randomness - 1.0)
    start_value = jnp.minimum(jnp.floor(value), float(Lm1 - 1))
    start_idx = start_value.astype(jnp.int32)                # (TN, 1)
    frac = value - start_value                               # (TN, 1)

    iota = jax.lax.broadcasted_iota(jnp.int32, (TN, Lm1), 1)
    hit = (iota == start_idx)
    one_hot_f32 = hit.astype(jnp.float32)                    # (TN, L-1)
    one_hot_bf16 = hit.astype(jnp.bfloat16)

    # Native-bf16 gather of [start | end] (0/1 and +/-1 exact), f32 accumulate.
    se = jnp.dot(one_hot_bf16, wtab_ref[...],
                 preferred_element_type=jnp.float32)         # (TN, 2*D)
    # Exact f32 gather of the filter row.
    filt = jnp.dot(one_hot_f32, f_ref[...],
                   preferred_element_type=jnp.float32)       # (TN, D)

    start = se[:, :D]
    end = se[:, D:]
    o_ref[...] = jnp.where(frac <= filt, start, end).astype(o_ref.dtype)


def _has_two_tensorcores():
    """True on chips with 2 TensorCores per device (v7x); else False."""
    try:
        kind = jax.devices()[0].device_kind.lower()
    except Exception:  # pragma: no cover - defensive
        return False
    return "v7" in kind


def _choose_tiling(n, d, out_itemsize, *, two_tc, extra_per_row):
    """Pick (tile_n, n_pad).

    Padding is bounded at < 128 rows when the padded length has a usable
    divisor; tile size is bounded by a conservative cross-generation VMEM
    budget that now includes the kernel's live f32 intermediates.  On 2-TC
    chips (v7x) the grid is kept >= 2 steps so megacore can split it; on
    single-TC v5e/v6e the largest fitting tile is used.
    """
    rows = pl.cdiv(n, 128)                       # 128-row groups after padding
    # Per-row bytes: double-buffered lane-padded input + output blocks, plus
    # live f32 intermediates (select result / level_out / masks ~ 4 * D * 4).
    per_row = 2 * (128 * 4 + d * out_itemsize) + 4 * d * 4 + extra_per_row
    budget = 24 << 20                            # conservative across v5e/v6e/v7x
    max_k = max(1, min(16, budget // (per_row * 128)))   # cap tile at 2048 rows
    if two_tc and rows >= 2:
        max_k = max(1, min(max_k, rows // 2))    # keep >= 2 "parallel" steps
    max_k = min(max_k, rows)
    # Prefer zero extra padding: largest k <= max_k dividing the row count.
    best_div = max(k for k in range(1, max_k + 1) if rows % k == 0)
    # If the divisor structure is poor (would shrink the tile a lot), accept a
    # padded tail tile instead (waste still bounded by the tile size).
    k = best_div if 2 * best_div >= max_k else max_k
    tile_n = 128 * k
    n_pad = pl.cdiv(n, tile_n) * tile_n
    return tile_n, n_pad


def levels_forward(x, weight, filt, *, low=0.0, high=1.0, randomness=4.0,
                   tile_n=None, out_dtype=jnp.bfloat16):
    """Pallas implementation of Levels.forward.  Returns x.shape + (D,).

    Notes:
      * Output values are exactly +/-1, so the default bf16 output is
        bit-exact (int8 would be too); pass out_dtype=jnp.float32 if needed.
      * Assumes the filter is non-negative (torchhd draws it from U[0,1)).
        With a negative filter entry and an exactly-integral mapped value the
        end-gather shortcut (weight[start+1]) would differ from the reference
        ceil() gather.
    """
    assert randomness >= 1.0
    L, D = weight.shape
    assert L >= 2, "Levels kernel requires ceil(randomness) >= 2"
    assert filt.shape == (L - 1, D)
    # NOTE: D should be a multiple of 128 for lane-dense (unmasked) output
    # stores; D=128 here is already ideal.

    orig_shape = x.shape
    flat = x.reshape(-1).astype(jnp.float32)
    n = flat.shape[0]

    out_itemsize = jnp.dtype(out_dtype).itemsize
    use_matmul = (L - 1) > _SELECT_PATH_MAX_LEVELS
    # Extra live bytes per row for the matmul path: (TN, 3*D) f32 gathered
    # result plus the lane-padded one-hot (f32 + bf16).
    extra_per_row = (3 * D * 4 + 128 * 6) if use_matmul else 0

    if tile_n is None:
        tile_n, n_pad = _choose_tiling(
            n, D, out_itemsize, two_tc=_has_two_tensorcores(),
            extra_per_row=extra_per_row)
    else:
        tile_n = max(128, (int(tile_n) // 128) * 128)
        n_pad = pl.cdiv(n, tile_n) * tile_n

    flat = jnp.pad(flat, (0, n_pad - n)).reshape(n_pad, 1)

    kernel_kwargs = dict(low=float(low), high=float(high),
                         randomness=float(randomness))

    if use_matmul:
        # Fused bf16 gather table [weight[:-1] | weight[1:]] (+/-1 exact in
        # bf16); filter stays a separate f32 operand for an exact comparison.
        wtab = jnp.concatenate([weight[:-1], weight[1:]],
                               axis=1).astype(jnp.bfloat16)        # (L-1, 2D)
        f32_filt = filt.astype(jnp.float32)                        # (L-1, D)
        kernel = functools.partial(_levels_matmul_kernel, **kernel_kwargs)
        extra_inputs = (wtab, f32_filt)
        extra_specs = [
            pl.BlockSpec((L - 1, 2 * D), lambda i: (0, 0)),
            pl.BlockSpec((L - 1, D), lambda i: (0, 0)),
        ]
        table_bytes = 2 * ((L - 1) * 2 * D * 2 + (L - 1) * D * 4)
    else:
        w32 = weight.astype(jnp.float32)                           # (L, D)
        f32_filt = filt.astype(jnp.float32)                        # (L-1, D)
        kernel = functools.partial(_levels_select_kernel, **kernel_kwargs)
        extra_inputs = (w32, f32_filt)
        extra_specs = [
            pl.BlockSpec((L, D), lambda i: (0, 0)),
            pl.BlockSpec((L - 1, D), lambda i: (0, 0)),
        ]
        table_bytes = 2 * (L * D * 4 + (L - 1) * D * 4)

    # VMEM estimate including live intermediates; only override the scoped
    # limit when we actually need more than the conservative default, and
    # leave headroom below v7x's 64 MiB physical VMEM.
    io_bytes = 2 * tile_n * (128 * 4 + D * out_itemsize)
    interm_bytes = tile_n * (4 * D * 4 + extra_per_row)
    vmem_est = io_bytes + interm_bytes + table_bytes + (2 << 20)
    vmem_limit = int(min(vmem_est, 48 << 20)) if vmem_est > (16 << 20) else None

    # Memory-bound custom call: tell XLA so it schedules/overlaps it sensibly.
    flops_per_elem = (2 * (L - 1) * 3 * D) if use_matmul else (2 * (L - 1) + 2) * D
    cost = pl.CostEstimate(
        flops=int(n_pad * flops_per_elem),
        transcendentals=0,
        bytes_accessed=int(n_pad * 4 + n_pad * D * out_itemsize + table_bytes))

    out = pl.pallas_call(
        kernel,
        out_shape=jax.ShapeDtypeStruct((n_pad, D), out_dtype),
        grid_spec=pltpu.PrefetchScalarGridSpec(
            num_scalar_prefetch=0,
            grid=(n_pad // tile_n,),
            in_specs=[
                # (tile_n, 1) lane-pads to 128 lanes in VMEM; accepted here
                # (harmless at this size, avoids any in-kernel relayout).
                pl.BlockSpec((tile_n, 1), lambda i: (i, 0)),   # input scalars
                *extra_specs,                                  # codebook tables
            ],
            out_specs=pl.BlockSpec((tile_n, D), lambda i: (i, 0)),
        ),
        compiler_params=pltpu.CompilerParams(
            dimension_semantics=("parallel",),
            vmem_limit_bytes=vmem_limit),
        cost_estimate=cost,
    )(flat, *extra_inputs)

    return out[:n].reshape(orig_shape + (D,))


if __name__ == "__main__":
    randomness = 4.0
    dimensions = 128
    low, high = 0.0, 1.0
    L = math.ceil(randomness)

    key = jax.random.PRNGKey(0)
    k_f, k_w, k_x = jax.random.split(key, 3)

    # Deterministic "parameters" mirroring Levels.__init__:
    #   filter ~ U[0,1), shape (ceil(randomness)-1, dimensions)
    #   weight ~ Rademacher(+/-1), shape (ceil(randomness), dimensions)
    filt = jax.random.uniform(k_f, (L - 1, dimensions), dtype=jnp.float32)
    select = jax.random.bernoulli(k_w, 0.5, (L, dimensions))
    weight = jnp.where(select, -1.0, 1.0).astype(jnp.float32)

    # Example input (values in [low, high]).
    x = jax.random.uniform(k_x, (2, 4, 16, 16), dtype=jnp.float32,
                           minval=low, maxval=high)
    # Inject exact boundary values (frac == 0 and clamped-top cases) to
    # exercise the end == weight[start_idx + 1] tie rule.
    x = x.at[0, 0, 0, 0].set(0.0)
    x = x.at[0, 0, 0, 1].set(1.0)

    out = levels_forward(x, weight, filt, low=low, high=high,
                         randomness=randomness)
    out = jax.block_until_ready(out)

    # Pure-JAX reference using the original (un-fused) gather semantics,
    # same math as the PyTorch forward.
    flat = x.reshape(-1)
    value = jnp.clip((flat - low) * ((randomness - 1.0) / (high - low)),
                     0.0, randomness - 1.0)
    start_value = jnp.minimum(jnp.floor(value), float(L - 2))
    si = start_value.astype(jnp.int32)
    ei = jnp.ceil(value).astype(jnp.int32)
    frac = value - start_value
    ref = jnp.where(frac[:, None] <= filt[si], weight[si], weight[ei])
    ref = ref.reshape(x.shape + (dimensions,))

    assert out.shape == x.shape + (dimensions,)
    # Outputs are exactly +/-1, so the bf16 cast of the reference is exact.
    assert jnp.allclose(out.astype(jnp.float32), ref), \
        "kernel output mismatch vs reference"
    print("KERNEL_OK")
</pallas_src>

<mosaic_0001>
module attributes {stable_mosaic.version = 11 : i64} {
  func.func @_levels_select_kernel(%arg0: i32, %arg1: memref<2048x1xf32, #tpu.memory_space<vmem>>, %arg2: memref<4x128xf32, #tpu.memory_space<vmem>>, %arg3: memref<3x128xf32, #tpu.memory_space<vmem>>, %arg4: memref<2048x128xbf16, #tpu.memory_space<vmem>>) attributes {dimension_semantics = [#tpu.dimension_semantics<parallel>], iteration_bounds = array<i64: 1>, scalar_prefetch = 0 : i64, scratch_operands = 0 : i64, tpu.core_type = #tpu.core_type<tc>, window_params = [{transform_indices = @transform_0, window_bounds = array<i64: 2048, 1>}, {pipeline_mode = #tpu.pipeline_mode<synchronous>, transform_indices = @transform_1, window_bounds = array<i64: 4, 128>}, {pipeline_mode = #tpu.pipeline_mode<synchronous>, transform_indices = @transform_2, window_bounds = array<i64: 3, 128>}, {transform_indices = @transform_3, window_bounds = array<i64: 2048, 128>}]} {
    %c0 = arith.constant 0 : index
    %c0_0 = arith.constant 0 : index
    %0 = vector.load %arg1[%c0, %c0_0] : memref<2048x1xf32, #tpu.memory_space<vmem>>, vector<2048x1xf32>
    %cst = arith.constant 0.000000e+00 : f32
    %1 = vector.broadcast %cst : f32 to vector<2048x1xf32>
    %2 = arith.subf %0, %1 : vector<2048x1xf32>
    %cst_1 = arith.constant 3.000000e+00 : f32
    %3 = vector.broadcast %cst_1 : f32 to vector<2048x1xf32>
    %4 = arith.mulf %2, %3 : vector<2048x1xf32>
    %cst_2 = arith.constant 0.000000e+00 : f32
    %cst_3 = arith.constant 3.000000e+00 : f32
    %5 = vector.broadcast %cst_2 : f32 to vector<2048x1xf32>
    %6 = arith.maximumf %5, %4 : vector<2048x1xf32>
    %7 = vector.broadcast %cst_3 : f32 to vector<2048x1xf32>
    %8 = arith.minimumf %7, %6 : vector<2048x1xf32>
    %9 = math.floor %8 : vector<2048x1xf32>
    %cst_4 = arith.constant 2.000000e+00 : f32
    %10 = vector.broadcast %cst_4 : f32 to vector<2048x1xf32>
    %11 = arith.minimumf %9, %10 : vector<2048x1xf32>
    %12 = arith.fptosi %11 : vector<2048x1xf32> to vector<2048x1xi32>
    %13 = arith.subf %8, %11 : vector<2048x1xf32>
    %c0_5 = arith.constant 0 : index
    %c0_6 = arith.constant 0 : index
    %14 = vector.load %arg2[%c0_5, %c0_6] : memref<4x128xf32, #tpu.memory_space<vmem>>, vector<4x128xf32>
    %c0_7 = arith.constant 0 : index
    %c0_8 = arith.constant 0 : index
    %15 = vector.load %arg3[%c0_7, %c0_8] : memref<3x128xf32, #tpu.memory_space<vmem>>, vector<3x128xf32>
    %16 = vector.extract_strided_slice %15 {offsets = [0, 0], sizes = [1, 128], strides = [1, 1]} : vector<3x128xf32> to vector<1x128xf32>
    %17 = vector.shape_cast %16 : vector<1x128xf32> to vector<128xf32>
    %18 = vector.shape_cast %17 : vector<128xf32> to vector<1x128xf32>
    %19 = vector.broadcast %13 : vector<2048x1xf32> to vector<2048x128xf32>
    %20 = vector.broadcast %18 : vector<1x128xf32> to vector<2048x128xf32>
    %21 = arith.cmpf ole, %19, %20 : vector<2048x128xf32>
    %22 = vector.extract_strided_slice %14 {offsets = [0, 0], sizes = [1, 128], strides = [1, 1]} : vector<4x128xf32> to vector<1x128xf32>
    %23 = vector.shape_cast %22 : vector<1x128xf32> to vector<128xf32>
    %24 = vector.extract_strided_slice %14 {offsets = [1, 0], sizes = [1, 128], strides = [1, 1]} : vector<4x128xf32> to vector<1x128xf32>
    %25 = vector.shape_cast %24 : vector<1x128xf32> to vector<128xf32>
    %26 = vector.shape_cast %23 : vector<128xf32> to vector<1x128xf32>
    %27 = vector.broadcast %26 : vector<1x128xf32> to vector<2048x128xf32>
    %28 = vector.shape_cast %25 : vector<128xf32> to vector<1x128xf32>
    %29 = vector.broadcast %28 : vector<1x128xf32> to vector<2048x128xf32>
    %30 = arith.select %21, %27, %29 : vector<2048x128xi1>, vector<2048x128xf32>
    %31 = vector.extract_strided_slice %15 {offsets = [1, 0], sizes = [1, 128], strides = [1, 1]} : vector<3x128xf32> to vector<1x128xf32>
    %32 = vector.shape_cast %31 : vector<1x128xf32> to vector<128xf32>
    %33 = vector.shape_cast %32 : vector<128xf32> to vector<1x128xf32>
    %34 = vector.broadcast %13 : vector<2048x1xf32> to vector<2048x128xf32>
    %35 = vector.broadcast %33 : vector<1x128xf32> to vector<2048x128xf32>
    %36 = arith.cmpf ole, %34, %35 : vector<2048x128xf32>
    %37 = vector.extract_strided_slice %14 {offsets = [1, 0], sizes = [1, 128], strides = [1, 1]} : vector<4x128xf32> to vector<1x128xf32>
    %38 = vector.shape_cast %37 : vector<1x128xf32> to vector<128xf32>
    %39 = vector.extract_strided_slice %14 {offsets = [2, 0], sizes = [1, 128], strides = [1, 1]} : vector<4x128xf32> to vector<1x128xf32>
    %40 = vector.shape_cast %39 : vector<1x128xf32> to vector<128xf32>
    %41 = vector.shape_cast %38 : vector<128xf32> to vector<1x128xf32>
    %42 = vector.broadcast %41 : vector<1x128xf32> to vector<2048x128xf32>
    %43 = vector.shape_cast %40 : vector<128xf32> to vector<1x128xf32>
    %44 = vector.broadcast %43 : vector<1x128xf32> to vector<2048x128xf32>
    %45 = arith.select %36, %42, %44 : vector<2048x128xi1>, vector<2048x128xf32>
    %c1_i32 = arith.constant 1 : i32
    %46 = vector.broadcast %c1_i32 : i32 to vector<2048x1xi32>
    %47 = arith.cmpi eq, %12, %46 : vector<2048x1xi32>
    %48 = vector.shape_cast %47 : vector<2048x1xi1> to vector<2048x1xi1>
    %49 = vector.broadcast %48 : vector<2048x1xi1> to vector<2048x128xi1>
    %50 = arith.select %49, %45, %30 : vector<2048x128xi1>, vector<2048x128xf32>
    %51 = vector.extract_strided_slice %15 {offsets = [2, 0], sizes = [1, 128], strides = [1, 1]} : vector<3x128xf32> to vector<1x128xf32>
    %52 = vector.shape_cast %51 : vector<1x128xf32> to vector<128xf32>
    %53 = vector.shape_cast %52 : vector<128xf32> to vector<1x128xf32>
    %54 = vector.broadcast %13 : vector<2048x1xf32> to vector<2048x128xf32>
    %55 = vector.broadcast %53 : vector<1x128xf32> to vector<2048x128xf32>
    %56 = arith.cmpf ole, %54, %55 : vector<2048x128xf32>
    %57 = vector.extract_strided_slice %14 {offsets = [2, 0], sizes = [1, 128], strides = [1, 1]} : vector<4x128xf32> to vector<1x128xf32>
    %58 = vector.shape_cast %57 : vector<1x128xf32> to vector<128xf32>
    %59 = vector.extract_strided_slice %14 {offsets = [3, 0], sizes = [1, 128], strides = [1, 1]} : vector<4x128xf32> to vector<1x128xf32>
    %60 = vector.shape_cast %59 : vector<1x128xf32> to vector<128xf32>
    %61 = vector.shape_cast %58 : vector<128xf32> to vector<1x128xf32>
    %62 = vector.broadcast %61 : vector<1x128xf32> to vector<2048x128xf32>
    %63 = vector.shape_cast %60 : vector<128xf32> to vector<1x128xf32>
    %64 = vector.broadcast %63 : vector<1x128xf32> to vector<2048x128xf32>
    %65 = arith.select %56, %62, %64 : vector<2048x128xi1>, vector<2048x128xf32>
    %c2_i32 = arith.constant 2 : i32
    %66 = vector.broadcast %c2_i32 : i32 to vector<2048x1xi32>
    %67 = arith.cmpi eq, %12, %66 : vector<2048x1xi32>
    %68 = vector.shape_cast %67 : vector<2048x1xi1> to vector<2048x1xi1>
    %69 = vector.broadcast %68 : vector<2048x1xi1> to vector<2048x128xi1>
    %70 = arith.select %69, %65, %50 : vector<2048x128xi1>, vector<2048x128xf32>
    %71 = arith.truncf %70 : vector<2048x128xf32> to vector<2048x128xbf16>
    %c0_9 = arith.constant 0 : index
    %c0_10 = arith.constant 0 : index
    %72 = vector.load %arg4[%c0_9, %c0_10] : memref<2048x128xbf16, #tpu.memory_space<vmem>>, vector<2048x128xbf16>
    tpu.vector_store %arg4[%c0_9, %c0_10], %71 {strides = array<i32>} : memref<2048x128xbf16, #tpu.memory_space<vmem>>, vector<2048x128xbf16>,
    return
  }
  func.func @transform_0(%arg0: i32) -> (i32, i32) {
    %c0_i32 = arith.constant 0 : i32
    %c0_i32_0 = arith.constant 0 : i32
    return %arg0, %c0_i32 : i32, i32
  }
  func.func @transform_1(%arg0: i32) -> (i32, i32) {
    %c0_i32 = arith.constant 0 : i32
    %c0_i32_0 = arith.constant 0 : i32
    %c0_i32_1 = arith.constant 0 : i32
    return %c0_i32, %c0_i32_0 : i32, i32
  }
  func.func @transform_2(%arg0: i32) -> (i32, i32) {
    %c0_i32 = arith.constant 0 : i32
    %c0_i32_0 = arith.constant 0 : i32
    %c0_i32_1 = arith.constant 0 : i32
    return %c0_i32, %c0_i32_0 : i32, i32
  }
  func.func @transform_3(%arg0: i32) -> (i32, i32) {
    %c0_i32 = arith.constant 0 : i32
    %c0_i32_0 = arith.constant 0 : i32
    return %arg0, %c0_i32 : i32, i32
  }
}

</mosaic_0001>

<llo_original>
// kernel: tpu_custom_call.1
$region0: #{tpu_custom_call.1}
  #allocation0 [shape = 'u32[]', space=smem, size = 0x4, offset = 0x4, fixed_abs, tag = 'smem constant byte address 0x4 - core index']
  #allocation1 [shape = 'u32[144,128]{1,0:T(1,128)}', space=vmem, size = 0x12000, scoped, tag = 'internal scratch']
  %s0 = inlined_call_operand.vmem [shape: f32[2048,1], index: 0, kind: input, shape index: {}]
  %s1 = inlined_call_operand.vmem [shape: f32[4,128], index: 1, kind: input, shape index: {}]
  %s2 = inlined_call_operand.vmem [shape: f32[3,128], index: 2, kind: input, shape index: {}]
  %s3 = inlined_call_operand.hbm [shape: bf16[2048,128], index: 3, kind: output, shape index: {}]
  %s4 = sld [smem:[#allocation0]]
  $region22: #{tpu_custom_call.1} parent=0
    _
  %s6 = ssub.s32 1, %s4
  %s7 = scalar_select 0, %s6, %s4
  $region1: #{tpu_custom_call.1} parent=0
    #allocation2 [shape = 'u8[524288]{0}', space=vmem, size = 0x80000, scoped, tag = 'output window, operand 0, single buffered']
    #allocation3 [shape = 's32[1]{0}', space=sflag, size = 0x4, scoped, tag = 'scoped memory for tpu_custom_call.1']
    %8 = vsyncpa [#allocation3], 0
    // Predicated region
    $region2: #{tpu_custom_call.1} parent=1 // pred_check
      _
    $region3: #{tpu_custom_call.1} parent=1 // pred_check_branch
      %10 = sbr.rel (0) target = $region5
    $region4: #{tpu_custom_call.1} parent=1 // pred_region
      _
    $region5: #{tpu_custom_call.1} parent=1 // pred_fallthru
      _
    // Predicated region
    $region6: #{tpu_custom_call.1} parent=1 // pred_check
      _
    $region7: #{tpu_custom_call.1} parent=1 // pred_check_branch
      %12 = sbr.rel (0) target = $region9
    $region8: #{tpu_custom_call.1} parent=1 // pred_region
      _
    $region9: #{tpu_custom_call.1} parent=1 // pred_fallthru
      _
    // Predicated region
    $region10: #{tpu_custom_call.1} parent=1 // pred_check
      _
    $region11: #{tpu_custom_call.1} parent=1 // pred_check_branch
      %14 = sbr.rel (0) target = $region13
    $region12: #{tpu_custom_call.1} parent=1 // pred_region
      _
    $region13: #{tpu_custom_call.1} parent=1 // pred_fallthru
      _
    %v15 = vld [vmem:[%s0] sm:$0xff]
    %v16 = vld [vmem:[%s0 + $0x8] sm:$0xff]
    %v17 = vld [vmem:[%s0 + $0x10] sm:$0xff]
    %v18 = vld [vmem:[%s0 + $0x18] sm:$0xff]
    %v19 = vld [vmem:[%s0 + $0x20] sm:$0xff]
    %v20 = vld [vmem:[%s0 + $0x28] sm:$0xff]
    %v21 = vld [vmem:[%s0 + $0x30] sm:$0xff]
    %v22 = vld [vmem:[%s0 + $0x38] sm:$0xff]
    %v23 = vld [vmem:[%s0 + $0x40] sm:$0xff]
    %v24 = vld [vmem:[%s0 + $0x48] sm:$0xff]
    %v25 = vld [vmem:[%s0 + $0x50] sm:$0xff]
    %v26 = vld [vmem:[%s0 + $0x58] sm:$0xff]
    %v27 = vld [vmem:[%s0 + $0x60] sm:$0xff]
    %v28 = vld [vmem:[%s0 + $0x68] sm:$0xff]
    %v29 = vld [vmem:[%s0 + $0x70] sm:$0xff]
    %v30 = vld [vmem:[%s0 + $0x78] sm:$0xff]
    %v31 = vld [vmem:[%s0 + $0x80] sm:$0xff]
    %v32 = vld [vmem:[%s0 + $0x88] sm:$0xff]
    %v33 = vld [vmem:[%s0 + $0x90] sm:$0xff]
    %v34 = vld [vmem:[%s0 + $0x98] sm:$0xff]
    %v35 = vld [vmem:[%s0 + $0xa0] sm:$0xff]
    %v36 = vld [vmem:[%s0 + $0xa8] sm:$0xff]
    %v37 = vld [vmem:[%s0 + $0xb0] sm:$0xff]
    %v38 = vld [vmem:[%s0 + $0xb8] sm:$0xff]
    %v39 = vld [vmem:[%s0 + $0xc0] sm:$0xff]
    %v40 = vld [vmem:[%s0 + $0xc8] sm:$0xff]
    %v41 = vld [vmem:[%s0 + $0xd0] sm:$0xff]
    %v42 = vld [vmem:[%s0 + $0xd8] sm:$0xff]
    %v43 = vld [vmem:[%s0 + $0xe0] sm:$0xff]
    %v44 = vld [vmem:[%s0 + $0xe8] sm:$0xff]
    %v45 = vld [vmem:[%s0 + $0xf0] sm:$0xff]
    %v46 = vld [vmem:[%s0 + $0xf8] sm:$0xff]
    %v47 = vld [vmem:[%s0 + $0x100] sm:$0xff]
    %v48 = vld [vmem:[%s0 + $0x108] sm:$0xff]
    %v49 = vld [vmem:[%s0 + $0x110] sm:$0xff]
    %v50 = vld [vmem:[%s0 + $0x118] sm:$0xff]
    %v51 = vld [vmem:[%s0 + $0x120] sm:$0xff]
    %v52 = vld [vmem:[%s0 + $0x128] sm:$0xff]
    %v53 = vld [vmem:[%s0 + $0x130] sm:$0xff]
    %v54 = vld [vmem:[%s0 + $0x138] sm:$0xff]
    %v55 = vld [vmem:[%s0 + $0x140] sm:$0xff]
    %v56 = vld [vmem:[%s0 + $0x148] sm:$0xff]
    %v57 = vld [vmem:[%s0 + $0x150] sm:$0xff]
    %v58 = vld [vmem:[%s0 + $0x158] sm:$0xff]
    %v59 = vld [vmem:[%s0 + $0x160] sm:$0xff]
    %v60 = vld [vmem:[%s0 + $0x168] sm:$0xff]
    %v61 = vld [vmem:[%s0 + $0x170] sm:$0xff]
    %v62 = vld [vmem:[%s0 + $0x178] sm:$0xff]
    %v63 = vld [vmem:[%s0 + $0x180] sm:$0xff]
    %v64 = vld [vmem:[%s0 + $0x188] sm:$0xff]
    %v65 = vld [vmem:[%s0 + $0x190] sm:$0xff]
    %v66 = vld [vmem:[%s0 + $0x198] sm:$0xff]
    %v67 = vld [vmem:[%s0 + $0x1a0] sm:$0xff]
    %v68 = vld [vmem:[%s0 + $0x1a8] sm:$0xff]
    %v69 = vld [vmem:[%s0 + $0x1b0] sm:$0xff]
    %v70 = vld [vmem:[%s0 + $0x1b8] sm:$0xff]
    %v71 = vld [vmem:[%s0 + $0x1c0] sm:$0xff]
    %v72 = vld [vmem:[%s0 + $0x1c8] sm:$0xff]
    %v73 = vld [vmem:[%s0 + $0x1d0] sm:$0xff]
    %v74 = vld [vmem:[%s0 + $0x1d8] sm:$0xff]
    %v75 = vld [vmem:[%s0 + $0x1e0] sm:$0xff]
    %v76 = vld [vmem:[%s0 + $0x1e8] sm:$0xff]
    %v77 = vld [vmem:[%s0 + $0x1f0] sm:$0xff]
    %v78 = vld [vmem:[%s0 + $0x1f8] sm:$0xff]
    %v79 = vld [vmem:[%s0 + $0x200] sm:$0xff]
    %v80 = vld [vmem:[%s0 + $0x208] sm:$0xff]
    %v81 = vld [vmem:[%s0 + $0x210] sm:$0xff]
    %v82 = vld [vmem:[%s0 + $0x218] sm:$0xff]
    %v83 = vld [vmem:[%s0 + $0x220] sm:$0xff]
    %v84 = vld [vmem:[%s0 + $0x228] sm:$0xff]
    %v85 = vld [vmem:[%s0 + $0x230] sm:$0xff]
    %v86 = vld [vmem:[%s0 + $0x238] sm:$0xff]
    %v87 = vld [vmem:[%s0 + $0x240] sm:$0xff]
    %v88 = vld [vmem:[%s0 + $0x248] sm:$0xff]
    %v89 = vld [vmem:[%s0 + $0x250] sm:$0xff]
    %v90 = vld [vmem:[%s0 + $0x258] sm:$0xff]
    %v91 = vld [vmem:[%s0 + $0x260] sm:$0xff]
    %v92 = vld [vmem:[%s0 + $0x268] sm:$0xff]
    %v93 = vld [vmem:[%s0 + $0x270] sm:$0xff]
    %v94 = vld [vmem:[%s0 + $0x278] sm:$0xff]
    %v95 = vld [vmem:[%s0 + $0x280] sm:$0xff]
    %v96 = vld [vmem:[%s0 + $0x288] sm:$0xff]
    %v97 = vld [vmem:[%s0 + $0x290] sm:$0xff]
    %v98 = vld [vmem:[%s0 + $0x298] sm:$0xff]
    %v99 = vld [vmem:[%s0 + $0x2a0] sm:$0xff]
    %v100 = vld [vmem:[%s0 + $0x2a8] sm:$0xff]
    %v101 = vld [vmem:[%s0 + $0x2b0] sm:$0xff]
    %v102 = vld [vmem:[%s0 + $0x2b8] sm:$0xff]
    %v103 = vld [vmem:[%s0 + $0x2c0] sm:$0xff]
    %v104 = vld [vmem:[%s0 + $0x2c8] sm:$0xff]
    %v105 = vld [vmem:[%s0 + $0x2d0] sm:$0xff]
    %v106 = vld [vmem:[%s0 + $0x2d8] sm:$0xff]
    %v107 = vld [vmem:[%s0 + $0x2e0] sm:$0xff]
    %v108 = vld [vmem:[%s0 + $0x2e8] sm:$0xff]
    %v109 = vld [vmem:[%s0 + $0x2f0] sm:$0xff]
    %v110 = vld [vmem:[%s0 + $0x2f8] sm:$0xff]
    %v111 = vld [vmem:[%s0 + $0x300] sm:$0xff]
    %v112 = vld [vmem:[%s0 + $0x308] sm:$0xff]
    %v113 = vld [vmem:[%s0 + $0x310] sm:$0xff]
    %v114 = vld [vmem:[%s0 + $0x318] sm:$0xff]
    %v115 = vld [vmem:[%s0 + $0x320] sm:$0xff]
    %v116 = vld [vmem:[%s0 + $0x328] sm:$0xff]
    %v117 = vld [vmem:[%s0 + $0x330] sm:$0xff]
    %v118 = vld [vmem:[%s0 + $0x338] sm:$0xff]
    %v119 = vld [vmem:[%s0 + $0x340] sm:$0xff]
    %v120 = vld [vmem:[%s0 + $0x348] sm:$0xff]
    %v121 = vld [vmem:[%s0 + $0x350] sm:$0xff]
    %v122 = vld [vmem:[%s0 + $0x358] sm:$0xff]
    %v123 = vld [vmem:[%s0 + $0x360] sm:$0xff]
    %v124 = vld [vmem:[%s0 + $0x368] sm:$0xff]
    %v125 = vld [vmem:[%s0 + $0x370] sm:$0xff]
    %v126 = vld [vmem:[%s0 + $0x378] sm:$0xff]
    %v127 = vld [vmem:[%s0 + $0x380] sm:$0xff]
    %v128 = vld [vmem:[%s0 + $0x388] sm:$0xff]
    %v129 = vld [vmem:[%s0 + $0x390] sm:$0xff]
    %v130 = vld [vmem:[%s0 + $0x398] sm:$0xff]
    %v131 = vld [vmem:[%s0 + $0x3a0] sm:$0xff]
    %v132 = vld [vmem:[%s0 + $0x3a8] sm:$0xff]
    %v133 = vld [vmem:[%s0 + $0x3b0] sm:$0xff]
    %v134 = vld [vmem:[%s0 + $0x3b8] sm:$0xff]
    %v135 = vld [vmem:[%s0 + $0x3c0] sm:$0xff]
    %v136 = vld [vmem:[%s0 + $0x3c8] sm:$0xff]
    %v137 = vld [vmem:[%s0 + $0x3d0] sm:$0xff]
    %v138 = vld [vmem:[%s0 + $0x3d8] sm:$0xff]
    %v139 = vld [vmem:[%s0 + $0x3e0] sm:$0xff]
    %v140 = vld [vmem:[%s0 + $0x3e8] sm:$0xff]
    %v141 = vld [vmem:[%s0 + $0x3f0] sm:$0xff]
    %v142 = vld [vmem:[%s0 + $0x3f8] sm:$0xff]
    %v143 = vld [vmem:[%s0 + $0x400] sm:$0xff]
    %v144 = vld [vmem:[%s0 + $0x408] sm:$0xff]
    %v145 = vld [vmem:[%s0 + $0x410] sm:$0xff]
    %v146 = vld [vmem:[%s0 + $0x418] sm:$0xff]
    %v147 = vld [vmem:[%s0 + $0x420] sm:$0xff]
    %v148 = vld [vmem:[%s0 + $0x428] sm:$0xff]
    %v149 = vld [vmem:[%s0 + $0x430] sm:$0xff]
    %v150 = vld [vmem:[%s0 + $0x438] sm:$0xff]
    %v151 = vld [vmem:[%s0 + $0x440] sm:$0xff]
    %v152 = vld [vmem:[%s0 + $0x448] sm:$0xff]
    %v153 = vld [vmem:[%s0 + $0x450] sm:$0xff]
    %v154 = vld [vmem:[%s0 + $0x458] sm:$0xff]
    %v155 = vld [vmem:[%s0 + $0x460] sm:$0xff]
    %v156 = vld [vmem:[%s0 + $0x468] sm:$0xff]
    %v157 = vld [vmem:[%s0 + $0x470] sm:$0xff]
    %v158 = vld [vmem:[%s0 + $0x478] sm:$0xff]
    %v159 = vld [vmem:[%s0 + $0x480] sm:$0xff]
    %v160 = vld [vmem:[%s0 + $0x488] sm:$0xff]
    %v161 = vld [vmem:[%s0 + $0x490] sm:$0xff]
    %v162 = vld [vmem:[%s0 + $0x498] sm:$0xff]
    %v163 = vld [vmem:[%s0 + $0x4a0] sm:$0xff]
    %v164 = vld [vmem:[%s0 + $0x4a8] sm:$0xff]
    %v165 = vld [vmem:[%s0 + $0x4b0] sm:$0xff]
    %v166 = vld [vmem:[%s0 + $0x4b8] sm:$0xff]
    %v167 = vld [vmem:[%s0 + $0x4c0] sm:$0xff]
    %v168 = vld [vmem:[%s0 + $0x4c8] sm:$0xff]
    %v169 = vld [vmem:[%s0 + $0x4d0] sm:$0xff]
    %v170 = vld [vmem:[%s0 + $0x4d8] sm:$0xff]
    %v171 = vld [vmem:[%s0 + $0x4e0] sm:$0xff]
    %v172 = vld [vmem:[%s0 + $0x4e8] sm:$0xff]
    %v173 = vld [vmem:[%s0 + $0x4f0] sm:$0xff]
    %v174 = vld [vmem:[%s0 + $0x4f8] sm:$0xff]
    %v175 = vld [vmem:[%s0 + $0x500] sm:$0xff]
    %v176 = vld [vmem:[%s0 + $0x508] sm:$0xff]
    %v177 = vld [vmem:[%s0 + $0x510] sm:$0xff]
    %v178 = vld [vmem:[%s0 + $0x518] sm:$0xff]
    %v179 = vld [vmem:[%s0 + $0x520] sm:$0xff]
    %v180 = vld [vmem:[%s0 + $0x528] sm:$0xff]
    %v181 = vld [vmem:[%s0 + $0x530] sm:$0xff]
    %v182 = vld [vmem:[%s0 + $0x538] sm:$0xff]
    %v183 = vld [vmem:[%s0 + $0x540] sm:$0xff]
    %v184 = vld [vmem:[%s0 + $0x548] sm:$0xff]
    %v185 = vld [vmem:[%s0 + $0x550] sm:$0xff]
    %v186 = vld [vmem:[%s0 + $0x558] sm:$0xff]
    %v187 = vld [vmem:[%s0 + $0x560] sm:$0xff]
    %v188 = vld [vmem:[%s0 + $0x568] sm:$0xff]
    %v189 = vld [vmem:[%s0 + $0x570] sm:$0xff]
    %v190 = vld [vmem:[%s0 + $0x578] sm:$0xff]
    %v191 = vld [vmem:[%s0 + $0x580] sm:$0xff]
    %v192 = vld [vmem:[%s0 + $0x588] sm:$0xff]
    %v193 = vld [vmem:[%s0 + $0x590] sm:$0xff]
    %v194 = vld [vmem:[%s0 + $0x598] sm:$0xff]
    %v195 = vld [vmem:[%s0 + $0x5a0] sm:$0xff]
    %v196 = vld [vmem:[%s0 + $0x5a8] sm:$0xff]
    %v197 = vld [vmem:[%s0 + $0x5b0] sm:$0xff]
    %v198 = vld [vmem:[%s0 + $0x5b8] sm:$0xff]
    %v199 = vld [vmem:[%s0 + $0x5c0] sm:$0xff]
    %v200 = vld [vmem:[%s0 + $0x5c8] sm:$0xff]
    %v201 = vld [vmem:[%s0 + $0x5d0] sm:$0xff]
    %v202 = vld [vmem:[%s0 + $0x5d8] sm:$0xff]
    %v203 = vld [vmem:[%s0 + $0x5e0] sm:$0xff]
    %v204 = vld [vmem:[%s0 + $0x5e8] sm:$0xff]
    %v205 = vld [vmem:[%s0 + $0x5f0] sm:$0xff]
    %v206 = vld [vmem:[%s0 + $0x5f8] sm:$0xff]
    %v207 = vld [vmem:[%s0 + $0x600] sm:$0xff]
    %v208 = vld [vmem:[%s0 + $0x608] sm:$0xff]
    %v209 = vld [vmem:[%s0 + $0x610] sm:$0xff]
    %v210 = vld [vmem:[%s0 + $0x618] sm:$0xff]
    %v211 = vld [vmem:[%s0 + $0x620] sm:$0xff]
    %v212 = vld [vmem:[%s0 + $0x628] sm:$0xff]
    %v213 = vld [vmem:[%s0 + $0x630] sm:$0xff]
    %v214 = vld [vmem:[%s0 + $0x638] sm:$0xff]
    %v215 = vld [vmem:[%s0 + $0x640] sm:$0xff]
    %v216 = vld [vmem:[%s0 + $0x648] sm:$0xff]
    %v217 = vld [vmem:[%s0 + $0x650] sm:$0xff]
    %v218 = vld [vmem:[%s0 + $0x658] sm:$0xff]
    %v219 = vld [vmem:[%s0 + $0x660] sm:$0xff]
    %v220 = vld [vmem:[%s0 + $0x668] sm:$0xff]
    %v221 = vld [vmem:[%s0 + $0x670] sm:$0xff]
    %v222 = vld [vmem:[%s0 + $0x678] sm:$0xff]
    %v223 = vld [vmem:[%s0 + $0x680] sm:$0xff]
    %v224 = vld [vmem:[%s0 + $0x688] sm:$0xff]
    %v225 = vld [vmem:[%s0 + $0x690] sm:$0xff]
    %v226 = vld [vmem:[%s0 + $0x698] sm:$0xff]
    %v227 = vld [vmem:[%s0 + $0x6a0] sm:$0xff]
    %v228 = vld [vmem:[%s0 + $0x6a8] sm:$0xff]
    %v229 = vld [vmem:[%s0 + $0x6b0] sm:$0xff]
    %v230 = vld [vmem:[%s0 + $0x6b8] sm:$0xff]
    %v231 = vld [vmem:[%s0 + $0x6c0] sm:$0xff]
    %v232 = vld [vmem:[%s0 + $0x6c8] sm:$0xff]
    %v233 = vld [vmem:[%s0 + $0x6d0] sm:$0xff]
    %v234 = vld [vmem:[%s0 + $0x6d8] sm:$0xff]
    %v235 = vld [vmem:[%s0 + $0x6e0] sm:$0xff]
    %v236 = vld [vmem:[%s0 + $0x6e8] sm:$0xff]
    %v237 = vld [vmem:[%s0 + $0x6f0] sm:$0xff]
    %v238 = vld [vmem:[%s0 + $0x6f8] sm:$0xff]
    %v239 = vld [vmem:[%s0 + $0x700] sm:$0xff]
    %v240 = vld [vmem:[%s0 + $0x708] sm:$0xff]
    %v241 = vld [vmem:[%s0 + $0x710] sm:$0xff]
    %v242 = vld [vmem:[%s0 + $0x718] sm:$0xff]
    %v243 = vld [vmem:[%s0 + $0x720] sm:$0xff]
    %v244 = vld [vmem:[%s0 + $0x728] sm:$0xff]
    %v245 = vld [vmem:[%s0 + $0x730] sm:$0xff]
    %v246 = vld [vmem:[%s0 + $0x738] sm:$0xff]
    %v247 = vld [vmem:[%s0 + $0x740] sm:$0xff]
    %v248 = vld [vmem:[%s0 + $0x748] sm:$0xff]
    %v249 = vld [vmem:[%s0 + $0x750] sm:$0xff]
    %v250 = vld [vmem:[%s0 + $0x758] sm:$0xff]
    %v251 = vld [vmem:[%s0 + $0x760] sm:$0xff]
    %v252 = vld [vmem:[%s0 + $0x768] sm:$0xff]
    %v253 = vld [vmem:[%s0 + $0x770] sm:$0xff]
    %v254 = vld [vmem:[%s0 + $0x778] sm:$0xff]
    %v255 = vld [vmem:[%s0 + $0x780] sm:$0xff]
    %v256 = vld [vmem:[%s0 + $0x788] sm:$0xff]
    %v257 = vld [vmem:[%s0 + $0x790] sm:$0xff]
    %v258 = vld [vmem:[%s0 + $0x798] sm:$0xff]
    %v259 = vld [vmem:[%s0 + $0x7a0] sm:$0xff]
    %v260 = vld [vmem:[%s0 + $0x7a8] sm:$0xff]
    %v261 = vld [vmem:[%s0 + $0x7b0] sm:$0xff]
    %v262 = vld [vmem:[%s0 + $0x7b8] sm:$0xff]
    %v263 = vld [vmem:[%s0 + $0x7c0] sm:$0xff]
    %v264 = vld [vmem:[%s0 + $0x7c8] sm:$0xff]
    %v265 = vld [vmem:[%s0 + $0x7d0] sm:$0xff]
    %v266 = vld [vmem:[%s0 + $0x7d8] sm:$0xff]
    %v267 = vld [vmem:[%s0 + $0x7e0] sm:$0xff]
    %v268 = vld [vmem:[%s0 + $0x7e8] sm:$0xff]
    %v269 = vld [vmem:[%s0 + $0x7f0] sm:$0xff]
    %v270 = vld [vmem:[%s0 + $0x7f8] sm:$0xff]
    %v271 = vmul.f32 %v15, 3.0
    %v272 = vmul.f32 %v16, 3.0
    %v273 = vmul.f32 %v17, 3.0
    %v274 = vmul.f32 %v18, 3.0
    %v275 = vmul.f32 %v19, 3.0
    %v276 = vmul.f32 %v20, 3.0
    %v277 = vmul.f32 %v21, 3.0
    %v278 = vmul.f32 %v22, 3.0
    %v279 = vmul.f32 %v23, 3.0
    %v280 = vmul.f32 %v24, 3.0
    %v281 = vmul.f32 %v25, 3.0
    %v282 = vmul.f32 %v26, 3.0
    %v283 = vmul.f32 %v27, 3.0
    %v284 = vmul.f32 %v28, 3.0
    %v285 = vmul.f32 %v29, 3.0
    %v286 = vmul.f32 %v30, 3.0
    %v287 = vmul.f32 %v31, 3.0
    %v288 = vmul.f32 %v32, 3.0
    %v289 = vmul.f32 %v33, 3.0
    %v290 = vmul.f32 %v34, 3.0
    %v291 = vmul.f32 %v35, 3.0
    %v292 = vmul.f32 %v36, 3.0
    %v293 = vmul.f32 %v37, 3.0
    %v294 = vmul.f32 %v38, 3.0
    %v295 = vmul.f32 %v39, 3.0
    %v296 = vmul.f32 %v40, 3.0
    %v297 = vmul.f32 %v41, 3.0
    %v298 = vmul.f32 %v42, 3.0
    %v299 = vmul.f32 %v43, 3.0
    %v300 = vmul.f32 %v44, 3.0
    %v301 = vmul.f32 %v45, 3.0
    %v302 = vmul.f32 %v46, 3.0
    %v303 = vmul.f32 %v47, 3.0
    %v304 = vmul.f32 %v48, 3.0
    %v305 = vmul.f32 %v49, 3.0
    %v306 = vmul.f32 %v50, 3.0
    %v307 = vmul.f32 %v51, 3.0
    %v308 = vmul.f32 %v52, 3.0
    %v309 = vmul.f32 %v53, 3.0
    %v310 = vmul.f32 %v54, 3.0
    %v311 = vmul.f32 %v55, 3.0
    %v312 = vmul.f32 %v56, 3.0
    %v313 = vmul.f32 %v57, 3.0
    %v314 = vmul.f32 %v58, 3.0
    %v315 = vmul.f32 %v59, 3.0
    %v316 = vmul.f32 %v60, 3.0
    %v317 = vmul.f32 %v61, 3.0
    %v318 = vmul.f32 %v62, 3.0
    %v319 = vmul.f32 %v63, 3.0
    %v320 = vmul.f32 %v64, 3.0
    %v321 = vmul.f32 %v65, 3.0
    %v322 = vmul.f32 %v66, 3.0
    %v323 = vmul.f32 %v67, 3.0
    %v324 = vmul.f32 %v68, 3.0
    %v325 = vmul.f32 %v69, 3.0
    %v326 = vmul.f32 %v70, 3.0
    %v327 = vmul.f32 %v71, 3.0
    %v328 = vmul.f32 %v72, 3.0
    %v329 = vmul.f32 %v73, 3.0
    %v330 = vmul.f32 %v74, 3.0
    %v331 = vmul.f32 %v75, 3.0
    %v332 = vmul.f32 %v76, 3.0
    %v333 = vmul.f32 %v77, 3.0
    %v334 = vmul.f32 %v78, 3.0
    %v335 = vmul.f32 %v79, 3.0
    %v336 = vmul.f32 %v80, 3.0
    %v337 = vmul.f32 %v81, 3.0
    %v338 = vmul.f32 %v82, 3.0
    %v339 = vmul.f32 %v83, 3.0
    %v340 = vmul.f32 %v84, 3.0
    %v341 = vmul.f32 %v85, 3.0
    %v342 = vmul.f32 %v86, 3.0
    %v343 = vmul.f32 %v87, 3.0
    %v344 = vmul.f32 %v88, 3.0
    %v345 = vmul.f32 %v89, 3.0
    %v346 = vmul.f32 %v90, 3.0
    %v347 = vmul.f32 %v91, 3.0
    %v348 = vmul.f32 %v92, 3.0
    %v349 = vmul.f32 %v93, 3.0
    %v350 = vmul.f32 %v94, 3.0
    %v351 = vmul.f32 %v95, 3.0
    %v352 = vmul.f32 %v96, 3.0
    %v353 = vmul.f32 %v97, 3.0
    %v354 = vmul.f32 %v98, 3.0
    %v355 = vmul.f32 %v99, 3.0
    %v356 = vmul.f32 %v100, 3.0
    %v357 = vmul.f32 %v101, 3.0
    %v358 = vmul.f32 %v102, 3.0
    %v359 = vmul.f32 %v103, 3.0
    %v360 = vmul.f32 %v104, 3.0
    %v361 = vmul.f32 %v105, 3.0
    %v362 = vmul.f32 %v106, 3.0
    %v363 = vmul.f32 %v107, 3.0
    %v364 = vmul.f32 %v108, 3.0
    %v365 = vmul.f32 %v109, 3.0
    %v366 = vmul.f32 %v110, 3.0
    %v367 = vmul.f32 %v111, 3.0
    %v368 = vmul.f32 %v112, 3.0
    %v369 = vmul.f32 %v113, 3.0
    %v370 = vmul.f32 %v114, 3.0
    %v371 = vmul.f32 %v115, 3.0
    %v372 = vmul.f32 %v116, 3.0
    %v373 = vmul.f32 %v117, 3.0
    %v374 = vmul.f32 %v118, 3.0
    %v375 = vmul.f32 %v119, 3.0
    %v376 = vmul.f32 %v120, 3.0
    %v377 = vmul.f32 %v121, 3.0
    %v378 = vmul.f32 %v122, 3.0
    %v379 = vmul.f32 %v123, 3.0
    %v380 = vmul.f32 %v124, 3.0
    %v381 = vmul.f32 %v125, 3.0
    %v382 = vmul.f32 %v126, 3.0
    %v383 = vmul.f32 %v127, 3.0
    %v384 = vmul.f32 %v128, 3.0
    %v385 = vmul.f32 %v129, 3.0
    %v386 = vmul.f32 %v130, 3.0
    %v387 = vmul.f32 %v131, 3.0
    %v388 = vmul.f32 %v132, 3.0
    %v389 = vmul.f32 %v133, 3.0
    %v390 = vmul.f32 %v134, 3.0
    %v391 = vmul.f32 %v135, 3.0
    %v392 = vmul.f32 %v136, 3.0
    %v393 = vmul.f32 %v137, 3.0
    %v394 = vmul.f32 %v138, 3.0
    %v395 = vmul.f32 %v139, 3.0
    %v396 = vmul.f32 %v140, 3.0
    %v397 = vmul.f32 %v141, 3.0
    %v398 = vmul.f32 %v142, 3.0
    %v399 = vmul.f32 %v143, 3.0
    %v400 = vmul.f32 %v144, 3.0
    %v401 = vmul.f32 %v145, 3.0
    %v402 = vmul.f32 %v146, 3.0
    %v403 = vmul.f32 %v147, 3.0
    %v404 = vmul.f32 %v148, 3.0
    %v405 = vmul.f32 %v149, 3.0
    %v406 = vmul.f32 %v150, 3.0
    %v407 = vmul.f32 %v151, 3.0
    %v408 = vmul.f32 %v152, 3.0
    %v409 = vmul.f32 %v153, 3.0
    %v410 = vmul.f32 %v154, 3.0
    %v411 = vmul.f32 %v155, 3.0
    %v412 = vmul.f32 %v156, 3.0
    %v413 = vmul.f32 %v157, 3.0
    %v414 = vmul.f32 %v158, 3.0
    %v415 = vmul.f32 %v159, 3.0
    %v416 = vmul.f32 %v160, 3.0
    %v417 = vmul.f32 %v161, 3.0
    %v418 = vmul.f32 %v162, 3.0
    %v419 = vmul.f32 %v163, 3.0
    %v420 = vmul.f32 %v164, 3.0
    %v421 = vmul.f32 %v165, 3.0
    %v422 = vmul.f32 %v166, 3.0
    %v423 = vmul.f32 %v167, 3.0
    %v424 = vmul.f32 %v168, 3.0
    %v425 = vmul.f32 %v169, 3.0
    %v426 = vmul.f32 %v170, 3.0
    %v427 = vmul.f32 %v171, 3.0
    %v428 = vmul.f32 %v172, 3.0
    %v429 = vmul.f32 %v173, 3.0
    %v430 = vmul.f32 %v174, 3.0
    %v431 = vmul.f32 %v175, 3.0
    %v432 = vmul.f32 %v176, 3.0
    %v433 = vmul.f32 %v177, 3.0
    %v434 = vmul.f32 %v178, 3.0
    %v435 = vmul.f32 %v179, 3.0
    %v436 = vmul.f32 %v180, 3.0
    %v437 = vmul.f32 %v181, 3.0
    %v438 = vmul.f32 %v182, 3.0
    %v439 = vmul.f32 %v183, 3.0
    %v440 = vmul.f32 %v184, 3.0
    %v441 = vmul.f32 %v185, 3.0
    %v442 = vmul.f32 %v186, 3.0
    %v443 = vmul.f32 %v187, 3.0
    %v444 = vmul.f32 %v188, 3.0
    %v445 = vmul.f32 %v189, 3.0
    %v446 = vmul.f32 %v190, 3.0
    %v447 = vmul.f32 %v191, 3.0
    %v448 = vmul.f32 %v192, 3.0
    %v449 = vmul.f32 %v193, 3.0
    %v450 = vmul.f32 %v194, 3.0
    %v451 = vmul.f32 %v195, 3.0
    %v452 = vmul.f32 %v196, 3.0
    %v453 = vmul.f32 %v197, 3.0
    %v454 = vmul.f32 %v198, 3.0
    %v455 = vmul.f32 %v199, 3.0
    %v456 = vmul.f32 %v200, 3.0
    %v457 = vmul.f32 %v201, 3.0
    %v458 = vmul.f32 %v202, 3.0
    %v459 = vmul.f32 %v203, 3.0
    %v460 = vmul.f32 %v204, 3.0
    %v461 = vmul.f32 %v205, 3.0
    %v462 = vmul.f32 %v206, 3.0
    %v463 = vmul.f32 %v207, 3.0
    %v464 = vmul.f32 %v208, 3.0
    %v465 = vmul.f32 %v209, 3.0
    %v466 = vmul.f32 %v210, 3.0
    %v467 = vmul.f32 %v211, 3.0
    %v468 = vmul.f32 %v212, 3.0
    %v469 = vmul.f32 %v213, 3.0
    %v470 = vmul.f32 %v214, 3.0
    %v471 = vmul.f32 %v215, 3.0
    %v472 = vmul.f32 %v216, 3.0
    %v473 = vmul.f32 %v217, 3.0
    %v474 = vmul.f32 %v218, 3.0
    %v475 = vmul.f32 %v219, 3.0
    %v476 = vmul.f32 %v220, 3.0
    %v477 = vmul.f32 %v221, 3.0
    %v478 = vmul.f32 %v222, 3.0
    %v479 = vmul.f32 %v223, 3.0
    %v480 = vmul.f32 %v224, 3.0
    %v481 = vmul.f32 %v225, 3.0
    %v482 = vmul.f32 %v226, 3.0
    %v483 = vmul.f32 %v227, 3.0
    %v484 = vmul.f32 %v228, 3.0
    %v485 = vmul.f32 %v229, 3.0
    %v486 = vmul.f32 %v230, 3.0
    %v487 = vmul.f32 %v231, 3.0
    %v488 = vmul.f32 %v232, 3.0
    %v489 = vmul.f32 %v233, 3.0
    %v490 = vmul.f32 %v234, 3.0
    %v491 = vmul.f32 %v235, 3.0
    %v492 = vmul.f32 %v236, 3.0
    %v493 = vmul.f32 %v237, 3.0
    %v494 = vmul.f32 %v238, 3.0
    %v495 = vmul.f32 %v239, 3.0
    %v496 = vmul.f32 %v240, 3.0
    %v497 = vmul.f32 %v241, 3.0
    %v498 = vmul.f32 %v242, 3.0
    %v499 = vmul.f32 %v243, 3.0
    %v500 = vmul.f32 %v244, 3.0
    %v501 = vmul.f32 %v245, 3.0
    %v502 = vmul.f32 %v246, 3.0
    %v503 = vmul.f32 %v247, 3.0
    %v504 = vmul.f32 %v248, 3.0
    %v505 = vmul.f32 %v249, 3.0
    %v506 = vmul.f32 %v250, 3.0
    %v507 = vmul.f32 %v251, 3.0
    %v508 = vmul.f32 %v252, 3.0
    %v509 = vmul.f32 %v253, 3.0
    %v510 = vmul.f32 %v254, 3.0
    %v511 = vmul.f32 %v255, 3.0
    %v512 = vmul.f32 %v256, 3.0
    %v513 = vmul.f32 %v257, 3.0
    %v514 = vmul.f32 %v258, 3.0
    %v515 = vmul.f32 %v259, 3.0
    %v516 = vmul.f32 %v260, 3.0
    %v517 = vmul.f32 %v261, 3.0
    %v518 = vmul.f32 %v262, 3.0
    %v519 = vmul.f32 %v263, 3.0
    %v520 = vmul.f32 %v264, 3.0
    %v521 = vmul.f32 %v265, 3.0
    %v522 = vmul.f32 %v266, 3.0
    %v523 = vmul.f32 %v267, 3.0
    %v524 = vmul.f32 %v268, 3.0
    %v525 = vmul.f32 %v269, 3.0
    %v526 = vmul.f32 %v270, 3.0
    %v527 = vmax.f32 %v271, 0.0
    %v528 = vmax.f32 %v272, 0.0
    %v529 = vmax.f32 %v273, 0.0
    %v530 = vmax.f32 %v274, 0.0
    %v531 = vmax.f32 %v275, 0.0
    %v532 = vmax.f32 %v276, 0.0
    %v533 = vmax.f32 %v277, 0.0
    %v534 = vmax.f32 %v278, 0.0
    %v535 = vmax.f32 %v279, 0.0
    %v536 = vmax.f32 %v280, 0.0
    %v537 = vmax.f32 %v281, 0.0
    %v538 = vmax.f32 %v282, 0.0
    %v539 = vmax.f32 %v283, 0.0
    %v540 = vmax.f32 %v284, 0.0
    %v541 = vmax.f32 %v285, 0.0
    %v542 = vmax.f32 %v286, 0.0
    %v543 = vmax.f32 %v287, 0.0
    %v544 = vmax.f32 %v288, 0.0
    %v545 = vmax.f32 %v289, 0.0
    %v546 = vmax.f32 %v290, 0.0
    %v547 = vmax.f32 %v291, 0.0
    %v548 = vmax.f32 %v292, 0.0
    %v549 = vmax.f32 %v293, 0.0
    %v550 = vmax.f32 %v294, 0.0
    %v551 = vmax.f32 %v295, 0.0
    %v552 = vmax.f32 %v296, 0.0
    %v553 = vmax.f32 %v297, 0.0
    %v554 = vmax.f32 %v298, 0.0
    %v555 = vmax.f32 %v299, 0.0
    %v556 = vmax.f32 %v300, 0.0
    %v557 = vmax.f32 %v301, 0.0
    %v558 = vmax.f32 %v302, 0.0
    %v559 = vmax.f32 %v303, 0.0
    %v560 = vmax.f32 %v304, 0.0
    %v561 = vmax.f32 %v305, 0.0
    %v562 = vmax.f32 %v306, 0.0
    %v563 = vmax.f32 %v307, 0.0
    %v564 = vmax.f32 %v308, 0.0
    %v565 = vmax.f32 %v309, 0.0
    %v566 = vmax.f32 %v310, 0.0
    %v567 = vmax.f32 %v311, 0.0
    %v568 = vmax.f32 %v312, 0.0
    %v569 = vmax.f32 %v313, 0.0
    %v570 = vmax.f32 %v314, 0.0
    %v571 = vmax.f32 %v315, 0.0
    %v572 = vmax.f32 %v316, 0.0
    %v573 = vmax.f32 %v317, 0.0
    %v574 = vmax.f32 %v318, 0.0
    %v575 = vmax.f32 %v319, 0.0
    %v576 = vmax.f32 %v320, 0.0
    %v577 = vmax.f32 %v321, 0.0
    %v578 = vmax.f32 %v322, 0.0
    %v579 = vmax.f32 %v323, 0.0
    %v580 = vmax.f32 %v324, 0.0
    %v581 = vmax.f32 %v325, 0.0
    %v582 = vmax.f32 %v326, 0.0
    %v583 = vmax.f32 %v327, 0.0
    %v584 = vmax.f32 %v328, 0.0
    %v585 = vmax.f32 %v329, 0.0
    %v586 = vmax.f32 %v330, 0.0
    %v587 = vmax.f32 %v331, 0.0
    %v588 = vmax.f32 %v332, 0.0
    %v589 = vmax.f32 %v333, 0.0
    %v590 = vmax.f32 %v334, 0.0
    %v591 = vmax.f32 %v335, 0.0
    %v592 = vmax.f32 %v336, 0.0
    %v593 = vmax.f32 %v337, 0.0
    %v594 = vmax.f32 %v338, 0.0
    %v595 = vmax.f32 %v339, 0.0
    %v596 = vmax.f32 %v340, 0.0
    %v597 = vmax.f32 %v341, 0.0
    %v598 = vmax.f32 %v342, 0.0
    %v599 = vmax.f32 %v343, 0.0
    %v600 = vmax.f32 %v344, 0.0
    %v601 = vmax.f32 %v345, 0.0
    %v602 = vmax.f32 %v346, 0.0
    %v603 = vmax.f32 %v347, 0.0
    %v604 = vmax.f32 %v348, 0.0
    %v605 = vmax.f32 %v349, 0.0
    %v606 = vmax.f32 %v350, 0.0
    %v607 = vmax.f32 %v351, 0.0
    %v608 = vmax.f32 %v352, 0.0
    %v609 = vmax.f32 %v353, 0.0
    %v610 = vmax.f32 %v354, 0.0
    %v611 = vmax.f32 %v355, 0.0
    %v612 = vmax.f32 %v356, 0.0
    %v613 = vmax.f32 %v357, 0.0
    %v614 = vmax.f32 %v358, 0.0
    %v615 = vmax.f32 %v359, 0.0
    %v616 = vmax.f32 %v360, 0.0
    %v617 = vmax.f32 %v361, 0.0
    %v618 = vmax.f32 %v362, 0.0
    %v619 = vmax.f32 %v363, 0.0
    %v620 = vmax.f32 %v364, 0.0
    %v621 = vmax.f32 %v365, 0.0
    %v622 = vmax.f32 %v366, 0.0
    %v623 = vmax.f32 %v367, 0.0
    %v624 = vmax.f32 %v368, 0.0
    %v625 = vmax.f32 %v369, 0.0
    %v626 = vmax.f32 %v370, 0.0
    %v627 = vmax.f32 %v371, 0.0
    %v628 = vmax.f32 %v372, 0.0
    %v629 = vmax.f32 %v373, 0.0
    %v630 = vmax.f32 %v374, 0.0
    %v631 = vmax.f32 %v375, 0.0
    %v632 = vmax.f32 %v376, 0.0
    %v633 = vmax.f32 %v377, 0.0
    %v634 = vmax.f32 %v378, 0.0
    %v635 = vmax.f32 %v379, 0.0
    %v636 = vmax.f32 %v380, 0.0
    %v637 = vmax.f32 %v381, 0.0
    %v638 = vmax.f32 %v382, 0.0
    %v639 = vmax.f32 %v383, 0.0
    %v640 = vmax.f32 %v384, 0.0
    %v641 = vmax.f32 %v385, 0.0
    %v642 = vmax.f32 %v386, 0.0
    %v643 = vmax.f32 %v387, 0.0
    %v644 = vmax.f32 %v388, 0.0
    %v645 = vmax.f32 %v389, 0.0
    %v646 = vmax.f32 %v390, 0.0
    %v647 = vmax.f32 %v391, 0.0
    %v648 = vmax.f32 %v392, 0.0
    %v649 = vmax.f32 %v393, 0.0
    %v650 = vmax.f32 %v394, 0.0
    %v651 = vmax.f32 %v395, 0.0
    %v652 = vmax.f32 %v396, 0.0
    %v653 = vmax.f32 %v397, 0.0
    %v654 = vmax.f32 %v398, 0.0
    %v655 = vmax.f32 %v399, 0.0
    %v656 = vmax.f32 %v400, 0.0
    %v657 = vmax.f32 %v401, 0.0
    %v658 = vmax.f32 %v402, 0.0
    %v659 = vmax.f32 %v403, 0.0
    %v660 = vmax.f32 %v404, 0.0
    %v661 = vmax.f32 %v405, 0.0
    %v662 = vmax.f32 %v406, 0.0
    %v663 = vmax.f32 %v407, 0.0
    %v664 = vmax.f32 %v408, 0.0
    %v665 = vmax.f32 %v409, 0.0
    %v666 = vmax.f32 %v410, 0.0
    %v667 = vmax.f32 %v411, 0.0
    %v668 = vmax.f32 %v412, 0.0
    %v669 = vmax.f32 %v413, 0.0
    %v670 = vmax.f32 %v414, 0.0
    %v671 = vmax.f32 %v415, 0.0
    %v672 = vmax.f32 %v416, 0.0
    %v673 = vmax.f32 %v417, 0.0
    %v674 = vmax.f32 %v418, 0.0
    %v675 = vmax.f32 %v419, 0.0
    %v676 = vmax.f32 %v420, 0.0
    %v677 = vmax.f32 %v421, 0.0
    %v678 = vmax.f32 %v422, 0.0
    %v679 = vmax.f32 %v423, 0.0
    %v680 = vmax.f32 %v424, 0.0
    %v681 = vmax.f32 %v425, 0.0
    %v682 = vmax.f32 %v426, 0.0
    %v683 = vmax.f32 %v427, 0.0
    %v684 = vmax.f32 %v428, 0.0
    %v685 = vmax.f32 %v429, 0.0
    %v686 = vmax.f32 %v430, 0.0
    %v687 = vmax.f32 %v431, 0.0
    %v688 = vmax.f32 %v432, 0.0
    %v689 = vmax.f32 %v433, 0.0
    %v690 = vmax.f32 %v434, 0.0
    %v691 = vmax.f32 %v435, 0.0
    %v692 = vmax.f32 %v436, 0.0
    %v693 = vmax.f32 %v437, 0.0
    %v694 = vmax.f32 %v438, 0.0
    %v695 = vmax.f32 %v439, 0.0
    %v696 = vmax.f32 %v440, 0.0
    %v697 = vmax.f32 %v441, 0.0
    %v698 = vmax.f32 %v442, 0.0
    %v699 = vmax.f32 %v443, 0.0
    %v700 = vmax.f32 %v444, 0.0
    %v701 = vmax.f32 %v445, 0.0
    %v702 = vmax.f32 %v446, 0.0
    %v703 = vmax.f32 %v447, 0.0
    %v704 = vmax.f32 %v448, 0.0
    %v705 = vmax.f32 %v449, 0.0
    %v706 = vmax.f32 %v450, 0.0
    %v707 = vmax.f32 %v451, 0.0
    %v708 = vmax.f32 %v452, 0.0
    %v709 = vmax.f32 %v453, 0.0
    %v710 = vmax.f32 %v454, 0.0
    %v711 = vmax.f32 %v455, 0.0
    %v712 = vmax.f32 %v456, 0.0
    %v713 = vmax.f32 %v457, 0.0
    %v714 = vmax.f32 %v458, 0.0
    %v715 = vmax.f32 %v459, 0.0
    %v716 = vmax.f32 %v460, 0.0
    %v717 = vmax.f32 %v461, 0.0
    %v718 = vmax.f32 %v462, 0.0
    %v719 = vmax.f32 %v463, 0.0
    %v720 = vmax.f32 %v464, 0.0
    %v721 = vmax.f32 %v465, 0.0
    %v722 = vmax.f32 %v466, 0.0
    %v723 = vmax.f32 %v467, 0.0
    %v724 = vmax.f32 %v468, 0.0
    %v725 = vmax.f32 %v469, 0.0
    %v726 = vmax.f32 %v470, 0.0
    %v727 = vmax.f32 %v471, 0.0
    %v728 = vmax.f32 %v472, 0.0
    %v729 = vmax.f32 %v473, 0.0
    %v730 = vmax.f32 %v474, 0.0
    %v731 = vmax.f32 %v475, 0.0
    %v732 = vmax.f32 %v476, 0.0
    %v733 = vmax.f32 %v477, 0.0
    %v734 = vmax.f32 %v478, 0.0
    %v735 = vmax.f32 %v479, 0.0
    %v736 = vmax.f32 %v480, 0.0
    %v737 = vmax.f32 %v481, 0.0
    %v738 = vmax.f32 %v482, 0.0
    %v739 = vmax.f32 %v483, 0.0
    %v740 = vmax.f32 %v484, 0.0
    %v741 = vmax.f32 %v485, 0.0
    %v742 = vmax.f32 %v486, 0.0
    %v743 = vmax.f32 %v487, 0.0
    %v744 = vmax.f32 %v488, 0.0
    %v745 = vmax.f32 %v489, 0.0
    %v746 = vmax.f32 %v490, 0.0
    %v747 = vmax.f32 %v491, 0.0
    %v748 = vmax.f32 %v492, 0.0
    %v749 = vmax.f32 %v493, 0.0
    %v750 = vmax.f32 %v494, 0.0
    %v751 = vmax.f32 %v495, 0.0
    %v752 = vmax.f32 %v496, 0.0
    %v753 = vmax.f32 %v497, 0.0
    %v754 = vmax.f32 %v498, 0.0
    %v755 = vmax.f32 %v499, 0.0
    %v756 = vmax.f32 %v500, 0.0
    %v757 = vmax.f32 %v501, 0.0
    %v758 = vmax.f32 %v502, 0.0
    %v759 = vmax.f32 %v503, 0.0
    %v760 = vmax.f32 %v504, 0.0
    %v761 = vmax.f32 %v505, 0.0
    %v762 = vmax.f32 %v506, 0.0
    %v763 = vmax.f32 %v507, 0.0
    %v764 = vmax.f32 %v508, 0.0
    %v765 = vmax.f32 %v509, 0.0
    %v766 = vmax.f32 %v510, 0.0
    %v767 = vmax.f32 %v511, 0.0
    %v768 = vmax.f32 %v512, 0.0
    %v769 = vmax.f32 %v513, 0.0
    %v770 = vmax.f32 %v514, 0.0
    %v771 = vmax.f32 %v515, 0.0
    %v772 = vmax.f32 %v516, 0.0
    %v773 = vmax.f32 %v517, 0.0
    %v774 = vmax.f32 %v518, 0.0
    %v775 = vmax.f32 %v519, 0.0
    %v776 = vmax.f32 %v520, 0.0
    %v777 = vmax.f32 %v521, 0.0
    %v778 = vmax.f32 %v522, 0.0
    %v779 = vmax.f32 %v523, 0.0
    %v780 = vmax.f32 %v524, 0.0
    %v781 = vmax.f32 %v525, 0.0
    %v782 = vmax.f32 %v526, 0.0
    %v783 = vmin.f32 %v527, 3.0
    %v784 = vmin.f32 %v528, 3.0
    %v785 = vmin.f32 %v529, 3.0
    %v786 = vmin.f32 %v530, 3.0
    %v787 = vmin.f32 %v531, 3.0
    %v788 = vmin.f32 %v532, 3.0
    %v789 = vmin.f32 %v533, 3.0
    %v790 = vmin.f32 %v534, 3.0
    %v791 = vmin.f32 %v535, 3.0
    %v792 = vmin.f32 %v536, 3.0
    %v793 = vmin.f32 %v537, 3.0
    %v794 = vmin.f32 %v538, 3.0
    %v795 = vmin.f32 %v539, 3.0
    %v796 = vmin.f32 %v540, 3.0
    %v797 = vmin.f32 %v541, 3.0
    %v798 = vmin.f32 %v542, 3.0
    %v799 = vmin.f32 %v543, 3.0
    %v800 = vmin.f32 %v544, 3.0
    %v801 = vmin.f32 %v545, 3.0
    %v802 = vmin.f32 %v546, 3.0
    %v803 = vmin.f32 %v547, 3.0
    %v804 = vmin.f32 %v548, 3.0
    %v805 = vmin.f32 %v549, 3.0
    %v806 = vmin.f32 %v550, 3.0
    %v807 = vmin.f32 %v551, 3.0
    %v808 = vmin.f32 %v552, 3.0
    %v809 = vmin.f32 %v553, 3.0
    %v810 = vmin.f32 %v554, 3.0
    %v811 = vmin.f32 %v555, 3.0
    %v812 = vmin.f32 %v556, 3.0
    %v813 = vmin.f32 %v557, 3.0
    %v814 = vmin.f32 %v558, 3.0
    %v815 = vmin.f32 %v559, 3.0
    %v816 = vmin.f32 %v560, 3.0
    %v817 = vmin.f32 %v561, 3.0
    %v818 = vmin.f32 %v562, 3.0
    %v819 = vmin.f32 %v563, 3.0
    %v820 = vmin.f32 %v564, 3.0
    %v821 = vmin.f32 %v565, 3.0
    %v822 = vmin.f32 %v566, 3.0
    %v823 = vmin.f32 %v567, 3.0
    %v824 = vmin.f32 %v568, 3.0
    %v825 = vmin.f32 %v569, 3.0
    %v826 = vmin.f32 %v570, 3.0
    %v827 = vmin.f32 %v571, 3.0
    %v828 = vmin.f32 %v572, 3.0
    %v829 = vmin.f32 %v573, 3.0
    %v830 = vmin.f32 %v574, 3.0
    %v831 = vmin.f32 %v575, 3.0
    %v832 = vmin.f32 %v576, 3.0
    %v833 = vmin.f32 %v577, 3.0
    %v834 = vmin.f32 %v578, 3.0
    %v835 = vmin.f32 %v579, 3.0
    %v836 = vmin.f32 %v580, 3.0
    %v837 = vmin.f32 %v581, 3.0
    %v838 = vmin.f32 %v582, 3.0
    %v839 = vmin.f32 %v583, 3.0
    %v840 = vmin.f32 %v584, 3.0
    %v841 = vmin.f32 %v585, 3.0
    %v842 = vmin.f32 %v586, 3.0
    %v843 = vmin.f32 %v587, 3.0
    %v844 = vmin.f32 %v588, 3.0
    %v845 = vmin.f32 %v589, 3.0
    %v846 = vmin.f32 %v590, 3.0
    %v847 = vmin.f32 %v591, 3.0
    %v848 = vmin.f32 %v592, 3.0
    %v849 = vmin.f32 %v593, 3.0
    %v850 = vmin.f32 %v594, 3.0
    %v851 = vmin.f32 %v595, 3.0
    %v852 = vmin.f32 %v596, 3.0
    %v853 = vmin.f32 %v597, 3.0
    %v854 = vmin.f32 %v598, 3.0
    %v855 = vmin.f32 %v599, 3.0
    %v856 = vmin.f32 %v600, 3.0
    %v857 = vmin.f32 %v601, 3.0
    %v858 = vmin.f32 %v602, 3.0
    %v859 = vmin.f32 %v603, 3.0
    %v860 = vmin.f32 %v604, 3.0
    %v861 = vmin.f32 %v605, 3.0
    %v862 = vmin.f32 %v606, 3.0
    %v863 = vmin.f32 %v607, 3.0
    %v864 = vmin.f32 %v608, 3.0
    %v865 = vmin.f32 %v609, 3.0
    %v866 = vmin.f32 %v610, 3.0
    %v867 = vmin.f32 %v611, 3.0
    %v868 = vmin.f32 %v612, 3.0
    %v869 = vmin.f32 %v613, 3.0
    %v870 = vmin.f32 %v614, 3.0
    %v871 = vmin.f32 %v615, 3.0
    %v872 = vmin.f32 %v616, 3.0
    %v873 = vmin.f32 %v617, 3.0
    %v874 = vmin.f32 %v618, 3.0
    %v875 = vmin.f32 %v619, 3.0
    %v876 = vmin.f32 %v620, 3.0
    %v877 = vmin.f32 %v621, 3.0
    %v878 = vmin.f32 %v622, 3.0
    %v879 = vmin.f32 %v623, 3.0
    %v880 = vmin.f32 %v624, 3.0
    %v881 = vmin.f32 %v625, 3.0
    %v882 = vmin.f32 %v626, 3.0
    %v883 = vmin.f32 %v627, 3.0
    %v884 = vmin.f32 %v628, 3.0
    %v885 = vmin.f32 %v629, 3.0
    %v886 = vmin.f32 %v630, 3.0
    %v887 = vmin.f32 %v631, 3.0
    %v888 = vmin.f32 %v632, 3.0
    %v889 = vmin.f32 %v633, 3.0
    %v890 = vmin.f32 %v634, 3.0
    %v891 = vmin.f32 %v635, 3.0
    %v892 = vmin.f32 %v636, 3.0
    %v893 = vmin.f32 %v637, 3.0
    %v894 = vmin.f32 %v638, 3.0
    %v895 = vmin.f32 %v639, 3.0
    %v896 = vmin.f32 %v640, 3.0
    %v897 = vmin.f32 %v641, 3.0
    %v898 = vmin.f32 %v642, 3.0
    %v899 = vmin.f32 %v643, 3.0
    %v900 = vmin.f32 %v644, 3.0
    %v901 = vmin.f32 %v645, 3.0
    %v902 = vmin.f32 %v646, 3.0
    %v903 = vmin.f32 %v647, 3.0
    %v904 = vmin.f32 %v648, 3.0
    %v905 = vmin.f32 %v649, 3.0
    %v906 = vmin.f32 %v650, 3.0
    %v907 = vmin.f32 %v651, 3.0
    %v908 = vmin.f32 %v652, 3.0
    %v909 = vmin.f32 %v653, 3.0
    %v910 = vmin.f32 %v654, 3.0
    %v911 = vmin.f32 %v655, 3.0
    %v912 = vmin.f32 %v656, 3.0
    %v913 = vmin.f32 %v657, 3.0
    %v914 = vmin.f32 %v658, 3.0
    %v915 = vmin.f32 %v659, 3.0
    %v916 = vmin.f32 %v660, 3.0
    %v917 = vmin.f32 %v661, 3.0
    %v918 = vmin.f32 %v662, 3.0
    %v919 = vmin.f32 %v663, 3.0
    %v920 = vmin.f32 %v664, 3.0
    %v921 = vmin.f32 %v665, 3.0
    %v922 = vmin.f32 %v666, 3.0
    %v923 = vmin.f32 %v667, 3.0
    %v924 = vmin.f32 %v668, 3.0
    %v925 = vmin.f32 %v669, 3.0
    %v926 = vmin.f32 %v670, 3.0
    %v927 = vmin.f32 %v671, 3.0
    %v928 = vmin.f32 %v672, 3.0
    %v929 = vmin.f32 %v673, 3.0
    %v930 = vmin.f32 %v674, 3.0
    %v931 = vmin.f32 %v675, 3.0
    %v932 = vmin.f32 %v676, 3.0
    %v933 = vmin.f32 %v677, 3.0
    %v934 = vmin.f32 %v678, 3.0
    %v935 = vmin.f32 %v679, 3.0
    %v936 = vmin.f32 %v680, 3.0
    %v937 = vmin.f32 %v681, 3.0
    %v938 = vmin.f32 %v682, 3.0
    %v939 = vmin.f32 %v683, 3.0
    %v940 = vmin.f32 %v684, 3.0
    %v941 = vmin.f32 %v685, 3.0
    %v942 = vmin.f32 %v686, 3.0
    %v943 = vmin.f32 %v687, 3.0
    %v944 = vmin.f32 %v688, 3.0
    %v945 = vmin.f32 %v689, 3.0
    %v946 = vmin.f32 %v690, 3.0
    %v947 = vmin.f32 %v691, 3.0
    %v948 = vmin.f32 %v692, 3.0
    %v949 = vmin.f32 %v693, 3.0
    %v950 = vmin.f32 %v694, 3.0
    %v951 = vmin.f32 %v695, 3.0
    %v952 = vmin.f32 %v696, 3.0
    %v953 = vmin.f32 %v697, 3.0
    %v954 = vmin.f32 %v698, 3.0
    %v955 = vmin.f32 %v699, 3.0
    %v956 = vmin.f32 %v700, 3.0
    %v957 = vmin.f32 %v701, 3.0
    %v958 = vmin.f32 %v702, 3.0
    %v959 = vmin.f32 %v703, 3.0
    %v960 = vmin.f32 %v704, 3.0
    %v961 = vmin.f32 %v705, 3.0
    %v962 = vmin.f32 %v706, 3.0
    %v963 = vmin.f32 %v707, 3.0
    %v964 = vmin.f32 %v708, 3.0
    %v965 = vmin.f32 %v709, 3.0
    %v966 = vmin.f32 %v710, 3.0
    %v967 = vmin.f32 %v711, 3.0
    %v968 = vmin.f32 %v712, 3.0
    %v969 = vmin.f32 %v713, 3.0
    %v970 = vmin.f32 %v714, 3.0
    %v971 = vmin.f32 %v715, 3.0
    %v972 = vmin.f32 %v716, 3.0
    %v973 = vmin.f32 %v717, 3.0
    %v974 = vmin.f32 %v718, 3.0
    %v975 = vmin.f32 %v719, 3.0
    %v976 = vmin.f32 %v720, 3.0
    %v977 = vmin.f32 %v721, 3.0
    %v978 = vmin.f32 %v722, 3.0
    %v979 = vmin.f32 %v723, 3.0
    %v980 = vmin.f32 %v724, 3.0
    %v981 = vmin.f32 %v725, 3.0
    %v982 = vmin.f32 %v726, 3.0
    %v983 = vmin.f32 %v727, 3.0
    %v984 = vmin.f32 %v728, 3.0
    %v985 = vmin.f32 %v729, 3.0
    %v986 = vmin.f32 %v730, 3.0
    %v987 = vmin.f32 %v731, 3.0
    %v988 = vmin.f32 %v732, 3.0
    %v989 = vmin.f32 %v733, 3.0
    %v990 = vmin.f32 %v734, 3.0
    %v991 = vmin.f32 %v735, 3.0
    %v992 = vmin.f32 %v736, 3.0
    %v993 = vmin.f32 %v737, 3.0
    %v994 = vmin.f32 %v738, 3.0
    %v995 = vmin.f32 %v739, 3.0
    %v996 = vmin.f32 %v740, 3.0
    %v997 = vmin.f32 %v741, 3.0
    %v998 = vmin.f32 %v742, 3.0
    %v999 = vmin.f32 %v743, 3.0
    %v1000 = vmin.f32 %v744, 3.0
    %v1001 = vmin.f32 %v745, 3.0
    %v1002 = vmin.f32 %v746, 3.0
    %v1003 = vmin.f32 %v747, 3.0
    %v1004 = vmin.f32 %v748, 3.0
    %v1005 = vmin.f32 %v749, 3.0
    %v1006 = vmin.f32 %v750, 3.0
    %v1007 = vmin.f32 %v751, 3.0
    %v1008 = vmin.f32 %v752, 3.0
    %v1009 = vmin.f32 %v753, 3.0
    %v1010 = vmin.f32 %v754, 3.0
    %v1011 = vmin.f32 %v755, 3.0
    %v1012 = vmin.f32 %v756, 3.0
    %v1013 = vmin.f32 %v757, 3.0
    %v1014 = vmin.f32 %v758, 3.0
    %v1015 = vmin.f32 %v759, 3.0
    %v1016 = vmin.f32 %v760, 3.0
    %v1017 = vmin.f32 %v761, 3.0
    %v1018 = vmin.f32 %v762, 3.0
    %v1019 = vmin.f32 %v763, 3.0
    %v1020 = vmin.f32 %v764, 3.0
    %v1021 = vmin.f32 %v765, 3.0
    %v1022 = vmin.f32 %v766, 3.0
    %v1023 = vmin.f32 %v767, 3.0
    %v1024 = vmin.f32 %v768, 3.0
    %v1025 = vmin.f32 %v769, 3.0
    %v1026 = vmin.f32 %v770, 3.0
    %v1027 = vmin.f32 %v771, 3.0
    %v1028 = vmin.f32 %v772, 3.0
    %v1029 = vmin.f32 %v773, 3.0
    %v1030 = vmin.f32 %v774, 3.0
    %v1031 = vmin.f32 %v775, 3.0
    %v1032 = vmin.f32 %v776, 3.0
    %v1033 = vmin.f32 %v777, 3.0
    %v1034 = vmin.f32 %v778, 3.0
    %v1035 = vmin.f32 %v779, 3.0
    %v1036 = vmin.f32 %v780, 3.0
    %v1037 = vmin.f32 %v781, 3.0
    %v1038 = vmin.f32 %v782, 3.0
    %v1039 = vfloor.f32 %v783
    %v1040 = vfloor.f32 %v784
    %v1041 = vfloor.f32 %v785
    %v1042 = vfloor.f32 %v786
    %v1043 = vfloor.f32 %v787
    %v1044 = vfloor.f32 %v788
    %v1045 = vfloor.f32 %v789
    %v1046 = vfloor.f32 %v790
    %v1047 = vfloor.f32 %v791
    %v1048 = vfloor.f32 %v792
    %v1049 = vfloor.f32 %v793
    %v1050 = vfloor.f32 %v794
    %v1051 = vfloor.f32 %v795
    %v1052 = vfloor.f32 %v796
    %v1053 = vfloor.f32 %v797
    %v1054 = vfloor.f32 %v798
    %v1055 = vfloor.f32 %v799
    %v1056 = vfloor.f32 %v800
    %v1057 = vfloor.f32 %v801
    %v1058 = vfloor.f32 %v802
    %v1059 = vfloor.f32 %v803
    %v1060 = vfloor.f32 %v804
    %v1061 = vfloor.f32 %v805
    %v1062 = vfloor.f32 %v806
    %v1063 = vfloor.f32 %v807
    %v1064 = vfloor.f32 %v808
    %v1065 = vfloor.f32 %v809
    %v1066 = vfloor.f32 %v810
    %v1067 = vfloor.f32 %v811
    %v1068 = vfloor.f32 %v812
    %v1069 = vfloor.f32 %v813
    %v1070 = vfloor.f32 %v814
    %v1071 = vfloor.f32 %v815
    %v1072 = vfloor.f32 %v816
    %v1073 = vfloor.f32 %v817
    %v1074 = vfloor.f32 %v818
    %v1075 = vfloor.f32 %v819
    %v1076 = vfloor.f32 %v820
    %v1077 = vfloor.f32 %v821
    %v1078 = vfloor.f32 %v822
    %v1079 = vfloor.f32 %v823
    %v1080 = vfloor.f32 %v824
    %v1081 = vfloor.f32 %v825
    %v1082 = vfloor.f32 %v826
    %v1083 = vfloor.f32 %v827
    %v1084 = vfloor.f32 %v828
    %v1085 = vfloor.f32 %v829
    %v1086 = vfloor.f32 %v830
    %v1087 = vfloor.f32 %v831
    %v1088 = vfloor.f32 %v832
    %v1089 = vfloor.f32 %v833
    %v1090 = vfloor.f32 %v834
    %v1091 = vfloor.f32 %v835
    %v1092 = vfloor.f32 %v836
    %v1093 = vfloor.f32 %v837
    %v1094 = vfloor.f32 %v838
    %v1095 = vfloor.f32 %v839
    %v1096 = vfloor.f32 %v840
    %v1097 = vfloor.f32 %v841
    %v1098 = vfloor.f32 %v842
    %v1099 = vfloor.f32 %v843
    %v1100 = vfloor.f32 %v844
    %v1101 = vfloor.f32 %v845
    %v1102 = vfloor.f32 %v846
    %v1103 = vfloor.f32 %v847
    %v1104 = vfloor.f32 %v848
    %v1105 = vfloor.f32 %v849
    %v1106 = vfloor.f32 %v850
    %v1107 = vfloor.f32 %v851
    %v1108 = vfloor.f32 %v852
    %v1109 = vfloor.f32 %v853
    %v1110 = vfloor.f32 %v854
    %v1111 = vfloor.f32 %v855
    %v1112 = vfloor.f32 %v856
    %v1113 = vfloor.f32 %v857
    %v1114 = vfloor.f32 %v858
    %v1115 = vfloor.f32 %v859
    %v1116 = vfloor.f32 %v860
    %v1117 = vfloor.f32 %v861
    %v1118 = vfloor.f32 %v862
    %v1119 = vfloor.f32 %v863
    %v1120 = vfloor.f32 %v864
    %v1121 = vfloor.f32 %v865
    %v1122 = vfloor.f32 %v866
    %v1123 = vfloor.f32 %v867
    %v1124 = vfloor.f32 %v868
    %v1125 = vfloor.f32 %v869
    %v1126 = vfloor.f32 %v870
    %v1127 = vfloor.f32 %v871
    %v1128 = vfloor.f32 %v872
    %v1129 = vfloor.f32 %v873
    %v1130 = vfloor.f32 %v874
    %v1131 = vfloor.f32 %v875
    %v1132 = vfloor.f32 %v876
    %v1133 = vfloor.f32 %v877
    %v1134 = vfloor.f32 %v878
    %v1135 = vfloor.f32 %v879
    %v1136 = vfloor.f32 %v880
    %v1137 = vfloor.f32 %v881
    %v1138 = vfloor.f32 %v882
    %v1139 = vfloor.f32 %v883
    %v1140 = vfloor.f32 %v884
    %v1141 = vfloor.f32 %v885
    %v1142 = vfloor.f32 %v886
    %v1143 = vfloor.f32 %v887
    %v1144 = vfloor.f32 %v888
    %v1145 = vfloor.f32 %v889
    %v1146 = vfloor.f32 %v890
    %v1147 = vfloor.f32 %v891
    %v1148 = vfloor.f32 %v892
    %v1149 = vfloor.f32 %v893
    %v1150 = vfloor.f32 %v894
    %v1151 = vfloor.f32 %v895
    %v1152 = vfloor.f32 %v896
    %v1153 = vfloor.f32 %v897
    %v1154 = vfloor.f32 %v898
    %v1155 = vfloor.f32 %v899
    %v1156 = vfloor.f32 %v900
    %v1157 = vfloor.f32 %v901
    %v1158 = vfloor.f32 %v902
    %v1159 = vfloor.f32 %v903
    %v1160 = vfloor.f32 %v904
    %v1161 = vfloor.f32 %v905
    %v1162 = vfloor.f32 %v906
    %v1163 = vfloor.f32 %v907
    %v1164 = vfloor.f32 %v908
    %v1165 = vfloor.f32 %v909
    %v1166 = vfloor.f32 %v910
    %v1167 = vfloor.f32 %v911
    %v1168 = vfloor.f32 %v912
    %v1169 = vfloor.f32 %v913
    %v1170 = vfloor.f32 %v914
    %v1171 = vfloor.f32 %v915
    %v1172 = vfloor.f32 %v916
    %v1173 = vfloor.f32 %v917
    %v1174 = vfloor.f32 %v918
    %v1175 = vfloor.f32 %v919
    %v1176 = vfloor.f32 %v920
    %v1177 = vfloor.f32 %v921
    %v1178 = vfloor.f32 %v922
    %v1179 = vfloor.f32 %v923
    %v1180 = vfloor.f32 %v924
    %v1181 = vfloor.f32 %v925
    %v1182 = vfloor.f32 %v926
    %v1183 = vfloor.f32 %v927
    %v1184 = vfloor.f32 %v928
    %v1185 = vfloor.f32 %v929
    %v1186 = vfloor.f32 %v930
    %v1187 = vfloor.f32 %v931
    %v1188 = vfloor.f32 %v932
    %v1189 = vfloor.f32 %v933
    %v1190 = vfloor.f32 %v934
    %v1191 = vfloor.f32 %v935
    %v1192 = vfloor.f32 %v936
    %v1193 = vfloor.f32 %v937
    %v1194 = vfloor.f32 %v938
    %v1195 = vfloor.f32 %v939
    %v1196 = vfloor.f32 %v940
    %v1197 = vfloor.f32 %v941
    %v1198 = vfloor.f32 %v942
    %v1199 = vfloor.f32 %v943
    %v1200 = vfloor.f32 %v944
    %v1201 = vfloor.f32 %v945
    %v1202 = vfloor.f32 %v946
    %v1203 = vfloor.f32 %v947
    %v1204 = vfloor.f32 %v948
    %v1205 = vfloor.f32 %v949
    %v1206 = vfloor.f32 %v950
    %v1207 = vfloor.f32 %v951
    %v1208 = vfloor.f32 %v952
    %v1209 = vfloor.f32 %v953
    %v1210 = vfloor.f32 %v954
    %v1211 = vfloor.f32 %v955
    %v1212 = vfloor.f32 %v956
    %v1213 = vfloor.f32 %v957
    %v1214 = vfloor.f32 %v958
    %v1215 = vfloor.f32 %v959
    %v1216 = vfloor.f32 %v960
    %v1217 = vfloor.f32 %v961
    %v1218 = vfloor.f32 %v962
    %v1219 = vfloor.f32 %v963
    %v1220 = vfloor.f32 %v964
    %v1221 = vfloor.f32 %v965
    %v1222 = vfloor.f32 %v966
    %v1223 = vfloor.f32 %v967
    %v1224 = vfloor.f32 %v968
    %v1225 = vfloor.f32 %v969
    %v1226 = vfloor.f32 %v970
    %v1227 = vfloor.f32 %v971
    %v1228 = vfloor.f32 %v972
    %v1229 = vfloor.f32 %v973
    %v1230 = vfloor.f32 %v974
    %v1231 = vfloor.f32 %v975
    %v1232 = vfloor.f32 %v976
    %v1233 = vfloor.f32 %v977
    %v1234 = vfloor.f32 %v978
    %v1235 = vfloor.f32 %v979
    %v1236 = vfloor.f32 %v980
    %v1237 = vfloor.f32 %v981
    %v1238 = vfloor.f32 %v982
    %v1239 = vfloor.f32 %v983
    %v1240 = vfloor.f32 %v984
    %v1241 = vfloor.f32 %v985
    %v1242 = vfloor.f32 %v986
    %v1243 = vfloor.f32 %v987
    %v1244 = vfloor.f32 %v988
    %v1245 = vfloor.f32 %v989
    %v1246 = vfloor.f32 %v990
    %v1247 = vfloor.f32 %v991
    %v1248 = vfloor.f32 %v992
    %v1249 = vfloor.f32 %v993
    %v1250 = vfloor.f32 %v994
    %v1251 = vfloor.f32 %v995
    %v1252 = vfloor.f32 %v996
    %v1253 = vfloor.f32 %v997
    %v1254 = vfloor.f32 %v998
    %v1255 = vfloor.f32 %v999
    %v1256 = vfloor.f32 %v1000
    %v1257 = vfloor.f32 %v1001
    %v1258 = vfloor.f32 %v1002
    %v1259 = vfloor.f32 %v1003
    %v1260 = vfloor.f32 %v1004
    %v1261 = vfloor.f32 %v1005
    %v1262 = vfloor.f32 %v1006
    %v1263 = vfloor.f32 %v1007
    %v1264 = vfloor.f32 %v1008
    %v1265 = vfloor.f32 %v1009
    %v1266 = vfloor.f32 %v1010
    %v1267 = vfloor.f32 %v1011
    %v1268 = vfloor.f32 %v1012
    %v1269 = vfloor.f32 %v1013
    %v1270 = vfloor.f32 %v1014
    %v1271 = vfloor.f32 %v1015
    %v1272 = vfloor.f32 %v1016
    %v1273 = vfloor.f32 %v1017
    %v1274 = vfloor.f32 %v1018
    %v1275 = vfloor.f32 %v1019
    %v1276 = vfloor.f32 %v1020
    %v1277 = vfloor.f32 %v1021
    %v1278 = vfloor.f32 %v1022
    %v1279 = vfloor.f32 %v1023
    %v1280 = vfloor.f32 %v1024
    %v1281 = vfloor.f32 %v1025
    %v1282 = vfloor.f32 %v1026
    %v1283 = vfloor.f32 %v1027
    %v1284 = vfloor.f32 %v1028
    %v1285 = vfloor.f32 %v1029
    %v1286 = vfloor.f32 %v1030
    %v1287 = vfloor.f32 %v1031
    %v1288 = vfloor.f32 %v1032
    %v1289 = vfloor.f32 %v1033
    %v1290 = vfloor.f32 %v1034
    %v1291 = vfloor.f32 %v1035
    %v1292 = vfloor.f32 %v1036
    %v1293 = vfloor.f32 %v1037
    %v1294 = vfloor.f32 %v1038
    %v1295 = vmin.f32 %v1039, 2.0
    %v1296 = vmin.f32 %v1040, 2.0
    %v1297 = vmin.f32 %v1041, 2.0
    %v1298 = vmin.f32 %v1042, 2.0
    %v1299 = vmin.f32 %v1043, 2.0
    %v1300 = vmin.f32 %v1044, 2.0
    %v1301 = vmin.f32 %v1045, 2.0
    %v1302 = vmin.f32 %v1046, 2.0
    %v1303 = vmin.f32 %v1047, 2.0
    %v1304 = vmin.f32 %v1048, 2.0
    %v1305 = vmin.f32 %v1049, 2.0
    %v1306 = vmin.f32 %v1050, 2.0
    %v1307 = vmin.f32 %v1051, 2.0
    %v1308 = vmin.f32 %v1052, 2.0
    %v1309 = vmin.f32 %v1053, 2.0
    %v1310 = vmin.f32 %v1054, 2.0
    %v1311 = vmin.f32 %v1055, 2.0
    %v1312 = vmin.f32 %v1056, 2.0
    %v1313 = vmin.f32 %v1057, 2.0
    %v1314 = vmin.f32 %v1058, 2.0
    %v1315 = vmin.f32 %v1059, 2.0
    %v1316 = vmin.f32 %v1060, 2.0
    %v1317 = vmin.f32 %v1061, 2.0
    %v1318 = vmin.f32 %v1062, 2.0
    %v1319 = vmin.f32 %v1063, 2.0
    %v1320 = vmin.f32 %v1064, 2.0
    %v1321 = vmin.f32 %v1065, 2.0
    %v1322 = vmin.f32 %v1066, 2.0
    %v1323 = vmin.f32 %v1067, 2.0
    %v1324 = vmin.f32 %v1068, 2.0
    %v1325 = vmin.f32 %v1069, 2.0
    %v1326 = vmin.f32 %v1070, 2.0
    %v1327 = vmin.f32 %v1071, 2.0
    %v1328 = vmin.f32 %v1072, 2.0
    %v1329 = vmin.f32 %v1073, 2.0
    %v1330 = vmin.f32 %v1074, 2.0
    %v1331 = vmin.f32 %v1075, 2.0
    %v1332 = vmin.f32 %v1076, 2.0
    %v1333 = vmin.f32 %v1077, 2.0
    %v1334 = vmin.f32 %v1078, 2.0
    %v1335 = vmin.f32 %v1079, 2.0
    %v1336 = vmin.f32 %v1080, 2.0
    %v1337 = vmin.f32 %v1081, 2.0
    %v1338 = vmin.f32 %v1082, 2.0
    %v1339 = vmin.f32 %v1083, 2.0
    %v1340 = vmin.f32 %v1084, 2.0
    %v1341 = vmin.f32 %v1085, 2.0
    %v1342 = vmin.f32 %v1086, 2.0
    %v1343 = vmin.f32 %v1087, 2.0
    %v1344 = vmin.f32 %v1088, 2.0
    %v1345 = vmin.f32 %v1089, 2.0
    %v1346 = vmin.f32 %v1090, 2.0
    %v1347 = vmin.f32 %v1091, 2.0
    %v1348 = vmin.f32 %v1092, 2.0
    %v1349 = vmin.f32 %v1093, 2.0
    %v1350 = vmin.f32 %v1094, 2.0
    %v1351 = vmin.f32 %v1095, 2.0
    %v1352 = vmin.f32 %v1096, 2.0
    %v1353 = vmin.f32 %v1097, 2.0
    %v1354 = vmin.f32 %v1098, 2.0
    %v1355 = vmin.f32 %v1099, 2.0
    %v1356 = vmin.f32 %v1100, 2.0
    %v1357 = vmin.f32 %v1101, 2.0
    %v1358 = vmin.f32 %v1102, 2.0
    %v1359 = vmin.f32 %v1103, 2.0
    %v1360 = vmin.f32 %v1104, 2.0
    %v1361 = vmin.f32 %v1105, 2.0
    %v1362 = vmin.f32 %v1106, 2.0
    %v1363 = vmin.f32 %v1107, 2.0
    %v1364 = vmin.f32 %v1108, 2.0
    %v1365 = vmin.f32 %v1109, 2.0
    %v1366 = vmin.f32 %v1110, 2.0
    %v1367 = vmin.f32 %v1111, 2.0
    %v1368 = vmin.f32 %v1112, 2.0
    %v1369 = vmin.f32 %v1113, 2.0
    %v1370 = vmin.f32 %v1114, 2.0
    %v1371 = vmin.f32 %v1115, 2.0
    %v1372 = vmin.f32 %v1116, 2.0
    %v1373 = vmin.f32 %v1117, 2.0
    %v1374 = vmin.f32 %v1118, 2.0
    %v1375 = vmin.f32 %v1119, 2.0
    %v1376 = vmin.f32 %v1120, 2.0
    %v1377 = vmin.f32 %v1121, 2.0
    %v1378 = vmin.f32 %v1122, 2.0
    %v1379 = vmin.f32 %v1123, 2.0
    %v1380 = vmin.f32 %v1124, 2.0
    %v1381 = vmin.f32 %v1125, 2.0
    %v1382 = vmin.f32 %v1126, 2.0
    %v1383 = vmin.f32 %v1127, 2.0
    %v1384 = vmin.f32 %v1128, 2.0
    %v1385 = vmin.f32 %v1129, 2.0
    %v1386 = vmin.f32 %v1130, 2.0
    %v1387 = vmin.f32 %v1131, 2.0
    %v1388 = vmin.f32 %v1132, 2.0
    %v1389 = vmin.f32 %v1133, 2.0
    %v1390 = vmin.f32 %v1134, 2.0
    %v1391 = vmin.f32 %v1135, 2.0
    %v1392 = vmin.f32 %v1136, 2.0
    %v1393 = vmin.f32 %v1137, 2.0
    %v1394 = vmin.f32 %v1138, 2.0
    %v1395 = vmin.f32 %v1139, 2.0
    %v1396 = vmin.f32 %v1140, 2.0
    %v1397 = vmin.f32 %v1141, 2.0
    %v1398 = vmin.f32 %v1142, 2.0
    %v1399 = vmin.f32 %v1143, 2.0
    %v1400 = vmin.f32 %v1144, 2.0
    %v1401 = vmin.f32 %v1145, 2.0
    %v1402 = vmin.f32 %v1146, 2.0
    %v1403 = vmin.f32 %v1147, 2.0
    %v1404 = vmin.f32 %v1148, 2.0
    %v1405 = vmin.f32 %v1149, 2.0
    %v1406 = vmin.f32 %v1150, 2.0
    %v1407 = vmin.f32 %v1151, 2.0
    %v1408 = vmin.f32 %v1152, 2.0
    %v1409 = vmin.f32 %v1153, 2.0
    %v1410 = vmin.f32 %v1154, 2.0
    %v1411 = vmin.f32 %v1155, 2.0
    %v1412 = vmin.f32 %v1156, 2.0
    %v1413 = vmin.f32 %v1157, 2.0
    %v1414 = vmin.f32 %v1158, 2.0
    %v1415 = vmin.f32 %v1159, 2.0
    %v1416 = vmin.f32 %v1160, 2.0
    %v1417 = vmin.f32 %v1161, 2.0
    %v1418 = vmin.f32 %v1162, 2.0
    %v1419 = vmin.f32 %v1163, 2.0
    %v1420 = vmin.f32 %v1164, 2.0
    %v1421 = vmin.f32 %v1165, 2.0
    %v1422 = vmin.f32 %v1166, 2.0
    %v1423 = vmin.f32 %v1167, 2.0
    %v1424 = vmin.f32 %v1168, 2.0
    %v1425 = vmin.f32 %v1169, 2.0
    %v1426 = vmin.f32 %v1170, 2.0
    %v1427 = vmin.f32 %v1171, 2.0
    %v1428 = vmin.f32 %v1172, 2.0
    %v1429 = vmin.f32 %v1173, 2.0
    %v1430 = vmin.f32 %v1174, 2.0
    %v1431 = vmin.f32 %v1175, 2.0
    %v1432 = vmin.f32 %v1176, 2.0
    %v1433 = vmin.f32 %v1177, 2.0
    %v1434 = vmin.f32 %v1178, 2.0
    %v1435 = vmin.f32 %v1179, 2.0
    %v1436 = vmin.f32 %v1180, 2.0
    %v1437 = vmin.f32 %v1181, 2.0
    %v1438 = vmin.f32 %v1182, 2.0
    %v1439 = vmin.f32 %v1183, 2.0
    %v1440 = vmin.f32 %v1184, 2.0
    %v1441 = vmin.f32 %v1185, 2.0
    %v1442 = vmin.f32 %v1186, 2.0
    %v1443 = vmin.f32 %v1187, 2.0
    %v1444 = vmin.f32 %v1188, 2.0
    %v1445 = vmin.f32 %v1189, 2.0
    %v1446 = vmin.f32 %v1190, 2.0
    %v1447 = vmin.f32 %v1191, 2.0
    %v1448 = vmin.f32 %v1192, 2.0
    %v1449 = vmin.f32 %v1193, 2.0
    %v1450 = vmin.f32 %v1194, 2.0
    %v1451 = vmin.f32 %v1195, 2.0
    %v1452 = vmin.f32 %v1196, 2.0
    %v1453 = vmin.f32 %v1197, 2.0
    %v1454 = vmin.f32 %v1198, 2.0
    %v1455 = vmin.f32 %v1199, 2.0
    %v1456 = vmin.f32 %v1200, 2.0
    %v1457 = vmin.f32 %v1201, 2.0
    %v1458 = vmin.f32 %v1202, 2.0
    %v1459 = vmin.f32 %v1203, 2.0
    %v1460 = vmin.f32 %v1204, 2.0
    %v1461 = vmin.f32 %v1205, 2.0
    %v1462 = vmin.f32 %v1206, 2.0
    %v1463 = vmin.f32 %v1207, 2.0
    %v1464 = vmin.f32 %v1208, 2.0
    %v1465 = vmin.f32 %v1209, 2.0
    %v1466 = vmin.f32 %v1210, 2.0
    %v1467 = vmin.f32 %v1211, 2.0
    %v1468 = vmin.f32 %v1212, 2.0
    %v1469 = vmin.f32 %v1213, 2.0
    %v1470 = vmin.f32 %v1214, 2.0
    %v1471 = vmin.f32 %v1215, 2.0
    %v1472 = vmin.f32 %v1216, 2.0
    %v1473 = vmin.f32 %v1217, 2.0
    %v1474 = vmin.f32 %v1218, 2.0
    %v1475 = vmin.f32 %v1219, 2.0
    %v1476 = vmin.f32 %v1220, 2.0
    %v1477 = vmin.f32 %v1221, 2.0
    %v1478 = vmin.f32 %v1222, 2.0
    %v1479 = vmin.f32 %v1223, 2.0
    %v1480 = vmin.f32 %v1224, 2.0
    %v1481 = vmin.f32 %v1225, 2.0
    %v1482 = vmin.f32 %v1226, 2.0
    %v1483 = vmin.f32 %v1227, 2.0
    %v1484 = vmin.f32 %v1228, 2.0
    %v1485 = vmin.f32 %v1229, 2.0
    %v1486 = vmin.f32 %v1230, 2.0
    %v1487 = vmin.f32 %v1231, 2.0
    %v1488 = vmin.f32 %v1232, 2.0
    %v1489 = vmin.f32 %v1233, 2.0
    %v1490 = vmin.f32 %v1234, 2.0
    %v1491 = vmin.f32 %v1235, 2.0
    %v1492 = vmin.f32 %v1236, 2.0
    %v1493 = vmin.f32 %v1237, 2.0
    %v1494 = vmin.f32 %v1238, 2.0
    %v1495 = vmin.f32 %v1239, 2.0
    %v1496 = vmin.f32 %v1240, 2.0
    %v1497 = vmin.f32 %v1241, 2.0
    %v1498 = vmin.f32 %v1242, 2.0
    %v1499 = vmin.f32 %v1243, 2.0
    %v1500 = vmin.f32 %v1244, 2.0
    %v1501 = vmin.f32 %v1245, 2.0
    %v1502 = vmin.f32 %v1246, 2.0
    %v1503 = vmin.f32 %v1247, 2.0
    %v1504 = vmin.f32 %v1248, 2.0
    %v1505 = vmin.f32 %v1249, 2.0
    %v1506 = vmin.f32 %v1250, 2.0
    %v1507 = vmin.f32 %v1251, 2.0
    %v1508 = vmin.f32 %v1252, 2.0
    %v1509 = vmin.f32 %v1253, 2.0
    %v1510 = vmin.f32 %v1254, 2.0
    %v1511 = vmin.f32 %v1255, 2.0
    %v1512 = vmin.f32 %v1256, 2.0
    %v1513 = vmin.f32 %v1257, 2.0
    %v1514 = vmin.f32 %v1258, 2.0
    %v1515 = vmin.f32 %v1259, 2.0
    %v1516 = vmin.f32 %v1260, 2.0
    %v1517 = vmin.f32 %v1261, 2.0
    %v1518 = vmin.f32 %v1262, 2.0
    %v1519 = vmin.f32 %v1263, 2.0
    %v1520 = vmin.f32 %v1264, 2.0
    %v1521 = vmin.f32 %v1265, 2.0
    %v1522 = vmin.f32 %v1266, 2.0
    %v1523 = vmin.f32 %v1267, 2.0
    %v1524 = vmin.f32 %v1268, 2.0
    %v1525 = vmin.f32 %v1269, 2.0
    %v1526 = vmin.f32 %v1270, 2.0
    %v1527 = vmin.f32 %v1271, 2.0
    %v1528 = vmin.f32 %v1272, 2.0
    %v1529 = vmin.f32 %v1273, 2.0
    %v1530 = vmin.f32 %v1274, 2.0
    %v1531 = vmin.f32 %v1275, 2.0
    %v1532 = vmin.f32 %v1276, 2.0
    %v1533 = vmin.f32 %v1277, 2.0
    %v1534 = vmin.f32 %v1278, 2.0
    %v1535 = vmin.f32 %v1279, 2.0
    %v1536 = vmin.f32 %v1280, 2.0
    %v1537 = vmin.f32 %v1281, 2.0
    %v1538 = vmin.f32 %v1282, 2.0
    %v1539 = vmin.f32 %v1283, 2.0
    %v1540 = vmin.f32 %v1284, 2.0
    %v1541 = vmin.f32 %v1285, 2.0
    %v1542 = vmin.f32 %v1286, 2.0
    %v1543 = vmin.f32 %v1287, 2.0
    %v1544 = vmin.f32 %v1288, 2.0
    %v1545 = vmin.f32 %v1289, 2.0
    %v1546 = vmin.f32 %v1290, 2.0
    %v1547 = vmin.f32 %v1291, 2.0
    %v1548 = vmin.f32 %v1292, 2.0
    %v1549 = vmin.f32 %v1293, 2.0
    %v1550 = vmin.f32 %v1294, 2.0
    %v1551 = vcvt.f32.s32.to.zero.pseudo %v1295
    %v1552 = vcvt.f32.s32.to.zero.pseudo %v1296
    %v1553 = vcvt.f32.s32.to.zero.pseudo %v1297
    %v1554 = vcvt.f32.s32.to.zero.pseudo %v1298
    %v1555 = vcvt.f32.s32.to.zero.pseudo %v1299
    %v1556 = vcvt.f32.s32.to.zero.pseudo %v1300
    %v1557 = vcvt.f32.s32.to.zero.pseudo %v1301
    %v1558 = vcvt.f32.s32.to.zero.pseudo %v1302
    %v1559 = vcvt.f32.s32.to.zero.pseudo %v1303
    %v1560 = vcvt.f32.s32.to.zero.pseudo %v1304
    %v1561 = vcvt.f32.s32.to.zero.pseudo %v1305
    %v1562 = vcvt.f32.s32.to.zero.pseudo %v1306
    %v1563 = vcvt.f32.s32.to.zero.pseudo %v1307
    %v1564 = vcvt.f32.s32.to.zero.pseudo %v1308
    %v1565 = vcvt.f32.s32.to.zero.pseudo %v1309
    %v1566 = vcvt.f32.s32.to.zero.pseudo %v1310
    %v1567 = vcvt.f32.s32.to.zero.pseudo %v1311
    %v1568 = vcvt.f32.s32.to.zero.pseudo %v1312
    %v1569 = vcvt.f32.s32.to.zero.pseudo %v1313
    %v1570 = vcvt.f32.s32.to.zero.pseudo %v1314
    %v1571 = vcvt.f32.s32.to.zero.pseudo %v1315
    %v1572 = vcvt.f32.s32.to.zero.pseudo %v1316
    %v1573 = vcvt.f32.s32.to.zero.pseudo %v1317
    %v1574 = vcvt.f32.s32.to.zero.pseudo %v1318
    %v1575 = vcvt.f32.s32.to.zero.pseudo %v1319
    %v1576 = vcvt.f32.s32.to.zero.pseudo %v1320
    %v1577 = vcvt.f32.s32.to.zero.pseudo %v1321
    %v1578 = vcvt.f32.s32.to.zero.pseudo %v1322
    %v1579 = vcvt.f32.s32.to.zero.pseudo %v1323
    %v1580 = vcvt.f32.s32.to.zero.pseudo %v1324
    %v1581 = vcvt.f32.s32.to.zero.pseudo %v1325
    %v1582 = vcvt.f32.s32.to.zero.pseudo %v1326
    %v1583 = vcvt.f32.s32.to.zero.pseudo %v1327
    %v1584 = vcvt.f32.s32.to.zero.pseudo %v1328
    %v1585 = vcvt.f32.s32.to.zero.pseudo %v1329
    %v1586 = vcvt.f32.s32.to.zero.pseudo %v1330
    %v1587 = vcvt.f32.s32.to.zero.pseudo %v1331
    %v1588 = vcvt.f32.s32.to.zero.pseudo %v1332
    %v1589 = vcvt.f32.s32.to.zero.pseudo %v1333
    %v1590 = vcvt.f32.s32.to.zero.pseudo %v1334
    %v1591 = vcvt.f32.s32.to.zero.pseudo %v1335
    %v1592 = vcvt.f32.s32.to.zero.pseudo %v1336
    %v1593 = vcvt.f32.s32.to.zero.pseudo %v1337
    %v1594 = vcvt.f32.s32.to.zero.pseudo %v1338
    %v1595 = vcvt.f32.s32.to.zero.pseudo %v1339
    %v1596 = vcvt.f32.s32.to.zero.pseudo %v1340
    %v1597 = vcvt.f32.s32.to.zero.pseudo %v1341
    %v1598 = vcvt.f32.s32.to.zero.pseudo %v1342
    %v1599 = vcvt.f32.s32.to.zero.pseudo %v1343
    %v1600 = vcvt.f32.s32.to.zero.pseudo %v1344
    %v1601 = vcvt.f32.s32.to.zero.pseudo %v1345
    %v1602 = vcvt.f32.s32.to.zero.pseudo %v1346
    %v1603 = vcvt.f32.s32.to.zero.pseudo %v1347
    %v1604 = vcvt.f32.s32.to.zero.pseudo %v1348
    %v1605 = vcvt.f32.s32.to.zero.pseudo %v1349
    %v1606 = vcvt.f32.s32.to.zero.pseudo %v1350
    %v1607 = vcvt.f32.s32.to.zero.pseudo %v1351
    %v1608 = vcvt.f32.s32.to.zero.pseudo %v1352
    %v1609 = vcvt.f32.s32.to.zero.pseudo %v1353
    %v1610 = vcvt.f32.s32.to.zero.pseudo %v1354
    %v1611 = vcvt.f32.s32.to.zero.pseudo %v1355
    %v1612 = vcvt.f32.s32.to.zero.pseudo %v1356
    %v1613 = vcvt.f32.s32.to.zero.pseudo %v1357
    %v1614 = vcvt.f32.s32.to.zero.pseudo %v1358
    %v1615 = vcvt.f32.s32.to.zero.pseudo %v1359
    %v1616 = vcvt.f32.s32.to.zero.pseudo %v1360
    %v1617 = vcvt.f32.s32.to.zero.pseudo %v1361
    %v1618 = vcvt.f32.s32.to.zero.pseudo %v1362
    %v1619 = vcvt.f32.s32.to.zero.pseudo %v1363
    %v1620 = vcvt.f32.s32.to.zero.pseudo %v1364
    %v1621 = vcvt.f32.s32.to.zero.pseudo %v1365
    %v1622 = vcvt.f32.s32.to.zero.pseudo %v1366
    %v1623 = vcvt.f32.s32.to.zero.pseudo %v1367
    %v1624 = vcvt.f32.s32.to.zero.pseudo %v1368
    %v1625 = vcvt.f32.s32.to.zero.pseudo %v1369
    %v1626 = vcvt.f32.s32.to.zero.pseudo %v1370
    %v1627 = vcvt.f32.s32.to.zero.pseudo %v1371
    %v1628 = vcvt.f32.s32.to.zero.pseudo %v1372
    %v1629 = vcvt.f32.s32.to.zero.pseudo %v1373
    %v1630 = vcvt.f32.s32.to.zero.pseudo %v1374
    %v1631 = vcvt.f32.s32.to.zero.pseudo %v1375
    %v1632 = vcvt.f32.s32.to.zero.pseudo %v1376
    %v1633 = vcvt.f32.s32.to.zero.pseudo %v1377
    %v1634 = vcvt.f32.s32.to.zero.pseudo %v1378
    %v1635 = vcvt.f32.s32.to.zero.pseudo %v1379
    %v1636 = vcvt.f32.s32.to.zero.pseudo %v1380
    %v1637 = vcvt.f32.s32.to.zero.pseudo %v1381
    %v1638 = vcvt.f32.s32.to.zero.pseudo %v1382
    %v1639 = vcvt.f32.s32.to.zero.pseudo %v1383
    %v1640 = vcvt.f32.s32.to.zero.pseudo %v1384
    %v1641 = vcvt.f32.s32.to.zero.pseudo %v1385
    %v1642 = vcvt.f32.s32.to.zero.pseudo %v1386
    %v1643 = vcvt.f32.s32.to.zero.pseudo %v1387
    %v1644 = vcvt.f32.s32.to.zero.pseudo %v1388
    %v1645 = vcvt.f32.s32.to.zero.pseudo %v1389
    %v1646 = vcvt.f32.s32.to.zero.pseudo %v1390
    %v1647 = vcvt.f32.s32.to.zero.pseudo %v1391
    %v1648 = vcvt.f32.s32.to.zero.pseudo %v1392
    %v1649 = vcvt.f32.s32.to.zero.pseudo %v1393
    %v1650 = vcvt.f32.s32.to.zero.pseudo %v1394
    %v1651 = vcvt.f32.s32.to.zero.pseudo %v1395
    %v1652 = vcvt.f32.s32.to.zero.pseudo %v1396
    %v1653 = vcvt.f32.s32.to.zero.pseudo %v1397
    %v1654 = vcvt.f32.s32.to.zero.pseudo %v1398
    %v1655 = vcvt.f32.s32.to.zero.pseudo %v1399
    %v1656 = vcvt.f32.s32.to.zero.pseudo %v1400
    %v1657 = vcvt.f32.s32.to.zero.pseudo %v1401
    %v1658 = vcvt.f32.s32.to.zero.pseudo %v1402
    %v1659 = vcvt.f32.s32.to.zero.pseudo %v1403
    %v1660 = vcvt.f32.s32.to.zero.pseudo %v1404
    %v1661 = vcvt.f32.s32.to.zero.pseudo %v1405
    %v1662 = vcvt.f32.s32.to.zero.pseudo %v1406
    %v1663 = vcvt.f32.s32.to.zero.pseudo %v1407
    %v1664 = vcvt.f32.s32.to.zero.pseudo %v1408
    %v1665 = vcvt.f32.s32.to.zero.pseudo %v1409
    %v1666 = vcvt.f32.s32.to.zero.pseudo %v1410
    %v1667 = vcvt.f32.s32.to.zero.pseudo %v1411
    %v1668 = vcvt.f32.s32.to.zero.pseudo %v1412
    %v1669 = vcvt.f32.s32.to.zero.pseudo %v1413
    %v1670 = vcvt.f32.s32.to.zero.pseudo %v1414
    %v1671 = vcvt.f32.s32.to.zero.pseudo %v1415
    %v1672 = vcvt.f32.s32.to.zero.pseudo %v1416
    %v1673 = vcvt.f32.s32.to.zero.pseudo %v1417
    %v1674 = vcvt.f32.s32.to.zero.pseudo %v1418
    %v1675 = vcvt.f32.s32.to.zero.pseudo %v1419
    %v1676 = vcvt.f32.s32.to.zero.pseudo %v1420
    %v1677 = vcvt.f32.s32.to.zero.pseudo %v1421
    %v1678 = vcvt.f32.s32.to.zero.pseudo %v1422
    %v1679 = vcvt.f32.s32.to.zero.pseudo %v1423
    %v1680 = vcvt.f32.s32.to.zero.pseudo %v1424
    %v1681 = vcvt.f32.s32.to.zero.pseudo %v1425
    %v1682 = vcvt.f32.s32.to.zero.pseudo %v1426
    %v1683 = vcvt.f32.s32.to.zero.pseudo %v1427
    %v1684 = vcvt.f32.s32.to.zero.pseudo %v1428
    %v1685 = vcvt.f32.s32.to.zero.pseudo %v1429
    %v1686 = vcvt.f32.s32.to.zero.pseudo %v1430
    %v1687 = vcvt.f32.s32.to.zero.pseudo %v1431
    %v1688 = vcvt.f32.s32.to.zero.pseudo %v1432
    %v1689 = vcvt.f32.s32.to.zero.pseudo %v1433
    %v1690 = vcvt.f32.s32.to.zero.pseudo %v1434
    %v1691 = vcvt.f32.s32.to.zero.pseudo %v1435
    %v1692 = vcvt.f32.s32.to.zero.pseudo %v1436
    %v1693 = vcvt.f32.s32.to.zero.pseudo %v1437
    %v1694 = vcvt.f32.s32.to.zero.pseudo %v1438
    %v1695 = vcvt.f32.s32.to.zero.pseudo %v1439
    %v1696 = vcvt.f32.s32.to.zero.pseudo %v1440
    %v1697 = vcvt.f32.s32.to.zero.pseudo %v1441
    %v1698 = vcvt.f32.s32.to.zero.pseudo %v1442
    %v1699 = vcvt.f32.s32.to.zero.pseudo %v1443
    %v1700 = vcvt.f32.s32.to.zero.pseudo %v1444
    %v1701 = vcvt.f32.s32.to.zero.pseudo %v1445
    %v1702 = vcvt.f32.s32.to.zero.pseudo %v1446
    %v1703 = vcvt.f32.s32.to.zero.pseudo %v1447
    %v1704 = vcvt.f32.s32.to.zero.pseudo %v1448
    %v1705 = vcvt.f32.s32.to.zero.pseudo %v1449
    %v1706 = vcvt.f32.s32.to.zero.pseudo %v1450
    %v1707 = vcvt.f32.s32.to.zero.pseudo %v1451
    %v1708 = vcvt.f32.s32.to.zero.pseudo %v1452
    %v1709 = vcvt.f32.s32.to.zero.pseudo %v1453
    %v1710 = vcvt.f32.s32.to.zero.pseudo %v1454
    %v1711 = vcvt.f32.s32.to.zero.pseudo %v1455
    %v1712 = vcvt.f32.s32.to.zero.pseudo %v1456
    %v1713 = vcvt.f32.s32.to.zero.pseudo %v1457
    %v1714 = vcvt.f32.s32.to.zero.pseudo %v1458
    %v1715 = vcvt.f32.s32.to.zero.pseudo %v1459
    %v1716 = vcvt.f32.s32.to.zero.pseudo %v1460
    %v1717 = vcvt.f32.s32.to.zero.pseudo %v1461
    %v1718 = vcvt.f32.s32.to.zero.pseudo %v1462
    %v1719 = vcvt.f32.s32.to.zero.pseudo %v1463
    %v1720 = vcvt.f32.s32.to.zero.pseudo %v1464
    %v1721 = vcvt.f32.s32.to.zero.pseudo %v1465
    %v1722 = vcvt.f32.s32.to.zero.pseudo %v1466
    %v1723 = vcvt.f32.s32.to.zero.pseudo %v1467
    %v1724 = vcvt.f32.s32.to.zero.pseudo %v1468
    %v1725 = vcvt.f32.s32.to.zero.pseudo %v1469
    %v1726 = vcvt.f32.s32.to.zero.pseudo %v1470
    %v1727 = vcvt.f32.s32.to.zero.pseudo %v1471
    %v1728 = vcvt.f32.s32.to.zero.pseudo %v1472
    %v1729 = vcvt.f32.s32.to.zero.pseudo %v1473
    %v1730 = vcvt.f32.s32.to.zero.pseudo %v1474
    %v1731 = vcvt.f32.s32.to.zero.pseudo %v1475
    %v1732 = vcvt.f32.s32.to.zero.pseudo %v1476
    %v1733 = vcvt.f32.s32.to.zero.pseudo %v1477
    %v1734 = vcvt.f32.s32.to.zero.pseudo %v1478
    %v1735 = vcvt.f32.s32.to.zero.pseudo %v1479
    %v1736 = vcvt.f32.s32.to.zero.pseudo %v1480
    %v1737 = vcvt.f32.s32.to.zero.pseudo %v1481
    %v1738 = vcvt.f32.s32.to.zero.pseudo %v1482
    %v1739 = vcvt.f32.s32.to.zero.pseudo %v1483
    %v1740 = vcvt.f32.s32.to.zero.pseudo %v1484
    %v1741 = vcvt.f32.s32.to.zero.pseudo %v1485
    %v1742 = vcvt.f32.s32.to.zero.pseudo %v1486
    %v1743 = vcvt.f32.s32.to.zero.pseudo %v1487
    %v1744 = vcvt.f32.s32.to.zero.pseudo %v1488
    %v1745 = vcvt.f32.s32.to.zero.pseudo %v1489
    %v1746 = vcvt.f32.s32.to.zero.pseudo %v1490
    %v1747 = vcvt.f32.s32.to.zero.pseudo %v1491
    %v1748 = vcvt.f32.s32.to.zero.pseudo %v1492
    %v1749 = vcvt.f32.s32.to.zero.pseudo %v1493
    %v1750 = vcvt.f32.s32.to.zero.pseudo %v1494
    %v1751 = vcvt.f32.s32.to.zero.pseudo %v1495
    %v1752 = vcvt.f32.s32.to.zero.pseudo %v1496
    %v1753 = vcvt.f32.s32.to.zero.pseudo %v1497
    %v1754 = vcvt.f32.s32.to.zero.pseudo %v1498
    %v1755 = vcvt.f32.s32.to.zero.pseudo %v1499
    %v1756 = vcvt.f32.s32.to.zero.pseudo %v1500
    %v1757 = vcvt.f32.s32.to.zero.pseudo %v1501
    %v1758 = vcvt.f32.s32.to.zero.pseudo %v1502
    %v1759 = vcvt.f32.s32.to.zero.pseudo %v1503
    %v1760 = vcvt.f32.s32.to.zero.pseudo %v1504
    %v1761 = vcvt.f32.s32.to.zero.pseudo %v1505
    %v1762 = vcvt.f32.s32.to.zero.pseudo %v1506
    %v1763 = vcvt.f32.s32.to.zero.pseudo %v1507
    %v1764 = vcvt.f32.s32.to.zero.pseudo %v1508
    %v1765 = vcvt.f32.s32.to.zero.pseudo %v1509
    %v1766 = vcvt.f32.s32.to.zero.pseudo %v1510
    %v1767 = vcvt.f32.s32.to.zero.pseudo %v1511
    %v1768 = vcvt.f32.s32.to.zero.pseudo %v1512
    %v1769 = vcvt.f32.s32.to.zero.pseudo %v1513
    %v1770 = vcvt.f32.s32.to.zero.pseudo %v1514
    %v1771 = vcvt.f32.s32.to.zero.pseudo %v1515
    %v1772 = vcvt.f32.s32.to.zero.pseudo %v1516
    %v1773 = vcvt.f32.s32.to.zero.pseudo %v1517
    %v1774 = vcvt.f32.s32.to.zero.pseudo %v1518
    %v1775 = vcvt.f32.s32.to.zero.pseudo %v1519
    %v1776 = vcvt.f32.s32.to.zero.pseudo %v1520
    %v1777 = vcvt.f32.s32.to.zero.pseudo %v1521
    %v1778 = vcvt.f32.s32.to.zero.pseudo %v1522
    %v1779 = vcvt.f32.s32.to.zero.pseudo %v1523
    %v1780 = vcvt.f32.s32.to.zero.pseudo %v1524
    %v1781 = vcvt.f32.s32.to.zero.pseudo %v1525
    %v1782 = vcvt.f32.s32.to.zero.pseudo %v1526
    %v1783 = vcvt.f32.s32.to.zero.pseudo %v1527
    %v1784 = vcvt.f32.s32.to.zero.pseudo %v1528
    %v1785 = vcvt.f32.s32.to.zero.pseudo %v1529
    %v1786 = vcvt.f32.s32.to.zero.pseudo %v1530
    %v1787 = vcvt.f32.s32.to.zero.pseudo %v1531
    %v1788 = vcvt.f32.s32.to.zero.pseudo %v1532
    %v1789 = vcvt.f32.s32.to.zero.pseudo %v1533
    %v1790 = vcvt.f32.s32.to.zero.pseudo %v1534
    %v1791 = vcvt.f32.s32.to.zero.pseudo %v1535
    %v1792 = vcvt.f32.s32.to.zero.pseudo %v1536
    %v1793 = vcvt.f32.s32.to.zero.pseudo %v1537
    %v1794 = vcvt.f32.s32.to.zero.pseudo %v1538
    %v1795 = vcvt.f32.s32.to.zero.pseudo %v1539
    %v1796 = vcvt.f32.s32.to.zero.pseudo %v1540
    %v1797 = vcvt.f32.s32.to.zero.pseudo %v1541
    %v1798 = vcvt.f32.s32.to.zero.pseudo %v1542
    %v1799 = vcvt.f32.s32.to.zero.pseudo %v1543
    %v1800 = vcvt.f32.s32.to.zero.pseudo %v1544
    %v1801 = vcvt.f32.s32.to.zero.pseudo %v1545
    %v1802 = vcvt.f32.s32.to.zero.pseudo %v1546
    %v1803 = vcvt.f32.s32.to.zero.pseudo %v1547
    %v1804 = vcvt.f32.s32.to.zero.pseudo %v1548
    %v1805 = vcvt.f32.s32.to.zero.pseudo %v1549
    %v1806 = vcvt.f32.s32.to.zero.pseudo %v1550
    %v1807 = vsub.f32 %v783, %v1295
    %v1808 = vsub.f32 %v784, %v1296
    %v1809 = vsub.f32 %v785, %v1297
    %v1810 = vsub.f32 %v786, %v1298
    %v1811 = vsub.f32 %v787, %v1299
    %v1812 = vsub.f32 %v788, %v1300
    %v1813 = vsub.f32 %v789, %v1301
    %v1814 = vsub.f32 %v790, %v1302
    %v1815 = vsub.f32 %v791, %v1303
    %v1816 = vsub.f32 %v792, %v1304
    %v1817 = vsub.f32 %v793, %v1305
    %v1818 = vsub.f32 %v794, %v1306
    %v1819 = vsub.f32 %v795, %v1307
    %v1820 = vsub.f32 %v796, %v1308
    %v1821 = vsub.f32 %v797, %v1309
    %v1822 = vsub.f32 %v798, %v1310
    %v1823 = vsub.f32 %v799, %v1311
    %v1824 = vsub.f32 %v800, %v1312
    %v1825 = vsub.f32 %v801, %v1313
    %v1826 = vsub.f32 %v802, %v1314
    %v1827 = vsub.f32 %v803, %v1315
    %v1828 = vsub.f32 %v804, %v1316
    %v1829 = vsub.f32 %v805, %v1317
    %v1830 = vsub.f32 %v806, %v1318
    %v1831 = vsub.f32 %v807, %v1319
    %v1832 = vsub.f32 %v808, %v1320
    %v1833 = vsub.f32 %v809, %v1321
    %v1834 = vsub.f32 %v810, %v1322
    %v1835 = vsub.f32 %v811, %v1323
    %v1836 = vsub.f32 %v812, %v1324
    %v1837 = vsub.f32 %v813, %v1325
    %v1838 = vsub.f32 %v814, %v1326
    %v1839 = vsub.f32 %v815, %v1327
    %v1840 = vsub.f32 %v816, %v1328
    %v1841 = vsub.f32 %v817, %v1329
    %v1842 = vsub.f32 %v818, %v1330
    %v1843 = vsub.f32 %v819, %v1331
    %v1844 = vsub.f32 %v820, %v1332
    %v1845 = vsub.f32 %v821, %v1333
    %v1846 = vsub.f32 %v822, %v1334
    %v1847 = vsub.f32 %v823, %v1335
    %v1848 = vsub.f32 %v824, %v1336
    %v1849 = vsub.f32 %v825, %v1337
    %v1850 = vsub.f32 %v826, %v1338
    %v1851 = vsub.f32 %v827, %v1339
    %v1852 = vsub.f32 %v828, %v1340
    %v1853 = vsub.f32 %v829, %v1341
    %v1854 = vsub.f32 %v830, %v1342
    %v1855 = vsub.f32 %v831, %v1343
    %v1856 = vsub.f32 %v832, %v1344
    %v1857 = vsub.f32 %v833, %v1345
    %v1858 = vsub.f32 %v834, %v1346
    %v1859 = vsub.f32 %v835, %v1347
    %v1860 = vsub.f32 %v836, %v1348
    %v1861 = vsub.f32 %v837, %v1349
    %v1862 = vsub.f32 %v838, %v1350
    %v1863 = vsub.f32 %v839, %v1351
    %v1864 = vsub.f32 %v840, %v1352
    %v1865 = vsub.f32 %v841, %v1353
    %v1866 = vsub.f32 %v842, %v1354
    %v1867 = vsub.f32 %v843, %v1355
    %v1868 = vsub.f32 %v844, %v1356
    %v1869 = vsub.f32 %v845, %v1357
    %v1870 = vsub.f32 %v846, %v1358
    %v1871 = vsub.f32 %v847, %v1359
    %v1872 = vsub.f32 %v848, %v1360
    %v1873 = vsub.f32 %v849, %v1361
    %v1874 = vsub.f32 %v850, %v1362
    %v1875 = vsub.f32 %v851, %v1363
    %v1876 = vsub.f32 %v852, %v1364
    %v1877 = vsub.f32 %v853, %v1365
    %v1878 = vsub.f32 %v854, %v1366
    %v1879 = vsub.f32 %v855, %v1367
    %v1880 = vsub.f32 %v856, %v1368
    %v1881 = vsub.f32 %v857, %v1369
    %v1882 = vsub.f32 %v858, %v1370
    %v1883 = vsub.f32 %v859, %v1371
    %v1884 = vsub.f32 %v860, %v1372
    %v1885 = vsub.f32 %v861, %v1373
    %v1886 = vsub.f32 %v862, %v1374
    %v1887 = vsub.f32 %v863, %v1375
    %v1888 = vsub.f32 %v864, %v1376
    %v1889 = vsub.f32 %v865, %v1377
    %v1890 = vsub.f32 %v866, %v1378
    %v1891 = vsub.f32 %v867, %v1379
    %v1892 = vsub.f32 %v868, %v1380
    %v1893 = vsub.f32 %v869, %v1381
    %v1894 = vsub.f32 %v870, %v1382
    %v1895 = vsub.f32 %v871, %v1383
    %v1896 = vsub.f32 %v872, %v1384
    %v1897 = vsub.f32 %v873, %v1385
    %v1898 = vsub.f32 %v874, %v1386
    %v1899 = vsub.f32 %v875, %v1387
    %v1900 = vsub.f32 %v876, %v1388
    %v1901 = vsub.f32 %v877, %v1389
    %v1902 = vsub.f32 %v878, %v1390
    %v1903 = vsub.f32 %v879, %v1391
    %v1904 = vsub.f32 %v880, %v1392
    %v1905 = vsub.f32 %v881, %v1393
    %v1906 = vsub.f32 %v882, %v1394
    %v1907 = vsub.f32 %v883, %v1395
    %v1908 = vsub.f32 %v884, %v1396
    %v1909 = vsub.f32 %v885, %v1397
    %v1910 = vsub.f32 %v886, %v1398
    %v1911 = vsub.f32 %v887, %v1399
    %v1912 = vsub.f32 %v888, %v1400
    %v1913 = vsub.f32 %v889, %v1401
    %v1914 = vsub.f32 %v890, %v1402
    %v1915 = vsub.f32 %v891, %v1403
    %v1916 = vsub.f32 %v892, %v1404
    %v1917 = vsub.f32 %v893, %v1405
    %v1918 = vsub.f32 %v894, %v1406
    %v1919 = vsub.f32 %v895, %v1407
    %v1920 = vsub.f32 %v896, %v1408
    %v1921 = vsub.f32 %v897, %v1409
    %v1922 = vsub.f32 %v898, %v1410
    %v1923 = vsub.f32 %v899, %v1411
    %v1924 = vsub.f32 %v900, %v1412
    %v1925 = vsub.f32 %v901, %v1413
    %v1926 = vsub.f32 %v902, %v1414
    %v1927 = vsub.f32 %v903, %v1415
    %v1928 = vsub.f32 %v904, %v1416
    %v1929 = vsub.f32 %v905, %v1417
    %v1930 = vsub.f32 %v906, %v1418
    %v1931 = vsub.f32 %v907, %v1419
    %v1932 = vsub.f32 %v908, %v1420
    %v1933 = vsub.f32 %v909, %v1421
    %v1934 = vsub.f32 %v910, %v1422
    %v1935 = vsub.f32 %v911, %v1423
    %v1936 = vsub.f32 %v912, %v1424
    %v1937 = vsub.f32 %v913, %v1425
    %v1938 = vsub.f32 %v914, %v1426
    %v1939 = vsub.f32 %v915, %v1427
    %v1940 = vsub.f32 %v916, %v1428
    %v1941 = vsub.f32 %v917, %v1429
    %v1942 = vsub.f32 %v918, %v1430
    %v1943 = vsub.f32 %v919, %v1431
    %v1944 = vsub.f32 %v920, %v1432
    %v1945 = vsub.f32 %v921, %v1433
    %v1946 = vsub.f32 %v922, %v1434
    %v1947 = vsub.f32 %v923, %v1435
    %v1948 = vsub.f32 %v924, %v1436
    %v1949 = vsub.f32 %v925, %v1437
    %v1950 = vsub.f32 %v926, %v1438
    %v1951 = vsub.f32 %v927, %v1439
    %v1952 = vsub.f32 %v928, %v1440
    %v1953 = vsub.f32 %v929, %v1441
    %v1954 = vsub.f32 %v930, %v1442
    %v1955 = vsub.f32 %v931, %v1443
    %v1956 = vsub.f32 %v932, %v1444
    %v1957 = vsub.f32 %v933, %v1445
    %v1958 = vsub.f32 %v934, %v1446
    %v1959 = vsub.f32 %v935, %v1447
    %v1960 = vsub.f32 %v936, %v1448
    %v1961 = vsub.f32 %v937, %v1449
    %v1962 = vsub.f32 %v938, %v1450
    %v1963 = vsub.f32 %v939, %v1451
    %v1964 = vsub.f32 %v940, %v1452
    %v1965 = vsub.f32 %v941, %v1453
    %v1966 = vsub.f32 %v942, %v1454
    %v1967 = vsub.f32 %v943, %v1455
    %v1968 = vsub.f32 %v944, %v1456
    %v1969 = vsub.f32 %v945, %v1457
    %v1970 = vsub.f32 %v946, %v1458
    %v1971 = vsub.f32 %v947, %v1459
    %v1972 = vsub.f32 %v948, %v1460
    %v1973 = vsub.f32 %v949, %v1461
    %v1974 = vsub.f32 %v950, %v1462
    %v1975 = vsub.f32 %v951, %v1463
    %v1976 = vsub.f32 %v952, %v1464
    %v1977 = vsub.f32 %v953, %v1465
    %v1978 = vsub.f32 %v954, %v1466
    %v1979 = vsub.f32 %v955, %v1467
    %v1980 = vsub.f32 %v956, %v1468
    %v1981 = vsub.f32 %v957, %v1469
    %v1982 = vsub.f32 %v958, %v1470
    %v1983 = vsub.f32 %v959, %v1471
    %v1984 = vsub.f32 %v960, %v1472
    %v1985 = vsub.f32 %v961, %v1473
    %v1986 = vsub.f32 %v962, %v1474
    %v1987 = vsub.f32 %v963, %v1475
    %v1988 = vsub.f32 %v964, %v1476
    %v1989 = vsub.f32 %v965, %v1477
    %v1990 = vsub.f32 %v966, %v1478
    %v1991 = vsub.f32 %v967, %v1479
    %v1992 = vsub.f32 %v968, %v1480
    %v1993 = vsub.f32 %v969, %v1481
    %v1994 = vsub.f32 %v970, %v1482
    %v1995 = vsub.f32 %v971, %v1483
    %v1996 = vsub.f32 %v972, %v1484
    %v1997 = vsub.f32 %v973, %v1485
    %v1998 = vsub.f32 %v974, %v1486
    %v1999 = vsub.f32 %v975, %v1487
    %v2000 = vsub.f32 %v976, %v1488
    %v2001 = vsub.f32 %v977, %v1489
    %v2002 = vsub.f32 %v978, %v1490
    %v2003 = vsub.f32 %v979, %v1491
    %v2004 = vsub.f32 %v980, %v1492
    %v2005 = vsub.f32 %v981, %v1493
    %v2006 = vsub.f32 %v982, %v1494
    %v2007 = vsub.f32 %v983, %v1495
    %v2008 = vsub.f32 %v984, %v1496
    %v2009 = vsub.f32 %v985, %v1497
    %v2010 = vsub.f32 %v986, %v1498
    %v2011 = vsub.f32 %v987, %v1499
    %v2012 = vsub.f32 %v988, %v1500
    %v2013 = vsub.f32 %v989, %v1501
    %v2014 = vsub.f32 %v990, %v1502
    %v2015 = vsub.f32 %v991, %v1503
    %v2016 = vsub.f32 %v992, %v1504
    %v2017 = vsub.f32 %v993, %v1505
    %v2018 = vsub.f32 %v994, %v1506
    %v2019 = vsub.f32 %v995, %v1507
    %v2020 = vsub.f32 %v996, %v1508
    %v2021 = vsub.f32 %v997, %v1509
    %v2022 = vsub.f32 %v998, %v1510
    %v2023 = vsub.f32 %v999, %v1511
    %v2024 = vsub.f32 %v1000, %v1512
    %v2025 = vsub.f32 %v1001, %v1513
    %v2026 = vsub.f32 %v1002, %v1514
    %v2027 = vsub.f32 %v1003, %v1515
    %v2028 = vsub.f32 %v1004, %v1516
    %v2029 = vsub.f32 %v1005, %v1517
    %v2030 = vsub.f32 %v1006, %v1518
    %v2031 = vsub.f32 %v1007, %v1519
    %v2032 = vsub.f32 %v1008, %v1520
    %v2033 = vsub.f32 %v1009, %v1521
    %v2034 = vsub.f32 %v1010, %v1522
    %v2035 = vsub.f32 %v1011, %v1523
    %v2036 = vsub.f32 %v1012, %v1524
    %v2037 = vsub.f32 %v1013, %v1525
    %v2038 = vsub.f32 %v1014, %v1526
    %v2039 = vsub.f32 %v1015, %v1527
    %v2040 = vsub.f32 %v1016, %v1528
    %v2041 = vsub.f32 %v1017, %v1529
    %v2042 = vsub.f32 %v1018, %v1530
    %v2043 = vsub.f32 %v1019, %v1531
    %v2044 = vsub.f32 %v1020, %v1532
    %v2045 = vsub.f32 %v1021, %v1533
    %v2046 = vsub.f32 %v1022, %v1534
    %v2047 = vsub.f32 %v1023, %v1535
    %v2048 = vsub.f32 %v1024, %v1536
    %v2049 = vsub.f32 %v1025, %v1537
    %v2050 = vsub.f32 %v1026, %v1538
    %v2051 = vsub.f32 %v1027, %v1539
    %v2052 = vsub.f32 %v1028, %v1540
    %v2053 = vsub.f32 %v1029, %v1541
    %v2054 = vsub.f32 %v1030, %v1542
    %v2055 = vsub.f32 %v1031, %v1543
    %v2056 = vsub.f32 %v1032, %v1544
    %v2057 = vsub.f32 %v1033, %v1545
    %v2058 = vsub.f32 %v1034, %v1546
    %v2059 = vsub.f32 %v1035, %v1547
    %v2060 = vsub.f32 %v1036, %v1548
    %v2061 = vsub.f32 %v1037, %v1549
    %v2062 = vsub.f32 %v1038, %v1550
    %v2063 = vld [vmem:[%s1] sm:$0xf]
    %v2064 = vld [vmem:[%s2] sm:$0x7]
    %2066 = vset.pattern.permute.xlu0 0
    %2067 = vperm.xlu0 %2066, %v1807
    %v2068 = vpop.permute.xlu0 %2067
    %2071 = vset.pattern.permute.xlu0 0
    %2072 = vperm.xlu0 %2071, %v1808
    %v2073 = vpop.permute.xlu0 %2072
    %2076 = vset.pattern.permute.xlu0 0
    %2077 = vperm.xlu0 %2076, %v1809
    %v2078 = vpop.permute.xlu0 %2077
    %2081 = vset.pattern.permute.xlu0 0
    %2082 = vperm.xlu0 %2081, %v1810
    %v2083 = vpop.permute.xlu0 %2082
    %2086 = vset.pattern.permute.xlu0 0
    %2087 = vperm.xlu0 %2086, %v1811
    %v2088 = vpop.permute.xlu0 %2087
    %2091 = vset.pattern.permute.xlu0 0
    %2092 = vperm.xlu0 %2091, %v1812
    %v2093 = vpop.permute.xlu0 %2092
    %2096 = vset.pattern.permute.xlu0 0
    %2097 = vperm.xlu0 %2096, %v1813
    %v2098 = vpop.permute.xlu0 %2097
    %2101 = vset.pattern.permute.xlu0 0
    %2102 = vperm.xlu0 %2101, %v1814
    %v2103 = vpop.permute.xlu0 %2102
    %2106 = vset.pattern.permute.xlu0 0
    %2107 = vperm.xlu0 %2106, %v1815
    %v2108 = vpop.permute.xlu0 %2107
    %2111 = vset.pattern.permute.xlu0 0
    %2112 = vperm.xlu0 %2111, %v1816
    %v2113 = vpop.permute.xlu0 %2112
    %2116 = vset.pattern.permute.xlu0 0
    %2117 = vperm.xlu0 %2116, %v1817
    %v2118 = vpop.permute.xlu0 %2117
    %2121 = vset.pattern.permute.xlu0 0
    %2122 = vperm.xlu0 %2121, %v1818
    %v2123 = vpop.permute.xlu0 %2122
    %2126 = vset.pattern.permute.xlu0 0
    %2127 = vperm.xlu0 %2126, %v1819
    %v2128 = vpop.permute.xlu0 %2127
    %2131 = vset.pattern.permute.xlu0 0
    %2132 = vperm.xlu0 %2131, %v1820
    %v2133 = vpop.permute.xlu0 %2132
    %2136 = vset.pattern.permute.xlu0 0
    %2137 = vperm.xlu0 %2136, %v1821
    %v2138 = vpop.permute.xlu0 %2137
    %2141 = vset.pattern.permute.xlu0 0
    %2142 = vperm.xlu0 %2141, %v1822
    %v2143 = vpop.permute.xlu0 %2142
    %2146 = vset.pattern.permute.xlu0 0
    %2147 = vperm.xlu0 %2146, %v1823
    %v2148 = vpop.permute.xlu0 %2147
    %2151 = vset.pattern.permute.xlu0 0
    %2152 = vperm.xlu0 %2151, %v1824
    %v2153 = vpop.permute.xlu0 %2152
    %2156 = vset.pattern.permute.xlu0 0
    %2157 = vperm.xlu0 %2156, %v1825
    %v2158 = vpop.permute.xlu0 %2157
    %2161 = vset.pattern.permute.xlu0 0
    %2162 = vperm.xlu0 %2161, %v1826
    %v2163 = vpop.permute.xlu0 %2162
    %2166 = vset.pattern.permute.xlu0 0
    %2167 = vperm.xlu0 %2166, %v1827
    %v2168 = vpop.permute.xlu0 %2167
    %2171 = vset.pattern.permute.xlu0 0
    %2172 = vperm.xlu0 %2171, %v1828
    %v2173 = vpop.permute.xlu0 %2172
    %2176 = vset.pattern.permute.xlu0 0
    %2177 = vperm.xlu0 %2176, %v1829
    %v2178 = vpop.permute.xlu0 %2177
    %2181 = vset.pattern.permute.xlu0 0
    %2182 = vperm.xlu0 %2181, %v1830
    %v2183 = vpop.permute.xlu0 %2182
    %2186 = vset.pattern.permute.xlu0 0
    %2187 = vperm.xlu0 %2186, %v1831
    %v2188 = vpop.permute.xlu0 %2187
    %2191 = vset.pattern.permute.xlu0 0
    %2192 = vperm.xlu0 %2191, %v1832
    %v2193 = vpop.permute.xlu0 %2192
    %2196 = vset.pattern.permute.xlu0 0
    %2197 = vperm.xlu0 %2196, %v1833
    %v2198 = vpop.permute.xlu0 %2197
    %2201 = vset.pattern.permute.xlu0 0
    %2202 = vperm.xlu0 %2201, %v1834
    %v2203 = vpop.permute.xlu0 %2202
    %2206 = vset.pattern.permute.xlu0 0
    %2207 = vperm.xlu0 %2206, %v1835
    %v2208 = vpop.permute.xlu0 %2207
    %2211 = vset.pattern.permute.xlu0 0
    %2212 = vperm.xlu0 %2211, %v1836
    %v2213 = vpop.permute.xlu0 %2212
    %2216 = vset.pattern.permute.xlu0 0
    %2217 = vperm.xlu0 %2216, %v1837
    %v2218 = vpop.permute.xlu0 %2217
    %2221 = vset.pattern.permute.xlu0 0
    %2222 = vperm.xlu0 %2221, %v1838
    %v2223 = vpop.permute.xlu0 %2222
    %2226 = vset.pattern.permute.xlu0 0
    %2227 = vperm.xlu0 %2226, %v1839
    %v2228 = vpop.permute.xlu0 %2227
    %2231 = vset.pattern.permute.xlu0 0
    %2232 = vperm.xlu0 %2231, %v1840
    %v2233 = vpop.permute.xlu0 %2232
    %2236 = vset.pattern.permute.xlu0 0
    %2237 = vperm.xlu0 %2236, %v1841
    %v2238 = vpop.permute.xlu0 %2237
    %2241 = vset.pattern.permute.xlu0 0
    %2242 = vperm.xlu0 %2241, %v1842
    %v2243 = vpop.permute.xlu0 %2242
    %2246 = vset.pattern.permute.xlu0 0
    %2247 = vperm.xlu0 %2246, %v1843
    %v2248 = vpop.permute.xlu0 %2247
    %2251 = vset.pattern.permute.xlu0 0
    %2252 = vperm.xlu0 %2251, %v1844
    %v2253 = vpop.permute.xlu0 %2252
    %2256 = vset.pattern.permute.xlu0 0
    %2257 = vperm.xlu0 %2256, %v1845
    %v2258 = vpop.permute.xlu0 %2257
    %2261 = vset.pattern.permute.xlu0 0
    %2262 = vperm.xlu0 %2261, %v1846
    %v2263 = vpop.permute.xlu0 %2262
    %2266 = vset.pattern.permute.xlu0 0
    %2267 = vperm.xlu0 %2266, %v1847
    %v2268 = vpop.permute.xlu0 %2267
    %2271 = vset.pattern.permute.xlu0 0
    %2272 = vperm.xlu0 %2271, %v1848
    %v2273 = vpop.permute.xlu0 %2272
    %2276 = vset.pattern.permute.xlu0 0
    %2277 = vperm.xlu0 %2276, %v1849
    %v2278 = vpop.permute.xlu0 %2277
    %2281 = vset.pattern.permute.xlu0 0
    %2282 = vperm.xlu0 %2281, %v1850
    %v2283 = vpop.permute.xlu0 %2282
    %2286 = vset.pattern.permute.xlu0 0
    %2287 = vperm.xlu0 %2286, %v1851
    %v2288 = vpop.permute.xlu0 %2287
    %2291 = vset.pattern.permute.xlu0 0
    %2292 = vperm.xlu0 %2291, %v1852
    %v2293 = vpop.permute.xlu0 %2292
    %2296 = vset.pattern.permute.xlu0 0
    %2297 = vperm.xlu0 %2296, %v1853
    %v2298 = vpop.permute.xlu0 %2297
    %2301 = vset.pattern.permute.xlu0 0
    %2302 = vperm.xlu0 %2301, %v1854
    %v2303 = vpop.permute.xlu0 %2302
    %2306 = vset.pattern.permute.xlu0 0
    %2307 = vperm.xlu0 %2306, %v1855
    %v2308 = vpop.permute.xlu0 %2307
    %2311 = vset.pattern.permute.xlu0 0
    %2312 = vperm.xlu0 %2311, %v1856
    %v2313 = vpop.permute.xlu0 %2312
    %2316 = vset.pattern.permute.xlu0 0
    %2317 = vperm.xlu0 %2316, %v1857
    %v2318 = vpop.permute.xlu0 %2317
    %2321 = vset.pattern.permute.xlu0 0
    %2322 = vperm.xlu0 %2321, %v1858
    %v2323 = vpop.permute.xlu0 %2322
    %2326 = vset.pattern.permute.xlu0 0
    %2327 = vperm.xlu0 %2326, %v1859
    %v2328 = vpop.permute.xlu0 %2327
    %2331 = vset.pattern.permute.xlu0 0
    %2332 = vperm.xlu0 %2331, %v1860
    %v2333 = vpop.permute.xlu0 %2332
    %2336 = vset.pattern.permute.xlu0 0
    %2337 = vperm.xlu0 %2336, %v1861
    %v2338 = vpop.permute.xlu0 %2337
    %2341 = vset.pattern.permute.xlu0 0
    %2342 = vperm.xlu0 %2341, %v1862
    %v2343 = vpop.permute.xlu0 %2342
    %2346 = vset.pattern.permute.xlu0 0
    %2347 = vperm.xlu0 %2346, %v1863
    %v2348 = vpop.permute.xlu0 %2347
    %2351 = vset.pattern.permute.xlu0 0
    %2352 = vperm.xlu0 %2351, %v1864
    %v2353 = vpop.permute.xlu0 %2352
    %2356 = vset.pattern.permute.xlu0 0
    %2357 = vperm.xlu0 %2356, %v1865
    %v2358 = vpop.permute.xlu0 %2357
    %2361 = vset.pattern.permute.xlu0 0
    %2362 = vperm.xlu0 %2361, %v1866
    %v2363 = vpop.permute.xlu0 %2362
    %2366 = vset.pattern.permute.xlu0 0
    %2367 = vperm.xlu0 %2366, %v1867
    %v2368 = vpop.permute.xlu0 %2367
    %2371 = vset.pattern.permute.xlu0 0
    %2372 = vperm.xlu0 %2371, %v1868
    %v2373 = vpop.permute.xlu0 %2372
    %2376 = vset.pattern.permute.xlu0 0
    %2377 = vperm.xlu0 %2376, %v1869
    %v2378 = vpop.permute.xlu0 %2377
    %2381 = vset.pattern.permute.xlu0 0
    %2382 = vperm.xlu0 %2381, %v1870
    %v2383 = vpop.permute.xlu0 %2382
    %2386 = vset.pattern.permute.xlu0 0
    %2387 = vperm.xlu0 %2386, %v1871
    %v2388 = vpop.permute.xlu0 %2387
    %2391 = vset.pattern.permute.xlu0 0
    %2392 = vperm.xlu0 %2391, %v1872
    %v2393 = vpop.permute.xlu0 %2392
    %2396 = vset.pattern.permute.xlu0 0
    %2397 = vperm.xlu0 %2396, %v1873
    %v2398 = vpop.permute.xlu0 %2397
    %2401 = vset.pattern.permute.xlu0 0
    %2402 = vperm.xlu0 %2401, %v1874
    %v2403 = vpop.permute.xlu0 %2402
    %2406 = vset.pattern.permute.xlu0 0
    %2407 = vperm.xlu0 %2406, %v1875
    %v2408 = vpop.permute.xlu0 %2407
    %2411 = vset.pattern.permute.xlu0 0
    %2412 = vperm.xlu0 %2411, %v1876
    %v2413 = vpop.permute.xlu0 %2412
    %2416 = vset.pattern.permute.xlu0 0
    %2417 = vperm.xlu0 %2416, %v1877
    %v2418 = vpop.permute.xlu0 %2417
    %2421 = vset.pattern.permute.xlu0 0
    %2422 = vperm.xlu0 %2421, %v1878
    %v2423 = vpop.permute.xlu0 %2422
    %2426 = vset.pattern.permute.xlu0 0
    %2427 = vperm.xlu0 %2426, %v1879
    %v2428 = vpop.permute.xlu0 %2427
    %2431 = vset.pattern.permute.xlu0 0
    %2432 = vperm.xlu0 %2431, %v1880
    %v2433 = vpop.permute.xlu0 %2432
    %2436 = vset.pattern.permute.xlu0 0
    %2437 = vperm.xlu0 %2436, %v1881
    %v2438 = vpop.permute.xlu0 %2437
    %2441 = vset.pattern.permute.xlu0 0
    %2442 = vperm.xlu0 %2441, %v1882
    %v2443 = vpop.permute.xlu0 %2442
    %2446 = vset.pattern.permute.xlu0 0
    %2447 = vperm.xlu0 %2446, %v1883
    %v2448 = vpop.permute.xlu0 %2447
    %2451 = vset.pattern.permute.xlu0 0
    %2452 = vperm.xlu0 %2451, %v1884
    %v2453 = vpop.permute.xlu0 %2452
    %2456 = vset.pattern.permute.xlu0 0
    %2457 = vperm.xlu0 %2456, %v1885
    %v2458 = vpop.permute.xlu0 %2457
    %2461 = vset.pattern.permute.xlu0 0
    %2462 = vperm.xlu0 %2461, %v1886
    %v2463 = vpop.permute.xlu0 %2462
    %2466 = vset.pattern.permute.xlu0 0
    %2467 = vperm.xlu0 %2466, %v1887
    %v2468 = vpop.permute.xlu0 %2467
    %2471 = vset.pattern.permute.xlu0 0
    %2472 = vperm.xlu0 %2471, %v1888
    %v2473 = vpop.permute.xlu0 %2472
    %2476 = vset.pattern.permute.xlu0 0
    %2477 = vperm.xlu0 %2476, %v1889
    %v2478 = vpop.permute.xlu0 %2477
    %2481 = vset.pattern.permute.xlu0 0
    %2482 = vperm.xlu0 %2481, %v1890
    %v2483 = vpop.permute.xlu0 %2482
    %2486 = vset.pattern.permute.xlu0 0
    %2487 = vperm.xlu0 %2486, %v1891
    %v2488 = vpop.permute.xlu0 %2487
    %2491 = vset.pattern.permute.xlu0 0
    %2492 = vperm.xlu0 %2491, %v1892
    %v2493 = vpop.permute.xlu0 %2492
    %2496 = vset.pattern.permute.xlu0 0
    %2497 = vperm.xlu0 %2496, %v1893
    %v2498 = vpop.permute.xlu0 %2497
    %2501 = vset.pattern.permute.xlu0 0
    %2502 = vperm.xlu0 %2501, %v1894
    %v2503 = vpop.permute.xlu0 %2502
    %2506 = vset.pattern.permute.xlu0 0
    %2507 = vperm.xlu0 %2506, %v1895
    %v2508 = vpop.permute.xlu0 %2507
    %2511 = vset.pattern.permute.xlu0 0
    %2512 = vperm.xlu0 %2511, %v1896
    %v2513 = vpop.permute.xlu0 %2512
    %2516 = vset.pattern.permute.xlu0 0
    %2517 = vperm.xlu0 %2516, %v1897
    %v2518 = vpop.permute.xlu0 %2517
    %2521 = vset.pattern.permute.xlu0 0
    %2522 = vperm.xlu0 %2521, %v1898
    %v2523 = vpop.permute.xlu0 %2522
    %2526 = vset.pattern.permute.xlu0 0
    %2527 = vperm.xlu0 %2526, %v1899
    %v2528 = vpop.permute.xlu0 %2527
    %2531 = vset.pattern.permute.xlu0 0
    %2532 = vperm.xlu0 %2531, %v1900
    %v2533 = vpop.permute.xlu0 %2532
    %2536 = vset.pattern.permute.xlu0 0
    %2537 = vperm.xlu0 %2536, %v1901
    %v2538 = vpop.permute.xlu0 %2537
    %2541 = vset.pattern.permute.xlu0 0
    %2542 = vperm.xlu0 %2541, %v1902
    %v2543 = vpop.permute.xlu0 %2542
    %2546 = vset.pattern.permute.xlu0 0
    %2547 = vperm.xlu0 %2546, %v1903
    %v2548 = vpop.permute.xlu0 %2547
    %2551 = vset.pattern.permute.xlu0 0
    %2552 = vperm.xlu0 %2551, %v1904
    %v2553 = vpop.permute.xlu0 %2552
    %2556 = vset.pattern.permute.xlu0 0
    %2557 = vperm.xlu0 %2556, %v1905
    %v2558 = vpop.permute.xlu0 %2557
    %2561 = vset.pattern.permute.xlu0 0
    %2562 = vperm.xlu0 %2561, %v1906
    %v2563 = vpop.permute.xlu0 %2562
    %2566 = vset.pattern.permute.xlu0 0
    %2567 = vperm.xlu0 %2566, %v1907
    %v2568 = vpop.permute.xlu0 %2567
    %2571 = vset.pattern.permute.xlu0 0
    %2572 = vperm.xlu0 %2571, %v1908
    %v2573 = vpop.permute.xlu0 %2572
    %2576 = vset.pattern.permute.xlu0 0
    %2577 = vperm.xlu0 %2576, %v1909
    %v2578 = vpop.permute.xlu0 %2577
    %2581 = vset.pattern.permute.xlu0 0
    %2582 = vperm.xlu0 %2581, %v1910
    %v2583 = vpop.permute.xlu0 %2582
    %2586 = vset.pattern.permute.xlu0 0
    %2587 = vperm.xlu0 %2586, %v1911
    %v2588 = vpop.permute.xlu0 %2587
    %2591 = vset.pattern.permute.xlu0 0
    %2592 = vperm.xlu0 %2591, %v1912
    %v2593 = vpop.permute.xlu0 %2592
    %2596 = vset.pattern.permute.xlu0 0
    %2597 = vperm.xlu0 %2596, %v1913
    %v2598 = vpop.permute.xlu0 %2597
    %2601 = vset.pattern.permute.xlu0 0
    %2602 = vperm.xlu0 %2601, %v1914
    %v2603 = vpop.permute.xlu0 %2602
    %2606 = vset.pattern.permute.xlu0 0
    %2607 = vperm.xlu0 %2606, %v1915
    %v2608 = vpop.permute.xlu0 %2607
    %2611 = vset.pattern.permute.xlu0 0
    %2612 = vperm.xlu0 %2611, %v1916
    %v2613 = vpop.permute.xlu0 %2612
    %2616 = vset.pattern.permute.xlu0 0
    %2617 = vperm.xlu0 %2616, %v1917
    %v2618 = vpop.permute.xlu0 %2617
    %2621 = vset.pattern.permute.xlu0 0
    %2622 = vperm.xlu0 %2621, %v1918
    %v2623 = vpop.permute.xlu0 %2622
    %2626 = vset.pattern.permute.xlu0 0
    %2627 = vperm.xlu0 %2626, %v1919
    %v2628 = vpop.permute.xlu0 %2627
    %2631 = vset.pattern.permute.xlu0 0
    %2632 = vperm.xlu0 %2631, %v1920
    %v2633 = vpop.permute.xlu0 %2632
    %2636 = vset.pattern.permute.xlu0 0
    %2637 = vperm.xlu0 %2636, %v1921
    %v2638 = vpop.permute.xlu0 %2637
    %2641 = vset.pattern.permute.xlu0 0
    %2642 = vperm.xlu0 %2641, %v1922
    %v2643 = vpop.permute.xlu0 %2642
    %2646 = vset.pattern.permute.xlu0 0
    %2647 = vperm.xlu0 %2646, %v1923
    %v2648 = vpop.permute.xlu0 %2647
    %2651 = vset.pattern.permute.xlu0 0
    %2652 = vperm.xlu0 %2651, %v1924
    %v2653 = vpop.permute.xlu0 %2652
    %2656 = vset.pattern.permute.xlu0 0
    %2657 = vperm.xlu0 %2656, %v1925
    %v2658 = vpop.permute.xlu0 %2657
    %2661 = vset.pattern.permute.xlu0 0
    %2662 = vperm.xlu0 %2661, %v1926
    %v2663 = vpop.permute.xlu0 %2662
    %2666 = vset.pattern.permute.xlu0 0
    %2667 = vperm.xlu0 %2666, %v1927
    %v2668 = vpop.permute.xlu0 %2667
    %2671 = vset.pattern.permute.xlu0 0
    %2672 = vperm.xlu0 %2671, %v1928
    %v2673 = vpop.permute.xlu0 %2672
    %2676 = vset.pattern.permute.xlu0 0
    %2677 = vperm.xlu0 %2676, %v1929
    %v2678 = vpop.permute.xlu0 %2677
    %2681 = vset.pattern.permute.xlu0 0
    %2682 = vperm.xlu0 %2681, %v1930
    %v2683 = vpop.permute.xlu0 %2682
    %2686 = vset.pattern.permute.xlu0 0
    %2687 = vperm.xlu0 %2686, %v1931
    %v2688 = vpop.permute.xlu0 %2687
    %2691 = vset.pattern.permute.xlu0 0
    %2692 = vperm.xlu0 %2691, %v1932
    %v2693 = vpop.permute.xlu0 %2692
    %2696 = vset.pattern.permute.xlu0 0
    %2697 = vperm.xlu0 %2696, %v1933
    %v2698 = vpop.permute.xlu0 %2697
    %2701 = vset.pattern.permute.xlu0 0
    %2702 = vperm.xlu0 %2701, %v1934
    %v2703 = vpop.permute.xlu0 %2702
    %2706 = vset.pattern.permute.xlu0 0
    %2707 = vperm.xlu0 %2706, %v1935
    %v2708 = vpop.permute.xlu0 %2707
    %2711 = vset.pattern.permute.xlu0 0
    %2712 = vperm.xlu0 %2711, %v1936
    %v2713 = vpop.permute.xlu0 %2712
    %2716 = vset.pattern.permute.xlu0 0
    %2717 = vperm.xlu0 %2716, %v1937
    %v2718 = vpop.permute.xlu0 %2717
    %2721 = vset.pattern.permute.xlu0 0
    %2722 = vperm.xlu0 %2721, %v1938
    %v2723 = vpop.permute.xlu0 %2722
    %2726 = vset.pattern.permute.xlu0 0
    %2727 = vperm.xlu0 %2726, %v1939
    %v2728 = vpop.permute.xlu0 %2727
    %2731 = vset.pattern.permute.xlu0 0
    %2732 = vperm.xlu0 %2731, %v1940
    %v2733 = vpop.permute.xlu0 %2732
    %2736 = vset.pattern.permute.xlu0 0
    %2737 = vperm.xlu0 %2736, %v1941
    %v2738 = vpop.permute.xlu0 %2737
    %2741 = vset.pattern.permute.xlu0 0
    %2742 = vperm.xlu0 %2741, %v1942
    %v2743 = vpop.permute.xlu0 %2742
    %2746 = vset.pattern.permute.xlu0 0
    %2747 = vperm.xlu0 %2746, %v1943
    %v2748 = vpop.permute.xlu0 %2747
    %2751 = vset.pattern.permute.xlu0 0
    %2752 = vperm.xlu0 %2751, %v1944
    %v2753 = vpop.permute.xlu0 %2752
    %2756 = vset.pattern.permute.xlu0 0
    %2757 = vperm.xlu0 %2756, %v1945
    %v2758 = vpop.permute.xlu0 %2757
    %2761 = vset.pattern.permute.xlu0 0
    %2762 = vperm.xlu0 %2761, %v1946
    %v2763 = vpop.permute.xlu0 %2762
    %2766 = vset.pattern.permute.xlu0 0
    %2767 = vperm.xlu0 %2766, %v1947
    %v2768 = vpop.permute.xlu0 %2767
    %2771 = vset.pattern.permute.xlu0 0
    %2772 = vperm.xlu0 %2771, %v1948
    %v2773 = vpop.permute.xlu0 %2772
    %2776 = vset.pattern.permute.xlu0 0
    %2777 = vperm.xlu0 %2776, %v1949
    %v2778 = vpop.permute.xlu0 %2777
    %2781 = vset.pattern.permute.xlu0 0
    %2782 = vperm.xlu0 %2781, %v1950
    %v2783 = vpop.permute.xlu0 %2782
    %2786 = vset.pattern.permute.xlu0 0
    %2787 = vperm.xlu0 %2786, %v1951
    %v2788 = vpop.permute.xlu0 %2787
    %2791 = vset.pattern.permute.xlu0 0
    %2792 = vperm.xlu0 %2791, %v1952
    %v2793 = vpop.permute.xlu0 %2792
    %2796 = vset.pattern.permute.xlu0 0
    %2797 = vperm.xlu0 %2796, %v1953
    %v2798 = vpop.permute.xlu0 %2797
    %2801 = vset.pattern.permute.xlu0 0
    %2802 = vperm.xlu0 %2801, %v1954
    %v2803 = vpop.permute.xlu0 %2802
    %2806 = vset.pattern.permute.xlu0 0
    %2807 = vperm.xlu0 %2806, %v1955
    %v2808 = vpop.permute.xlu0 %2807
    %2811 = vset.pattern.permute.xlu0 0
    %2812 = vperm.xlu0 %2811, %v1956
    %v2813 = vpop.permute.xlu0 %2812
    %2816 = vset.pattern.permute.xlu0 0
    %2817 = vperm.xlu0 %2816, %v1957
    %v2818 = vpop.permute.xlu0 %2817
    %2821 = vset.pattern.permute.xlu0 0
    %2822 = vperm.xlu0 %2821, %v1958
    %v2823 = vpop.permute.xlu0 %2822
    %2826 = vset.pattern.permute.xlu0 0
    %2827 = vperm.xlu0 %2826, %v1959
    %v2828 = vpop.permute.xlu0 %2827
    %2831 = vset.pattern.permute.xlu0 0
    %2832 = vperm.xlu0 %2831, %v1960
    %v2833 = vpop.permute.xlu0 %2832
    %2836 = vset.pattern.permute.xlu0 0
    %2837 = vperm.xlu0 %2836, %v1961
    %v2838 = vpop.permute.xlu0 %2837
    %2841 = vset.pattern.permute.xlu0 0
    %2842 = vperm.xlu0 %2841, %v1962
    %v2843 = vpop.permute.xlu0 %2842
    %2846 = vset.pattern.permute.xlu0 0
    %2847 = vperm.xlu0 %2846, %v1963
    %v2848 = vpop.permute.xlu0 %2847
    %2851 = vset.pattern.permute.xlu0 0
    %2852 = vperm.xlu0 %2851, %v1964
    %v2853 = vpop.permute.xlu0 %2852
    %2856 = vset.pattern.permute.xlu0 0
    %2857 = vperm.xlu0 %2856, %v1965
    %v2858 = vpop.permute.xlu0 %2857
    %2861 = vset.pattern.permute.xlu0 0
    %2862 = vperm.xlu0 %2861, %v1966
    %v2863 = vpop.permute.xlu0 %2862
    %2866 = vset.pattern.permute.xlu0 0
    %2867 = vperm.xlu0 %2866, %v1967
    %v2868 = vpop.permute.xlu0 %2867
    %2871 = vset.pattern.permute.xlu0 0
    %2872 = vperm.xlu0 %2871, %v1968
    %v2873 = vpop.permute.xlu0 %2872
    %2876 = vset.pattern.permute.xlu0 0
    %2877 = vperm.xlu0 %2876, %v1969
    %v2878 = vpop.permute.xlu0 %2877
    %2881 = vset.pattern.permute.xlu0 0
    %2882 = vperm.xlu0 %2881, %v1970
    %v2883 = vpop.permute.xlu0 %2882
    %2886 = vset.pattern.permute.xlu0 0
    %2887 = vperm.xlu0 %2886, %v1971
    %v2888 = vpop.permute.xlu0 %2887
    %2891 = vset.pattern.permute.xlu0 0
    %2892 = vperm.xlu0 %2891, %v1972
    %v2893 = vpop.permute.xlu0 %2892
    %2896 = vset.pattern.permute.xlu0 0
    %2897 = vperm.xlu0 %2896, %v1973
    %v2898 = vpop.permute.xlu0 %2897
    %2901 = vset.pattern.permute.xlu0 0
    %2902 = vperm.xlu0 %2901, %v1974
    %v2903 = vpop.permute.xlu0 %2902
    %2906 = vset.pattern.permute.xlu0 0
    %2907 = vperm.xlu0 %2906, %v1975
    %v2908 = vpop.permute.xlu0 %2907
    %2911 = vset.pattern.permute.xlu0 0
    %2912 = vperm.xlu0 %2911, %v1976
    %v2913 = vpop.permute.xlu0 %2912
    %2916 = vset.pattern.permute.xlu0 0
    %2917 = vperm.xlu0 %2916, %v1977
    %v2918 = vpop.permute.xlu0 %2917
    %2921 = vset.pattern.permute.xlu0 0
    %2922 = vperm.xlu0 %2921, %v1978
    %v2923 = vpop.permute.xlu0 %2922
    %2926 = vset.pattern.permute.xlu0 0
    %2927 = vperm.xlu0 %2926, %v1979
    %v2928 = vpop.permute.xlu0 %2927
    %2931 = vset.pattern.permute.xlu0 0
    %2932 = vperm.xlu0 %2931, %v1980
    %v2933 = vpop.permute.xlu0 %2932
    %2936 = vset.pattern.permute.xlu0 0
    %2937 = vperm.xlu0 %2936, %v1981
    %v2938 = vpop.permute.xlu0 %2937
    %2941 = vset.pattern.permute.xlu0 0
    %2942 = vperm.xlu0 %2941, %v1982
    %v2943 = vpop.permute.xlu0 %2942
    %2946 = vset.pattern.permute.xlu0 0
    %2947 = vperm.xlu0 %2946, %v1983
    %v2948 = vpop.permute.xlu0 %2947
    %2951 = vset.pattern.permute.xlu0 0
    %2952 = vperm.xlu0 %2951, %v1984
    %v2953 = vpop.permute.xlu0 %2952
    %2956 = vset.pattern.permute.xlu0 0
    %2957 = vperm.xlu0 %2956, %v1985
    %v2958 = vpop.permute.xlu0 %2957
    %2961 = vset.pattern.permute.xlu0 0
    %2962 = vperm.xlu0 %2961, %v1986
    %v2963 = vpop.permute.xlu0 %2962
    %2966 = vset.pattern.permute.xlu0 0
    %2967 = vperm.xlu0 %2966, %v1987
    %v2968 = vpop.permute.xlu0 %2967
    %2971 = vset.pattern.permute.xlu0 0
    %2972 = vperm.xlu0 %2971, %v1988
    %v2973 = vpop.permute.xlu0 %2972
    %2976 = vset.pattern.permute.xlu0 0
    %2977 = vperm.xlu0 %2976, %v1989
    %v2978 = vpop.permute.xlu0 %2977
    %2981 = vset.pattern.permute.xlu0 0
    %2982 = vperm.xlu0 %2981, %v1990
    %v2983 = vpop.permute.xlu0 %2982
    %2986 = vset.pattern.permute.xlu0 0
    %2987 = vperm.xlu0 %2986, %v1991
    %v2988 = vpop.permute.xlu0 %2987
    %2991 = vset.pattern.permute.xlu0 0
    %2992 = vperm.xlu0 %2991, %v1992
    %v2993 = vpop.permute.xlu0 %2992
    %2996 = vset.pattern.permute.xlu0 0
    %2997 = vperm.xlu0 %2996, %v1993
    %v2998 = vpop.permute.xlu0 %2997
    %3001 = vset.pattern.permute.xlu0 0
    %3002 = vperm.xlu0 %3001, %v1994
    %v3003 = vpop.permute.xlu0 %3002
    %3006 = vset.pattern.permute.xlu0 0
    %3007 = vperm.xlu0 %3006, %v1995
    %v3008 = vpop.permute.xlu0 %3007
    %3011 = vset.pattern.permute.xlu0 0
    %3012 = vperm.xlu0 %3011, %v1996
    %v3013 = vpop.permute.xlu0 %3012
    %3016 = vset.pattern.permute.xlu0 0
    %3017 = vperm.xlu0 %3016, %v1997
    %v3018 = vpop.permute.xlu0 %3017
    %3021 = vset.pattern.permute.xlu0 0
    %3022 = vperm.xlu0 %3021, %v1998
    %v3023 = vpop.permute.xlu0 %3022
    %3026 = vset.pattern.permute.xlu0 0
    %3027 = vperm.xlu0 %3026, %v1999
    %v3028 = vpop.permute.xlu0 %3027
    %3031 = vset.pattern.permute.xlu0 0
    %3032 = vperm.xlu0 %3031, %v2000
    %v3033 = vpop.permute.xlu0 %3032
    %3036 = vset.pattern.permute.xlu0 0
    %3037 = vperm.xlu0 %3036, %v2001
    %v3038 = vpop.permute.xlu0 %3037
    %3041 = vset.pattern.permute.xlu0 0
    %3042 = vperm.xlu0 %3041, %v2002
    %v3043 = vpop.permute.xlu0 %3042
    %3046 = vset.pattern.permute.xlu0 0
    %3047 = vperm.xlu0 %3046, %v2003
    %v3048 = vpop.permute.xlu0 %3047
    %3051 = vset.pattern.permute.xlu0 0
    %3052 = vperm.xlu0 %3051, %v2004
    %v3053 = vpop.permute.xlu0 %3052
    %3056 = vset.pattern.permute.xlu0 0
    %3057 = vperm.xlu0 %3056, %v2005
    %v3058 = vpop.permute.xlu0 %3057
    %3061 = vset.pattern.permute.xlu0 0
    %3062 = vperm.xlu0 %3061, %v2006
    %v3063 = vpop.permute.xlu0 %3062
    %3066 = vset.pattern.permute.xlu0 0
    %3067 = vperm.xlu0 %3066, %v2007
    %v3068 = vpop.permute.xlu0 %3067
    %3071 = vset.pattern.permute.xlu0 0
    %3072 = vperm.xlu0 %3071, %v2008
    %v3073 = vpop.permute.xlu0 %3072
    %3076 = vset.pattern.permute.xlu0 0
    %3077 = vperm.xlu0 %3076, %v2009
    %v3078 = vpop.permute.xlu0 %3077
    %3081 = vset.pattern.permute.xlu0 0
    %3082 = vperm.xlu0 %3081, %v2010
    %v3083 = vpop.permute.xlu0 %3082
    %3086 = vset.pattern.permute.xlu0 0
    %3087 = vperm.xlu0 %3086, %v2011
    %v3088 = vpop.permute.xlu0 %3087
    %3091 = vset.pattern.permute.xlu0 0
    %3092 = vperm.xlu0 %3091, %v2012
    %v3093 = vpop.permute.xlu0 %3092
    %3096 = vset.pattern.permute.xlu0 0
    %3097 = vperm.xlu0 %3096, %v2013
    %v3098 = vpop.permute.xlu0 %3097
    %3101 = vset.pattern.permute.xlu0 0
    %3102 = vperm.xlu0 %3101, %v2014
    %v3103 = vpop.permute.xlu0 %3102
    %3106 = vset.pattern.permute.xlu0 0
    %3107 = vperm.xlu0 %3106, %v2015
    %v3108 = vpop.permute.xlu0 %3107
    %3111 = vset.pattern.permute.xlu0 0
    %3112 = vperm.xlu0 %3111, %v2016
    %v3113 = vpop.permute.xlu0 %3112
    %3116 = vset.pattern.permute.xlu0 0
    %3117 = vperm.xlu0 %3116, %v2017
    %v3118 = vpop.permute.xlu0 %3117
    %3121 = vset.pattern.permute.xlu0 0
    %3122 = vperm.xlu0 %3121, %v2018
    %v3123 = vpop.permute.xlu0 %3122
    %3126 = vset.pattern.permute.xlu0 0
    %3127 = vperm.xlu0 %3126, %v2019
    %v3128 = vpop.permute.xlu0 %3127
    %3131 = vset.pattern.permute.xlu0 0
    %3132 = vperm.xlu0 %3131, %v2020
    %v3133 = vpop.permute.xlu0 %3132
    %3136 = vset.pattern.permute.xlu0 0
    %3137 = vperm.xlu0 %3136, %v2021
    %v3138 = vpop.permute.xlu0 %3137
    %3141 = vset.pattern.permute.xlu0 0
    %3142 = vperm.xlu0 %3141, %v2022
    %v3143 = vpop.permute.xlu0 %3142
    %3146 = vset.pattern.permute.xlu0 0
    %3147 = vperm.xlu0 %3146, %v2023
    %v3148 = vpop.permute.xlu0 %3147
    %3151 = vset.pattern.permute.xlu0 0
    %3152 = vperm.xlu0 %3151, %v2024
    %v3153 = vpop.permute.xlu0 %3152
    %3156 = vset.pattern.permute.xlu0 0
    %3157 = vperm.xlu0 %3156, %v2025
    %v3158 = vpop.permute.xlu0 %3157
    %3161 = vset.pattern.permute.xlu0 0
    %3162 = vperm.xlu0 %3161, %v2026
    %v3163 = vpop.permute.xlu0 %3162
    %3166 = vset.pattern.permute.xlu0 0
    %3167 = vperm.xlu0 %3166, %v2027
    %v3168 = vpop.permute.xlu0 %3167
    %3171 = vset.pattern.permute.xlu0 0
    %3172 = vperm.xlu0 %3171, %v2028
    %v3173 = vpop.permute.xlu0 %3172
    %3176 = vset.pattern.permute.xlu0 0
    %3177 = vperm.xlu0 %3176, %v2029
    %v3178 = vpop.permute.xlu0 %3177
    %3181 = vset.pattern.permute.xlu0 0
    %3182 = vperm.xlu0 %3181, %v2030
    %v3183 = vpop.permute.xlu0 %3182
    %3186 = vset.pattern.permute.xlu0 0
    %3187 = vperm.xlu0 %3186, %v2031
    %v3188 = vpop.permute.xlu0 %3187
    %3191 = vset.pattern.permute.xlu0 0
    %3192 = vperm.xlu0 %3191, %v2032
    %v3193 = vpop.permute.xlu0 %3192
    %3196 = vset.pattern.permute.xlu0 0
    %3197 = vperm.xlu0 %3196, %v2033
    %v3198 = vpop.permute.xlu0 %3197
    %3201 = vset.pattern.permute.xlu0 0
    %3202 = vperm.xlu0 %3201, %v2034
    %v3203 = vpop.permute.xlu0 %3202
    %3206 = vset.pattern.permute.xlu0 0
    %3207 = vperm.xlu0 %3206, %v2035
    %v3208 = vpop.permute.xlu0 %3207
    %3211 = vset.pattern.permute.xlu0 0
    %3212 = vperm.xlu0 %3211, %v2036
    %v3213 = vpop.permute.xlu0 %3212
    %3216 = vset.pattern.permute.xlu0 0
    %3217 = vperm.xlu0 %3216, %v2037
    %v3218 = vpop.permute.xlu0 %3217
    %3221 = vset.pattern.permute.xlu0 0
    %3222 = vperm.xlu0 %3221, %v2038
    %v3223 = vpop.permute.xlu0 %3222
    %3226 = vset.pattern.permute.xlu0 0
    %3227 = vperm.xlu0 %3226, %v2039
    %v3228 = vpop.permute.xlu0 %3227
    %3231 = vset.pattern.permute.xlu0 0
    %3232 = vperm.xlu0 %3231, %v2040
    %v3233 = vpop.permute.xlu0 %3232
    %3236 = vset.pattern.permute.xlu0 0
    %3237 = vperm.xlu0 %3236, %v2041
    %v3238 = vpop.permute.xlu0 %3237
    %3241 = vset.pattern.permute.xlu0 0
    %3242 = vperm.xlu0 %3241, %v2042
    %v3243 = vpop.permute.xlu0 %3242
    %3246 = vset.pattern.permute.xlu0 0
    %3247 = vperm.xlu0 %3246, %v2043
    %v3248 = vpop.permute.xlu0 %3247
    %3251 = vset.pattern.permute.xlu0 0
    %3252 = vperm.xlu0 %3251, %v2044
    %v3253 = vpop.permute.xlu0 %3252
    %3256 = vset.pattern.permute.xlu0 0
    %3257 = vperm.xlu0 %3256, %v2045
    %v3258 = vpop.permute.xlu0 %3257
    %3261 = vset.pattern.permute.xlu0 0
    %3262 = vperm.xlu0 %3261, %v2046
    %v3263 = vpop.permute.xlu0 %3262
    %3266 = vset.pattern.permute.xlu0 0
    %3267 = vperm.xlu0 %3266, %v2047
    %v3268 = vpop.permute.xlu0 %3267
    %3271 = vset.pattern.permute.xlu0 0
    %3272 = vperm.xlu0 %3271, %v2048
    %v3273 = vpop.permute.xlu0 %3272
    %3276 = vset.pattern.permute.xlu0 0
    %3277 = vperm.xlu0 %3276, %v2049
    %v3278 = vpop.permute.xlu0 %3277
    %3281 = vset.pattern.permute.xlu0 0
    %3282 = vperm.xlu0 %3281, %v2050
    %v3283 = vpop.permute.xlu0 %3282
    %3286 = vset.pattern.permute.xlu0 0
    %3287 = vperm.xlu0 %3286, %v2051
    %v3288 = vpop.permute.xlu0 %3287
    %3291 = vset.pattern.permute.xlu0 0
    %3292 = vperm.xlu0 %3291, %v2052
    %v3293 = vpop.permute.xlu0 %3292
    %3296 = vset.pattern.permute.xlu0 0
    %3297 = vperm.xlu0 %3296, %v2053
    %v3298 = vpop.permute.xlu0 %3297
    %3301 = vset.pattern.permute.xlu0 0
    %3302 = vperm.xlu0 %3301, %v2054
    %v3303 = vpop.permute.xlu0 %3302
    %3306 = vset.pattern.permute.xlu0 0
    %3307 = vperm.xlu0 %3306, %v2055
    %v3308 = vpop.permute.xlu0 %3307
    %3311 = vset.pattern.permute.xlu0 0
    %3312 = vperm.xlu0 %3311, %v2056
    %v3313 = vpop.permute.xlu0 %3312
    %3316 = vset.pattern.permute.xlu0 0
    %3317 = vperm.xlu0 %3316, %v2057
    %v3318 = vpop.permute.xlu0 %3317
    %3321 = vset.pattern.permute.xlu0 0
    %3322 = vperm.xlu0 %3321, %v2058
    %v3323 = vpop.permute.xlu0 %3322
    %3326 = vset.pattern.permute.xlu0 0
    %3327 = vperm.xlu0 %3326, %v2059
    %v3328 = vpop.permute.xlu0 %3327
    %3331 = vset.pattern.permute.xlu0 0
    %3332 = vperm.xlu0 %3331, %v2060
    %v3333 = vpop.permute.xlu0 %3332
    %3336 = vset.pattern.permute.xlu0 0
    %3337 = vperm.xlu0 %3336, %v2061
    %v3338 = vpop.permute.xlu0 %3337
    %3341 = vset.pattern.permute.xlu0 0
    %3342 = vperm.xlu0 %3341, %v2062
    %v3343 = vpop.permute.xlu0 %3342
    %v3345 = vlaneseq
    %v3346 = vshrl.u32 %v3345, 7
    %v3347 = vsub.s32 0, %v3346
    %v3348 = vrot.slane %v2064, %v3347
    %vm3349 = vcmp.le.f32.partialorder %v2068, %v3348
    %vm3350 = vcmp.le.f32.partialorder %v2073, %v3348
    %vm3351 = vcmp.le.f32.partialorder %v2078, %v3348
    %vm3352 = vcmp.le.f32.partialorder %v2083, %v3348
    %vm3353 = vcmp.le.f32.partialorder %v2088, %v3348
    %vm3354 = vcmp.le.f32.partialorder %v2093, %v3348
    %vm3355 = vcmp.le.f32.partialorder %v2098, %v3348
    %vm3356 = vcmp.le.f32.partialorder %v2103, %v3348
    %vm3357 = vcmp.le.f32.partialorder %v2108, %v3348
    %vm3358 = vcmp.le.f32.partialorder %v2113, %v3348
    %vm3359 = vcmp.le.f32.partialorder %v2118, %v3348
    %vm3360 = vcmp.le.f32.partialorder %v2123, %v3348
    %vm3361 = vcmp.le.f32.partialorder %v2128, %v3348
    %vm3362 = vcmp.le.f32.partialorder %v2133, %v3348
    %vm3363 = vcmp.le.f32.partialorder %v2138, %v3348
    %vm3364 = vcmp.le.f32.partialorder %v2143, %v3348
    %vm3365 = vcmp.le.f32.partialorder %v2148, %v3348
    %vm3366 = vcmp.le.f32.partialorder %v2153, %v3348
    %vm3367 = vcmp.le.f32.partialorder %v2158, %v3348
    %vm3368 = vcmp.le.f32.partialorder %v2163, %v3348
    %vm3369 = vcmp.le.f32.partialorder %v2168, %v3348
    %vm3370 = vcmp.le.f32.partialorder %v2173, %v3348
    %vm3371 = vcmp.le.f32.partialorder %v2178, %v3348
    %vm3372 = vcmp.le.f32.partialorder %v2183, %v3348
    %vm3373 = vcmp.le.f32.partialorder %v2188, %v3348
    %vm3374 = vcmp.le.f32.partialorder %v2193, %v3348
    %vm3375 = vcmp.le.f32.partialorder %v2198, %v3348
    %vm3376 = vcmp.le.f32.partialorder %v2203, %v3348
    %vm3377 = vcmp.le.f32.partialorder %v2208, %v3348
    %vm3378 = vcmp.le.f32.partialorder %v2213, %v3348
    %vm3379 = vcmp.le.f32.partialorder %v2218, %v3348
    %vm3380 = vcmp.le.f32.partialorder %v2223, %v3348
    %vm3381 = vcmp.le.f32.partialorder %v2228, %v3348
    %vm3382 = vcmp.le.f32.partialorder %v2233, %v3348
    %vm3383 = vcmp.le.f32.partialorder %v2238, %v3348
    %vm3384 = vcmp.le.f32.partialorder %v2243, %v3348
    %vm3385 = vcmp.le.f32.partialorder %v2248, %v3348
    %vm3386 = vcmp.le.f32.partialorder %v2253, %v3348
    %vm3387 = vcmp.le.f32.partialorder %v2258, %v3348
    %vm3388 = vcmp.le.f32.partialorder %v2263, %v3348
    %vm3389 = vcmp.le.f32.partialorder %v2268, %v3348
    %vm3390 = vcmp.le.f32.partialorder %v2273, %v3348
    %vm3391 = vcmp.le.f32.partialorder %v2278, %v3348
    %vm3392 = vcmp.le.f32.partialorder %v2283, %v3348
    %vm3393 = vcmp.le.f32.partialorder %v2288, %v3348
    %vm3394 = vcmp.le.f32.partialorder %v2293, %v3348
    %vm3395 = vcmp.le.f32.partialorder %v2298, %v3348
    %vm3396 = vcmp.le.f32.partialorder %v2303, %v3348
    %vm3397 = vcmp.le.f32.partialorder %v2308, %v3348
    %vm3398 = vcmp.le.f32.partialorder %v2313, %v3348
    %vm3399 = vcmp.le.f32.partialorder %v2318, %v3348
    %vm3400 = vcmp.le.f32.partialorder %v2323, %v3348
    %vm3401 = vcmp.le.f32.partialorder %v2328, %v3348
    %vm3402 = vcmp.le.f32.partialorder %v2333, %v3348
    %vm3403 = vcmp.le.f32.partialorder %v2338, %v3348
    %vm3404 = vcmp.le.f32.partialorder %v2343, %v3348
    %vm3405 = vcmp.le.f32.partialorder %v2348, %v3348
    %vm3406 = vcmp.le.f32.partialorder %v2353, %v3348
    %vm3407 = vcmp.le.f32.partialorder %v2358, %v3348
    %vm3408 = vcmp.le.f32.partialorder %v2363, %v3348
    %vm3409 = vcmp.le.f32.partialorder %v2368, %v3348
    %vm3410 = vcmp.le.f32.partialorder %v2373, %v3348
    %vm3411 = vcmp.le.f32.partialorder %v2378, %v3348
    %vm3412 = vcmp.le.f32.partialorder %v2383, %v3348
    %vm3413 = vcmp.le.f32.partialorder %v2388, %v3348
    %vm3414 = vcmp.le.f32.partialorder %v2393, %v3348
    %vm3415 = vcmp.le.f32.partialorder %v2398, %v3348
    %vm3416 = vcmp.le.f32.partialorder %v2403, %v3348
    %vm3417 = vcmp.le.f32.partialorder %v2408, %v3348
    %vm3418 = vcmp.le.f32.partialorder %v2413, %v3348
    %vm3419 = vcmp.le.f32.partialorder %v2418, %v3348
    %vm3420 = vcmp.le.f32.partialorder %v2423, %v3348
    %vm3421 = vcmp.le.f32.partialorder %v2428, %v3348
    %vm3422 = vcmp.le.f32.partialorder %v2433, %v3348
    %vm3423 = vcmp.le.f32.partialorder %v2438, %v3348
    %vm3424 = vcmp.le.f32.partialorder %v2443, %v3348
    %vm3425 = vcmp.le.f32.partialorder %v2448, %v3348
    %vm3426 = vcmp.le.f32.partialorder %v2453, %v3348
    %vm3427 = vcmp.le.f32.partialorder %v2458, %v3348
    %vm3428 = vcmp.le.f32.partialorder %v2463, %v3348
    %vm3429 = vcmp.le.f32.partialorder %v2468, %v3348
    %vm3430 = vcmp.le.f32.partialorder %v2473, %v3348
    %vm3431 = vcmp.le.f32.partialorder %v2478, %v3348
    %vm3432 = vcmp.le.f32.partialorder %v2483, %v3348
    %vm3433 = vcmp.le.f32.partialorder %v2488, %v3348
    %vm3434 = vcmp.le.f32.partialorder %v2493, %v3348
    %vm3435 = vcmp.le.f32.partialorder %v2498, %v3348
    %vm3436 = vcmp.le.f32.partialorder %v2503, %v3348
    %vm3437 = vcmp.le.f32.partialorder %v2508, %v3348
    %vm3438 = vcmp.le.f32.partialorder %v2513, %v3348
    %vm3439 = vcmp.le.f32.partialorder %v2518, %v3348
    %vm3440 = vcmp.le.f32.partialorder %v2523, %v3348
    %vm3441 = vcmp.le.f32.partialorder %v2528, %v3348
    %vm3442 = vcmp.le.f32.partialorder %v2533, %v3348
    %vm3443 = vcmp.le.f32.partialorder %v2538, %v3348
    %vm3444 = vcmp.le.f32.partialorder %v2543, %v3348
    %vm3445 = vcmp.le.f32.partialorder %v2548, %v3348
    %vm3446 = vcmp.le.f32.partialorder %v2553, %v3348
    %vm3447 = vcmp.le.f32.partialorder %v2558, %v3348
    %vm3448 = vcmp.le.f32.partialorder %v2563, %v3348
    %vm3449 = vcmp.le.f32.partialorder %v2568, %v3348
    %vm3450 = vcmp.le.f32.partialorder %v2573, %v3348
    %vm3451 = vcmp.le.f32.partialorder %v2578, %v3348
    %vm3452 = vcmp.le.f32.partialorder %v2583, %v3348
    %vm3453 = vcmp.le.f32.partialorder %v2588, %v3348
    %vm3454 = vcmp.le.f32.partialorder %v2593, %v3348
    %vm3455 = vcmp.le.f32.partialorder %v2598, %v3348
    %vm3456 = vcmp.le.f32.partialorder %v2603, %v3348
    %vm3457 = vcmp.le.f32.partialorder %v2608, %v3348
    %vm3458 = vcmp.le.f32.partialorder %v2613, %v3348
    %vm3459 = vcmp.le.f32.partialorder %v2618, %v3348
    %vm3460 = vcmp.le.f32.partialorder %v2623, %v3348
    %vm3461 = vcmp.le.f32.partialorder %v2628, %v3348
    %vm3462 = vcmp.le.f32.partialorder %v2633, %v3348
    %vm3463 = vcmp.le.f32.partialorder %v2638, %v3348
    %vm3464 = vcmp.le.f32.partialorder %v2643, %v3348
    %vm3465 = vcmp.le.f32.partialorder %v2648, %v3348
    %vm3466 = vcmp.le.f32.partialorder %v2653, %v3348
    %vm3467 = vcmp.le.f32.partialorder %v2658, %v3348
    %vm3468 = vcmp.le.f32.partialorder %v2663, %v3348
    %vm3469 = vcmp.le.f32.partialorder %v2668, %v3348
    %vm3470 = vcmp.le.f32.partialorder %v2673, %v3348
    %vm3471 = vcmp.le.f32.partialorder %v2678, %v3348
    %vm3472 = vcmp.le.f32.partialorder %v2683, %v3348
    %vm3473 = vcmp.le.f32.partialorder %v2688, %v3348
    %vm3474 = vcmp.le.f32.partialorder %v2693, %v3348
    %vm3475 = vcmp.le.f32.partialorder %v2698, %v3348
    %vm3476 = vcmp.le.f32.partialorder %v2703, %v3348
    %vm3477 = vcmp.le.f32.partialorder %v2708, %v3348
    %vm3478 = vcmp.le.f32.partialorder %v2713, %v3348
    %vm3479 = vcmp.le.f32.partialorder %v2718, %v3348
    %vm3480 = vcmp.le.f32.partialorder %v2723, %v3348
    %vm3481 = vcmp.le.f32.partialorder %v2728, %v3348
    %vm3482 = vcmp.le.f32.partialorder %v2733, %v3348
    %vm3483 = vcmp.le.f32.partialorder %v2738, %v3348
    %vm3484 = vcmp.le.f32.partialorder %v2743, %v3348
    %vm3485 = vcmp.le.f32.partialorder %v2748, %v3348
    %vm3486 = vcmp.le.f32.partialorder %v2753, %v3348
    %vm3487 = vcmp.le.f32.partialorder %v2758, %v3348
    %vm3488 = vcmp.le.f32.partialorder %v2763, %v3348
    %vm3489 = vcmp.le.f32.partialorder %v2768, %v3348
    %vm3490 = vcmp.le.f32.partialorder %v2773, %v3348
    %vm3491 = vcmp.le.f32.partialorder %v2778, %v3348
    %vm3492 = vcmp.le.f32.partialorder %v2783, %v3348
    %vm3493 = vcmp.le.f32.partialorder %v2788, %v3348
    %vm3494 = vcmp.le.f32.partialorder %v2793, %v3348
    %vm3495 = vcmp.le.f32.partialorder %v2798, %v3348
    %vm3496 = vcmp.le.f32.partialorder %v2803, %v3348
    %vm3497 = vcmp.le.f32.partialorder %v2808, %v3348
    %vm3498 = vcmp.le.f32.partialorder %v2813, %v3348
    %vm3499 = vcmp.le.f32.partialorder %v2818, %v3348
    %vm3500 = vcmp.le.f32.partialorder %v2823, %v3348
    %vm3501 = vcmp.le.f32.partialorder %v2828, %v3348
    %vm3502 = vcmp.le.f32.partialorder %v2833, %v3348
    %vm3503 = vcmp.le.f32.partialorder %v2838, %v3348
    %vm3504 = vcmp.le.f32.partialorder %v2843, %v3348
    %vm3505 = vcmp.le.f32.partialorder %v2848, %v3348
    %vm3506 = vcmp.le.f32.partialorder %v2853, %v3348
    %vm3507 = vcmp.le.f32.partialorder %v2858, %v3348
    %vm3508 = vcmp.le.f32.partialorder %v2863, %v3348
    %vm3509 = vcmp.le.f32.partialorder %v2868, %v3348
    %vm3510 = vcmp.le.f32.partialorder %v2873, %v3348
    %vm3511 = vcmp.le.f32.partialorder %v2878, %v3348
    %vm3512 = vcmp.le.f32.partialorder %v2883, %v3348
    %vm3513 = vcmp.le.f32.partialorder %v2888, %v3348
    %vm3514 = vcmp.le.f32.partialorder %v2893, %v3348
    %vm3515 = vcmp.le.f32.partialorder %v2898, %v3348
    %vm3516 = vcmp.le.f32.partialorder %v2903, %v3348
    %vm3517 = vcmp.le.f32.partialorder %v2908, %v3348
    %vm3518 = vcmp.le.f32.partialorder %v2913, %v3348
    %vm3519 = vcmp.le.f32.partialorder %v2918, %v3348
    %vm3520 = vcmp.le.f32.partialorder %v2923, %v3348
    %vm3521 = vcmp.le.f32.partialorder %v2928, %v3348
    %vm3522 = vcmp.le.f32.partialorder %v2933, %v3348
    %vm3523 = vcmp.le.f32.partialorder %v2938, %v3348
    %vm3524 = vcmp.le.f32.partialorder %v2943, %v3348
    %vm3525 = vcmp.le.f32.partialorder %v2948, %v3348
    %vm3526 = vcmp.le.f32.partialorder %v2953, %v3348
    %vm3527 = vcmp.le.f32.partialorder %v2958, %v3348
    %vm3528 = vcmp.le.f32.partialorder %v2963, %v3348
    %vm3529 = vcmp.le.f32.partialorder %v2968, %v3348
    %vm3530 = vcmp.le.f32.partialorder %v2973, %v3348
    %vm3531 = vcmp.le.f32.partialorder %v2978, %v3348
    %vm3532 = vcmp.le.f32.partialorder %v2983, %v3348
    %vm3533 = vcmp.le.f32.partialorder %v2988, %v3348
    %vm3534 = vcmp.le.f32.partialorder %v2993, %v3348
    %vm3535 = vcmp.le.f32.partialorder %v2998, %v3348
    %vm3536 = vcmp.le.f32.partialorder %v3003, %v3348
    %vm3537 = vcmp.le.f32.partialorder %v3008, %v3348
    %vm3538 = vcmp.le.f32.partialorder %v3013, %v3348
    %vm3539 = vcmp.le.f32.partialorder %v3018, %v3348
    %vm3540 = vcmp.le.f32.partialorder %v3023, %v3348
    %vm3541 = vcmp.le.f32.partialorder %v3028, %v3348
    %vm3542 = vcmp.le.f32.partialorder %v3033, %v3348
    %vm3543 = vcmp.le.f32.partialorder %v3038, %v3348
    %vm3544 = vcmp.le.f32.partialorder %v3043, %v3348
    %vm3545 = vcmp.le.f32.partialorder %v3048, %v3348
    %vm3546 = vcmp.le.f32.partialorder %v3053, %v3348
    %vm3547 = vcmp.le.f32.partialorder %v3058, %v3348
    %vm3548 = vcmp.le.f32.partialorder %v3063, %v3348
    %vm3549 = vcmp.le.f32.partialorder %v3068, %v3348
    %vm3550 = vcmp.le.f32.partialorder %v3073, %v3348
    %vm3551 = vcmp.le.f32.partialorder %v3078, %v3348
    %vm3552 = vcmp.le.f32.partialorder %v3083, %v3348
    %vm3553 = vcmp.le.f32.partialorder %v3088, %v3348
    %vm3554 = vcmp.le.f32.partialorder %v3093, %v3348
    %vm3555 = vcmp.le.f32.partialorder %v3098, %v3348
    %vm3556 = vcmp.le.f32.partialorder %v3103, %v3348
    %vm3557 = vcmp.le.f32.partialorder %v3108, %v3348
    %vm3558 = vcmp.le.f32.partialorder %v3113, %v3348
    %vm3559 = vcmp.le.f32.partialorder %v3118, %v3348
    %vm3560 = vcmp.le.f32.partialorder %v3123, %v3348
    %vm3561 = vcmp.le.f32.partialorder %v3128, %v3348
    %vm3562 = vcmp.le.f32.partialorder %v3133, %v3348
    %vm3563 = vcmp.le.f32.partialorder %v3138, %v3348
    %vm3564 = vcmp.le.f32.partialorder %v3143, %v3348
    %vm3565 = vcmp.le.f32.partialorder %v3148, %v3348
    %vm3566 = vcmp.le.f32.partialorder %v3153, %v3348
    %vm3567 = vcmp.le.f32.partialorder %v3158, %v3348
    %vm3568 = vcmp.le.f32.partialorder %v3163, %v3348
    %vm3569 = vcmp.le.f32.partialorder %v3168, %v3348
    %vm3570 = vcmp.le.f32.partialorder %v3173, %v3348
    %vm3571 = vcmp.le.f32.partialorder %v3178, %v3348
    %vm3572 = vcmp.le.f32.partialorder %v3183, %v3348
    %vm3573 = vcmp.le.f32.partialorder %v3188, %v3348
    %vm3574 = vcmp.le.f32.partialorder %v3193, %v3348
    %vm3575 = vcmp.le.f32.partialorder %v3198, %v3348
    %vm3576 = vcmp.le.f32.partialorder %v3203, %v3348
    %vm3577 = vcmp.le.f32.partialorder %v3208, %v3348
    %vm3578 = vcmp.le.f32.partialorder %v3213, %v3348
    %vm3579 = vcmp.le.f32.partialorder %v3218, %v3348
    %vm3580 = vcmp.le.f32.partialorder %v3223, %v3348
    %vm3581 = vcmp.le.f32.partialorder %v3228, %v3348
    %vm3582 = vcmp.le.f32.partialorder %v3233, %v3348
    %vm3583 = vcmp.le.f32.partialorder %v3238, %v3348
    %vm3584 = vcmp.le.f32.partialorder %v3243, %v3348
    %vm3585 = vcmp.le.f32.partialorder %v3248, %v3348
    %vm3586 = vcmp.le.f32.partialorder %v3253, %v3348
    %vm3587 = vcmp.le.f32.partialorder %v3258, %v3348
    %vm3588 = vcmp.le.f32.partialorder %v3263, %v3348
    %vm3589 = vcmp.le.f32.partialorder %v3268, %v3348
    %vm3590 = vcmp.le.f32.partialorder %v3273, %v3348
    %vm3591 = vcmp.le.f32.partialorder %v3278, %v3348
    %vm3592 = vcmp.le.f32.partialorder %v3283, %v3348
    %vm3593 = vcmp.le.f32.partialorder %v3288, %v3348
    %vm3594 = vcmp.le.f32.partialorder %v3293, %v3348
    %vm3595 = vcmp.le.f32.partialorder %v3298, %v3348
    %vm3596 = vcmp.le.f32.partialorder %v3303, %v3348
    %vm3597 = vcmp.le.f32.partialorder %v3308, %v3348
    %vm3598 = vcmp.le.f32.partialorder %v3313, %v3348
    %vm3599 = vcmp.le.f32.partialorder %v3318, %v3348
    %vm3600 = vcmp.le.f32.partialorder %v3323, %v3348
    %vm3601 = vcmp.le.f32.partialorder %v3328, %v3348
    %vm3602 = vcmp.le.f32.partialorder %v3333, %v3348
    %vm3603 = vcmp.le.f32.partialorder %v3338, %v3348
    %vm3604 = vcmp.le.f32.partialorder %v3343, %v3348
    %v3605 = vlaneseq
    %v3606 = vshrl.u32 %v3605, 7
    %v3607 = vsub.s32 0, %v3606
    %v3608 = vrot.slane %v2063, %v3607
    %v3609 = vlaneseq
    %v3610 = vshrl.u32 %v3609, 7
    %v3611 = vsub.s32 1, %v3610
    %v3612 = vrot.slane %v2063, %v3611
    %v3613 = vsel %vm3349, %v3608, %v3612
    %v3614 = vsel %vm3350, %v3608, %v3612
    %v3615 = vsel %vm3351, %v3608, %v3612
    %v3616 = vsel %vm3352, %v3608, %v3612
    %v3617 = vsel %vm3353, %v3608, %v3612
    %v3618 = vsel %vm3354, %v3608, %v3612
    %v3619 = vsel %vm3355, %v3608, %v3612
    %v3620 = vsel %vm3356, %v3608, %v3612
    %v3621 = vsel %vm3357, %v3608, %v3612
    %v3622 = vsel %vm3358, %v3608, %v3612
    %v3623 = vsel %vm3359, %v3608, %v3612
    %v3624 = vsel %vm3360, %v3608, %v3612
    %v3625 = vsel %vm3361, %v3608, %v3612
    %v3626 = vsel %vm3362, %v3608, %v3612
    %v3627 = vsel %vm3363, %v3608, %v3612
    %v3628 = vsel %vm3364, %v3608, %v3612
    %v3629 = vsel %vm3365, %v3608, %v3612
    %v3630 = vsel %vm3366, %v3608, %v3612
    %v3631 = vsel %vm3367, %v3608, %v3612
    %v3632 = vsel %vm3368, %v3608, %v3612
    %v3633 = vsel %vm3369, %v3608, %v3612
    %v3634 = vsel %vm3370, %v3608, %v3612
    %v3635 = vsel %vm3371, %v3608, %v3612
    %v3636 = vsel %vm3372, %v3608, %v3612
    %v3637 = vsel %vm3373, %v3608, %v3612
    %v3638 = vsel %vm3374, %v3608, %v3612
    %v3639 = vsel %vm3375, %v3608, %v3612
    %v3640 = vsel %vm3376, %v3608, %v3612
    %v3641 = vsel %vm3377, %v3608, %v3612
    %v3642 = vsel %vm3378, %v3608, %v3612
    %v3643 = vsel %vm3379, %v3608, %v3612
    %v3644 = vsel %vm3380, %v3608, %v3612
    %v3645 = vsel %vm3381, %v3608, %v3612
    %v3646 = vsel %vm3382, %v3608, %v3612
    %v3647 = vsel %vm3383, %v3608, %v3612
    %v3648 = vsel %vm3384, %v3608, %v3612
    %v3649 = vsel %vm3385, %v3608, %v3612
    %v3650 = vsel %vm3386, %v3608, %v3612
    %v3651 = vsel %vm3387, %v3608, %v3612
    %v3652 = vsel %vm3388, %v3608, %v3612
    %v3653 = vsel %vm3389, %v3608, %v3612
    %v3654 = vsel %vm3390, %v3608, %v3612
    %v3655 = vsel %vm3391, %v3608, %v3612
    %v3656 = vsel %vm3392, %v3608, %v3612
    %v3657 = vsel %vm3393, %v3608, %v3612
    %v3658 = vsel %vm3394, %v3608, %v3612
    %v3659 = vsel %vm3395, %v3608, %v3612
    %v3660 = vsel %vm3396, %v3608, %v3612
    %v3661 = vsel %vm3397, %v3608, %v3612
    %v3662 = vsel %vm3398, %v3608, %v3612
    %v3663 = vsel %vm3399, %v3608, %v3612
    %v3664 = vsel %vm3400, %v3608, %v3612
    %v3665 = vsel %vm3401, %v3608, %v3612
    %v3666 = vsel %vm3402, %v3608, %v3612
    %v3667 = vsel %vm3403, %v3608, %v3612
    %v3668 = vsel %vm3404, %v3608, %v3612
    %v3669 = vsel %vm3405, %v3608, %v3612
    %v3670 = vsel %vm3406, %v3608, %v3612
    %v3671 = vsel %vm3407, %v3608, %v3612
    %v3672 = vsel %vm3408, %v3608, %v3612
    %v3673 = vsel %vm3409, %v3608, %v3612
    %v3674 = vsel %vm3410, %v3608, %v3612
    %v3675 = vsel %vm3411, %v3608, %v3612
    %v3676 = vsel %vm3412, %v3608, %v3612
    %v3677 = vsel %vm3413, %v3608, %v3612
    %v3678 = vsel %vm3414, %v3608, %v3612
    %v3679 = vsel %vm3415, %v3608, %v3612
    %v3680 = vsel %vm3416, %v3608, %v3612
    %v3681 = vsel %vm3417, %v3608, %v3612
    %v3682 = vsel %vm3418, %v3608, %v3612
    %v3683 = vsel %vm3419, %v3608, %v3612
    %v3684 = vsel %vm3420, %v3608, %v3612
    %v3685 = vsel %vm3421, %v3608, %v3612
    %v3686 = vsel %vm3422, %v3608, %v3612
    %v3687 = vsel %vm3423, %v3608, %v3612
    %v3688 = vsel %vm3424, %v3608, %v3612
    %v3689 = vsel %vm3425, %v3608, %v3612
    %v3690 = vsel %vm3426, %v3608, %v3612
    %v3691 = vsel %vm3427, %v3608, %v3612
    %v3692 = vsel %vm3428, %v3608, %v3612
    %v3693 = vsel %vm3429, %v3608, %v3612
    %v3694 = vsel %vm3430, %v3608, %v3612
    %v3695 = vsel %vm3431, %v3608, %v3612
    %v3696 = vsel %vm3432, %v3608, %v3612
    %v3697 = vsel %vm3433, %v3608, %v3612
    %v3698 = vsel %vm3434, %v3608, %v3612
    %v3699 = vsel %vm3435, %v3608, %v3612
    %v3700 = vsel %vm3436, %v3608, %v3612
    %v3701 = vsel %vm3437, %v3608, %v3612
    %v3702 = vsel %vm3438, %v3608, %v3612
    %v3703 = vsel %vm3439, %v3608, %v3612
    %v3704 = vsel %vm3440, %v3608, %v3612
    %v3705 = vsel %vm3441, %v3608, %v3612
    %v3706 = vsel %vm3442, %v3608, %v3612
    %v3707 = vsel %vm3443, %v3608, %v3612
    %v3708 = vsel %vm3444, %v3608, %v3612
    %v3709 = vsel %vm3445, %v3608, %v3612
    %v3710 = vsel %vm3446, %v3608, %v3612
    %v3711 = vsel %vm3447, %v3608, %v3612
    %v3712 = vsel %vm3448, %v3608, %v3612
    %v3713 = vsel %vm3449, %v3608, %v3612
    %v3714 = vsel %vm3450, %v3608, %v3612
    %v3715 = vsel %vm3451, %v3608, %v3612
    %v3716 = vsel %vm3452, %v3608, %v3612
    %v3717 = vsel %vm3453, %v3608, %v3612
    %v3718 = vsel %vm3454, %v3608, %v3612
    %v3719 = vsel %vm3455, %v3608, %v3612
    %v3720 = vsel %vm3456, %v3608, %v3612
    %v3721 = vsel %vm3457, %v3608, %v3612
    %v3722 = vsel %vm3458, %v3608, %v3612
    %v3723 = vsel %vm3459, %v3608, %v3612
    %v3724 = vsel %vm3460, %v3608, %v3612
    %v3725 = vsel %vm3461, %v3608, %v3612
    %v3726 = vsel %vm3462, %v3608, %v3612
    %v3727 = vsel %vm3463, %v3608, %v3612
    %v3728 = vsel %vm3464, %v3608, %v3612
    %v3729 = vsel %vm3465, %v3608, %v3612
    %v3730 = vsel %vm3466, %v3608, %v3612
    %v3731 = vsel %vm3467, %v3608, %v3612
    %v3732 = vsel %vm3468, %v3608, %v3612
    %v3733 = vsel %vm3469, %v3608, %v3612
    %v3734 = vsel %vm3470, %v3608, %v3612
    %v3735 = vsel %vm3471, %v3608, %v3612
    %v3736 = vsel %vm3472, %v3608, %v3612
    %v3737 = vsel %vm3473, %v3608, %v3612
    %v3738 = vsel %vm3474, %v3608, %v3612
    %v3739 = vsel %vm3475, %v3608, %v3612
    %v3740 = vsel %vm3476, %v3608, %v3612
    %v3741 = vsel %vm3477, %v3608, %v3612
    %v3742 = vsel %vm3478, %v3608, %v3612
    %v3743 = vsel %vm3479, %v3608, %v3612
    %v3744 = vsel %vm3480, %v3608, %v3612
    %v3745 = vsel %vm3481, %v3608, %v3612
    %v3746 = vsel %vm3482, %v3608, %v3612
    %v3747 = vsel %vm3483, %v3608, %v3612
    %v3748 = vsel %vm3484, %v3608, %v3612
    %v3749 = vsel %vm3485, %v3608, %v3612
    %v3750 = vsel %vm3486, %v3608, %v3612
    %v3751 = vsel %vm3487, %v3608, %v3612
    %v3752 = vsel %vm3488, %v3608, %v3612
    %v3753 = vsel %vm3489, %v3608, %v3612
    %v3754 = vsel %vm3490, %v3608, %v3612
    %v3755 = vsel %vm3491, %v3608, %v3612
    %v3756 = vsel %vm3492, %v3608, %v3612
    %v3757 = vsel %vm3493, %v3608, %v3612
    %v3758 = vsel %vm3494, %v3608, %v3612
    %v3759 = vsel %vm3495, %v3608, %v3612
    %v3760 = vsel %vm3496, %v3608, %v3612
    %v3761 = vsel %vm3497, %v3608, %v3612
    %v3762 = vsel %vm3498, %v3608, %v3612
    %v3763 = vsel %vm3499, %v3608, %v3612
    %v3764 = vsel %vm3500, %v3608, %v3612
    %v3765 = vsel %vm3501, %v3608, %v3612
    %v3766 = vsel %vm3502, %v3608, %v3612
    %v3767 = vsel %vm3503, %v3608, %v3612
    %v3768 = vsel %vm3504, %v3608, %v3612
    %v3769 = vsel %vm3505, %v3608, %v3612
    %v3770 = vsel %vm3506, %v3608, %v3612
    %v3771 = vsel %vm3507, %v3608, %v3612
    %v3772 = vsel %vm3508, %v3608, %v3612
    %v3773 = vsel %vm3509, %v3608, %v3612
    %v3774 = vsel %vm3510, %v3608, %v3612
    %v3775 = vsel %vm3511, %v3608, %v3612
    %v3776 = vsel %vm3512, %v3608, %v3612
    %v3777 = vsel %vm3513, %v3608, %v3612
    %v3778 = vsel %vm3514, %v3608, %v3612
    %v3779 = vsel %vm3515, %v3608, %v3612
    %v3780 = vsel %vm3516, %v3608, %v3612
    %v3781 = vsel %vm3517, %v3608, %v3612
    %v3782 = vsel %vm3518, %v3608, %v3612
    %v3783 = vsel %vm3519, %v3608, %v3612
    %v3784 = vsel %vm3520, %v3608, %v3612
    %v3785 = vsel %vm3521, %v3608, %v3612
    %v3786 = vsel %vm3522, %v3608, %v3612
    %v3787 = vsel %vm3523, %v3608, %v3612
    %v3788 = vsel %vm3524, %v3608, %v3612
    %v3789 = vsel %vm3525, %v3608, %v3612
    %v3790 = vsel %vm3526, %v3608, %v3612
    %v3791 = vsel %vm3527, %v3608, %v3612
    %v3792 = vsel %vm3528, %v3608, %v3612
    %v3793 = vsel %vm3529, %v3608, %v3612
    %v3794 = vsel %vm3530, %v3608, %v3612
    %v3795 = vsel %vm3531, %v3608, %v3612
    %v3796 = vsel %vm3532, %v3608, %v3612
    %v3797 = vsel %vm3533, %v3608, %v3612
    %v3798 = vsel %vm3534, %v3608, %v3612
    %v3799 = vsel %vm3535, %v3608, %v3612
    %v3800 = vsel %vm3536, %v3608, %v3612
    %v3801 = vsel %vm3537, %v3608, %v3612
    %v3802 = vsel %vm3538, %v3608, %v3612
    %v3803 = vsel %vm3539, %v3608, %v3612
    %v3804 = vsel %vm3540, %v3608, %v3612
    %v3805 = vsel %vm3541, %v3608, %v3612
    %v3806 = vsel %vm3542, %v3608, %v3612
    %v3807 = vsel %vm3543, %v3608, %v3612
    %v3808 = vsel %vm3544, %v3608, %v3612
    %v3809 = vsel %vm3545, %v3608, %v3612
    %v3810 = vsel %vm3546, %v3608, %v3612
    %v3811 = vsel %vm3547, %v3608, %v3612
    %v3812 = vsel %vm3548, %v3608, %v3612
    %v3813 = vsel %vm3549, %v3608, %v3612
    %v3814 = vsel %vm3550, %v3608, %v3612
    %v3815 = vsel %vm3551, %v3608, %v3612
    %v3816 = vsel %vm3552, %v3608, %v3612
    %v3817 = vsel %vm3553, %v3608, %v3612
    %v3818 = vsel %vm3554, %v3608, %v3612
    %v3819 = vsel %vm3555, %v3608, %v3612
    %v3820 = vsel %vm3556, %v3608, %v3612
    %v3821 = vsel %vm3557, %v3608, %v3612
    %v3822 = vsel %vm3558, %v3608, %v3612
    %v3823 = vsel %vm3559, %v3608, %v3612
    %v3824 = vsel %vm3560, %v3608, %v3612
    %v3825 = vsel %vm3561, %v3608, %v3612
    %v3826 = vsel %vm3562, %v3608, %v3612
    %v3827 = vsel %vm3563, %v3608, %v3612
    %v3828 = vsel %vm3564, %v3608, %v3612
    %v3829 = vsel %vm3565, %v3608, %v3612
    %v3830 = vsel %vm3566, %v3608, %v3612
    %v3831 = vsel %vm3567, %v3608, %v3612
    %v3832 = vsel %vm3568, %v3608, %v3612
    %v3833 = vsel %vm3569, %v3608, %v3612
    %v3834 = vsel %vm3570, %v3608, %v3612
    %v3835 = vsel %vm3571, %v3608, %v3612
    %v3836 = vsel %vm3572, %v3608, %v3612
    %v3837 = vsel %vm3573, %v3608, %v3612
    %v3838 = vsel %vm3574, %v3608, %v3612
    %v3839 = vsel %vm3575, %v3608, %v3612
    %v3840 = vsel %vm3576, %v3608, %v3612
    %v3841 = vsel %vm3577, %v3608, %v3612
    %v3842 = vsel %vm3578, %v3608, %v3612
    %v3843 = vsel %vm3579, %v3608, %v3612
    %v3844 = vsel %vm3580, %v3608, %v3612
    %v3845 = vsel %vm3581, %v3608, %v3612
    %v3846 = vsel %vm3582, %v3608, %v3612
    %v3847 = vsel %vm3583, %v3608, %v3612
    %v3848 = vsel %vm3584, %v3608, %v3612
    %v3849 = vsel %vm3585, %v3608, %v3612
    %v3850 = vsel %vm3586, %v3608, %v3612
    %v3851 = vsel %vm3587, %v3608, %v3612
    %v3852 = vsel %vm3588, %v3608, %v3612
    %v3853 = vsel %vm3589, %v3608, %v3612
    %v3854 = vsel %vm3590, %v3608, %v3612
    %v3855 = vsel %vm3591, %v3608, %v3612
    %v3856 = vsel %vm3592, %v3608, %v3612
    %v3857 = vsel %vm3593, %v3608, %v3612
    %v3858 = vsel %vm3594, %v3608, %v3612
    %v3859 = vsel %vm3595, %v3608, %v3612
    %v3860 = vsel %vm3596, %v3608, %v3612
    %v3861 = vsel %vm3597, %v3608, %v3612
    %v3862 = vsel %vm3598, %v3608, %v3612
    %v3863 = vsel %vm3599, %v3608, %v3612
    %v3864 = vsel %vm3600, %v3608, %v3612
    %v3865 = vsel %vm3601, %v3608, %v3612
    %v3866 = vsel %vm3602, %v3608, %v3612
    %v3867 = vsel %vm3603, %v3608, %v3612
    %v3868 = vsel %vm3604, %v3608, %v3612
    %v3869 = vlaneseq
    %v3870 = vshrl.u32 %v3869, 7
    %v3871 = vsub.s32 1, %v3870
    %v3872 = vrot.slane %v2064, %v3871
    %vm3873 = vcmp.le.f32.partialorder %v2068, %v3872
    %vm3874 = vcmp.le.f32.partialorder %v2073, %v3872
    %vm3875 = vcmp.le.f32.partialorder %v2078, %v3872
    %vm3876 = vcmp.le.f32.partialorder %v2083, %v3872
    %vm3877 = vcmp.le.f32.partialorder %v2088, %v3872
    %vm3878 = vcmp.le.f32.partialorder %v2093, %v3872
    %vm3879 = vcmp.le.f32.partialorder %v2098, %v3872
    %vm3880 = vcmp.le.f32.partialorder %v2103, %v3872
    %vm3881 = vcmp.le.f32.partialorder %v2108, %v3872
    %vm3882 = vcmp.le.f32.partialorder %v2113, %v3872
    %vm3883 = vcmp.le.f32.partialorder %v2118, %v3872
    %vm3884 = vcmp.le.f32.partialorder %v2123, %v3872
    %vm3885 = vcmp.le.f32.partialorder %v2128, %v3872
    %vm3886 = vcmp.le.f32.partialorder %v2133, %v3872
    %vm3887 = vcmp.le.f32.partialorder %v2138, %v3872
    %vm3888 = vcmp.le.f32.partialorder %v2143, %v3872
    %vm3889 = vcmp.le.f32.partialorder %v2148, %v3872
    %vm3890 = vcmp.le.f32.partialorder %v2153, %v3872
    %vm3891 = vcmp.le.f32.partialorder %v2158, %v3872
    %vm3892 = vcmp.le.f32.partialorder %v2163, %v3872
    %vm3893 = vcmp.le.f32.partialorder %v2168, %v3872
    %vm3894 = vcmp.le.f32.partialorder %v2173, %v3872
    %vm3895 = vcmp.le.f32.partialorder %v2178, %v3872
    %vm3896 = vcmp.le.f32.partialorder %v2183, %v3872
    %vm3897 = vcmp.le.f32.partialorder %v2188, %v3872
    %vm3898 = vcmp.le.f32.partialorder %v2193, %v3872
    %vm3899 = vcmp.le.f32.partialorder %v2198, %v3872
    %vm3900 = vcmp.le.f32.partialorder %v2203, %v3872
    %vm3901 = vcmp.le.f32.partialorder %v2208, %v3872
    %vm3902 = vcmp.le.f32.partialorder %v2213, %v3872
    %vm3903 = vcmp.le.f32.partialorder %v2218, %v3872
    %vm3904 = vcmp.le.f32.partialorder %v2223, %v3872
    %vm3905 = vcmp.le.f32.partialorder %v2228, %v3872
    %vm3906 = vcmp.le.f32.partialorder %v2233, %v3872
    %vm3907 = vcmp.le.f32.partialorder %v2238, %v3872
    %vm3908 = vcmp.le.f32.partialorder %v2243, %v3872
    %vm3909 = vcmp.le.f32.partialorder %v2248, %v3872
    %vm3910 = vcmp.le.f32.partialorder %v2253, %v3872
    %vm3911 = vcmp.le.f32.partialorder %v2258, %v3872
    %vm3912 = vcmp.le.f32.partialorder %v2263, %v3872
    %vm3913 = vcmp.le.f32.partialorder %v2268, %v3872
    %vm3914 = vcmp.le.f32.partialorder %v2273, %v3872
    %vm3915 = vcmp.le.f32.partialorder %v2278, %v3872
    %vm3916 = vcmp.le.f32.partialorder %v2283, %v3872
    %vm3917 = vcmp.le.f32.partialorder %v2288, %v3872
    %vm3918 = vcmp.le.f32.partialorder %v2293, %v3872
    %vm3919 = vcmp.le.f32.partialorder %v2298, %v3872
    %vm3920 = vcmp.le.f32.partialorder %v2303, %v3872
    %vm3921 = vcmp.le.f32.partialorder %v2308, %v3872
    %vm3922 = vcmp.le.f32.partialorder %v2313, %v3872
    %vm3923 = vcmp.le.f32.partialorder %v2318, %v3872
    %vm3924 = vcmp.le.f32.partialorder %v2323, %v3872
    %vm3925 = vcmp.le.f32.partialorder %v2328, %v3872
    %vm3926 = vcmp.le.f32.partialorder %v2333, %v3872
    %vm3927 = vcmp.le.f32.partialorder %v2338, %v3872
    %vm3928 = vcmp.le.f32.partialorder %v2343, %v3872
    %vm3929 = vcmp.le.f32.partialorder %v2348, %v3872
    %vm3930 = vcmp.le.f32.partialorder %v2353, %v3872
    %vm3931 = vcmp.le.f32.partialorder %v2358, %v3872
    %vm3932 = vcmp.le.f32.partialorder %v2363, %v3872
    %vm3933 = vcmp.le.f32.partialorder %v2368, %v3872
    %vm3934 = vcmp.le.f32.partialorder %v2373, %v3872
    %vm3935 = vcmp.le.f32.partialorder %v2378, %v3872
    %vm3936 = vcmp.le.f32.partialorder %v2383, %v3872
    %vm3937 = vcmp.le.f32.partialorder %v2388, %v3872
    %vm3938 = vcmp.le.f32.partialorder %v2393, %v3872
    %vm3939 = vcmp.le.f32.partialorder %v2398, %v3872
    %vm3940 = vcmp.le.f32.partialorder %v2403, %v3872
    %vm3941 = vcmp.le.f32.partialorder %v2408, %v3872
    %vm3942 = vcmp.le.f32.partialorder %v2413, %v3872
    %vm3943 = vcmp.le.f32.partialorder %v2418, %v3872
    %vm3944 = vcmp.le.f32.partialorder %v2423, %v3872
    %vm3945 = vcmp.le.f32.partialorder %v2428, %v3872
    %vm3946 = vcmp.le.f32.partialorder %v2433, %v3872
    %vm3947 = vcmp.le.f32.partialorder %v2438, %v3872
    %vm3948 = vcmp.le.f32.partialorder %v2443, %v3872
    %vm3949 = vcmp.le.f32.partialorder %v2448, %v3872
    %vm3950 = vcmp.le.f32.partialorder %v2453, %v3872
    %vm3951 = vcmp.le.f32.partialorder %v2458, %v3872
    %vm3952 = vcmp.le.f32.partialorder %v2463, %v3872
    %vm3953 = vcmp.le.f32.partialorder %v2468, %v3872
    %vm3954 = vcmp.le.f32.partialorder %v2473, %v3872
    %vm3955 = vcmp.le.f32.partialorder %v2478, %v3872
    %vm3956 = vcmp.le.f32.partialorder %v2483, %v3872
    %vm3957 = vcmp.le.f32.partialorder %v2488, %v3872
    %vm3958 = vcmp.le.f32.partialorder %v2493, %v3872
    %vm3959 = vcmp.le.f32.partialorder %v2498, %v3872
    %vm3960 = vcmp.le.f32.partialorder %v2503, %v3872
    %vm3961 = vcmp.le.f32.partialorder %v2508, %v3872
    %vm3962 = vcmp.le.f32.partialorder %v2513, %v3872
    %vm3963 = vcmp.le.f32.partialorder %v2518, %v3872
    %vm3964 = vcmp.le.f32.partialorder %v2523, %v3872
    %vm3965 = vcmp.le.f32.partialorder %v2528, %v3872
    %vm3966 = vcmp.le.f32.partialorder %v2533, %v3872
    %vm3967 = vcmp.le.f32.partialorder %v2538, %v3872
    %vm3968 = vcmp.le.f32.partialorder %v2543, %v3872
    %vm3969 = vcmp.le.f32.partialorder %v2548, %v3872
    %vm3970 = vcmp.le.f32.partialorder %v2553, %v3872
    %vm3971 = vcmp.le.f32.partialorder %v2558, %v3872
    %vm3972 = vcmp.le.f32.partialorder %v2563, %v3872
    %vm3973 = vcmp.le.f32.partialorder %v2568, %v3872
    %vm3974 = vcmp.le.f32.partialorder %v2573, %v3872
    %vm3975 = vcmp.le.f32.partialorder %v2578, %v3872
    %vm3976 = vcmp.le.f32.partialorder %v2583, %v3872
    %vm3977 = vcmp.le.f32.partialorder %v2588, %v3872
    %vm3978 = vcmp.le.f32.partialorder %v2593, %v3872
    %vm3979 = vcmp.le.f32.partialorder %v2598, %v3872
    %vm3980 = vcmp.le.f32.partialorder %v2603, %v3872
    %vm3981 = vcmp.le.f32.partialorder %v2608, %v3872
    %vm3982 = vcmp.le.f32.partialorder %v2613, %v3872
    %vm3983 = vcmp.le.f32.partialorder %v2618, %v3872
    %vm3984 = vcmp.le.f32.partialorder %v2623, %v3872
    %vm3985 = vcmp.le.f32.partialorder %v2628, %v3872
    %vm3986 = vcmp.le.f32.partialorder %v2633, %v3872
    %vm3987 = vcmp.le.f32.partialorder %v2638, %v3872
    %vm3988 = vcmp.le.f32.partialorder %v2643, %v3872
    %vm3989 = vcmp.le.f32.partialorder %v2648, %v3872
    %vm3990 = vcmp.le.f32.partialorder %v2653, %v3872
    %vm3991 = vcmp.le.f32.partialorder %v2658, %v3872
    %vm3992 = vcmp.le.f32.partialorder %v2663, %v3872
    %vm3993 = vcmp.le.f32.partialorder %v2668, %v3872
    %vm3994 = vcmp.le.f32.partialorder %v2673, %v3872
    %vm3995 = vcmp.le.f32.partialorder %v2678, %v3872
    %vm3996 = vcmp.le.f32.partialorder %v2683, %v3872
    %vm3997 = vcmp.le.f32.partialorder %v2688, %v3872
    %vm3998 = vcmp.le.f32.partialorder %v2693, %v3872
    %vm3999 = vcmp.le.f32.partialorder %v2698, %v3872
    %vm4000 = vcmp.le.f32.partialorder %v2703, %v3872
    %vm4001 = vcmp.le.f32.partialorder %v2708, %v3872
    %vm4002 = vcmp.le.f32.partialorder %v2713, %v3872
    %vm4003 = vcmp.le.f32.partialorder %v2718, %v3872
    %vm4004 = vcmp.le.f32.partialorder %v2723, %v3872
    %vm4005 = vcmp.le.f32.partialorder %v2728, %v3872
    %vm4006 = vcmp.le.f32.partialorder %v2733, %v3872
    %vm4007 = vcmp.le.f32.partialorder %v2738, %v3872
    %vm4008 = vcmp.le.f32.partialorder %v2743, %v3872
    %vm4009 = vcmp.le.f32.partialorder %v2748, %v3872
    %vm4010 = vcmp.le.f32.partialorder %v2753, %v3872
    %vm4011 = vcmp.le.f32.partialorder %v2758, %v3872
    %vm4012 = vcmp.le.f32.partialorder %v2763, %v3872
    %vm4013 = vcmp.le.f32.partialorder %v2768, %v3872
    %vm4014 = vcmp.le.f32.partialorder %v2773, %v3872
    %vm4015 = vcmp.le.f32.partialorder %v2778, %v3872
    %vm4016 = vcmp.le.f32.partialorder %v2783, %v3872
    %vm4017 = vcmp.le.f32.partialorder %v2788, %v3872
    %vm4018 = vcmp.le.f32.partialorder %v2793, %v3872
    %vm4019 = vcmp.le.f32.partialorder %v2798, %v3872
    %vm4020 = vcmp.le.f32.partialorder %v2803, %v3872
    %vm4021 = vcmp.le.f32.partialorder %v2808, %v3872
    %vm4022 = vcmp.le.f32.partialorder %v2813, %v3872
    %vm4023 = vcmp.le.f32.partialorder %v2818, %v3872
    %vm4024 = vcmp.le.f32.partialorder %v2823, %v3872
    %vm4025 = vcmp.le.f32.partialorder %v2828, %v3872
    %vm4026 = vcmp.le.f32.partialorder %v2833, %v3872
    %vm4027 = vcmp.le.f32.partialorder %v2838, %v3872
    %vm4028 = vcmp.le.f32.partialorder %v2843, %v3872
    %vm4029 = vcmp.le.f32.partialorder %v2848, %v3872
    %vm4030 = vcmp.le.f32.partialorder %v2853, %v3872
    %vm4031 = vcmp.le.f32.partialorder %v2858, %v3872
    %vm4032 = vcmp.le.f32.partialorder %v2863, %v3872
    %vm4033 = vcmp.le.f32.partialorder %v2868, %v3872
    %vm4034 = vcmp.le.f32.partialorder %v2873, %v3872
    %vm4035 = vcmp.le.f32.partialorder %v2878, %v3872
    %vm4036 = vcmp.le.f32.partialorder %v2883, %v3872
    %vm4037 = vcmp.le.f32.partialorder %v2888, %v3872
    %vm4038 = vcmp.le.f32.partialorder %v2893, %v3872
    %vm4039 = vcmp.le.f32.partialorder %v2898, %v3872
    %vm4040 = vcmp.le.f32.partialorder %v2903, %v3872
    %vm4041 = vcmp.le.f32.partialorder %v2908, %v3872
    %vm4042 = vcmp.le.f32.partialorder %v2913, %v3872
    %vm4043 = vcmp.le.f32.partialorder %v2918, %v3872
    %vm4044 = vcmp.le.f32.partialorder %v2923, %v3872
    %vm4045 = vcmp.le.f32.partialorder %v2928, %v3872
    %vm4046 = vcmp.le.f32.partialorder %v2933, %v3872
    %vm4047 = vcmp.le.f32.partialorder %v2938, %v3872
    %vm4048 = vcmp.le.f32.partialorder %v2943, %v3872
    %vm4049 = vcmp.le.f32.partialorder %v2948, %v3872
    %vm4050 = vcmp.le.f32.partialorder %v2953, %v3872
    %vm4051 = vcmp.le.f32.partialorder %v2958, %v3872
    %vm4052 = vcmp.le.f32.partialorder %v2963, %v3872
    %vm4053 = vcmp.le.f32.partialorder %v2968, %v3872
    %vm4054 = vcmp.le.f32.partialorder %v2973, %v3872
    %vm4055 = vcmp.le.f32.partialorder %v2978, %v3872
    %vm4056 = vcmp.le.f32.partialorder %v2983, %v3872
    %vm4057 = vcmp.le.f32.partialorder %v2988, %v3872
    %vm4058 = vcmp.le.f32.partialorder %v2993, %v3872
    %vm4059 = vcmp.le.f32.partialorder %v2998, %v3872
    %vm4060 = vcmp.le.f32.partialorder %v3003, %v3872
    %vm4061 = vcmp.le.f32.partialorder %v3008, %v3872
    %vm4062 = vcmp.le.f32.partialorder %v3013, %v3872
    %vm4063 = vcmp.le.f32.partialorder %v3018, %v3872
    %vm4064 = vcmp.le.f32.partialorder %v3023, %v3872
    %vm4065 = vcmp.le.f32.partialorder %v3028, %v3872
    %vm4066 = vcmp.le.f32.partialorder %v3033, %v3872
    %vm4067 = vcmp.le.f32.partialorder %v3038, %v3872
    %vm4068 = vcmp.le.f32.partialorder %v3043, %v3872
    %vm4069 = vcmp.le.f32.partialorder %v3048, %v3872
    %vm4070 = vcmp.le.f32.partialorder %v3053, %v3872
    %vm4071 = vcmp.le.f32.partialorder %v3058, %v3872
    %vm4072 = vcmp.le.f32.partialorder %v3063, %v3872
    %vm4073 = vcmp.le.f32.partialorder %v3068, %v3872
    %vm4074 = vcmp.le.f32.partialorder %v3073, %v3872
    %vm4075 = vcmp.le.f32.partialorder %v3078, %v3872
    %vm4076 = vcmp.le.f32.partialorder %v3083, %v3872
    %vm4077 = vcmp.le.f32.partialorder %v3088, %v3872
    %vm4078 = vcmp.le.f32.partialorder %v3093, %v3872
    %vm4079 = vcmp.le.f32.partialorder %v3098, %v3872
    %vm4080 = vcmp.le.f32.partialorder %v3103, %v3872
    %vm4081 = vcmp.le.f32.partialorder %v3108, %v3872
    %vm4082 = vcmp.le.f32.partialorder %v3113, %v3872
    %vm4083 = vcmp.le.f32.partialorder %v3118, %v3872
    %vm4084 = vcmp.le.f32.partialorder %v3123, %v3872
    %vm4085 = vcmp.le.f32.partialorder %v3128, %v3872
    %vm4086 = vcmp.le.f32.partialorder %v3133, %v3872
    %vm4087 = vcmp.le.f32.partialorder %v3138, %v3872
    %vm4088 = vcmp.le.f32.partialorder %v3143, %v3872
    %vm4089 = vcmp.le.f32.partialorder %v3148, %v3872
    %vm4090 = vcmp.le.f32.partialorder %v3153, %v3872
    %vm4091 = vcmp.le.f32.partialorder %v3158, %v3872
    %vm4092 = vcmp.le.f32.partialorder %v3163, %v3872
    %vm4093 = vcmp.le.f32.partialorder %v3168, %v3872
    %vm4094 = vcmp.le.f32.partialorder %v3173, %v3872
    %vm4095 = vcmp.le.f32.partialorder %v3178, %v3872
    %vm4096 = vcmp.le.f32.partialorder %v3183, %v3872
    %vm4097 = vcmp.le.f32.partialorder %v3188, %v3872
    %vm4098 = vcmp.le.f32.partialorder %v3193, %v3872
    %vm4099 = vcmp.le.f32.partialorder %v3198, %v3872
    %vm4100 = vcmp.le.f32.partialorder %v3203, %v3872
    %vm4101 = vcmp.le.f32.partialorder %v3208, %v3872
    %vm4102 = vcmp.le.f32.partialorder %v3213, %v3872
    %vm4103 = vcmp.le.f32.partialorder %v3218, %v3872
    %vm4104 = vcmp.le.f32.partialorder %v3223, %v3872
    %vm4105 = vcmp.le.f32.partialorder %v3228, %v3872
    %vm4106 = vcmp.le.f32.partialorder %v3233, %v3872
    %vm4107 = vcmp.le.f32.partialorder %v3238, %v3872
    %vm4108 = vcmp.le.f32.partialorder %v3243, %v3872
    %vm4109 = vcmp.le.f32.partialorder %v3248, %v3872
    %vm4110 = vcmp.le.f32.partialorder %v3253, %v3872
    %vm4111 = vcmp.le.f32.partialorder %v3258, %v3872
    %vm4112 = vcmp.le.f32.partialorder %v3263, %v3872
    %vm4113 = vcmp.le.f32.partialorder %v3268, %v3872
    %vm4114 = vcmp.le.f32.partialorder %v3273, %v3872
    %vm4115 = vcmp.le.f32.partialorder %v3278, %v3872
    %vm4116 = vcmp.le.f32.partialorder %v3283, %v3872
    %vm4117 = vcmp.le.f32.partialorder %v3288, %v3872
    %vm4118 = vcmp.le.f32.partialorder %v3293, %v3872
    %vm4119 = vcmp.le.f32.partialorder %v3298, %v3872
    %vm4120 = vcmp.le.f32.partialorder %v3303, %v3872
    %vm4121 = vcmp.le.f32.partialorder %v3308, %v3872
    %vm4122 = vcmp.le.f32.partialorder %v3313, %v3872
    %vm4123 = vcmp.le.f32.partialorder %v3318, %v3872
    %vm4124 = vcmp.le.f32.partialorder %v3323, %v3872
    %vm4125 = vcmp.le.f32.partialorder %v3328, %v3872
    %vm4126 = vcmp.le.f32.partialorder %v3333, %v3872
    %vm4127 = vcmp.le.f32.partialorder %v3338, %v3872
    %vm4128 = vcmp.le.f32.partialorder %v3343, %v3872
    %v4129 = vlaneseq
    %v4130 = vshrl.u32 %v4129, 7
    %v4131 = vsub.s32 2, %v4130
    %v4132 = vrot.slane %v2063, %v4131
    %v4133 = vsel %vm3873, %v3612, %v4132
    %v4134 = vsel %vm3874, %v3612, %v4132
    %v4135 = vsel %vm3875, %v3612, %v4132
    %v4136 = vsel %vm3876, %v3612, %v4132
    %v4137 = vsel %vm3877, %v3612, %v4132
    %v4138 = vsel %vm3878, %v3612, %v4132
    %v4139 = vsel %vm3879, %v3612, %v4132
    %v4140 = vsel %vm3880, %v3612, %v4132
    %v4141 = vsel %vm3881, %v3612, %v4132
    %v4142 = vsel %vm3882, %v3612, %v4132
    %v4143 = vsel %vm3883, %v3612, %v4132
    %v4144 = vsel %vm3884, %v3612, %v4132
    %v4145 = vsel %vm3885, %v3612, %v4132
    %v4146 = vsel %vm3886, %v3612, %v4132
    %v4147 = vsel %vm3887, %v3612, %v4132
    %v4148 = vsel %vm3888, %v3612, %v4132
    %v4149 = vsel %vm3889, %v3612, %v4132
    %v4150 = vsel %vm3890, %v3612, %v4132
    %v4151 = vsel %vm3891, %v3612, %v4132
    %v4152 = vsel %vm3892, %v3612, %v4132
    %v4153 = vsel %vm3893, %v3612, %v4132
    %v4154 = vsel %vm3894, %v3612, %v4132
    %v4155 = vsel %vm3895, %v3612, %v4132
    %v4156 = vsel %vm3896, %v3612, %v4132
    %v4157 = vsel %vm3897, %v3612, %v4132
    %v4158 = vsel %vm3898, %v3612, %v4132
    %v4159 = vsel %vm3899, %v3612, %v4132
    %v4160 = vsel %vm3900, %v3612, %v4132
    %v4161 = vsel %vm3901, %v3612, %v4132
    %v4162 = vsel %vm3902, %v3612, %v4132
    %v4163 = vsel %vm3903, %v3612, %v4132
    %v4164 = vsel %vm3904, %v3612, %v4132
    %v4165 = vsel %vm3905, %v3612, %v4132
    %v4166 = vsel %vm3906, %v3612, %v4132
    %v4167 = vsel %vm3907, %v3612, %v4132
    %v4168 = vsel %vm3908, %v3612, %v4132
    %v4169 = vsel %vm3909, %v3612, %v4132
    %v4170 = vsel %vm3910, %v3612, %v4132
    %v4171 = vsel %vm3911, %v3612, %v4132
    %v4172 = vsel %vm3912, %v3612, %v4132
    %v4173 = vsel %vm3913, %v3612, %v4132
    %v4174 = vsel %vm3914, %v3612, %v4132
    %v4175 = vsel %vm3915, %v3612, %v4132
    %v4176 = vsel %vm3916, %v3612, %v4132
    %v4177 = vsel %vm3917, %v3612, %v4132
    %v4178 = vsel %vm3918, %v3612, %v4132
    %v4179 = vsel %vm3919, %v3612, %v4132
    %v4180 = vsel %vm3920, %v3612, %v4132
    %v4181 = vsel %vm3921, %v3612, %v4132
    %v4182 = vsel %vm3922, %v3612, %v4132
    %v4183 = vsel %vm3923, %v3612, %v4132
    %v4184 = vsel %vm3924, %v3612, %v4132
    %v4185 = vsel %vm3925, %v3612, %v4132
    %v4186 = vsel %vm3926, %v3612, %v4132
    %v4187 = vsel %vm3927, %v3612, %v4132
    %v4188 = vsel %vm3928, %v3612, %v4132
    %v4189 = vsel %vm3929, %v3612, %v4132
    %v4190 = vsel %vm3930, %v3612, %v4132
    %v4191 = vsel %vm3931, %v3612, %v4132
    %v4192 = vsel %vm3932, %v3612, %v4132
    %v4193 = vsel %vm3933, %v3612, %v4132
    %v4194 = vsel %vm3934, %v3612, %v4132
    %v4195 = vsel %vm3935, %v3612, %v4132
    %v4196 = vsel %vm3936, %v3612, %v4132
    %v4197 = vsel %vm3937, %v3612, %v4132
    %v4198 = vsel %vm3938, %v3612, %v4132
    %v4199 = vsel %vm3939, %v3612, %v4132
    %v4200 = vsel %vm3940, %v3612, %v4132
    %v4201 = vsel %vm3941, %v3612, %v4132
    %v4202 = vsel %vm3942, %v3612, %v4132
    %v4203 = vsel %vm3943, %v3612, %v4132
    %v4204 = vsel %vm3944, %v3612, %v4132
    %v4205 = vsel %vm3945, %v3612, %v4132
    %v4206 = vsel %vm3946, %v3612, %v4132
    %v4207 = vsel %vm3947, %v3612, %v4132
    %v4208 = vsel %vm3948, %v3612, %v4132
    %v4209 = vsel %vm3949, %v3612, %v4132
    %v4210 = vsel %vm3950, %v3612, %v4132
    %v4211 = vsel %vm3951, %v3612, %v4132
    %v4212 = vsel %vm3952, %v3612, %v4132
    %v4213 = vsel %vm3953, %v3612, %v4132
    %v4214 = vsel %vm3954, %v3612, %v4132
    %v4215 = vsel %vm3955, %v3612, %v4132
    %v4216 = vsel %vm3956, %v3612, %v4132
    %v4217 = vsel %vm3957, %v3612, %v4132
    %v4218 = vsel %vm3958, %v3612, %v4132
    %v4219 = vsel %vm3959, %v3612, %v4132
    %v4220 = vsel %vm3960, %v3612, %v4132
    %v4221 = vsel %vm3961, %v3612, %v4132
    %v4222 = vsel %vm3962, %v3612, %v4132
    %v4223 = vsel %vm3963, %v3612, %v4132
    %v4224 = vsel %vm3964, %v3612, %v4132
    %v4225 = vsel %vm3965, %v3612, %v4132
    %v4226 = vsel %vm3966, %v3612, %v4132
    %v4227 = vsel %vm3967, %v3612, %v4132
    %v4228 = vsel %vm3968, %v3612, %v4132
    %v4229 = vsel %vm3969, %v3612, %v4132
    %v4230 = vsel %vm3970, %v3612, %v4132
    %v4231 = vsel %vm3971, %v3612, %v4132
    %v4232 = vsel %vm3972, %v3612, %v4132
    %v4233 = vsel %vm3973, %v3612, %v4132
    %v4234 = vsel %vm3974, %v3612, %v4132
    %v4235 = vsel %vm3975, %v3612, %v4132
    %v4236 = vsel %vm3976, %v3612, %v4132
    %v4237 = vsel %vm3977, %v3612, %v4132
    %v4238 = vsel %vm3978, %v3612, %v4132
    %v4239 = vsel %vm3979, %v3612, %v4132
    %v4240 = vsel %vm3980, %v3612, %v4132
    %v4241 = vsel %vm3981, %v3612, %v4132
    %v4242 = vsel %vm3982, %v3612, %v4132
    %v4243 = vsel %vm3983, %v3612, %v4132
    %v4244 = vsel %vm3984, %v3612, %v4132
    %v4245 = vsel %vm3985, %v3612, %v4132
    %v4246 = vsel %vm3986, %v3612, %v4132
    %v4247 = vsel %vm3987, %v3612, %v4132
    %v4248 = vsel %vm3988, %v3612, %v4132
    %v4249 = vsel %vm3989, %v3612, %v4132
    %v4250 = vsel %vm3990, %v3612, %v4132
    %v4251 = vsel %vm3991, %v3612, %v4132
    %v4252 = vsel %vm3992, %v3612, %v4132
    %v4253 = vsel %vm3993, %v3612, %v4132
    %v4254 = vsel %vm3994, %v3612, %v4132
    %v4255 = vsel %vm3995, %v3612, %v4132
    %v4256 = vsel %vm3996, %v3612, %v4132
    %v4257 = vsel %vm3997, %v3612, %v4132
    %v4258 = vsel %vm3998, %v3612, %v4132
    %v4259 = vsel %vm3999, %v3612, %v4132
    %v4260 = vsel %vm4000, %v3612, %v4132
    %v4261 = vsel %vm4001, %v3612, %v4132
    %v4262 = vsel %vm4002, %v3612, %v4132
    %v4263 = vsel %vm4003, %v3612, %v4132
    %v4264 = vsel %vm4004, %v3612, %v4132
    %v4265 = vsel %vm4005, %v3612, %v4132
    %v4266 = vsel %vm4006, %v3612, %v4132
    %v4267 = vsel %vm4007, %v3612, %v4132
    %v4268 = vsel %vm4008, %v3612, %v4132
    %v4269 = vsel %vm4009, %v3612, %v4132
    %v4270 = vsel %vm4010, %v3612, %v4132
    %v4271 = vsel %vm4011, %v3612, %v4132
    %v4272 = vsel %vm4012, %v3612, %v4132
    %v4273 = vsel %vm4013, %v3612, %v4132
    %v4274 = vsel %vm4014, %v3612, %v4132
    %v4275 = vsel %vm4015, %v3612, %v4132
    %v4276 = vsel %vm4016, %v3612, %v4132
    %v4277 = vsel %vm4017, %v3612, %v4132
    %v4278 = vsel %vm4018, %v3612, %v4132
    %v4279 = vsel %vm4019, %v3612, %v4132
    %v4280 = vsel %vm4020, %v3612, %v4132
    %v4281 = vsel %vm4021, %v3612, %v4132
    %v4282 = vsel %vm4022, %v3612, %v4132
    %v4283 = vsel %vm4023, %v3612, %v4132
    %v4284 = vsel %vm4024, %v3612, %v4132
    %v4285 = vsel %vm4025, %v3612, %v4132
    %v4286 = vsel %vm4026, %v3612, %v4132
    %v4287 = vsel %vm4027, %v3612, %v4132
    %v4288 = vsel %vm4028, %v3612, %v4132
    %v4289 = vsel %vm4029, %v3612, %v4132
    %v4290 = vsel %vm4030, %v3612, %v4132
    %v4291 = vsel %vm4031, %v3612, %v4132
    %v4292 = vsel %vm4032, %v3612, %v4132
    %v4293 = vsel %vm4033, %v3612, %v4132
    %v4294 = vsel %vm4034, %v3612, %v4132
    %v4295 = vsel %vm4035, %v3612, %v4132
    %v4296 = vsel %vm4036, %v3612, %v4132
    %v4297 = vsel %vm4037, %v3612, %v4132
    %v4298 = vsel %vm4038, %v3612, %v4132
    %v4299 = vsel %vm4039, %v3612, %v4132
    %v4300 = vsel %vm4040, %v3612, %v4132
    %v4301 = vsel %vm4041, %v3612, %v4132
    %v4302 = vsel %vm4042, %v3612, %v4132
    %v4303 = vsel %vm4043, %v3612, %v4132
    %v4304 = vsel %vm4044, %v3612, %v4132
    %v4305 = vsel %vm4045, %v3612, %v4132
    %v4306 = vsel %vm4046, %v3612, %v4132
    %v4307 = vsel %vm4047, %v3612, %v4132
    %v4308 = vsel %vm4048, %v3612, %v4132
    %v4309 = vsel %vm4049, %v3612, %v4132
    %v4310 = vsel %vm4050, %v3612, %v4132
    %v4311 = vsel %vm4051, %v3612, %v4132
    %v4312 = vsel %vm4052, %v3612, %v4132
    %v4313 = vsel %vm4053, %v3612, %v4132
    %v4314 = vsel %vm4054, %v3612, %v4132
    %v4315 = vsel %vm4055, %v3612, %v4132
    %v4316 = vsel %vm4056, %v3612, %v4132
    %v4317 = vsel %vm4057, %v3612, %v4132
    %v4318 = vsel %vm4058, %v3612, %v4132
    %v4319 = vsel %vm4059, %v3612, %v4132
    %v4320 = vsel %vm4060, %v3612, %v4132
    %v4321 = vsel %vm4061, %v3612, %v4132
    %v4322 = vsel %vm4062, %v3612, %v4132
    %v4323 = vsel %vm4063, %v3612, %v4132
    %v4324 = vsel %vm4064, %v3612, %v4132
    %v4325 = vsel %vm4065, %v3612, %v4132
    %v4326 = vsel %vm4066, %v3612, %v4132
    %v4327 = vsel %vm4067, %v3612, %v4132
    %v4328 = vsel %vm4068, %v3612, %v4132
    %v4329 = vsel %vm4069, %v3612, %v4132
    %v4330 = vsel %vm4070, %v3612, %v4132
    %v4331 = vsel %vm4071, %v3612, %v4132
    %v4332 = vsel %vm4072, %v3612, %v4132
    %v4333 = vsel %vm4073, %v3612, %v4132
    %v4334 = vsel %vm4074, %v3612, %v4132
    %v4335 = vsel %vm4075, %v3612, %v4132
    %v4336 = vsel %vm4076, %v3612, %v4132
    %v4337 = vsel %vm4077, %v3612, %v4132
    %v4338 = vsel %vm4078, %v3612, %v4132
    %v4339 = vsel %vm4079, %v3612, %v4132
    %v4340 = vsel %vm4080, %v3612, %v4132
    %v4341 = vsel %vm4081, %v3612, %v4132
    %v4342 = vsel %vm4082, %v3612, %v4132
    %v4343 = vsel %vm4083, %v3612, %v4132
    %v4344 = vsel %vm4084, %v3612, %v4132
    %v4345 = vsel %vm4085, %v3612, %v4132
    %v4346 = vsel %vm4086, %v3612, %v4132
    %v4347 = vsel %vm4087, %v3612, %v4132
    %v4348 = vsel %vm4088, %v3612, %v4132
    %v4349 = vsel %vm4089, %v3612, %v4132
    %v4350 = vsel %vm4090, %v3612, %v4132
    %v4351 = vsel %vm4091, %v3612, %v4132
    %v4352 = vsel %vm4092, %v3612, %v4132
    %v4353 = vsel %vm4093, %v3612, %v4132
    %v4354 = vsel %vm4094, %v3612, %v4132
    %v4355 = vsel %vm4095, %v3612, %v4132
    %v4356 = vsel %vm4096, %v3612, %v4132
    %v4357 = vsel %vm4097, %v3612, %v4132
    %v4358 = vsel %vm4098, %v3612, %v4132
    %v4359 = vsel %vm4099, %v3612, %v4132
    %v4360 = vsel %vm4100, %v3612, %v4132
    %v4361 = vsel %vm4101, %v3612, %v4132
    %v4362 = vsel %vm4102, %v3612, %v4132
    %v4363 = vsel %vm4103, %v3612, %v4132
    %v4364 = vsel %vm4104, %v3612, %v4132
    %v4365 = vsel %vm4105, %v3612, %v4132
    %v4366 = vsel %vm4106, %v3612, %v4132
    %v4367 = vsel %vm4107, %v3612, %v4132
    %v4368 = vsel %vm4108, %v3612, %v4132
    %v4369 = vsel %vm4109, %v3612, %v4132
    %v4370 = vsel %vm4110, %v3612, %v4132
    %v4371 = vsel %vm4111, %v3612, %v4132
    %v4372 = vsel %vm4112, %v3612, %v4132
    %v4373 = vsel %vm4113, %v3612, %v4132
    %v4374 = vsel %vm4114, %v3612, %v4132
    %v4375 = vsel %vm4115, %v3612, %v4132
    %v4376 = vsel %vm4116, %v3612, %v4132
    %v4377 = vsel %vm4117, %v3612, %v4132
    %v4378 = vsel %vm4118, %v3612, %v4132
    %v4379 = vsel %vm4119, %v3612, %v4132
    %v4380 = vsel %vm4120, %v3612, %v4132
    %v4381 = vsel %vm4121, %v3612, %v4132
    %v4382 = vsel %vm4122, %v3612, %v4132
    %v4383 = vsel %vm4123, %v3612, %v4132
    %v4384 = vsel %vm4124, %v3612, %v4132
    %v4385 = vsel %vm4125, %v3612, %v4132
    %v4386 = vsel %vm4126, %v3612, %v4132
    %v4387 = vsel %vm4127, %v3612, %v4132
    %v4388 = vsel %vm4128, %v3612, %v4132
    %vm4389 = vcmp.eq.s32.totalorder %v1551, 1
    %vm4390 = vcmp.eq.s32.totalorder %v1552, 1
    %vm4391 = vcmp.eq.s32.totalorder %v1553, 1
    %vm4392 = vcmp.eq.s32.totalorder %v1554, 1
    %vm4393 = vcmp.eq.s32.totalorder %v1555, 1
    %vm4394 = vcmp.eq.s32.totalorder %v1556, 1
    %vm4395 = vcmp.eq.s32.totalorder %v1557, 1
    %vm4396 = vcmp.eq.s32.totalorder %v1558, 1
    %vm4397 = vcmp.eq.s32.totalorder %v1559, 1
    %vm4398 = vcmp.eq.s32.totalorder %v1560, 1
    %vm4399 = vcmp.eq.s32.totalorder %v1561, 1
    %vm4400 = vcmp.eq.s32.totalorder %v1562, 1
    %vm4401 = vcmp.eq.s32.totalorder %v1563, 1
    %vm4402 = vcmp.eq.s32.totalorder %v1564, 1
    %vm4403 = vcmp.eq.s32.totalorder %v1565, 1
    %vm4404 = vcmp.eq.s32.totalorder %v1566, 1
    %vm4405 = vcmp.eq.s32.totalorder %v1567, 1
    %vm4406 = vcmp.eq.s32.totalorder %v1568, 1
    %vm4407 = vcmp.eq.s32.totalorder %v1569, 1
    %vm4408 = vcmp.eq.s32.totalorder %v1570, 1
    %vm4409 = vcmp.eq.s32.totalorder %v1571, 1
    %vm4410 = vcmp.eq.s32.totalorder %v1572, 1
    %vm4411 = vcmp.eq.s32.totalorder %v1573, 1
    %vm4412 = vcmp.eq.s32.totalorder %v1574, 1
    %vm4413 = vcmp.eq.s32.totalorder %v1575, 1
    %vm4414 = vcmp.eq.s32.totalorder %v1576, 1
    %vm4415 = vcmp.eq.s32.totalorder %v1577, 1
    %vm4416 = vcmp.eq.s32.totalorder %v1578, 1
    %vm4417 = vcmp.eq.s32.totalorder %v1579, 1
    %vm4418 = vcmp.eq.s32.totalorder %v1580, 1
    %vm4419 = vcmp.eq.s32.totalorder %v1581, 1
    %vm4420 = vcmp.eq.s32.totalorder %v1582, 1
    %vm4421 = vcmp.eq.s32.totalorder %v1583, 1
    %vm4422 = vcmp.eq.s32.totalorder %v1584, 1
    %vm4423 = vcmp.eq.s32.totalorder %v1585, 1
    %vm4424 = vcmp.eq.s32.totalorder %v1586, 1
    %vm4425 = vcmp.eq.s32.totalorder %v1587, 1
    %vm4426 = vcmp.eq.s32.totalorder %v1588, 1
    %vm4427 = vcmp.eq.s32.totalorder %v1589, 1
    %vm4428 = vcmp.eq.s32.totalorder %v1590, 1
    %vm4429 = vcmp.eq.s32.totalorder %v1591, 1
    %vm4430 = vcmp.eq.s32.totalorder %v1592, 1
    %vm4431 = vcmp.eq.s32.totalorder %v1593, 1
    %vm4432 = vcmp.eq.s32.totalorder %v1594, 1
    %vm4433 = vcmp.eq.s32.totalorder %v1595, 1
    %vm4434 = vcmp.eq.s32.totalorder %v1596, 1
    %vm4435 = vcmp.eq.s32.totalorder %v1597, 1
    %vm4436 = vcmp.eq.s32.totalorder %v1598, 1
    %vm4437 = vcmp.eq.s32.totalorder %v1599, 1
    %vm4438 = vcmp.eq.s32.totalorder %v1600, 1
    %vm4439 = vcmp.eq.s32.totalorder %v1601, 1
    %vm4440 = vcmp.eq.s32.totalorder %v1602, 1
    %vm4441 = vcmp.eq.s32.totalorder %v1603, 1
    %vm4442 = vcmp.eq.s32.totalorder %v1604, 1
    %vm4443 = vcmp.eq.s32.totalorder %v1605, 1
    %vm4444 = vcmp.eq.s32.totalorder %v1606, 1
    %vm4445 = vcmp.eq.s32.totalorder %v1607, 1
    %vm4446 = vcmp.eq.s32.totalorder %v1608, 1
    %vm4447 = vcmp.eq.s32.totalorder %v1609, 1
    %vm4448 = vcmp.eq.s32.totalorder %v1610, 1
    %vm4449 = vcmp.eq.s32.totalorder %v1611, 1
    %vm4450 = vcmp.eq.s32.totalorder %v1612, 1
    %vm4451 = vcmp.eq.s32.totalorder %v1613, 1
    %vm4452 = vcmp.eq.s32.totalorder %v1614, 1
    %vm4453 = vcmp.eq.s32.totalorder %v1615, 1
    %vm4454 = vcmp.eq.s32.totalorder %v1616, 1
    %vm4455 = vcmp.eq.s32.totalorder %v1617, 1
    %vm4456 = vcmp.eq.s32.totalorder %v1618, 1
    %vm4457 = vcmp.eq.s32.totalorder %v1619, 1
    %vm4458 = vcmp.eq.s32.totalorder %v1620, 1
    %vm4459 = vcmp.eq.s32.totalorder %v1621, 1
    %vm4460 = vcmp.eq.s32.totalorder %v1622, 1
    %vm4461 = vcmp.eq.s32.totalorder %v1623, 1
    %vm4462 = vcmp.eq.s32.totalorder %v1624, 1
    %vm4463 = vcmp.eq.s32.totalorder %v1625, 1
    %vm4464 = vcmp.eq.s32.totalorder %v1626, 1
    %vm4465 = vcmp.eq.s32.totalorder %v1627, 1
    %vm4466 = vcmp.eq.s32.totalorder %v1628, 1
    %vm4467 = vcmp.eq.s32.totalorder %v1629, 1
    %vm4468 = vcmp.eq.s32.totalorder %v1630, 1
    %vm4469 = vcmp.eq.s32.totalorder %v1631, 1
    %vm4470 = vcmp.eq.s32.totalorder %v1632, 1
    %vm4471 = vcmp.eq.s32.totalorder %v1633, 1
    %vm4472 = vcmp.eq.s32.totalorder %v1634, 1
    %vm4473 = vcmp.eq.s32.totalorder %v1635, 1
    %vm4474 = vcmp.eq.s32.totalorder %v1636, 1
    %vm4475 = vcmp.eq.s32.totalorder %v1637, 1
    %vm4476 = vcmp.eq.s32.totalorder %v1638, 1
    %vm4477 = vcmp.eq.s32.totalorder %v1639, 1
    %vm4478 = vcmp.eq.s32.totalorder %v1640, 1
    %vm4479 = vcmp.eq.s32.totalorder %v1641, 1
    %vm4480 = vcmp.eq.s32.totalorder %v1642, 1
    %vm4481 = vcmp.eq.s32.totalorder %v1643, 1
    %vm4482 = vcmp.eq.s32.totalorder %v1644, 1
    %vm4483 = vcmp.eq.s32.totalorder %v1645, 1
    %vm4484 = vcmp.eq.s32.totalorder %v1646, 1
    %vm4485 = vcmp.eq.s32.totalorder %v1647, 1
    %vm4486 = vcmp.eq.s32.totalorder %v1648, 1
    %vm4487 = vcmp.eq.s32.totalorder %v1649, 1
    %vm4488 = vcmp.eq.s32.totalorder %v1650, 1
    %vm4489 = vcmp.eq.s32.totalorder %v1651, 1
    %vm4490 = vcmp.eq.s32.totalorder %v1652, 1
    %vm4491 = vcmp.eq.s32.totalorder %v1653, 1
    %vm4492 = vcmp.eq.s32.totalorder %v1654, 1
    %vm4493 = vcmp.eq.s32.totalorder %v1655, 1
    %vm4494 = vcmp.eq.s32.totalorder %v1656, 1
    %vm4495 = vcmp.eq.s32.totalorder %v1657, 1
    %vm4496 = vcmp.eq.s32.totalorder %v1658, 1
    %vm4497 = vcmp.eq.s32.totalorder %v1659, 1
    %vm4498 = vcmp.eq.s32.totalorder %v1660, 1
    %vm4499 = vcmp.eq.s32.totalorder %v1661, 1
    %vm4500 = vcmp.eq.s32.totalorder %v1662, 1
    %vm4501 = vcmp.eq.s32.totalorder %v1663, 1
    %vm4502 = vcmp.eq.s32.totalorder %v1664, 1
    %vm4503 = vcmp.eq.s32.totalorder %v1665, 1
    %vm4504 = vcmp.eq.s32.totalorder %v1666, 1
    %vm4505 = vcmp.eq.s32.totalorder %v1667, 1
    %vm4506 = vcmp.eq.s32.totalorder %v1668, 1
    %vm4507 = vcmp.eq.s32.totalorder %v1669, 1
    %vm4508 = vcmp.eq.s32.totalorder %v1670, 1
    %vm4509 = vcmp.eq.s32.totalorder %v1671, 1
    %vm4510 = vcmp.eq.s32.totalorder %v1672, 1
    %vm4511 = vcmp.eq.s32.totalorder %v1673, 1
    %vm4512 = vcmp.eq.s32.totalorder %v1674, 1
    %vm4513 = vcmp.eq.s32.totalorder %v1675, 1
    %vm4514 = vcmp.eq.s32.totalorder %v1676, 1
    %vm4515 = vcmp.eq.s32.totalorder %v1677, 1
    %vm4516 = vcmp.eq.s32.totalorder %v1678, 1
    %vm4517 = vcmp.eq.s32.totalorder %v1679, 1
    %vm4518 = vcmp.eq.s32.totalorder %v1680, 1
    %vm4519 = vcmp.eq.s32.totalorder %v1681, 1
    %vm4520 = vcmp.eq.s32.totalorder %v1682, 1
    %vm4521 = vcmp.eq.s32.totalorder %v1683, 1
    %vm4522 = vcmp.eq.s32.totalorder %v1684, 1
    %vm4523 = vcmp.eq.s32.totalorder %v1685, 1
    %vm4524 = vcmp.eq.s32.totalorder %v1686, 1
    %vm4525 = vcmp.eq.s32.totalorder %v1687, 1
    %vm4526 = vcmp.eq.s32.totalorder %v1688, 1
    %vm4527 = vcmp.eq.s32.totalorder %v1689, 1
    %vm4528 = vcmp.eq.s32.totalorder %v1690, 1
    %vm4529 = vcmp.eq.s32.totalorder %v1691, 1
    %vm4530 = vcmp.eq.s32.totalorder %v1692, 1
    %vm4531 = vcmp.eq.s32.totalorder %v1693, 1
    %vm4532 = vcmp.eq.s32.totalorder %v1694, 1
    %vm4533 = vcmp.eq.s32.totalorder %v1695, 1
    %vm4534 = vcmp.eq.s32.totalorder %v1696, 1
    %vm4535 = vcmp.eq.s32.totalorder %v1697, 1
    %vm4536 = vcmp.eq.s32.totalorder %v1698, 1
    %vm4537 = vcmp.eq.s32.totalorder %v1699, 1
    %vm4538 = vcmp.eq.s32.totalorder %v1700, 1
    %vm4539 = vcmp.eq.s32.totalorder %v1701, 1
    %vm4540 = vcmp.eq.s32.totalorder %v1702, 1
    %vm4541 = vcmp.eq.s32.totalorder %v1703, 1
    %vm4542 = vcmp.eq.s32.totalorder %v1704, 1
    %vm4543 = vcmp.eq.s32.totalorder %v1705, 1
    %vm4544 = vcmp.eq.s32.totalorder %v1706, 1
    %vm4545 = vcmp.eq.s32.totalorder %v1707, 1
    %vm4546 = vcmp.eq.s32.totalorder %v1708, 1
    %vm4547 = vcmp.eq.s32.totalorder %v1709, 1
    %vm4548 = vcmp.eq.s32.totalorder %v1710, 1
    %vm4549 = vcmp.eq.s32.totalorder %v1711, 1
    %vm4550 = vcmp.eq.s32.totalorder %v1712, 1
    %vm4551 = vcmp.eq.s32.totalorder %v1713, 1
    %vm4552 = vcmp.eq.s32.totalorder %v1714, 1
    %vm4553 = vcmp.eq.s32.totalorder %v1715, 1
    %vm4554 = vcmp.eq.s32.totalorder %v1716, 1
    %vm4555 = vcmp.eq.s32.totalorder %v1717, 1
    %vm4556 = vcmp.eq.s32.totalorder %v1718, 1
    %vm4557 = vcmp.eq.s32.totalorder %v1719, 1
    %vm4558 = vcmp.eq.s32.totalorder %v1720, 1
    %vm4559 = vcmp.eq.s32.totalorder %v1721, 1
    %vm4560 = vcmp.eq.s32.totalorder %v1722, 1
    %vm4561 = vcmp.eq.s32.totalorder %v1723, 1
    %vm4562 = vcmp.eq.s32.totalorder %v1724, 1
    %vm4563 = vcmp.eq.s32.totalorder %v1725, 1
    %vm4564 = vcmp.eq.s32.totalorder %v1726, 1
    %vm4565 = vcmp.eq.s32.totalorder %v1727, 1
    %vm4566 = vcmp.eq.s32.totalorder %v1728, 1
    %vm4567 = vcmp.eq.s32.totalorder %v1729, 1
    %vm4568 = vcmp.eq.s32.totalorder %v1730, 1
    %vm4569 = vcmp.eq.s32.totalorder %v1731, 1
    %vm4570 = vcmp.eq.s32.totalorder %v1732, 1
    %vm4571 = vcmp.eq.s32.totalorder %v1733, 1
    %vm4572 = vcmp.eq.s32.totalorder %v1734, 1
    %vm4573 = vcmp.eq.s32.totalorder %v1735, 1
    %vm4574 = vcmp.eq.s32.totalorder %v1736, 1
    %vm4575 = vcmp.eq.s32.totalorder %v1737, 1
    %vm4576 = vcmp.eq.s32.totalorder %v1738, 1
    %vm4577 = vcmp.eq.s32.totalorder %v1739, 1
    %vm4578 = vcmp.eq.s32.totalorder %v1740, 1
    %vm4579 = vcmp.eq.s32.totalorder %v1741, 1
    %vm4580 = vcmp.eq.s32.totalorder %v1742, 1
    %vm4581 = vcmp.eq.s32.totalorder %v1743, 1
    %vm4582 = vcmp.eq.s32.totalorder %v1744, 1
    %vm4583 = vcmp.eq.s32.totalorder %v1745, 1
    %vm4584 = vcmp.eq.s32.totalorder %v1746, 1
    %vm4585 = vcmp.eq.s32.totalorder %v1747, 1
    %vm4586 = vcmp.eq.s32.totalorder %v1748, 1
    %vm4587 = vcmp.eq.s32.totalorder %v1749, 1
    %vm4588 = vcmp.eq.s32.totalorder %v1750, 1
    %vm4589 = vcmp.eq.s32.totalorder %v1751, 1
    %vm4590 = vcmp.eq.s32.totalorder %v1752, 1
    %vm4591 = vcmp.eq.s32.totalorder %v1753, 1
    %vm4592 = vcmp.eq.s32.totalorder %v1754, 1
    %vm4593 = vcmp.eq.s32.totalorder %v1755, 1
    %vm4594 = vcmp.eq.s32.totalorder %v1756, 1
    %vm4595 = vcmp.eq.s32.totalorder %v1757, 1
    %vm4596 = vcmp.eq.s32.totalorder %v1758, 1
    %vm4597 = vcmp.eq.s32.totalorder %v1759, 1
    %vm4598 = vcmp.eq.s32.totalorder %v1760, 1
    %vm4599 = vcmp.eq.s32.totalorder %v1761, 1
    %vm4600 = vcmp.eq.s32.totalorder %v1762, 1
    %vm4601 = vcmp.eq.s32.totalorder %v1763, 1
    %vm4602 = vcmp.eq.s32.totalorder %v1764, 1
    %vm4603 = vcmp.eq.s32.totalorder %v1765, 1
    %vm4604 = vcmp.eq.s32.totalorder %v1766, 1
    %vm4605 = vcmp.eq.s32.totalorder %v1767, 1
    %vm4606 = vcmp.eq.s32.totalorder %v1768, 1
    %vm4607 = vcmp.eq.s32.totalorder %v1769, 1
    %vm4608 = vcmp.eq.s32.totalorder %v1770, 1
    %vm4609 = vcmp.eq.s32.totalorder %v1771, 1
    %vm4610 = vcmp.eq.s32.totalorder %v1772, 1
    %vm4611 = vcmp.eq.s32.totalorder %v1773, 1
    %vm4612 = vcmp.eq.s32.totalorder %v1774, 1
    %vm4613 = vcmp.eq.s32.totalorder %v1775, 1
    %vm4614 = vcmp.eq.s32.totalorder %v1776, 1
    %vm4615 = vcmp.eq.s32.totalorder %v1777, 1
    %vm4616 = vcmp.eq.s32.totalorder %v1778, 1
    %vm4617 = vcmp.eq.s32.totalorder %v1779, 1
    %vm4618 = vcmp.eq.s32.totalorder %v1780, 1
    %vm4619 = vcmp.eq.s32.totalorder %v1781, 1
    %vm4620 = vcmp.eq.s32.totalorder %v1782, 1
    %vm4621 = vcmp.eq.s32.totalorder %v1783, 1
    %vm4622 = vcmp.eq.s32.totalorder %v1784, 1
    %vm4623 = vcmp.eq.s32.totalorder %v1785, 1
    %vm4624 = vcmp.eq.s32.totalorder %v1786, 1
    %vm4625 = vcmp.eq.s32.totalorder %v1787, 1
    %vm4626 = vcmp.eq.s32.totalorder %v1788, 1
    %vm4627 = vcmp.eq.s32.totalorder %v1789, 1
    %vm4628 = vcmp.eq.s32.totalorder %v1790, 1
    %vm4629 = vcmp.eq.s32.totalorder %v1791, 1
    %vm4630 = vcmp.eq.s32.totalorder %v1792, 1
    %vm4631 = vcmp.eq.s32.totalorder %v1793, 1
    %vm4632 = vcmp.eq.s32.totalorder %v1794, 1
    %vm4633 = vcmp.eq.s32.totalorder %v1795, 1
    %vm4634 = vcmp.eq.s32.totalorder %v1796, 1
    %vm4635 = vcmp.eq.s32.totalorder %v1797, 1
    %vm4636 = vcmp.eq.s32.totalorder %v1798, 1
    %vm4637 = vcmp.eq.s32.totalorder %v1799, 1
    %vm4638 = vcmp.eq.s32.totalorder %v1800, 1
    %vm4639 = vcmp.eq.s32.totalorder %v1801, 1
    %vm4640 = vcmp.eq.s32.totalorder %v1802, 1
    %vm4641 = vcmp.eq.s32.totalorder %v1803, 1
    %vm4642 = vcmp.eq.s32.totalorder %v1804, 1
    %vm4643 = vcmp.eq.s32.totalorder %v1805, 1
    %vm4644 = vcmp.eq.s32.totalorder %v1806, 1
    %v4645 = vsel %vm4389, 1, 0
    %v4646 = vsel %vm4390, 1, 0
    %v4647 = vsel %vm4391, 1, 0
    %v4648 = vsel %vm4392, 1, 0
    %v4649 = vsel %vm4393, 1, 0
    %v4650 = vsel %vm4394, 1, 0
    %v4651 = vsel %vm4395, 1, 0
    %v4652 = vsel %vm4396, 1, 0
    %v4653 = vsel %vm4397, 1, 0
    %v4654 = vsel %vm4398, 1, 0
    %v4655 = vsel %vm4399, 1, 0
    %v4656 = vsel %vm4400, 1, 0
    %v4657 = vsel %vm4401, 1, 0
    %v4658 = vsel %vm4402, 1, 0
    %v4659 = vsel %vm4403, 1, 0
    %v4660 = vsel %vm4404, 1, 0
    %v4661 = vsel %vm4405, 1, 0
    %v4662 = vsel %vm4406, 1, 0
    %v4663 = vsel %vm4407, 1, 0
    %v4664 = vsel %vm4408, 1, 0
    %v4665 = vsel %vm4409, 1, 0
    %v4666 = vsel %vm4410, 1, 0
    %v4667 = vsel %vm4411, 1, 0
    %v4668 = vsel %vm4412, 1, 0
    %v4669 = vsel %vm4413, 1, 0
    %v4670 = vsel %vm4414, 1, 0
    %v4671 = vsel %vm4415, 1, 0
    %v4672 = vsel %vm4416, 1, 0
    %v4673 = vsel %vm4417, 1, 0
    %v4674 = vsel %vm4418, 1, 0
    %v4675 = vsel %vm4419, 1, 0
    %v4676 = vsel %vm4420, 1, 0
    %v4677 = vsel %vm4421, 1, 0
    %v4678 = vsel %vm4422, 1, 0
    %v4679 = vsel %vm4423, 1, 0
    %v4680 = vsel %vm4424, 1, 0
    %v4681 = vsel %vm4425, 1, 0
    %v4682 = vsel %vm4426, 1, 0
    %v4683 = vsel %vm4427, 1, 0
    %v4684 = vsel %vm4428, 1, 0
    %v4685 = vsel %vm4429, 1, 0
    %v4686 = vsel %vm4430, 1, 0
    %v4687 = vsel %vm4431, 1, 0
    %v4688 = vsel %vm4432, 1, 0
    %v4689 = vsel %vm4433, 1, 0
    %v4690 = vsel %vm4434, 1, 0
    %v4691 = vsel %vm4435, 1, 0
    %v4692 = vsel %vm4436, 1, 0
    %v4693 = vsel %vm4437, 1, 0
    %v4694 = vsel %vm4438, 1, 0
    %v4695 = vsel %vm4439, 1, 0
    %v4696 = vsel %vm4440, 1, 0
    %v4697 = vsel %vm4441, 1, 0
    %v4698 = vsel %vm4442, 1, 0
    %v4699 = vsel %vm4443, 1, 0
    %v4700 = vsel %vm4444, 1, 0
    %v4701 = vsel %vm4445, 1, 0
    %v4702 = vsel %vm4446, 1, 0
    %v4703 = vsel %vm4447, 1, 0
    %v4704 = vsel %vm4448, 1, 0
    %v4705 = vsel %vm4449, 1, 0
    %v4706 = vsel %vm4450, 1, 0
    %v4707 = vsel %vm4451, 1, 0
    %v4708 = vsel %vm4452, 1, 0
    %v4709 = vsel %vm4453, 1, 0
    %v4710 = vsel %vm4454, 1, 0
    %v4711 = vsel %vm4455, 1, 0
    %v4712 = vsel %vm4456, 1, 0
    %v4713 = vsel %vm4457, 1, 0
    %v4714 = vsel %vm4458, 1, 0
    %v4715 = vsel %vm4459, 1, 0
    %v4716 = vsel %vm4460, 1, 0
    %v4717 = vsel %vm4461, 1, 0
    %v4718 = vsel %vm4462, 1, 0
    %v4719 = vsel %vm4463, 1, 0
    %v4720 = vsel %vm4464, 1, 0
    %v4721 = vsel %vm4465, 1, 0
    %v4722 = vsel %vm4466, 1, 0
    %v4723 = vsel %vm4467, 1, 0
    %v4724 = vsel %vm4468, 1, 0
    %v4725 = vsel %vm4469, 1, 0
    %v4726 = vsel %vm4470, 1, 0
    %v4727 = vsel %vm4471, 1, 0
    %v4728 = vsel %vm4472, 1, 0
    %v4729 = vsel %vm4473, 1, 0
    %v4730 = vsel %vm4474, 1, 0
    %v4731 = vsel %vm4475, 1, 0
    %v4732 = vsel %vm4476, 1, 0
    %v4733 = vsel %vm4477, 1, 0
    %v4734 = vsel %vm4478, 1, 0
    %v4735 = vsel %vm4479, 1, 0
    %v4736 = vsel %vm4480, 1, 0
    %v4737 = vsel %vm4481, 1, 0
    %v4738 = vsel %vm4482, 1, 0
    %v4739 = vsel %vm4483, 1, 0
    %v4740 = vsel %vm4484, 1, 0
    %v4741 = vsel %vm4485, 1, 0
    %v4742 = vsel %vm4486, 1, 0
    %v4743 = vsel %vm4487, 1, 0
    %v4744 = vsel %vm4488, 1, 0
    %v4745 = vsel %vm4489, 1, 0
    %v4746 = vsel %vm4490, 1, 0
    %v4747 = vsel %vm4491, 1, 0
    %v4748 = vsel %vm4492, 1, 0
    %v4749 = vsel %vm4493, 1, 0
    %v4750 = vsel %vm4494, 1, 0
    %v4751 = vsel %vm4495, 1, 0
    %v4752 = vsel %vm4496, 1, 0
    %v4753 = vsel %vm4497, 1, 0
    %v4754 = vsel %vm4498, 1, 0
    %v4755 = vsel %vm4499, 1, 0
    %v4756 = vsel %vm4500, 1, 0
    %v4757 = vsel %vm4501, 1, 0
    %v4758 = vsel %vm4502, 1, 0
    %v4759 = vsel %vm4503, 1, 0
    %v4760 = vsel %vm4504, 1, 0
    %v4761 = vsel %vm4505, 1, 0
    %v4762 = vsel %vm4506, 1, 0
    %v4763 = vsel %vm4507, 1, 0
    %v4764 = vsel %vm4508, 1, 0
    %v4765 = vsel %vm4509, 1, 0
    %v4766 = vsel %vm4510, 1, 0
    %v4767 = vsel %vm4511, 1, 0
    %v4768 = vsel %vm4512, 1, 0
    %v4769 = vsel %vm4513, 1, 0
    %v4770 = vsel %vm4514, 1, 0
    %v4771 = vsel %vm4515, 1, 0
    %v4772 = vsel %vm4516, 1, 0
    %v4773 = vsel %vm4517, 1, 0
    %v4774 = vsel %vm4518, 1, 0
    %v4775 = vsel %vm4519, 1, 0
    %v4776 = vsel %vm4520, 1, 0
    %v4777 = vsel %vm4521, 1, 0
    %v4778 = vsel %vm4522, 1, 0
    %v4779 = vsel %vm4523, 1, 0
    %v4780 = vsel %vm4524, 1, 0
    %v4781 = vsel %vm4525, 1, 0
    %v4782 = vsel %vm4526, 1, 0
    %v4783 = vsel %vm4527, 1, 0
    %v4784 = vsel %vm4528, 1, 0
    %v4785 = vsel %vm4529, 1, 0
    %v4786 = vsel %vm4530, 1, 0
    %v4787 = vsel %vm4531, 1, 0
    %v4788 = vsel %vm4532, 1, 0
    %v4789 = vsel %vm4533, 1, 0
    %v4790 = vsel %vm4534, 1, 0
    %v4791 = vsel %vm4535, 1, 0
    %v4792 = vsel %vm4536, 1, 0
    %v4793 = vsel %vm4537, 1, 0
    %v4794 = vsel %vm4538, 1, 0
    %v4795 = vsel %vm4539, 1, 0
    %v4796 = vsel %vm4540, 1, 0
    %v4797 = vsel %vm4541, 1, 0
    %v4798 = vsel %vm4542, 1, 0
    %v4799 = vsel %vm4543, 1, 0
    %v4800 = vsel %vm4544, 1, 0
    %v4801 = vsel %vm4545, 1, 0
    %v4802 = vsel %vm4546, 1, 0
    %v4803 = vsel %vm4547, 1, 0
    %v4804 = vsel %vm4548, 1, 0
    %v4805 = vsel %vm4549, 1, 0
    %v4806 = vsel %vm4550, 1, 0
    %v4807 = vsel %vm4551, 1, 0
    %v4808 = vsel %vm4552, 1, 0
    %v4809 = vsel %vm4553, 1, 0
    %v4810 = vsel %vm4554, 1, 0
    %v4811 = vsel %vm4555, 1, 0
    %v4812 = vsel %vm4556, 1, 0
    %v4813 = vsel %vm4557, 1, 0
    %v4814 = vsel %vm4558, 1, 0
    %v4815 = vsel %vm4559, 1, 0
    %v4816 = vsel %vm4560, 1, 0
    %v4817 = vsel %vm4561, 1, 0
    %v4818 = vsel %vm4562, 1, 0
    %v4819 = vsel %vm4563, 1, 0
    %v4820 = vsel %vm4564, 1, 0
    %v4821 = vsel %vm4565, 1, 0
    %v4822 = vsel %vm4566, 1, 0
    %v4823 = vsel %vm4567, 1, 0
    %v4824 = vsel %vm4568, 1, 0
    %v4825 = vsel %vm4569, 1, 0
    %v4826 = vsel %vm4570, 1, 0
    %v4827 = vsel %vm4571, 1, 0
    %v4828 = vsel %vm4572, 1, 0
    %v4829 = vsel %vm4573, 1, 0
    %v4830 = vsel %vm4574, 1, 0
    %v4831 = vsel %vm4575, 1, 0
    %v4832 = vsel %vm4576, 1, 0
    %v4833 = vsel %vm4577, 1, 0
    %v4834 = vsel %vm4578, 1, 0
    %v4835 = vsel %vm4579, 1, 0
    %v4836 = vsel %vm4580, 1, 0
    %v4837 = vsel %vm4581, 1, 0
    %v4838 = vsel %vm4582, 1, 0
    %v4839 = vsel %vm4583, 1, 0
    %v4840 = vsel %vm4584, 1, 0
    %v4841 = vsel %vm4585, 1, 0
    %v4842 = vsel %vm4586, 1, 0
    %v4843 = vsel %vm4587, 1, 0
    %v4844 = vsel %vm4588, 1, 0
    %v4845 = vsel %vm4589, 1, 0
    %v4846 = vsel %vm4590, 1, 0
    %v4847 = vsel %vm4591, 1, 0
    %v4848 = vsel %vm4592, 1, 0
    %v4849 = vsel %vm4593, 1, 0
    %v4850 = vsel %vm4594, 1, 0
    %v4851 = vsel %vm4595, 1, 0
    %v4852 = vsel %vm4596, 1, 0
    %v4853 = vsel %vm4597, 1, 0
    %v4854 = vsel %vm4598, 1, 0
    %v4855 = vsel %vm4599, 1, 0
    %v4856 = vsel %vm4600, 1, 0
    %v4857 = vsel %vm4601, 1, 0
    %v4858 = vsel %vm4602, 1, 0
    %v4859 = vsel %vm4603, 1, 0
    %v4860 = vsel %vm4604, 1, 0
    %v4861 = vsel %vm4605, 1, 0
    %v4862 = vsel %vm4606, 1, 0
    %v4863 = vsel %vm4607, 1, 0
    %v4864 = vsel %vm4608, 1, 0
    %v4865 = vsel %vm4609, 1, 0
    %v4866 = vsel %vm4610, 1, 0
    %v4867 = vsel %vm4611, 1, 0
    %v4868 = vsel %vm4612, 1, 0
    %v4869 = vsel %vm4613, 1, 0
    %v4870 = vsel %vm4614, 1, 0
    %v4871 = vsel %vm4615, 1, 0
    %v4872 = vsel %vm4616, 1, 0
    %v4873 = vsel %vm4617, 1, 0
    %v4874 = vsel %vm4618, 1, 0
    %v4875 = vsel %vm4619, 1, 0
    %v4876 = vsel %vm4620, 1, 0
    %v4877 = vsel %vm4621, 1, 0
    %v4878 = vsel %vm4622, 1, 0
    %v4879 = vsel %vm4623, 1, 0
    %v4880 = vsel %vm4624, 1, 0
    %v4881 = vsel %vm4625, 1, 0
    %v4882 = vsel %vm4626, 1, 0
    %v4883 = vsel %vm4627, 1, 0
    %v4884 = vsel %vm4628, 1, 0
    %v4885 = vsel %vm4629, 1, 0
    %v4886 = vsel %vm4630, 1, 0
    %v4887 = vsel %vm4631, 1, 0
    %v4888 = vsel %vm4632, 1, 0
    %v4889 = vsel %vm4633, 1, 0
    %v4890 = vsel %vm4634, 1, 0
    %v4891 = vsel %vm4635, 1, 0
    %v4892 = vsel %vm4636, 1, 0
    %v4893 = vsel %vm4637, 1, 0
    %v4894 = vsel %vm4638, 1, 0
    %v4895 = vsel %vm4639, 1, 0
    %v4896 = vsel %vm4640, 1, 0
    %v4897 = vsel %vm4641, 1, 0
    %v4898 = vsel %vm4642, 1, 0
    %v4899 = vsel %vm4643, 1, 0
    %v4900 = vsel %vm4644, 1, 0
    %4901 = vset.pattern.permute.xlu0 0
    %4902 = vperm.xlu0 %4901, %v4645
    %v4903 = vpop.permute.xlu0 %4902
    %4904 = vset.pattern.permute.xlu0 0
    %4905 = vperm.xlu0 %4904, %v4646
    %v4906 = vpop.permute.xlu0 %4905
    %4907 = vset.pattern.permute.xlu0 0
    %4908 = vperm.xlu0 %4907, %v4647
    %v4909 = vpop.permute.xlu0 %4908
    %4910 = vset.pattern.permute.xlu0 0
    %4911 = vperm.xlu0 %4910, %v4648
    %v4912 = vpop.permute.xlu0 %4911
    %4913 = vset.pattern.permute.xlu0 0
    %4914 = vperm.xlu0 %4913, %v4649
    %v4915 = vpop.permute.xlu0 %4914
    %4916 = vset.pattern.permute.xlu0 0
    %4917 = vperm.xlu0 %4916, %v4650
    %v4918 = vpop.permute.xlu0 %4917
    %4919 = vset.pattern.permute.xlu0 0
    %4920 = vperm.xlu0 %4919, %v4651
    %v4921 = vpop.permute.xlu0 %4920
    %4922 = vset.pattern.permute.xlu0 0
    %4923 = vperm.xlu0 %4922, %v4652
    %v4924 = vpop.permute.xlu0 %4923
    %4925 = vset.pattern.permute.xlu0 0
    %4926 = vperm.xlu0 %4925, %v4653
    %v4927 = vpop.permute.xlu0 %4926
    %4928 = vset.pattern.permute.xlu0 0
    %4929 = vperm.xlu0 %4928, %v4654
    %v4930 = vpop.permute.xlu0 %4929
    %4931 = vset.pattern.permute.xlu0 0
    %4932 = vperm.xlu0 %4931, %v4655
    %v4933 = vpop.permute.xlu0 %4932
    %4934 = vset.pattern.permute.xlu0 0
    %4935 = vperm.xlu0 %4934, %v4656
    %v4936 = vpop.permute.xlu0 %4935
    %4937 = vset.pattern.permute.xlu0 0
    %4938 = vperm.xlu0 %4937, %v4657
    %v4939 = vpop.permute.xlu0 %4938
    %4940 = vset.pattern.permute.xlu0 0
    %4941 = vperm.xlu0 %4940, %v4658
    %v4942 = vpop.permute.xlu0 %4941
    %4943 = vset.pattern.permute.xlu0 0
    %4944 = vperm.xlu0 %4943, %v4659
    %v4945 = vpop.permute.xlu0 %4944
    %4946 = vset.pattern.permute.xlu0 0
    %4947 = vperm.xlu0 %4946, %v4660
    %v4948 = vpop.permute.xlu0 %4947
    %4949 = vset.pattern.permute.xlu0 0
    %4950 = vperm.xlu0 %4949, %v4661
    %v4951 = vpop.permute.xlu0 %4950
    %4952 = vset.pattern.permute.xlu0 0
    %4953 = vperm.xlu0 %4952, %v4662
    %v4954 = vpop.permute.xlu0 %4953
    %4955 = vset.pattern.permute.xlu0 0
    %4956 = vperm.xlu0 %4955, %v4663
    %v4957 = vpop.permute.xlu0 %4956
    %4958 = vset.pattern.permute.xlu0 0
    %4959 = vperm.xlu0 %4958, %v4664
    %v4960 = vpop.permute.xlu0 %4959
    %4961 = vset.pattern.permute.xlu0 0
    %4962 = vperm.xlu0 %4961, %v4665
    %v4963 = vpop.permute.xlu0 %4962
    %4964 = vset.pattern.permute.xlu0 0
    %4965 = vperm.xlu0 %4964, %v4666
    %v4966 = vpop.permute.xlu0 %4965
    %4967 = vset.pattern.permute.xlu0 0
    %4968 = vperm.xlu0 %4967, %v4667
    %v4969 = vpop.permute.xlu0 %4968
    %4970 = vset.pattern.permute.xlu0 0
    %4971 = vperm.xlu0 %4970, %v4668
    %v4972 = vpop.permute.xlu0 %4971
    %4973 = vset.pattern.permute.xlu0 0
    %4974 = vperm.xlu0 %4973, %v4669
    %v4975 = vpop.permute.xlu0 %4974
    %4976 = vset.pattern.permute.xlu0 0
    %4977 = vperm.xlu0 %4976, %v4670
    %v4978 = vpop.permute.xlu0 %4977
    %4979 = vset.pattern.permute.xlu0 0
    %4980 = vperm.xlu0 %4979, %v4671
    %v4981 = vpop.permute.xlu0 %4980
    %4982 = vset.pattern.permute.xlu0 0
    %4983 = vperm.xlu0 %4982, %v4672
    %v4984 = vpop.permute.xlu0 %4983
    %4985 = vset.pattern.permute.xlu0 0
    %4986 = vperm.xlu0 %4985, %v4673
    %v4987 = vpop.permute.xlu0 %4986
    %4988 = vset.pattern.permute.xlu0 0
    %4989 = vperm.xlu0 %4988, %v4674
    %v4990 = vpop.permute.xlu0 %4989
    %4991 = vset.pattern.permute.xlu0 0
    %4992 = vperm.xlu0 %4991, %v4675
    %v4993 = vpop.permute.xlu0 %4992
    %4994 = vset.pattern.permute.xlu0 0
    %4995 = vperm.xlu0 %4994, %v4676
    %v4996 = vpop.permute.xlu0 %4995
    %4997 = vset.pattern.permute.xlu0 0
    %4998 = vperm.xlu0 %4997, %v4677
    %v4999 = vpop.permute.xlu0 %4998
    %5000 = vset.pattern.permute.xlu0 0
    %5001 = vperm.xlu0 %5000, %v4678
    %v5002 = vpop.permute.xlu0 %5001
    %5003 = vset.pattern.permute.xlu0 0
    %5004 = vperm.xlu0 %5003, %v4679
    %v5005 = vpop.permute.xlu0 %5004
    %5006 = vset.pattern.permute.xlu0 0
    %5007 = vperm.xlu0 %5006, %v4680
    %v5008 = vpop.permute.xlu0 %5007
    %5009 = vset.pattern.permute.xlu0 0
    %5010 = vperm.xlu0 %5009, %v4681
    %v5011 = vpop.permute.xlu0 %5010
    %5012 = vset.pattern.permute.xlu0 0
    %5013 = vperm.xlu0 %5012, %v4682
    %v5014 = vpop.permute.xlu0 %5013
    %5015 = vset.pattern.permute.xlu0 0
    %5016 = vperm.xlu0 %5015, %v4683
    %v5017 = vpop.permute.xlu0 %5016
    %5018 = vset.pattern.permute.xlu0 0
    %5019 = vperm.xlu0 %5018, %v4684
    %v5020 = vpop.permute.xlu0 %5019
    %5021 = vset.pattern.permute.xlu0 0
    %5022 = vperm.xlu0 %5021, %v4685
    %v5023 = vpop.permute.xlu0 %5022
    %5024 = vset.pattern.permute.xlu0 0
    %5025 = vperm.xlu0 %5024, %v4686
    %v5026 = vpop.permute.xlu0 %5025
    %5027 = vset.pattern.permute.xlu0 0
    %5028 = vperm.xlu0 %5027, %v4687
    %v5029 = vpop.permute.xlu0 %5028
    %5030 = vset.pattern.permute.xlu0 0
    %5031 = vperm.xlu0 %5030, %v4688
    %v5032 = vpop.permute.xlu0 %5031
    %5033 = vset.pattern.permute.xlu0 0
    %5034 = vperm.xlu0 %5033, %v4689
    %v5035 = vpop.permute.xlu0 %5034
    %5036 = vset.pattern.permute.xlu0 0
    %5037 = vperm.xlu0 %5036, %v4690
    %v5038 = vpop.permute.xlu0 %5037
    %5039 = vset.pattern.permute.xlu0 0
    %5040 = vperm.xlu0 %5039, %v4691
    %v5041 = vpop.permute.xlu0 %5040
    %5042 = vset.pattern.permute.xlu0 0
    %5043 = vperm.xlu0 %5042, %v4692
    %v5044 = vpop.permute.xlu0 %5043
    %5045 = vset.pattern.permute.xlu0 0
    %5046 = vperm.xlu0 %5045, %v4693
    %v5047 = vpop.permute.xlu0 %5046
    %5048 = vset.pattern.permute.xlu0 0
    %5049 = vperm.xlu0 %5048, %v4694
    %v5050 = vpop.permute.xlu0 %5049
    %5051 = vset.pattern.permute.xlu0 0
    %5052 = vperm.xlu0 %5051, %v4695
    %v5053 = vpop.permute.xlu0 %5052
    %5054 = vset.pattern.permute.xlu0 0
    %5055 = vperm.xlu0 %5054, %v4696
    %v5056 = vpop.permute.xlu0 %5055
    %5057 = vset.pattern.permute.xlu0 0
    %5058 = vperm.xlu0 %5057, %v4697
    %v5059 = vpop.permute.xlu0 %5058
    %5060 = vset.pattern.permute.xlu0 0
    %5061 = vperm.xlu0 %5060, %v4698
    %v5062 = vpop.permute.xlu0 %5061
    %5063 = vset.pattern.permute.xlu0 0
    %5064 = vperm.xlu0 %5063, %v4699
    %v5065 = vpop.permute.xlu0 %5064
    %5066 = vset.pattern.permute.xlu0 0
    %5067 = vperm.xlu0 %5066, %v4700
    %v5068 = vpop.permute.xlu0 %5067
    %5069 = vset.pattern.permute.xlu0 0
    %5070 = vperm.xlu0 %5069, %v4701
    %v5071 = vpop.permute.xlu0 %5070
    %5072 = vset.pattern.permute.xlu0 0
    %5073 = vperm.xlu0 %5072, %v4702
    %v5074 = vpop.permute.xlu0 %5073
    %5075 = vset.pattern.permute.xlu0 0
    %5076 = vperm.xlu0 %5075, %v4703
    %v5077 = vpop.permute.xlu0 %5076
    %5078 = vset.pattern.permute.xlu0 0
    %5079 = vperm.xlu0 %5078, %v4704
    %v5080 = vpop.permute.xlu0 %5079
    %5081 = vset.pattern.permute.xlu0 0
    %5082 = vperm.xlu0 %5081, %v4705
    %v5083 = vpop.permute.xlu0 %5082
    %5084 = vset.pattern.permute.xlu0 0
    %5085 = vperm.xlu0 %5084, %v4706
    %v5086 = vpop.permute.xlu0 %5085
    %5087 = vset.pattern.permute.xlu0 0
    %5088 = vperm.xlu0 %5087, %v4707
    %v5089 = vpop.permute.xlu0 %5088
    %5090 = vset.pattern.permute.xlu0 0
    %5091 = vperm.xlu0 %5090, %v4708
    %v5092 = vpop.permute.xlu0 %5091
    %5093 = vset.pattern.permute.xlu0 0
    %5094 = vperm.xlu0 %5093, %v4709
    %v5095 = vpop.permute.xlu0 %5094
    %5096 = vset.pattern.permute.xlu0 0
    %5097 = vperm.xlu0 %5096, %v4710
    %v5098 = vpop.permute.xlu0 %5097
    %5099 = vset.pattern.permute.xlu0 0
    %5100 = vperm.xlu0 %5099, %v4711
    %v5101 = vpop.permute.xlu0 %5100
    %5102 = vset.pattern.permute.xlu0 0
    %5103 = vperm.xlu0 %5102, %v4712
    %v5104 = vpop.permute.xlu0 %5103
    %5105 = vset.pattern.permute.xlu0 0
    %5106 = vperm.xlu0 %5105, %v4713
    %v5107 = vpop.permute.xlu0 %5106
    %5108 = vset.pattern.permute.xlu0 0
    %5109 = vperm.xlu0 %5108, %v4714
    %v5110 = vpop.permute.xlu0 %5109
    %5111 = vset.pattern.permute.xlu0 0
    %5112 = vperm.xlu0 %5111, %v4715
    %v5113 = vpop.permute.xlu0 %5112
    %5114 = vset.pattern.permute.xlu0 0
    %5115 = vperm.xlu0 %5114, %v4716
    %v5116 = vpop.permute.xlu0 %5115
    %5117 = vset.pattern.permute.xlu0 0
    %5118 = vperm.xlu0 %5117, %v4717
    %v5119 = vpop.permute.xlu0 %5118
    %5120 = vset.pattern.permute.xlu0 0
    %5121 = vperm.xlu0 %5120, %v4718
    %v5122 = vpop.permute.xlu0 %5121
    %5123 = vset.pattern.permute.xlu0 0
    %5124 = vperm.xlu0 %5123, %v4719
    %v5125 = vpop.permute.xlu0 %5124
    %5126 = vset.pattern.permute.xlu0 0
    %5127 = vperm.xlu0 %5126, %v4720
    %v5128 = vpop.permute.xlu0 %5127
    %5129 = vset.pattern.permute.xlu0 0
    %5130 = vperm.xlu0 %5129, %v4721
    %v5131 = vpop.permute.xlu0 %5130
    %5132 = vset.pattern.permute.xlu0 0
    %5133 = vperm.xlu0 %5132, %v4722
    %v5134 = vpop.permute.xlu0 %5133
    %5135 = vset.pattern.permute.xlu0 0
    %5136 = vperm.xlu0 %5135, %v4723
    %v5137 = vpop.permute.xlu0 %5136
    %5138 = vset.pattern.permute.xlu0 0
    %5139 = vperm.xlu0 %5138, %v4724
    %v5140 = vpop.permute.xlu0 %5139
    %5141 = vset.pattern.permute.xlu0 0
    %5142 = vperm.xlu0 %5141, %v4725
    %v5143 = vpop.permute.xlu0 %5142
    %5144 = vset.pattern.permute.xlu0 0
    %5145 = vperm.xlu0 %5144, %v4726
    %v5146 = vpop.permute.xlu0 %5145
    %5147 = vset.pattern.permute.xlu0 0
    %5148 = vperm.xlu0 %5147, %v4727
    %v5149 = vpop.permute.xlu0 %5148
    %5150 = vset.pattern.permute.xlu0 0
    %5151 = vperm.xlu0 %5150, %v4728
    %v5152 = vpop.permute.xlu0 %5151
    %5153 = vset.pattern.permute.xlu0 0
    %5154 = vperm.xlu0 %5153, %v4729
    %v5155 = vpop.permute.xlu0 %5154
    %5156 = vset.pattern.permute.xlu0 0
    %5157 = vperm.xlu0 %5156, %v4730
    %v5158 = vpop.permute.xlu0 %5157
    %5159 = vset.pattern.permute.xlu0 0
    %5160 = vperm.xlu0 %5159, %v4731
    %v5161 = vpop.permute.xlu0 %5160
    %5162 = vset.pattern.permute.xlu0 0
    %5163 = vperm.xlu0 %5162, %v4732
    %v5164 = vpop.permute.xlu0 %5163
    %5165 = vset.pattern.permute.xlu0 0
    %5166 = vperm.xlu0 %5165, %v4733
    %v5167 = vpop.permute.xlu0 %5166
    %5168 = vset.pattern.permute.xlu0 0
    %5169 = vperm.xlu0 %5168, %v4734
    %v5170 = vpop.permute.xlu0 %5169
    %5171 = vset.pattern.permute.xlu0 0
    %5172 = vperm.xlu0 %5171, %v4735
    %v5173 = vpop.permute.xlu0 %5172
    %5174 = vset.pattern.permute.xlu0 0
    %5175 = vperm.xlu0 %5174, %v4736
    %v5176 = vpop.permute.xlu0 %5175
    %5177 = vset.pattern.permute.xlu0 0
    %5178 = vperm.xlu0 %5177, %v4737
    %v5179 = vpop.permute.xlu0 %5178
    %5180 = vset.pattern.permute.xlu0 0
    %5181 = vperm.xlu0 %5180, %v4738
    %v5182 = vpop.permute.xlu0 %5181
    %5183 = vset.pattern.permute.xlu0 0
    %5184 = vperm.xlu0 %5183, %v4739
    %v5185 = vpop.permute.xlu0 %5184
    %5186 = vset.pattern.permute.xlu0 0
    %5187 = vperm.xlu0 %5186, %v4740
    %v5188 = vpop.permute.xlu0 %5187
    %5189 = vset.pattern.permute.xlu0 0
    %5190 = vperm.xlu0 %5189, %v4741
    %v5191 = vpop.permute.xlu0 %5190
    %5192 = vset.pattern.permute.xlu0 0
    %5193 = vperm.xlu0 %5192, %v4742
    %v5194 = vpop.permute.xlu0 %5193
    %5195 = vset.pattern.permute.xlu0 0
    %5196 = vperm.xlu0 %5195, %v4743
    %v5197 = vpop.permute.xlu0 %5196
    %5198 = vset.pattern.permute.xlu0 0
    %5199 = vperm.xlu0 %5198, %v4744
    %v5200 = vpop.permute.xlu0 %5199
    %5201 = vset.pattern.permute.xlu0 0
    %5202 = vperm.xlu0 %5201, %v4745
    %v5203 = vpop.permute.xlu0 %5202
    %5204 = vset.pattern.permute.xlu0 0
    %5205 = vperm.xlu0 %5204, %v4746
    %v5206 = vpop.permute.xlu0 %5205
    %5207 = vset.pattern.permute.xlu0 0
    %5208 = vperm.xlu0 %5207, %v4747
    %v5209 = vpop.permute.xlu0 %5208
    %5210 = vset.pattern.permute.xlu0 0
    %5211 = vperm.xlu0 %5210, %v4748
    %v5212 = vpop.permute.xlu0 %5211
    %5213 = vset.pattern.permute.xlu0 0
    %5214 = vperm.xlu0 %5213, %v4749
    %v5215 = vpop.permute.xlu0 %5214
    %5216 = vset.pattern.permute.xlu0 0
    %5217 = vperm.xlu0 %5216, %v4750
    %v5218 = vpop.permute.xlu0 %5217
    %5219 = vset.pattern.permute.xlu0 0
    %5220 = vperm.xlu0 %5219, %v4751
    %v5221 = vpop.permute.xlu0 %5220
    %5222 = vset.pattern.permute.xlu0 0
    %5223 = vperm.xlu0 %5222, %v4752
    %v5224 = vpop.permute.xlu0 %5223
    %5225 = vset.pattern.permute.xlu0 0
    %5226 = vperm.xlu0 %5225, %v4753
    %v5227 = vpop.permute.xlu0 %5226
    %5228 = vset.pattern.permute.xlu0 0
    %5229 = vperm.xlu0 %5228, %v4754
    %v5230 = vpop.permute.xlu0 %5229
    %5231 = vset.pattern.permute.xlu0 0
    %5232 = vperm.xlu0 %5231, %v4755
    %v5233 = vpop.permute.xlu0 %5232
    %5234 = vset.pattern.permute.xlu0 0
    %5235 = vperm.xlu0 %5234, %v4756
    %v5236 = vpop.permute.xlu0 %5235
    %5237 = vset.pattern.permute.xlu0 0
    %5238 = vperm.xlu0 %5237, %v4757
    %v5239 = vpop.permute.xlu0 %5238
    %5240 = vset.pattern.permute.xlu0 0
    %5241 = vperm.xlu0 %5240, %v4758
    %v5242 = vpop.permute.xlu0 %5241
    %5243 = vset.pattern.permute.xlu0 0
    %5244 = vperm.xlu0 %5243, %v4759
    %v5245 = vpop.permute.xlu0 %5244
    %5246 = vset.pattern.permute.xlu0 0
    %5247 = vperm.xlu0 %5246, %v4760
    %v5248 = vpop.permute.xlu0 %5247
    %5249 = vset.pattern.permute.xlu0 0
    %5250 = vperm.xlu0 %5249, %v4761
    %v5251 = vpop.permute.xlu0 %5250
    %5252 = vset.pattern.permute.xlu0 0
    %5253 = vperm.xlu0 %5252, %v4762
    %v5254 = vpop.permute.xlu0 %5253
    %5255 = vset.pattern.permute.xlu0 0
    %5256 = vperm.xlu0 %5255, %v4763
    %v5257 = vpop.permute.xlu0 %5256
    %5258 = vset.pattern.permute.xlu0 0
    %5259 = vperm.xlu0 %5258, %v4764
    %v5260 = vpop.permute.xlu0 %5259
    %5261 = vset.pattern.permute.xlu0 0
    %5262 = vperm.xlu0 %5261, %v4765
    %v5263 = vpop.permute.xlu0 %5262
    %5264 = vset.pattern.permute.xlu0 0
    %5265 = vperm.xlu0 %5264, %v4766
    %v5266 = vpop.permute.xlu0 %5265
    %5267 = vset.pattern.permute.xlu0 0
    %5268 = vperm.xlu0 %5267, %v4767
    %v5269 = vpop.permute.xlu0 %5268
    %5270 = vset.pattern.permute.xlu0 0
    %5271 = vperm.xlu0 %5270, %v4768
    %v5272 = vpop.permute.xlu0 %5271
    %5273 = vset.pattern.permute.xlu0 0
    %5274 = vperm.xlu0 %5273, %v4769
    %v5275 = vpop.permute.xlu0 %5274
    %5276 = vset.pattern.permute.xlu0 0
    %5277 = vperm.xlu0 %5276, %v4770
    %v5278 = vpop.permute.xlu0 %5277
    %5279 = vset.pattern.permute.xlu0 0
    %5280 = vperm.xlu0 %5279, %v4771
    %v5281 = vpop.permute.xlu0 %5280
    %5282 = vset.pattern.permute.xlu0 0
    %5283 = vperm.xlu0 %5282, %v4772
    %v5284 = vpop.permute.xlu0 %5283
    %5285 = vset.pattern.permute.xlu0 0
    %5286 = vperm.xlu0 %5285, %v4773
    %v5287 = vpop.permute.xlu0 %5286
    %5288 = vset.pattern.permute.xlu0 0
    %5289 = vperm.xlu0 %5288, %v4774
    %v5290 = vpop.permute.xlu0 %5289
    %5291 = vset.pattern.permute.xlu0 0
    %5292 = vperm.xlu0 %5291, %v4775
    %v5293 = vpop.permute.xlu0 %5292
    %5294 = vset.pattern.permute.xlu0 0
    %5295 = vperm.xlu0 %5294, %v4776
    %v5296 = vpop.permute.xlu0 %5295
    %5297 = vset.pattern.permute.xlu0 0
    %5298 = vperm.xlu0 %5297, %v4777
    %v5299 = vpop.permute.xlu0 %5298
    %5300 = vset.pattern.permute.xlu0 0
    %5301 = vperm.xlu0 %5300, %v4778
    %v5302 = vpop.permute.xlu0 %5301
    %5303 = vset.pattern.permute.xlu0 0
    %5304 = vperm.xlu0 %5303, %v4779
    %v5305 = vpop.permute.xlu0 %5304
    %5306 = vset.pattern.permute.xlu0 0
    %5307 = vperm.xlu0 %5306, %v4780
    %v5308 = vpop.permute.xlu0 %5307
    %5309 = vset.pattern.permute.xlu0 0
    %5310 = vperm.xlu0 %5309, %v4781
    %v5311 = vpop.permute.xlu0 %5310
    %5312 = vset.pattern.permute.xlu0 0
    %5313 = vperm.xlu0 %5312, %v4782
    %v5314 = vpop.permute.xlu0 %5313
    %5315 = vset.pattern.permute.xlu0 0
    %5316 = vperm.xlu0 %5315, %v4783
    %v5317 = vpop.permute.xlu0 %5316
    %5318 = vset.pattern.permute.xlu0 0
    %5319 = vperm.xlu0 %5318, %v4784
    %v5320 = vpop.permute.xlu0 %5319
    %5321 = vset.pattern.permute.xlu0 0
    %5322 = vperm.xlu0 %5321, %v4785
    %v5323 = vpop.permute.xlu0 %5322
    %5324 = vset.pattern.permute.xlu0 0
    %5325 = vperm.xlu0 %5324, %v4786
    %v5326 = vpop.permute.xlu0 %5325
    %5327 = vset.pattern.permute.xlu0 0
    %5328 = vperm.xlu0 %5327, %v4787
    %v5329 = vpop.permute.xlu0 %5328
    %5330 = vset.pattern.permute.xlu0 0
    %5331 = vperm.xlu0 %5330, %v4788
    %v5332 = vpop.permute.xlu0 %5331
    %5333 = vset.pattern.permute.xlu0 0
    %5334 = vperm.xlu0 %5333, %v4789
    %v5335 = vpop.permute.xlu0 %5334
    %5336 = vset.pattern.permute.xlu0 0
    %5337 = vperm.xlu0 %5336, %v4790
    %v5338 = vpop.permute.xlu0 %5337
    %5339 = vset.pattern.permute.xlu0 0
    %5340 = vperm.xlu0 %5339, %v4791
    %v5341 = vpop.permute.xlu0 %5340
    %5342 = vset.pattern.permute.xlu0 0
    %5343 = vperm.xlu0 %5342, %v4792
    %v5344 = vpop.permute.xlu0 %5343
    %5345 = vset.pattern.permute.xlu0 0
    %5346 = vperm.xlu0 %5345, %v4793
    %v5347 = vpop.permute.xlu0 %5346
    %5348 = vset.pattern.permute.xlu0 0
    %5349 = vperm.xlu0 %5348, %v4794
    %v5350 = vpop.permute.xlu0 %5349
    %5351 = vset.pattern.permute.xlu0 0
    %5352 = vperm.xlu0 %5351, %v4795
    %v5353 = vpop.permute.xlu0 %5352
    %5354 = vset.pattern.permute.xlu0 0
    %5355 = vperm.xlu0 %5354, %v4796
    %v5356 = vpop.permute.xlu0 %5355
    %5357 = vset.pattern.permute.xlu0 0
    %5358 = vperm.xlu0 %5357, %v4797
    %v5359 = vpop.permute.xlu0 %5358
    %5360 = vset.pattern.permute.xlu0 0
    %5361 = vperm.xlu0 %5360, %v4798
    %v5362 = vpop.permute.xlu0 %5361
    %5363 = vset.pattern.permute.xlu0 0
    %5364 = vperm.xlu0 %5363, %v4799
    %v5365 = vpop.permute.xlu0 %5364
    %5366 = vset.pattern.permute.xlu0 0
    %5367 = vperm.xlu0 %5366, %v4800
    %v5368 = vpop.permute.xlu0 %5367
    %5369 = vset.pattern.permute.xlu0 0
    %5370 = vperm.xlu0 %5369, %v4801
    %v5371 = vpop.permute.xlu0 %5370
    %5372 = vset.pattern.permute.xlu0 0
    %5373 = vperm.xlu0 %5372, %v4802
    %v5374 = vpop.permute.xlu0 %5373
    %5375 = vset.pattern.permute.xlu0 0
    %5376 = vperm.xlu0 %5375, %v4803
    %v5377 = vpop.permute.xlu0 %5376
    %5378 = vset.pattern.permute.xlu0 0
    %5379 = vperm.xlu0 %5378, %v4804
    %v5380 = vpop.permute.xlu0 %5379
    %5381 = vset.pattern.permute.xlu0 0
    %5382 = vperm.xlu0 %5381, %v4805
    %v5383 = vpop.permute.xlu0 %5382
    %5384 = vset.pattern.permute.xlu0 0
    %5385 = vperm.xlu0 %5384, %v4806
    %v5386 = vpop.permute.xlu0 %5385
    %5387 = vset.pattern.permute.xlu0 0
    %5388 = vperm.xlu0 %5387, %v4807
    %v5389 = vpop.permute.xlu0 %5388
    %5390 = vset.pattern.permute.xlu0 0
    %5391 = vperm.xlu0 %5390, %v4808
    %v5392 = vpop.permute.xlu0 %5391
    %5393 = vset.pattern.permute.xlu0 0
    %5394 = vperm.xlu0 %5393, %v4809
    %v5395 = vpop.permute.xlu0 %5394
    %5396 = vset.pattern.permute.xlu0 0
    %5397 = vperm.xlu0 %5396, %v4810
    %v5398 = vpop.permute.xlu0 %5397
    %5399 = vset.pattern.permute.xlu0 0
    %5400 = vperm.xlu0 %5399, %v4811
    %v5401 = vpop.permute.xlu0 %5400
    %5402 = vset.pattern.permute.xlu0 0
    %5403 = vperm.xlu0 %5402, %v4812
    %v5404 = vpop.permute.xlu0 %5403
    %5405 = vset.pattern.permute.xlu0 0
    %5406 = vperm.xlu0 %5405, %v4813
    %v5407 = vpop.permute.xlu0 %5406
    %5408 = vset.pattern.permute.xlu0 0
    %5409 = vperm.xlu0 %5408, %v4814
    %v5410 = vpop.permute.xlu0 %5409
    %5411 = vset.pattern.permute.xlu0 0
    %5412 = vperm.xlu0 %5411, %v4815
    %v5413 = vpop.permute.xlu0 %5412
    %5414 = vset.pattern.permute.xlu0 0
    %5415 = vperm.xlu0 %5414, %v4816
    %v5416 = vpop.permute.xlu0 %5415
    %5417 = vset.pattern.permute.xlu0 0
    %5418 = vperm.xlu0 %5417, %v4817
    %v5419 = vpop.permute.xlu0 %5418
    %5420 = vset.pattern.permute.xlu0 0
    %5421 = vperm.xlu0 %5420, %v4818
    %v5422 = vpop.permute.xlu0 %5421
    %5423 = vset.pattern.permute.xlu0 0
    %5424 = vperm.xlu0 %5423, %v4819
    %v5425 = vpop.permute.xlu0 %5424
    %5426 = vset.pattern.permute.xlu0 0
    %5427 = vperm.xlu0 %5426, %v4820
    %v5428 = vpop.permute.xlu0 %5427
    %5429 = vset.pattern.permute.xlu0 0
    %5430 = vperm.xlu0 %5429, %v4821
    %v5431 = vpop.permute.xlu0 %5430
    %5432 = vset.pattern.permute.xlu0 0
    %5433 = vperm.xlu0 %5432, %v4822
    %v5434 = vpop.permute.xlu0 %5433
    %5435 = vset.pattern.permute.xlu0 0
    %5436 = vperm.xlu0 %5435, %v4823
    %v5437 = vpop.permute.xlu0 %5436
    %5438 = vset.pattern.permute.xlu0 0
    %5439 = vperm.xlu0 %5438, %v4824
    %v5440 = vpop.permute.xlu0 %5439
    %5441 = vset.pattern.permute.xlu0 0
    %5442 = vperm.xlu0 %5441, %v4825
    %v5443 = vpop.permute.xlu0 %5442
    %5444 = vset.pattern.permute.xlu0 0
    %5445 = vperm.xlu0 %5444, %v4826
    %v5446 = vpop.permute.xlu0 %5445
    %5447 = vset.pattern.permute.xlu0 0
    %5448 = vperm.xlu0 %5447, %v4827
    %v5449 = vpop.permute.xlu0 %5448
    %5450 = vset.pattern.permute.xlu0 0
    %5451 = vperm.xlu0 %5450, %v4828
    %v5452 = vpop.permute.xlu0 %5451
    %5453 = vset.pattern.permute.xlu0 0
    %5454 = vperm.xlu0 %5453, %v4829
    %v5455 = vpop.permute.xlu0 %5454
    %5456 = vset.pattern.permute.xlu0 0
    %5457 = vperm.xlu0 %5456, %v4830
    %v5458 = vpop.permute.xlu0 %5457
    %5459 = vset.pattern.permute.xlu0 0
    %5460 = vperm.xlu0 %5459, %v4831
    %v5461 = vpop.permute.xlu0 %5460
    %5462 = vset.pattern.permute.xlu0 0
    %5463 = vperm.xlu0 %5462, %v4832
    %v5464 = vpop.permute.xlu0 %5463
    %5465 = vset.pattern.permute.xlu0 0
    %5466 = vperm.xlu0 %5465, %v4833
    %v5467 = vpop.permute.xlu0 %5466
    %5468 = vset.pattern.permute.xlu0 0
    %5469 = vperm.xlu0 %5468, %v4834
    %v5470 = vpop.permute.xlu0 %5469
    %5471 = vset.pattern.permute.xlu0 0
    %5472 = vperm.xlu0 %5471, %v4835
    %v5473 = vpop.permute.xlu0 %5472
    %5474 = vset.pattern.permute.xlu0 0
    %5475 = vperm.xlu0 %5474, %v4836
    %v5476 = vpop.permute.xlu0 %5475
    %5477 = vset.pattern.permute.xlu0 0
    %5478 = vperm.xlu0 %5477, %v4837
    %v5479 = vpop.permute.xlu0 %5478
    %5480 = vset.pattern.permute.xlu0 0
    %5481 = vperm.xlu0 %5480, %v4838
    %v5482 = vpop.permute.xlu0 %5481
    %5483 = vset.pattern.permute.xlu0 0
    %5484 = vperm.xlu0 %5483, %v4839
    %v5485 = vpop.permute.xlu0 %5484
    %5486 = vset.pattern.permute.xlu0 0
    %5487 = vperm.xlu0 %5486, %v4840
    %v5488 = vpop.permute.xlu0 %5487
    %5489 = vset.pattern.permute.xlu0 0
    %5490 = vperm.xlu0 %5489, %v4841
    %v5491 = vpop.permute.xlu0 %5490
    %5492 = vset.pattern.permute.xlu0 0
    %5493 = vperm.xlu0 %5492, %v4842
    %v5494 = vpop.permute.xlu0 %5493
    %5495 = vset.pattern.permute.xlu0 0
    %5496 = vperm.xlu0 %5495, %v4843
    %v5497 = vpop.permute.xlu0 %5496
    %5498 = vset.pattern.permute.xlu0 0
    %5499 = vperm.xlu0 %5498, %v4844
    %v5500 = vpop.permute.xlu0 %5499
    %5501 = vset.pattern.permute.xlu0 0
    %5502 = vperm.xlu0 %5501, %v4845
    %v5503 = vpop.permute.xlu0 %5502
    %5504 = vset.pattern.permute.xlu0 0
    %5505 = vperm.xlu0 %5504, %v4846
    %v5506 = vpop.permute.xlu0 %5505
    %5507 = vset.pattern.permute.xlu0 0
    %5508 = vperm.xlu0 %5507, %v4847
    %v5509 = vpop.permute.xlu0 %5508
    %5510 = vset.pattern.permute.xlu0 0
    %5511 = vperm.xlu0 %5510, %v4848
    %v5512 = vpop.permute.xlu0 %5511
    %5513 = vset.pattern.permute.xlu0 0
    %5514 = vperm.xlu0 %5513, %v4849
    %v5515 = vpop.permute.xlu0 %5514
    %5516 = vset.pattern.permute.xlu0 0
    %5517 = vperm.xlu0 %5516, %v4850
    %v5518 = vpop.permute.xlu0 %5517
    %5519 = vset.pattern.permute.xlu0 0
    %5520 = vperm.xlu0 %5519, %v4851
    %v5521 = vpop.permute.xlu0 %5520
    %5522 = vset.pattern.permute.xlu0 0
    %5523 = vperm.xlu0 %5522, %v4852
    %v5524 = vpop.permute.xlu0 %5523
    %5525 = vset.pattern.permute.xlu0 0
    %5526 = vperm.xlu0 %5525, %v4853
    %v5527 = vpop.permute.xlu0 %5526
    %5528 = vset.pattern.permute.xlu0 0
    %5529 = vperm.xlu0 %5528, %v4854
    %v5530 = vpop.permute.xlu0 %5529
    %5531 = vset.pattern.permute.xlu0 0
    %5532 = vperm.xlu0 %5531, %v4855
    %v5533 = vpop.permute.xlu0 %5532
    %5534 = vset.pattern.permute.xlu0 0
    %5535 = vperm.xlu0 %5534, %v4856
    %v5536 = vpop.permute.xlu0 %5535
    %5537 = vset.pattern.permute.xlu0 0
    %5538 = vperm.xlu0 %5537, %v4857
    %v5539 = vpop.permute.xlu0 %5538
    %5540 = vset.pattern.permute.xlu0 0
    %5541 = vperm.xlu0 %5540, %v4858
    %v5542 = vpop.permute.xlu0 %5541
    %5543 = vset.pattern.permute.xlu0 0
    %5544 = vperm.xlu0 %5543, %v4859
    %v5545 = vpop.permute.xlu0 %5544
    %5546 = vset.pattern.permute.xlu0 0
    %5547 = vperm.xlu0 %5546, %v4860
    %v5548 = vpop.permute.xlu0 %5547
    %5549 = vset.pattern.permute.xlu0 0
    %5550 = vperm.xlu0 %5549, %v4861
    %v5551 = vpop.permute.xlu0 %5550
    %5552 = vset.pattern.permute.xlu0 0
    %5553 = vperm.xlu0 %5552, %v4862
    %v5554 = vpop.permute.xlu0 %5553
    %5555 = vset.pattern.permute.xlu0 0
    %5556 = vperm.xlu0 %5555, %v4863
    %v5557 = vpop.permute.xlu0 %5556
    %5558 = vset.pattern.permute.xlu0 0
    %5559 = vperm.xlu0 %5558, %v4864
    %v5560 = vpop.permute.xlu0 %5559
    %5561 = vset.pattern.permute.xlu0 0
    %5562 = vperm.xlu0 %5561, %v4865
    %v5563 = vpop.permute.xlu0 %5562
    %5564 = vset.pattern.permute.xlu0 0
    %5565 = vperm.xlu0 %5564, %v4866
    %v5566 = vpop.permute.xlu0 %5565
    %5567 = vset.pattern.permute.xlu0 0
    %5568 = vperm.xlu0 %5567, %v4867
    %v5569 = vpop.permute.xlu0 %5568
    %5570 = vset.pattern.permute.xlu0 0
    %5571 = vperm.xlu0 %5570, %v4868
    %v5572 = vpop.permute.xlu0 %5571
    %5573 = vset.pattern.permute.xlu0 0
    %5574 = vperm.xlu0 %5573, %v4869
    %v5575 = vpop.permute.xlu0 %5574
    %5576 = vset.pattern.permute.xlu0 0
    %5577 = vperm.xlu0 %5576, %v4870
    %v5578 = vpop.permute.xlu0 %5577
    %5579 = vset.pattern.permute.xlu0 0
    %5580 = vperm.xlu0 %5579, %v4871
    %v5581 = vpop.permute.xlu0 %5580
    %5582 = vset.pattern.permute.xlu0 0
    %5583 = vperm.xlu0 %5582, %v4872
    %v5584 = vpop.permute.xlu0 %5583
    %5585 = vset.pattern.permute.xlu0 0
    %5586 = vperm.xlu0 %5585, %v4873
    %v5587 = vpop.permute.xlu0 %5586
    %5588 = vset.pattern.permute.xlu0 0
    %5589 = vperm.xlu0 %5588, %v4874
    %v5590 = vpop.permute.xlu0 %5589
    %5591 = vset.pattern.permute.xlu0 0
    %5592 = vperm.xlu0 %5591, %v4875
    %v5593 = vpop.permute.xlu0 %5592
    %5594 = vset.pattern.permute.xlu0 0
    %5595 = vperm.xlu0 %5594, %v4876
    %v5596 = vpop.permute.xlu0 %5595
    %5597 = vset.pattern.permute.xlu0 0
    %5598 = vperm.xlu0 %5597, %v4877
    %v5599 = vpop.permute.xlu0 %5598
    %5600 = vset.pattern.permute.xlu0 0
    %5601 = vperm.xlu0 %5600, %v4878
    %v5602 = vpop.permute.xlu0 %5601
    %5603 = vset.pattern.permute.xlu0 0
    %5604 = vperm.xlu0 %5603, %v4879
    %v5605 = vpop.permute.xlu0 %5604
    %5606 = vset.pattern.permute.xlu0 0
    %5607 = vperm.xlu0 %5606, %v4880
    %v5608 = vpop.permute.xlu0 %5607
    %5609 = vset.pattern.permute.xlu0 0
    %5610 = vperm.xlu0 %5609, %v4881
    %v5611 = vpop.permute.xlu0 %5610
    %5612 = vset.pattern.permute.xlu0 0
    %5613 = vperm.xlu0 %5612, %v4882
    %v5614 = vpop.permute.xlu0 %5613
    %5615 = vset.pattern.permute.xlu0 0
    %5616 = vperm.xlu0 %5615, %v4883
    %v5617 = vpop.permute.xlu0 %5616
    %5618 = vset.pattern.permute.xlu0 0
    %5619 = vperm.xlu0 %5618, %v4884
    %v5620 = vpop.permute.xlu0 %5619
    %5621 = vset.pattern.permute.xlu0 0
    %5622 = vperm.xlu0 %5621, %v4885
    %v5623 = vpop.permute.xlu0 %5622
    %5624 = vset.pattern.permute.xlu0 0
    %5625 = vperm.xlu0 %5624, %v4886
    %v5626 = vpop.permute.xlu0 %5625
    %5627 = vset.pattern.permute.xlu0 0
    %5628 = vperm.xlu0 %5627, %v4887
    %v5629 = vpop.permute.xlu0 %5628
    %5630 = vset.pattern.permute.xlu0 0
    %5631 = vperm.xlu0 %5630, %v4888
    %v5632 = vpop.permute.xlu0 %5631
    %5633 = vset.pattern.permute.xlu0 0
    %5634 = vperm.xlu0 %5633, %v4889
    %v5635 = vpop.permute.xlu0 %5634
    %5636 = vset.pattern.permute.xlu0 0
    %5637 = vperm.xlu0 %5636, %v4890
    %v5638 = vpop.permute.xlu0 %5637
    %5639 = vset.pattern.permute.xlu0 0
    %5640 = vperm.xlu0 %5639, %v4891
    %v5641 = vpop.permute.xlu0 %5640
    %5642 = vset.pattern.permute.xlu0 0
    %5643 = vperm.xlu0 %5642, %v4892
    %v5644 = vpop.permute.xlu0 %5643
    %5645 = vset.pattern.permute.xlu0 0
    %5646 = vperm.xlu0 %5645, %v4893
    %v5647 = vpop.permute.xlu0 %5646
    %5648 = vset.pattern.permute.xlu0 0
    %5649 = vperm.xlu0 %5648, %v4894
    %v5650 = vpop.permute.xlu0 %5649
    %5651 = vset.pattern.permute.xlu0 0
    %5652 = vperm.xlu0 %5651, %v4895
    %v5653 = vpop.permute.xlu0 %5652
    %5654 = vset.pattern.permute.xlu0 0
    %5655 = vperm.xlu0 %5654, %v4896
    %v5656 = vpop.permute.xlu0 %5655
    %5657 = vset.pattern.permute.xlu0 0
    %5658 = vperm.xlu0 %5657, %v4897
    %v5659 = vpop.permute.xlu0 %5658
    %5660 = vset.pattern.permute.xlu0 0
    %5661 = vperm.xlu0 %5660, %v4898
    %v5662 = vpop.permute.xlu0 %5661
    %5663 = vset.pattern.permute.xlu0 0
    %5664 = vperm.xlu0 %5663, %v4899
    %v5665 = vpop.permute.xlu0 %5664
    %5666 = vset.pattern.permute.xlu0 0
    %5667 = vperm.xlu0 %5666, %v4900
    %v5668 = vpop.permute.xlu0 %5667
    %vm5669 = vcmp.eq.s32.totalorder %v4903, 1
    %vm5670 = vcmp.eq.s32.totalorder %v4906, 1
    %vm5671 = vcmp.eq.s32.totalorder %v4909, 1
    %vm5672 = vcmp.eq.s32.totalorder %v4912, 1
    %vm5673 = vcmp.eq.s32.totalorder %v4915, 1
    %vm5674 = vcmp.eq.s32.totalorder %v4918, 1
    %vm5675 = vcmp.eq.s32.totalorder %v4921, 1
    %vm5676 = vcmp.eq.s32.totalorder %v4924, 1
    %vm5677 = vcmp.eq.s32.totalorder %v4927, 1
    %vm5678 = vcmp.eq.s32.totalorder %v4930, 1
    %vm5679 = vcmp.eq.s32.totalorder %v4933, 1
    %vm5680 = vcmp.eq.s32.totalorder %v4936, 1
    %vm5681 = vcmp.eq.s32.totalorder %v4939, 1
    %vm5682 = vcmp.eq.s32.totalorder %v4942, 1
    %vm5683 = vcmp.eq.s32.totalorder %v4945, 1
    %vm5684 = vcmp.eq.s32.totalorder %v4948, 1
    %vm5685 = vcmp.eq.s32.totalorder %v4951, 1
    %vm5686 = vcmp.eq.s32.totalorder %v4954, 1
    %vm5687 = vcmp.eq.s32.totalorder %v4957, 1
    %vm5688 = vcmp.eq.s32.totalorder %v4960, 1
    %vm5689 = vcmp.eq.s32.totalorder %v4963, 1
    %vm5690 = vcmp.eq.s32.totalorder %v4966, 1
    %vm5691 = vcmp.eq.s32.totalorder %v4969, 1
    %vm5692 = vcmp.eq.s32.totalorder %v4972, 1
    %vm5693 = vcmp.eq.s32.totalorder %v4975, 1
    %vm5694 = vcmp.eq.s32.totalorder %v4978, 1
    %vm5695 = vcmp.eq.s32.totalorder %v4981, 1
    %vm5696 = vcmp.eq.s32.totalorder %v4984, 1
    %vm5697 = vcmp.eq.s32.totalorder %v4987, 1
    %vm5698 = vcmp.eq.s32.totalorder %v4990, 1
    %vm5699 = vcmp.eq.s32.totalorder %v4993, 1
    %vm5700 = vcmp.eq.s32.totalorder %v4996, 1
    %vm5701 = vcmp.eq.s32.totalorder %v4999, 1
    %vm5702 = vcmp.eq.s32.totalorder %v5002, 1
    %vm5703 = vcmp.eq.s32.totalorder %v5005, 1
    %vm5704 = vcmp.eq.s32.totalorder %v5008, 1
    %vm5705 = vcmp.eq.s32.totalorder %v5011, 1
    %vm5706 = vcmp.eq.s32.totalorder %v5014, 1
    %vm5707 = vcmp.eq.s32.totalorder %v5017, 1
    %vm5708 = vcmp.eq.s32.totalorder %v5020, 1
    %vm5709 = vcmp.eq.s32.totalorder %v5023, 1
    %vm5710 = vcmp.eq.s32.totalorder %v5026, 1
    %vm5711 = vcmp.eq.s32.totalorder %v5029, 1
    %vm5712 = vcmp.eq.s32.totalorder %v5032, 1
    %vm5713 = vcmp.eq.s32.totalorder %v5035, 1
    %vm5714 = vcmp.eq.s32.totalorder %v5038, 1
    %vm5715 = vcmp.eq.s32.totalorder %v5041, 1
    %vm5716 = vcmp.eq.s32.totalorder %v5044, 1
    %vm5717 = vcmp.eq.s32.totalorder %v5047, 1
    %vm5718 = vcmp.eq.s32.totalorder %v5050, 1
    %vm5719 = vcmp.eq.s32.totalorder %v5053, 1
    %vm5720 = vcmp.eq.s32.totalorder %v5056, 1
    %vm5721 = vcmp.eq.s32.totalorder %v5059, 1
    %vm5722 = vcmp.eq.s32.totalorder %v5062, 1
    %vm5723 = vcmp.eq.s32.totalorder %v5065, 1
    %vm5724 = vcmp.eq.s32.totalorder %v5068, 1
    %vm5725 = vcmp.eq.s32.totalorder %v5071, 1
    %vm5726 = vcmp.eq.s32.totalorder %v5074, 1
    %vm5727 = vcmp.eq.s32.totalorder %v5077, 1
    %vm5728 = vcmp.eq.s32.totalorder %v5080, 1
    %vm5729 = vcmp.eq.s32.totalorder %v5083, 1
    %vm5730 = vcmp.eq.s32.totalorder %v5086, 1
    %vm5731 = vcmp.eq.s32.totalorder %v5089, 1
    %vm5732 = vcmp.eq.s32.totalorder %v5092, 1
    %vm5733 = vcmp.eq.s32.totalorder %v5095, 1
    %vm5734 = vcmp.eq.s32.totalorder %v5098, 1
    %vm5735 = vcmp.eq.s32.totalorder %v5101, 1
    %vm5736 = vcmp.eq.s32.totalorder %v5104, 1
    %vm5737 = vcmp.eq.s32.totalorder %v5107, 1
    %vm5738 = vcmp.eq.s32.totalorder %v5110, 1
    %vm5739 = vcmp.eq.s32.totalorder %v5113, 1
    %vm5740 = vcmp.eq.s32.totalorder %v5116, 1
    %vm5741 = vcmp.eq.s32.totalorder %v5119, 1
    %vm5742 = vcmp.eq.s32.totalorder %v5122, 1
    %vm5743 = vcmp.eq.s32.totalorder %v5125, 1
    %vm5744 = vcmp.eq.s32.totalorder %v5128, 1
    %vm5745 = vcmp.eq.s32.totalorder %v5131, 1
    %vm5746 = vcmp.eq.s32.totalorder %v5134, 1
    %vm5747 = vcmp.eq.s32.totalorder %v5137, 1
    %vm5748 = vcmp.eq.s32.totalorder %v5140, 1
    %vm5749 = vcmp.eq.s32.totalorder %v5143, 1
    %vm5750 = vcmp.eq.s32.totalorder %v5146, 1
    %vm5751 = vcmp.eq.s32.totalorder %v5149, 1
    %vm5752 = vcmp.eq.s32.totalorder %v5152, 1
    %vm5753 = vcmp.eq.s32.totalorder %v5155, 1
    %vm5754 = vcmp.eq.s32.totalorder %v5158, 1
    %vm5755 = vcmp.eq.s32.totalorder %v5161, 1
    %vm5756 = vcmp.eq.s32.totalorder %v5164, 1
    %vm5757 = vcmp.eq.s32.totalorder %v5167, 1
    %vm5758 = vcmp.eq.s32.totalorder %v5170, 1
    %vm5759 = vcmp.eq.s32.totalorder %v5173, 1
    %vm5760 = vcmp.eq.s32.totalorder %v5176, 1
    %vm5761 = vcmp.eq.s32.totalorder %v5179, 1
    %vm5762 = vcmp.eq.s32.totalorder %v5182, 1
    %vm5763 = vcmp.eq.s32.totalorder %v5185, 1
    %vm5764 = vcmp.eq.s32.totalorder %v5188, 1
    %vm5765 = vcmp.eq.s32.totalorder %v5191, 1
    %vm5766 = vcmp.eq.s32.totalorder %v5194, 1
    %vm5767 = vcmp.eq.s32.totalorder %v5197, 1
    %vm5768 = vcmp.eq.s32.totalorder %v5200, 1
    %vm5769 = vcmp.eq.s32.totalorder %v5203, 1
    %vm5770 = vcmp.eq.s32.totalorder %v5206, 1
    %vm5771 = vcmp.eq.s32.totalorder %v5209, 1
    %vm5772 = vcmp.eq.s32.totalorder %v5212, 1
    %vm5773 = vcmp.eq.s32.totalorder %v5215, 1
    %vm5774 = vcmp.eq.s32.totalorder %v5218, 1
    %vm5775 = vcmp.eq.s32.totalorder %v5221, 1
    %vm5776 = vcmp.eq.s32.totalorder %v5224, 1
    %vm5777 = vcmp.eq.s32.totalorder %v5227, 1
    %vm5778 = vcmp.eq.s32.totalorder %v5230, 1
    %vm5779 = vcmp.eq.s32.totalorder %v5233, 1
    %vm5780 = vcmp.eq.s32.totalorder %v5236, 1
    %vm5781 = vcmp.eq.s32.totalorder %v5239, 1
    %vm5782 = vcmp.eq.s32.totalorder %v5242, 1
    %vm5783 = vcmp.eq.s32.totalorder %v5245, 1
    %vm5784 = vcmp.eq.s32.totalorder %v5248, 1
    %vm5785 = vcmp.eq.s32.totalorder %v5251, 1
    %vm5786 = vcmp.eq.s32.totalorder %v5254, 1
    %vm5787 = vcmp.eq.s32.totalorder %v5257, 1
    %vm5788 = vcmp.eq.s32.totalorder %v5260, 1
    %vm5789 = vcmp.eq.s32.totalorder %v5263, 1
    %vm5790 = vcmp.eq.s32.totalorder %v5266, 1
    %vm5791 = vcmp.eq.s32.totalorder %v5269, 1
    %vm5792 = vcmp.eq.s32.totalorder %v5272, 1
    %vm5793 = vcmp.eq.s32.totalorder %v5275, 1
    %vm5794 = vcmp.eq.s32.totalorder %v5278, 1
    %vm5795 = vcmp.eq.s32.totalorder %v5281, 1
    %vm5796 = vcmp.eq.s32.totalorder %v5284, 1
    %vm5797 = vcmp.eq.s32.totalorder %v5287, 1
    %vm5798 = vcmp.eq.s32.totalorder %v5290, 1
    %vm5799 = vcmp.eq.s32.totalorder %v5293, 1
    %vm5800 = vcmp.eq.s32.totalorder %v5296, 1
    %vm5801 = vcmp.eq.s32.totalorder %v5299, 1
    %vm5802 = vcmp.eq.s32.totalorder %v5302, 1
    %vm5803 = vcmp.eq.s32.totalorder %v5305, 1
    %vm5804 = vcmp.eq.s32.totalorder %v5308, 1
    %vm5805 = vcmp.eq.s32.totalorder %v5311, 1
    %vm5806 = vcmp.eq.s32.totalorder %v5314, 1
    %vm5807 = vcmp.eq.s32.totalorder %v5317, 1
    %vm5808 = vcmp.eq.s32.totalorder %v5320, 1
    %vm5809 = vcmp.eq.s32.totalorder %v5323, 1
    %vm5810 = vcmp.eq.s32.totalorder %v5326, 1
    %vm5811 = vcmp.eq.s32.totalorder %v5329, 1
    %vm5812 = vcmp.eq.s32.totalorder %v5332, 1
    %vm5813 = vcmp.eq.s32.totalorder %v5335, 1
    %vm5814 = vcmp.eq.s32.totalorder %v5338, 1
    %vm5815 = vcmp.eq.s32.totalorder %v5341, 1
    %vm5816 = vcmp.eq.s32.totalorder %v5344, 1
    %vm5817 = vcmp.eq.s32.totalorder %v5347, 1
    %vm5818 = vcmp.eq.s32.totalorder %v5350, 1
    %vm5819 = vcmp.eq.s32.totalorder %v5353, 1
    %vm5820 = vcmp.eq.s32.totalorder %v5356, 1
    %vm5821 = vcmp.eq.s32.totalorder %v5359, 1
    %vm5822 = vcmp.eq.s32.totalorder %v5362, 1
    %vm5823 = vcmp.eq.s32.totalorder %v5365, 1
    %vm5824 = vcmp.eq.s32.totalorder %v5368, 1
    %vm5825 = vcmp.eq.s32.totalorder %v5371, 1
    %vm5826 = vcmp.eq.s32.totalorder %v5374, 1
    %vm5827 = vcmp.eq.s32.totalorder %v5377, 1
    %vm5828 = vcmp.eq.s32.totalorder %v5380, 1
    %vm5829 = vcmp.eq.s32.totalorder %v5383, 1
    %vm5830 = vcmp.eq.s32.totalorder %v5386, 1
    %vm5831 = vcmp.eq.s32.totalorder %v5389, 1
    %vm5832 = vcmp.eq.s32.totalorder %v5392, 1
    %vm5833 = vcmp.eq.s32.totalorder %v5395, 1
    %vm5834 = vcmp.eq.s32.totalorder %v5398, 1
    %vm5835 = vcmp.eq.s32.totalorder %v5401, 1
    %vm5836 = vcmp.eq.s32.totalorder %v5404, 1
    %vm5837 = vcmp.eq.s32.totalorder %v5407, 1
    %vm5838 = vcmp.eq.s32.totalorder %v5410, 1
    %vm5839 = vcmp.eq.s32.totalorder %v5413, 1
    %vm5840 = vcmp.eq.s32.totalorder %v5416, 1
    %vm5841 = vcmp.eq.s32.totalorder %v5419, 1
    %vm5842 = vcmp.eq.s32.totalorder %v5422, 1
    %vm5843 = vcmp.eq.s32.totalorder %v5425, 1
    %vm5844 = vcmp.eq.s32.totalorder %v5428, 1
    %vm5845 = vcmp.eq.s32.totalorder %v5431, 1
    %vm5846 = vcmp.eq.s32.totalorder %v5434, 1
    %vm5847 = vcmp.eq.s32.totalorder %v5437, 1
    %vm5848 = vcmp.eq.s32.totalorder %v5440, 1
    %vm5849 = vcmp.eq.s32.totalorder %v5443, 1
    %vm5850 = vcmp.eq.s32.totalorder %v5446, 1
    %vm5851 = vcmp.eq.s32.totalorder %v5449, 1
    %vm5852 = vcmp.eq.s32.totalorder %v5452, 1
    %vm5853 = vcmp.eq.s32.totalorder %v5455, 1
    %vm5854 = vcmp.eq.s32.totalorder %v5458, 1
    %vm5855 = vcmp.eq.s32.totalorder %v5461, 1
    %vm5856 = vcmp.eq.s32.totalorder %v5464, 1
    %vm5857 = vcmp.eq.s32.totalorder %v5467, 1
    %vm5858 = vcmp.eq.s32.totalorder %v5470, 1
    %vm5859 = vcmp.eq.s32.totalorder %v5473, 1
    %vm5860 = vcmp.eq.s32.totalorder %v5476, 1
    %vm5861 = vcmp.eq.s32.totalorder %v5479, 1
    %vm5862 = vcmp.eq.s32.totalorder %v5482, 1
    %vm5863 = vcmp.eq.s32.totalorder %v5485, 1
    %vm5864 = vcmp.eq.s32.totalorder %v5488, 1
    %vm5865 = vcmp.eq.s32.totalorder %v5491, 1
    %vm5866 = vcmp.eq.s32.totalorder %v5494, 1
    %vm5867 = vcmp.eq.s32.totalorder %v5497, 1
    %vm5868 = vcmp.eq.s32.totalorder %v5500, 1
    %vm5869 = vcmp.eq.s32.totalorder %v5503, 1
    %vm5870 = vcmp.eq.s32.totalorder %v5506, 1
    %vm5871 = vcmp.eq.s32.totalorder %v5509, 1
    %vm5872 = vcmp.eq.s32.totalorder %v5512, 1
    %vm5873 = vcmp.eq.s32.totalorder %v5515, 1
    %vm5874 = vcmp.eq.s32.totalorder %v5518, 1
    %vm5875 = vcmp.eq.s32.totalorder %v5521, 1
    %vm5876 = vcmp.eq.s32.totalorder %v5524, 1
    %vm5877 = vcmp.eq.s32.totalorder %v5527, 1
    %vm5878 = vcmp.eq.s32.totalorder %v5530, 1
    %vm5879 = vcmp.eq.s32.totalorder %v5533, 1
    %vm5880 = vcmp.eq.s32.totalorder %v5536, 1
    %vm5881 = vcmp.eq.s32.totalorder %v5539, 1
    %vm5882 = vcmp.eq.s32.totalorder %v5542, 1
    %vm5883 = vcmp.eq.s32.totalorder %v5545, 1
    %vm5884 = vcmp.eq.s32.totalorder %v5548, 1
    %vm5885 = vcmp.eq.s32.totalorder %v5551, 1
    %vm5886 = vcmp.eq.s32.totalorder %v5554, 1
    %vm5887 = vcmp.eq.s32.totalorder %v5557, 1
    %vm5888 = vcmp.eq.s32.totalorder %v5560, 1
    %vm5889 = vcmp.eq.s32.totalorder %v5563, 1
    %vm5890 = vcmp.eq.s32.totalorder %v5566, 1
    %vm5891 = vcmp.eq.s32.totalorder %v5569, 1
    %vm5892 = vcmp.eq.s32.totalorder %v5572, 1
    %vm5893 = vcmp.eq.s32.totalorder %v5575, 1
    %vm5894 = vcmp.eq.s32.totalorder %v5578, 1
    %vm5895 = vcmp.eq.s32.totalorder %v5581, 1
    %vm5896 = vcmp.eq.s32.totalorder %v5584, 1
    %vm5897 = vcmp.eq.s32.totalorder %v5587, 1
    %vm5898 = vcmp.eq.s32.totalorder %v5590, 1
    %vm5899 = vcmp.eq.s32.totalorder %v5593, 1
    %vm5900 = vcmp.eq.s32.totalorder %v5596, 1
    %vm5901 = vcmp.eq.s32.totalorder %v5599, 1
    %vm5902 = vcmp.eq.s32.totalorder %v5602, 1
    %vm5903 = vcmp.eq.s32.totalorder %v5605, 1
    %vm5904 = vcmp.eq.s32.totalorder %v5608, 1
    %vm5905 = vcmp.eq.s32.totalorder %v5611, 1
    %vm5906 = vcmp.eq.s32.totalorder %v5614, 1
    %vm5907 = vcmp.eq.s32.totalorder %v5617, 1
    %vm5908 = vcmp.eq.s32.totalorder %v5620, 1
    %vm5909 = vcmp.eq.s32.totalorder %v5623, 1
    %vm5910 = vcmp.eq.s32.totalorder %v5626, 1
    %vm5911 = vcmp.eq.s32.totalorder %v5629, 1
    %vm5912 = vcmp.eq.s32.totalorder %v5632, 1
    %vm5913 = vcmp.eq.s32.totalorder %v5635, 1
    %vm5914 = vcmp.eq.s32.totalorder %v5638, 1
    %vm5915 = vcmp.eq.s32.totalorder %v5641, 1
    %vm5916 = vcmp.eq.s32.totalorder %v5644, 1
    %vm5917 = vcmp.eq.s32.totalorder %v5647, 1
    %vm5918 = vcmp.eq.s32.totalorder %v5650, 1
    %vm5919 = vcmp.eq.s32.totalorder %v5653, 1
    %vm5920 = vcmp.eq.s32.totalorder %v5656, 1
    %vm5921 = vcmp.eq.s32.totalorder %v5659, 1
    %vm5922 = vcmp.eq.s32.totalorder %v5662, 1
    %vm5923 = vcmp.eq.s32.totalorder %v5665, 1
    %vm5924 = vcmp.eq.s32.totalorder %v5668, 1
    %v5925 = vsel %vm5669, %v4133, %v3613
    %v5926 = vsel %vm5670, %v4134, %v3614
    %v5927 = vsel %vm5671, %v4135, %v3615
    %v5928 = vsel %vm5672, %v4136, %v3616
    %v5929 = vsel %vm5673, %v4137, %v3617
    %v5930 = vsel %vm5674, %v4138, %v3618
    %v5931 = vsel %vm5675, %v4139, %v3619
    %v5932 = vsel %vm5676, %v4140, %v3620
    %v5933 = vsel %vm5677, %v4141, %v3621
    %v5934 = vsel %vm5678, %v4142, %v3622
    %v5935 = vsel %vm5679, %v4143, %v3623
    %v5936 = vsel %vm5680, %v4144, %v3624
    %v5937 = vsel %vm5681, %v4145, %v3625
    %v5938 = vsel %vm5682, %v4146, %v3626
    %v5939 = vsel %vm5683, %v4147, %v3627
    %v5940 = vsel %vm5684, %v4148, %v3628
    %v5941 = vsel %vm5685, %v4149, %v3629
    %v5942 = vsel %vm5686, %v4150, %v3630
    %v5943 = vsel %vm5687, %v4151, %v3631
    %v5944 = vsel %vm5688, %v4152, %v3632
    %v5945 = vsel %vm5689, %v4153, %v3633
    %v5946 = vsel %vm5690, %v4154, %v3634
    %v5947 = vsel %vm5691, %v4155, %v3635
    %v5948 = vsel %vm5692, %v4156, %v3636
    %v5949 = vsel %vm5693, %v4157, %v3637
    %v5950 = vsel %vm5694, %v4158, %v3638
    %v5951 = vsel %vm5695, %v4159, %v3639
    %v5952 = vsel %vm5696, %v4160, %v3640
    %v5953 = vsel %vm5697, %v4161, %v3641
    %v5954 = vsel %vm5698, %v4162, %v3642
    %v5955 = vsel %vm5699, %v4163, %v3643
    %v5956 = vsel %vm5700, %v4164, %v3644
    %v5957 = vsel %vm5701, %v4165, %v3645
    %v5958 = vsel %vm5702, %v4166, %v3646
    %v5959 = vsel %vm5703, %v4167, %v3647
    %v5960 = vsel %vm5704, %v4168, %v3648
    %v5961 = vsel %vm5705, %v4169, %v3649
    %v5962 = vsel %vm5706, %v4170, %v3650
    %v5963 = vsel %vm5707, %v4171, %v3651
    %v5964 = vsel %vm5708, %v4172, %v3652
    %v5965 = vsel %vm5709, %v4173, %v3653
    %v5966 = vsel %vm5710, %v4174, %v3654
    %v5967 = vsel %vm5711, %v4175, %v3655
    %v5968 = vsel %vm5712, %v4176, %v3656
    %v5969 = vsel %vm5713, %v4177, %v3657
    %v5970 = vsel %vm5714, %v4178, %v3658
    %v5971 = vsel %vm5715, %v4179, %v3659
    %v5972 = vsel %vm5716, %v4180, %v3660
    %v5973 = vsel %vm5717, %v4181, %v3661
    %v5974 = vsel %vm5718, %v4182, %v3662
    %v5975 = vsel %vm5719, %v4183, %v3663
    %v5976 = vsel %vm5720, %v4184, %v3664
    %v5977 = vsel %vm5721, %v4185, %v3665
    %v5978 = vsel %vm5722, %v4186, %v3666
    %v5979 = vsel %vm5723, %v4187, %v3667
    %v5980 = vsel %vm5724, %v4188, %v3668
    %v5981 = vsel %vm5725, %v4189, %v3669
    %v5982 = vsel %vm5726, %v4190, %v3670
    %v5983 = vsel %vm5727, %v4191, %v3671
    %v5984 = vsel %vm5728, %v4192, %v3672
    %v5985 = vsel %vm5729, %v4193, %v3673
    %v5986 = vsel %vm5730, %v4194, %v3674
    %v5987 = vsel %vm5731, %v4195, %v3675
    %v5988 = vsel %vm5732, %v4196, %v3676
    %v5989 = vsel %vm5733, %v4197, %v3677
    %v5990 = vsel %vm5734, %v4198, %v3678
    %v5991 = vsel %vm5735, %v4199, %v3679
    %v5992 = vsel %vm5736, %v4200, %v3680
    %v5993 = vsel %vm5737, %v4201, %v3681
    %v5994 = vsel %vm5738, %v4202, %v3682
    %v5995 = vsel %vm5739, %v4203, %v3683
    %v5996 = vsel %vm5740, %v4204, %v3684
    %v5997 = vsel %vm5741, %v4205, %v3685
    %v5998 = vsel %vm5742, %v4206, %v3686
    %v5999 = vsel %vm5743, %v4207, %v3687
    %v6000 = vsel %vm5744, %v4208, %v3688
    %v6001 = vsel %vm5745, %v4209, %v3689
    %v6002 = vsel %vm5746, %v4210, %v3690
    %v6003 = vsel %vm5747, %v4211, %v3691
    %v6004 = vsel %vm5748, %v4212, %v3692
    %v6005 = vsel %vm5749, %v4213, %v3693
    %v6006 = vsel %vm5750, %v4214, %v3694
    %v6007 = vsel %vm5751, %v4215, %v3695
    %v6008 = vsel %vm5752, %v4216, %v3696
    %v6009 = vsel %vm5753, %v4217, %v3697
    %v6010 = vsel %vm5754, %v4218, %v3698
    %v6011 = vsel %vm5755, %v4219, %v3699
    %v6012 = vsel %vm5756, %v4220, %v3700
    %v6013 = vsel %vm5757, %v4221, %v3701
    %v6014 = vsel %vm5758, %v4222, %v3702
    %v6015 = vsel %vm5759, %v4223, %v3703
    %v6016 = vsel %vm5760, %v4224, %v3704
    %v6017 = vsel %vm5761, %v4225, %v3705
    %v6018 = vsel %vm5762, %v4226, %v3706
    %v6019 = vsel %vm5763, %v4227, %v3707
    %v6020 = vsel %vm5764, %v4228, %v3708
    %v6021 = vsel %vm5765, %v4229, %v3709
    %v6022 = vsel %vm5766, %v4230, %v3710
    %v6023 = vsel %vm5767, %v4231, %v3711
    %v6024 = vsel %vm5768, %v4232, %v3712
    %v6025 = vsel %vm5769, %v4233, %v3713
    %v6026 = vsel %vm5770, %v4234, %v3714
    %v6027 = vsel %vm5771, %v4235, %v3715
    %v6028 = vsel %vm5772, %v4236, %v3716
    %v6029 = vsel %vm5773, %v4237, %v3717
    %v6030 = vsel %vm5774, %v4238, %v3718
    %v6031 = vsel %vm5775, %v4239, %v3719
    %v6032 = vsel %vm5776, %v4240, %v3720
    %v6033 = vsel %vm5777, %v4241, %v3721
    %v6034 = vsel %vm5778, %v4242, %v3722
    %v6035 = vsel %vm5779, %v4243, %v3723
    %v6036 = vsel %vm5780, %v4244, %v3724
    %v6037 = vsel %vm5781, %v4245, %v3725
    %v6038 = vsel %vm5782, %v4246, %v3726
    %v6039 = vsel %vm5783, %v4247, %v3727
    %v6040 = vsel %vm5784, %v4248, %v3728
    %v6041 = vsel %vm5785, %v4249, %v3729
    %v6042 = vsel %vm5786, %v4250, %v3730
    %v6043 = vsel %vm5787, %v4251, %v3731
    %v6044 = vsel %vm5788, %v4252, %v3732
    %v6045 = vsel %vm5789, %v4253, %v3733
    %v6046 = vsel %vm5790, %v4254, %v3734
    %v6047 = vsel %vm5791, %v4255, %v3735
    %v6048 = vsel %vm5792, %v4256, %v3736
    %v6049 = vsel %vm5793, %v4257, %v3737
    %v6050 = vsel %vm5794, %v4258, %v3738
    %v6051 = vsel %vm5795, %v4259, %v3739
    %v6052 = vsel %vm5796, %v4260, %v3740
    %v6053 = vsel %vm5797, %v4261, %v3741
    %v6054 = vsel %vm5798, %v4262, %v3742
    %v6055 = vsel %vm5799, %v4263, %v3743
    %v6056 = vsel %vm5800, %v4264, %v3744
    %v6057 = vsel %vm5801, %v4265, %v3745
    %v6058 = vsel %vm5802, %v4266, %v3746
    %v6059 = vsel %vm5803, %v4267, %v3747
    %v6060 = vsel %vm5804, %v4268, %v3748
    %v6061 = vsel %vm5805, %v4269, %v3749
    %v6062 = vsel %vm5806, %v4270, %v3750
    %v6063 = vsel %vm5807, %v4271, %v3751
    %v6064 = vsel %vm5808, %v4272, %v3752
    %v6065 = vsel %vm5809, %v4273, %v3753
    %v6066 = vsel %vm5810, %v4274, %v3754
    %v6067 = vsel %vm5811, %v4275, %v3755
    %v6068 = vsel %vm5812, %v4276, %v3756
    %v6069 = vsel %vm5813, %v4277, %v3757
    %v6070 = vsel %vm5814, %v4278, %v3758
    %v6071 = vsel %vm5815, %v4279, %v3759
    %v6072 = vsel %vm5816, %v4280, %v3760
    %v6073 = vsel %vm5817, %v4281, %v3761
    %v6074 = vsel %vm5818, %v4282, %v3762
    %v6075 = vsel %vm5819, %v4283, %v3763
    %v6076 = vsel %vm5820, %v4284, %v3764
    %v6077 = vsel %vm5821, %v4285, %v3765
    %v6078 = vsel %vm5822, %v4286, %v3766
    %v6079 = vsel %vm5823, %v4287, %v3767
    %v6080 = vsel %vm5824, %v4288, %v3768
    %v6081 = vsel %vm5825, %v4289, %v3769
    %v6082 = vsel %vm5826, %v4290, %v3770
    %v6083 = vsel %vm5827, %v4291, %v3771
    %v6084 = vsel %vm5828, %v4292, %v3772
    %v6085 = vsel %vm5829, %v4293, %v3773
    %v6086 = vsel %vm5830, %v4294, %v3774
    %v6087 = vsel %vm5831, %v4295, %v3775
    %v6088 = vsel %vm5832, %v4296, %v3776
    %v6089 = vsel %vm5833, %v4297, %v3777
    %v6090 = vsel %vm5834, %v4298, %v3778
    %v6091 = vsel %vm5835, %v4299, %v3779
    %v6092 = vsel %vm5836, %v4300, %v3780
    %v6093 = vsel %vm5837, %v4301, %v3781
    %v6094 = vsel %vm5838, %v4302, %v3782
    %v6095 = vsel %vm5839, %v4303, %v3783
    %v6096 = vsel %vm5840, %v4304, %v3784
    %v6097 = vsel %vm5841, %v4305, %v3785
    %v6098 = vsel %vm5842, %v4306, %v3786
    %v6099 = vsel %vm5843, %v4307, %v3787
    %v6100 = vsel %vm5844, %v4308, %v3788
    %v6101 = vsel %vm5845, %v4309, %v3789
    %v6102 = vsel %vm5846, %v4310, %v3790
    %v6103 = vsel %vm5847, %v4311, %v3791
    %v6104 = vsel %vm5848, %v4312, %v3792
    %v6105 = vsel %vm5849, %v4313, %v3793
    %v6106 = vsel %vm5850, %v4314, %v3794
    %v6107 = vsel %vm5851, %v4315, %v3795
    %v6108 = vsel %vm5852, %v4316, %v3796
    %v6109 = vsel %vm5853, %v4317, %v3797
    %v6110 = vsel %vm5854, %v4318, %v3798
    %v6111 = vsel %vm5855, %v4319, %v3799
    %v6112 = vsel %vm5856, %v4320, %v3800
    %v6113 = vsel %vm5857, %v4321, %v3801
    %v6114 = vsel %vm5858, %v4322, %v3802
    %v6115 = vsel %vm5859, %v4323, %v3803
    %v6116 = vsel %vm5860, %v4324, %v3804
    %v6117 = vsel %vm5861, %v4325, %v3805
    %v6118 = vsel %vm5862, %v4326, %v3806
    %v6119 = vsel %vm5863, %v4327, %v3807
    %v6120 = vsel %vm5864, %v4328, %v3808
    %v6121 = vsel %vm5865, %v4329, %v3809
    %v6122 = vsel %vm5866, %v4330, %v3810
    %v6123 = vsel %vm5867, %v4331, %v3811
    %v6124 = vsel %vm5868, %v4332, %v3812
    %v6125 = vsel %vm5869, %v4333, %v3813
    %v6126 = vsel %vm5870, %v4334, %v3814
    %v6127 = vsel %vm5871, %v4335, %v3815
    %v6128 = vsel %vm5872, %v4336, %v3816
    %v6129 = vsel %vm5873, %v4337, %v3817
    %v6130 = vsel %vm5874, %v4338, %v3818
    %v6131 = vsel %vm5875, %v4339, %v3819
    %v6132 = vsel %vm5876, %v4340, %v3820
    %v6133 = vsel %vm5877, %v4341, %v3821
    %v6134 = vsel %vm5878, %v4342, %v3822
    %v6135 = vsel %vm5879, %v4343, %v3823
    %v6136 = vsel %vm5880, %v4344, %v3824
    %v6137 = vsel %vm5881, %v4345, %v3825
    %v6138 = vsel %vm5882, %v4346, %v3826
    %v6139 = vsel %vm5883, %v4347, %v3827
    %v6140 = vsel %vm5884, %v4348, %v3828
    %v6141 = vsel %vm5885, %v4349, %v3829
    %v6142 = vsel %vm5886, %v4350, %v3830
    %v6143 = vsel %vm5887, %v4351, %v3831
    %v6144 = vsel %vm5888, %v4352, %v3832
    %v6145 = vsel %vm5889, %v4353, %v3833
    %v6146 = vsel %vm5890, %v4354, %v3834
    %v6147 = vsel %vm5891, %v4355, %v3835
    %v6148 = vsel %vm5892, %v4356, %v3836
    %v6149 = vsel %vm5893, %v4357, %v3837
    %v6150 = vsel %vm5894, %v4358, %v3838
    %v6151 = vsel %vm5895, %v4359, %v3839
    %v6152 = vsel %vm5896, %v4360, %v3840
    %v6153 = vsel %vm5897, %v4361, %v3841
    %v6154 = vsel %vm5898, %v4362, %v3842
    %v6155 = vsel %vm5899, %v4363, %v3843
    %v6156 = vsel %vm5900, %v4364, %v3844
    %v6157 = vsel %vm5901, %v4365, %v3845
    %v6158 = vsel %vm5902, %v4366, %v3846
    %v6159 = vsel %vm5903, %v4367, %v3847
    %v6160 = vsel %vm5904, %v4368, %v3848
    %v6161 = vsel %vm5905, %v4369, %v3849
    %v6162 = vsel %vm5906, %v4370, %v3850
    %v6163 = vsel %vm5907, %v4371, %v3851
    %v6164 = vsel %vm5908, %v4372, %v3852
    %v6165 = vsel %vm5909, %v4373, %v3853
    %v6166 = vsel %vm5910, %v4374, %v3854
    %v6167 = vsel %vm5911, %v4375, %v3855
    %v6168 = vsel %vm5912, %v4376, %v3856
    %v6169 = vsel %vm5913, %v4377, %v3857
    %v6170 = vsel %vm5914, %v4378, %v3858
    %v6171 = vsel %vm5915, %v4379, %v3859
    %v6172 = vsel %vm5916, %v4380, %v3860
    %v6173 = vsel %vm5917, %v4381, %v3861
    %v6174 = vsel %vm5918, %v4382, %v3862
    %v6175 = vsel %vm5919, %v4383, %v3863
    %v6176 = vsel %vm5920, %v4384, %v3864
    %v6177 = vsel %vm5921, %v4385, %v3865
    %v6178 = vsel %vm5922, %v4386, %v3866
    %v6179 = vsel %vm5923, %v4387, %v3867
    %v6180 = vsel %vm5924, %v4388, %v3868
    %v6181 = vlaneseq
    %v6182 = vshrl.u32 %v6181, 7
    %v6183 = vsub.s32 2, %v6182
    %v6184 = vrot.slane %v2064, %v6183
    %vm6185 = vcmp.le.f32.partialorder %v2068, %v6184
    %vm6186 = vcmp.le.f32.partialorder %v2073, %v6184
    %vm6187 = vcmp.le.f32.partialorder %v2078, %v6184
    %vm6188 = vcmp.le.f32.partialorder %v2083, %v6184
    %vm6189 = vcmp.le.f32.partialorder %v2088, %v6184
    %vm6190 = vcmp.le.f32.partialorder %v2093, %v6184
    %vm6191 = vcmp.le.f32.partialorder %v2098, %v6184
    %vm6192 = vcmp.le.f32.partialorder %v2103, %v6184
    %vm6193 = vcmp.le.f32.partialorder %v2108, %v6184
    %vm6194 = vcmp.le.f32.partialorder %v2113, %v6184
    %vm6195 = vcmp.le.f32.partialorder %v2118, %v6184
    %vm6196 = vcmp.le.f32.partialorder %v2123, %v6184
    %vm6197 = vcmp.le.f32.partialorder %v2128, %v6184
    %vm6198 = vcmp.le.f32.partialorder %v2133, %v6184
    %vm6199 = vcmp.le.f32.partialorder %v2138, %v6184
    %vm6200 = vcmp.le.f32.partialorder %v2143, %v6184
    %vm6201 = vcmp.le.f32.partialorder %v2148, %v6184
    %vm6202 = vcmp.le.f32.partialorder %v2153, %v6184
    %vm6203 = vcmp.le.f32.partialorder %v2158, %v6184
    %vm6204 = vcmp.le.f32.partialorder %v2163, %v6184
    %vm6205 = vcmp.le.f32.partialorder %v2168, %v6184
    %vm6206 = vcmp.le.f32.partialorder %v2173, %v6184
    %vm6207 = vcmp.le.f32.partialorder %v2178, %v6184
    %vm6208 = vcmp.le.f32.partialorder %v2183, %v6184
    %vm6209 = vcmp.le.f32.partialorder %v2188, %v6184
    %vm6210 = vcmp.le.f32.partialorder %v2193, %v6184
    %vm6211 = vcmp.le.f32.partialorder %v2198, %v6184
    %vm6212 = vcmp.le.f32.partialorder %v2203, %v6184
    %vm6213 = vcmp.le.f32.partialorder %v2208, %v6184
    %vm6214 = vcmp.le.f32.partialorder %v2213, %v6184
    %vm6215 = vcmp.le.f32.partialorder %v2218, %v6184
    %vm6216 = vcmp.le.f32.partialorder %v2223, %v6184
    %vm6217 = vcmp.le.f32.partialorder %v2228, %v6184
    %vm6218 = vcmp.le.f32.partialorder %v2233, %v6184
    %vm6219 = vcmp.le.f32.partialorder %v2238, %v6184
    %vm6220 = vcmp.le.f32.partialorder %v2243, %v6184
    %vm6221 = vcmp.le.f32.partialorder %v2248, %v6184
    %vm6222 = vcmp.le.f32.partialorder %v2253, %v6184
    %vm6223 = vcmp.le.f32.partialorder %v2258, %v6184
    %vm6224 = vcmp.le.f32.partialorder %v2263, %v6184
    %vm6225 = vcmp.le.f32.partialorder %v2268, %v6184
    %vm6226 = vcmp.le.f32.partialorder %v2273, %v6184
    %vm6227 = vcmp.le.f32.partialorder %v2278, %v6184
    %vm6228 = vcmp.le.f32.partialorder %v2283, %v6184
    %vm6229 = vcmp.le.f32.partialorder %v2288, %v6184
    %vm6230 = vcmp.le.f32.partialorder %v2293, %v6184
    %vm6231 = vcmp.le.f32.partialorder %v2298, %v6184
    %vm6232 = vcmp.le.f32.partialorder %v2303, %v6184
    %vm6233 = vcmp.le.f32.partialorder %v2308, %v6184
    %vm6234 = vcmp.le.f32.partialorder %v2313, %v6184
    %vm6235 = vcmp.le.f32.partialorder %v2318, %v6184
    %vm6236 = vcmp.le.f32.partialorder %v2323, %v6184
    %vm6237 = vcmp.le.f32.partialorder %v2328, %v6184
    %vm6238 = vcmp.le.f32.partialorder %v2333, %v6184
    %vm6239 = vcmp.le.f32.partialorder %v2338, %v6184
    %vm6240 = vcmp.le.f32.partialorder %v2343, %v6184
    %vm6241 = vcmp.le.f32.partialorder %v2348, %v6184
    %vm6242 = vcmp.le.f32.partialorder %v2353, %v6184
    %vm6243 = vcmp.le.f32.partialorder %v2358, %v6184
    %vm6244 = vcmp.le.f32.partialorder %v2363, %v6184
    %vm6245 = vcmp.le.f32.partialorder %v2368, %v6184
    %vm6246 = vcmp.le.f32.partialorder %v2373, %v6184
    %vm6247 = vcmp.le.f32.partialorder %v2378, %v6184
    %vm6248 = vcmp.le.f32.partialorder %v2383, %v6184
    %vm6249 = vcmp.le.f32.partialorder %v2388, %v6184
    %vm6250 = vcmp.le.f32.partialorder %v2393, %v6184
    %vm6251 = vcmp.le.f32.partialorder %v2398, %v6184
    %vm6252 = vcmp.le.f32.partialorder %v2403, %v6184
    %vm6253 = vcmp.le.f32.partialorder %v2408, %v6184
    %vm6254 = vcmp.le.f32.partialorder %v2413, %v6184
    %vm6255 = vcmp.le.f32.partialorder %v2418, %v6184
    %vm6256 = vcmp.le.f32.partialorder %v2423, %v6184
    %vm6257 = vcmp.le.f32.partialorder %v2428, %v6184
    %vm6258 = vcmp.le.f32.partialorder %v2433, %v6184
    %vm6259 = vcmp.le.f32.partialorder %v2438, %v6184
    %vm6260 = vcmp.le.f32.partialorder %v2443, %v6184
    %vm6261 = vcmp.le.f32.partialorder %v2448, %v6184
    %vm6262 = vcmp.le.f32.partialorder %v2453, %v6184
    %vm6263 = vcmp.le.f32.partialorder %v2458, %v6184
    %vm6264 = vcmp.le.f32.partialorder %v2463, %v6184
    %vm6265 = vcmp.le.f32.partialorder %v2468, %v6184
    %vm6266 = vcmp.le.f32.partialorder %v2473, %v6184
    %vm6267 = vcmp.le.f32.partialorder %v2478, %v6184
    %vm6268 = vcmp.le.f32.partialorder %v2483, %v6184
    %vm6269 = vcmp.le.f32.partialorder %v2488, %v6184
    %vm6270 = vcmp.le.f32.partialorder %v2493, %v6184
    %vm6271 = vcmp.le.f32.partialorder %v2498, %v6184
    %vm6272 = vcmp.le.f32.partialorder %v2503, %v6184
    %vm6273 = vcmp.le.f32.partialorder %v2508, %v6184
    %vm6274 = vcmp.le.f32.partialorder %v2513, %v6184
    %vm6275 = vcmp.le.f32.partialorder %v2518, %v6184
    %vm6276 = vcmp.le.f32.partialorder %v2523, %v6184
    %vm6277 = vcmp.le.f32.partialorder %v2528, %v6184
    %vm6278 = vcmp.le.f32.partialorder %v2533, %v6184
    %vm6279 = vcmp.le.f32.partialorder %v2538, %v6184
    %vm6280 = vcmp.le.f32.partialorder %v2543, %v6184
    %vm6281 = vcmp.le.f32.partialorder %v2548, %v6184
    %vm6282 = vcmp.le.f32.partialorder %v2553, %v6184
    %vm6283 = vcmp.le.f32.partialorder %v2558, %v6184
    %vm6284 = vcmp.le.f32.partialorder %v2563, %v6184
    %vm6285 = vcmp.le.f32.partialorder %v2568, %v6184
    %vm6286 = vcmp.le.f32.partialorder %v2573, %v6184
    %vm6287 = vcmp.le.f32.partialorder %v2578, %v6184
    %vm6288 = vcmp.le.f32.partialorder %v2583, %v6184
    %vm6289 = vcmp.le.f32.partialorder %v2588, %v6184
    %vm6290 = vcmp.le.f32.partialorder %v2593, %v6184
    %vm6291 = vcmp.le.f32.partialorder %v2598, %v6184
    %vm6292 = vcmp.le.f32.partialorder %v2603, %v6184
    %vm6293 = vcmp.le.f32.partialorder %v2608, %v6184
    %vm6294 = vcmp.le.f32.partialorder %v2613, %v6184
    %vm6295 = vcmp.le.f32.partialorder %v2618, %v6184
    %vm6296 = vcmp.le.f32.partialorder %v2623, %v6184
    %vm6297 = vcmp.le.f32.partialorder %v2628, %v6184
    %vm6298 = vcmp.le.f32.partialorder %v2633, %v6184
    %vm6299 = vcmp.le.f32.partialorder %v2638, %v6184
    %vm6300 = vcmp.le.f32.partialorder %v2643, %v6184
    %vm6301 = vcmp.le.f32.partialorder %v2648, %v6184
    %vm6302 = vcmp.le.f32.partialorder %v2653, %v6184
    %vm6303 = vcmp.le.f32.partialorder %v2658, %v6184
    %vm6304 = vcmp.le.f32.partialorder %v2663, %v6184
    %vm6305 = vcmp.le.f32.partialorder %v2668, %v6184
    %vm6306 = vcmp.le.f32.partialorder %v2673, %v6184
    %vm6307 = vcmp.le.f32.partialorder %v2678, %v6184
    %vm6308 = vcmp.le.f32.partialorder %v2683, %v6184
    %vm6309 = vcmp.le.f32.partialorder %v2688, %v6184
    %vm6310 = vcmp.le.f32.partialorder %v2693, %v6184
    %vm6311 = vcmp.le.f32.partialorder %v2698, %v6184
    %vm6312 = vcmp.le.f32.partialorder %v2703, %v6184
    %vm6313 = vcmp.le.f32.partialorder %v2708, %v6184
    %vm6314 = vcmp.le.f32.partialorder %v2713, %v6184
    %vm6315 = vcmp.le.f32.partialorder %v2718, %v6184
    %vm6316 = vcmp.le.f32.partialorder %v2723, %v6184
    %vm6317 = vcmp.le.f32.partialorder %v2728, %v6184
    %vm6318 = vcmp.le.f32.partialorder %v2733, %v6184
    %vm6319 = vcmp.le.f32.partialorder %v2738, %v6184
    %vm6320 = vcmp.le.f32.partialorder %v2743, %v6184
    %vm6321 = vcmp.le.f32.partialorder %v2748, %v6184
    %vm6322 = vcmp.le.f32.partialorder %v2753, %v6184
    %vm6323 = vcmp.le.f32.partialorder %v2758, %v6184
    %vm6324 = vcmp.le.f32.partialorder %v2763, %v6184
    %vm6325 = vcmp.le.f32.partialorder %v2768, %v6184
    %vm6326 = vcmp.le.f32.partialorder %v2773, %v6184
    %vm6327 = vcmp.le.f32.partialorder %v2778, %v6184
    %vm6328 = vcmp.le.f32.partialorder %v2783, %v6184
    %vm6329 = vcmp.le.f32.partialorder %v2788, %v6184
    %vm6330 = vcmp.le.f32.partialorder %v2793, %v6184
    %vm6331 = vcmp.le.f32.partialorder %v2798, %v6184
    %vm6332 = vcmp.le.f32.partialorder %v2803, %v6184
    %vm6333 = vcmp.le.f32.partialorder %v2808, %v6184
    %vm6334 = vcmp.le.f32.partialorder %v2813, %v6184
    %vm6335 = vcmp.le.f32.partialorder %v2818, %v6184
    %vm6336 = vcmp.le.f32.partialorder %v2823, %v6184
    %vm6337 = vcmp.le.f32.partialorder %v2828, %v6184
    %vm6338 = vcmp.le.f32.partialorder %v2833, %v6184
    %vm6339 = vcmp.le.f32.partialorder %v2838, %v6184
    %vm6340 = vcmp.le.f32.partialorder %v2843, %v6184
    %vm6341 = vcmp.le.f32.partialorder %v2848, %v6184
    %vm6342 = vcmp.le.f32.partialorder %v2853, %v6184
    %vm6343 = vcmp.le.f32.partialorder %v2858, %v6184
    %vm6344 = vcmp.le.f32.partialorder %v2863, %v6184
    %vm6345 = vcmp.le.f32.partialorder %v2868, %v6184
    %vm6346 = vcmp.le.f32.partialorder %v2873, %v6184
    %vm6347 = vcmp.le.f32.partialorder %v2878, %v6184
    %vm6348 = vcmp.le.f32.partialorder %v2883, %v6184
    %vm6349 = vcmp.le.f32.partialorder %v2888, %v6184
    %vm6350 = vcmp.le.f32.partialorder %v2893, %v6184
    %vm6351 = vcmp.le.f32.partialorder %v2898, %v6184
    %vm6352 = vcmp.le.f32.partialorder %v2903, %v6184
    %vm6353 = vcmp.le.f32.partialorder %v2908, %v6184
    %vm6354 = vcmp.le.f32.partialorder %v2913, %v6184
    %vm6355 = vcmp.le.f32.partialorder %v2918, %v6184
    %vm6356 = vcmp.le.f32.partialorder %v2923, %v6184
    %vm6357 = vcmp.le.f32.partialorder %v2928, %v6184
    %vm6358 = vcmp.le.f32.partialorder %v2933, %v6184
    %vm6359 = vcmp.le.f32.partialorder %v2938, %v6184
    %vm6360 = vcmp.le.f32.partialorder %v2943, %v6184
    %vm6361 = vcmp.le.f32.partialorder %v2948, %v6184
    %vm6362 = vcmp.le.f32.partialorder %v2953, %v6184
    %vm6363 = vcmp.le.f32.partialorder %v2958, %v6184
    %vm6364 = vcmp.le.f32.partialorder %v2963, %v6184
    %vm6365 = vcmp.le.f32.partialorder %v2968, %v6184
    %vm6366 = vcmp.le.f32.partialorder %v2973, %v6184
    %vm6367 = vcmp.le.f32.partialorder %v2978, %v6184
    %vm6368 = vcmp.le.f32.partialorder %v2983, %v6184
    %vm6369 = vcmp.le.f32.partialorder %v2988, %v6184
    %vm6370 = vcmp.le.f32.partialorder %v2993, %v6184
    %vm6371 = vcmp.le.f32.partialorder %v2998, %v6184
    %vm6372 = vcmp.le.f32.partialorder %v3003, %v6184
    %vm6373 = vcmp.le.f32.partialorder %v3008, %v6184
    %vm6374 = vcmp.le.f32.partialorder %v3013, %v6184
    %vm6375 = vcmp.le.f32.partialorder %v3018, %v6184
    %vm6376 = vcmp.le.f32.partialorder %v3023, %v6184
    %vm6377 = vcmp.le.f32.partialorder %v3028, %v6184
    %vm6378 = vcmp.le.f32.partialorder %v3033, %v6184
    %vm6379 = vcmp.le.f32.partialorder %v3038, %v6184
    %vm6380 = vcmp.le.f32.partialorder %v3043, %v6184
    %vm6381 = vcmp.le.f32.partialorder %v3048, %v6184
    %vm6382 = vcmp.le.f32.partialorder %v3053, %v6184
    %vm6383 = vcmp.le.f32.partialorder %v3058, %v6184
    %vm6384 = vcmp.le.f32.partialorder %v3063, %v6184
    %vm6385 = vcmp.le.f32.partialorder %v3068, %v6184
    %vm6386 = vcmp.le.f32.partialorder %v3073, %v6184
    %vm6387 = vcmp.le.f32.partialorder %v3078, %v6184
    %vm6388 = vcmp.le.f32.partialorder %v3083, %v6184
    %vm6389 = vcmp.le.f32.partialorder %v3088, %v6184
    %vm6390 = vcmp.le.f32.partialorder %v3093, %v6184
    %vm6391 = vcmp.le.f32.partialorder %v3098, %v6184
    %vm6392 = vcmp.le.f32.partialorder %v3103, %v6184
    %vm6393 = vcmp.le.f32.partialorder %v3108, %v6184
    %vm6394 = vcmp.le.f32.partialorder %v3113, %v6184
    %vm6395 = vcmp.le.f32.partialorder %v3118, %v6184
    %vm6396 = vcmp.le.f32.partialorder %v3123, %v6184
    %vm6397 = vcmp.le.f32.partialorder %v3128, %v6184
    %vm6398 = vcmp.le.f32.partialorder %v3133, %v6184
    %vm6399 = vcmp.le.f32.partialorder %v3138, %v6184
    %vm6400 = vcmp.le.f32.partialorder %v3143, %v6184
    %vm6401 = vcmp.le.f32.partialorder %v3148, %v6184
    %vm6402 = vcmp.le.f32.partialorder %v3153, %v6184
    %vm6403 = vcmp.le.f32.partialorder %v3158, %v6184
    %vm6404 = vcmp.le.f32.partialorder %v3163, %v6184
    %vm6405 = vcmp.le.f32.partialorder %v3168, %v6184
    %vm6406 = vcmp.le.f32.partialorder %v3173, %v6184
    %vm6407 = vcmp.le.f32.partialorder %v3178, %v6184
    %vm6408 = vcmp.le.f32.partialorder %v3183, %v6184
    %vm6409 = vcmp.le.f32.partialorder %v3188, %v6184
    %vm6410 = vcmp.le.f32.partialorder %v3193, %v6184
    %vm6411 = vcmp.le.f32.partialorder %v3198, %v6184
    %vm6412 = vcmp.le.f32.partialorder %v3203, %v6184
    %vm6413 = vcmp.le.f32.partialorder %v3208, %v6184
    %vm6414 = vcmp.le.f32.partialorder %v3213, %v6184
    %vm6415 = vcmp.le.f32.partialorder %v3218, %v6184
    %vm6416 = vcmp.le.f32.partialorder %v3223, %v6184
    %vm6417 = vcmp.le.f32.partialorder %v3228, %v6184
    %vm6418 = vcmp.le.f32.partialorder %v3233, %v6184
    %vm6419 = vcmp.le.f32.partialorder %v3238, %v6184
    %vm6420 = vcmp.le.f32.partialorder %v3243, %v6184
    %vm6421 = vcmp.le.f32.partialorder %v3248, %v6184
    %vm6422 = vcmp.le.f32.partialorder %v3253, %v6184
    %vm6423 = vcmp.le.f32.partialorder %v3258, %v6184
    %vm6424 = vcmp.le.f32.partialorder %v3263, %v6184
    %vm6425 = vcmp.le.f32.partialorder %v3268, %v6184
    %vm6426 = vcmp.le.f32.partialorder %v3273, %v6184
    %vm6427 = vcmp.le.f32.partialorder %v3278, %v6184
    %vm6428 = vcmp.le.f32.partialorder %v3283, %v6184
    %vm6429 = vcmp.le.f32.partialorder %v3288, %v6184
    %vm6430 = vcmp.le.f32.partialorder %v3293, %v6184
    %vm6431 = vcmp.le.f32.partialorder %v3298, %v6184
    %vm6432 = vcmp.le.f32.partialorder %v3303, %v6184
    %vm6433 = vcmp.le.f32.partialorder %v3308, %v6184
    %vm6434 = vcmp.le.f32.partialorder %v3313, %v6184
    %vm6435 = vcmp.le.f32.partialorder %v3318, %v6184
    %vm6436 = vcmp.le.f32.partialorder %v3323, %v6184
    %vm6437 = vcmp.le.f32.partialorder %v3328, %v6184
    %vm6438 = vcmp.le.f32.partialorder %v3333, %v6184
    %vm6439 = vcmp.le.f32.partialorder %v3338, %v6184
    %vm6440 = vcmp.le.f32.partialorder %v3343, %v6184
    %v6441 = vlaneseq
    %v6442 = vshrl.u32 %v6441, 7
    %v6443 = vsub.s32 3, %v6442
    %v6444 = vrot.slane %v2063, %v6443
    %v6445 = vsel %vm6185, %v4132, %v6444
    %v6446 = vsel %vm6186, %v4132, %v6444
    %v6447 = vsel %vm6187, %v4132, %v6444
    %v6448 = vsel %vm6188, %v4132, %v6444
    %v6449 = vsel %vm6189, %v4132, %v6444
    %v6450 = vsel %vm6190, %v4132, %v6444
    %v6451 = vsel %vm6191, %v4132, %v6444
    %v6452 = vsel %vm6192, %v4132, %v6444
    %v6453 = vsel %vm6193, %v4132, %v6444
    %v6454 = vsel %vm6194, %v4132, %v6444
    %v6455 = vsel %vm6195, %v4132, %v6444
    %v6456 = vsel %vm6196, %v4132, %v6444
    %v6457 = vsel %vm6197, %v4132, %v6444
    %v6458 = vsel %vm6198, %v4132, %v6444
    %v6459 = vsel %vm6199, %v4132, %v6444
    %v6460 = vsel %vm6200, %v4132, %v6444
    %v6461 = vsel %vm6201, %v4132, %v6444
    %v6462 = vsel %vm6202, %v4132, %v6444
    %v6463 = vsel %vm6203, %v4132, %v6444
    %v6464 = vsel %vm6204, %v4132, %v6444
    %v6465 = vsel %vm6205, %v4132, %v6444
    %v6466 = vsel %vm6206, %v4132, %v6444
    %v6467 = vsel %vm6207, %v4132, %v6444
    %v6468 = vsel %vm6208, %v4132, %v6444
    %v6469 = vsel %vm6209, %v4132, %v6444
    %v6470 = vsel %vm6210, %v4132, %v6444
    %v6471 = vsel %vm6211, %v4132, %v6444
    %v6472 = vsel %vm6212, %v4132, %v6444
    %v6473 = vsel %vm6213, %v4132, %v6444
    %v6474 = vsel %vm6214, %v4132, %v6444
    %v6475 = vsel %vm6215, %v4132, %v6444
    %v6476 = vsel %vm6216, %v4132, %v6444
    %v6477 = vsel %vm6217, %v4132, %v6444
    %v6478 = vsel %vm6218, %v4132, %v6444
    %v6479 = vsel %vm6219, %v4132, %v6444
    %v6480 = vsel %vm6220, %v4132, %v6444
    %v6481 = vsel %vm6221, %v4132, %v6444
    %v6482 = vsel %vm6222, %v4132, %v6444
    %v6483 = vsel %vm6223, %v4132, %v6444
    %v6484 = vsel %vm6224, %v4132, %v6444
    %v6485 = vsel %vm6225, %v4132, %v6444
    %v6486 = vsel %vm6226, %v4132, %v6444
    %v6487 = vsel %vm6227, %v4132, %v6444
    %v6488 = vsel %vm6228, %v4132, %v6444
    %v6489 = vsel %vm6229, %v4132, %v6444
    %v6490 = vsel %vm6230, %v4132, %v6444
    %v6491 = vsel %vm6231, %v4132, %v6444
    %v6492 = vsel %vm6232, %v4132, %v6444
    %v6493 = vsel %vm6233, %v4132, %v6444
    %v6494 = vsel %vm6234, %v4132, %v6444
    %v6495 = vsel %vm6235, %v4132, %v6444
    %v6496 = vsel %vm6236, %v4132, %v6444
    %v6497 = vsel %vm6237, %v4132, %v6444
    %v6498 = vsel %vm6238, %v4132, %v6444
    %v6499 = vsel %vm6239, %v4132, %v6444
    %v6500 = vsel %vm6240, %v4132, %v6444
    %v6501 = vsel %vm6241, %v4132, %v6444
    %v6502 = vsel %vm6242, %v4132, %v6444
    %v6503 = vsel %vm6243, %v4132, %v6444
    %v6504 = vsel %vm6244, %v4132, %v6444
    %v6505 = vsel %vm6245, %v4132, %v6444
    %v6506 = vsel %vm6246, %v4132, %v6444
    %v6507 = vsel %vm6247, %v4132, %v6444
    %v6508 = vsel %vm6248, %v4132, %v6444
    %v6509 = vsel %vm6249, %v4132, %v6444
    %v6510 = vsel %vm6250, %v4132, %v6444
    %v6511 = vsel %vm6251, %v4132, %v6444
    %v6512 = vsel %vm6252, %v4132, %v6444
    %v6513 = vsel %vm6253, %v4132, %v6444
    %v6514 = vsel %vm6254, %v4132, %v6444
    %v6515 = vsel %vm6255, %v4132, %v6444
    %v6516 = vsel %vm6256, %v4132, %v6444
    %v6517 = vsel %vm6257, %v4132, %v6444
    %v6518 = vsel %vm6258, %v4132, %v6444
    %v6519 = vsel %vm6259, %v4132, %v6444
    %v6520 = vsel %vm6260, %v4132, %v6444
    %v6521 = vsel %vm6261, %v4132, %v6444
    %v6522 = vsel %vm6262, %v4132, %v6444
    %v6523 = vsel %vm6263, %v4132, %v6444
    %v6524 = vsel %vm6264, %v4132, %v6444
    %v6525 = vsel %vm6265, %v4132, %v6444
    %v6526 = vsel %vm6266, %v4132, %v6444
    %v6527 = vsel %vm6267, %v4132, %v6444
    %v6528 = vsel %vm6268, %v4132, %v6444
    %v6529 = vsel %vm6269, %v4132, %v6444
    %v6530 = vsel %vm6270, %v4132, %v6444
    %v6531 = vsel %vm6271, %v4132, %v6444
    %v6532 = vsel %vm6272, %v4132, %v6444
    %v6533 = vsel %vm6273, %v4132, %v6444
    %v6534 = vsel %vm6274, %v4132, %v6444
    %v6535 = vsel %vm6275, %v4132, %v6444
    %v6536 = vsel %vm6276, %v4132, %v6444
    %v6537 = vsel %vm6277, %v4132, %v6444
    %v6538 = vsel %vm6278, %v4132, %v6444
    %v6539 = vsel %vm6279, %v4132, %v6444
    %v6540 = vsel %vm6280, %v4132, %v6444
    %v6541 = vsel %vm6281, %v4132, %v6444
    %v6542 = vsel %vm6282, %v4132, %v6444
    %v6543 = vsel %vm6283, %v4132, %v6444
    %v6544 = vsel %vm6284, %v4132, %v6444
    %v6545 = vsel %vm6285, %v4132, %v6444
    %v6546 = vsel %vm6286, %v4132, %v6444
    %v6547 = vsel %vm6287, %v4132, %v6444
    %v6548 = vsel %vm6288, %v4132, %v6444
    %v6549 = vsel %vm6289, %v4132, %v6444
    %v6550 = vsel %vm6290, %v4132, %v6444
    %v6551 = vsel %vm6291, %v4132, %v6444
    %v6552 = vsel %vm6292, %v4132, %v6444
    %v6553 = vsel %vm6293, %v4132, %v6444
    %v6554 = vsel %vm6294, %v4132, %v6444
    %v6555 = vsel %vm6295, %v4132, %v6444
    %v6556 = vsel %vm6296, %v4132, %v6444
    %v6557 = vsel %vm6297, %v4132, %v6444
    %v6558 = vsel %vm6298, %v4132, %v6444
    %v6559 = vsel %vm6299, %v4132, %v6444
    %v6560 = vsel %vm6300, %v4132, %v6444
    %v6561 = vsel %vm6301, %v4132, %v6444
    %v6562 = vsel %vm6302, %v4132, %v6444
    %v6563 = vsel %vm6303, %v4132, %v6444
    %v6564 = vsel %vm6304, %v4132, %v6444
    %v6565 = vsel %vm6305, %v4132, %v6444
    %v6566 = vsel %vm6306, %v4132, %v6444
    %v6567 = vsel %vm6307, %v4132, %v6444
    %v6568 = vsel %vm6308, %v4132, %v6444
    %v6569 = vsel %vm6309, %v4132, %v6444
    %v6570 = vsel %vm6310, %v4132, %v6444
    %v6571 = vsel %vm6311, %v4132, %v6444
    %v6572 = vsel %vm6312, %v4132, %v6444
    %v6573 = vsel %vm6313, %v4132, %v6444
    %v6574 = vsel %vm6314, %v4132, %v6444
    %v6575 = vsel %vm6315, %v4132, %v6444
    %v6576 = vsel %vm6316, %v4132, %v6444
    %v6577 = vsel %vm6317, %v4132, %v6444
    %v6578 = vsel %vm6318, %v4132, %v6444
    %v6579 = vsel %vm6319, %v4132, %v6444
    %v6580 = vsel %vm6320, %v4132, %v6444
    %v6581 = vsel %vm6321, %v4132, %v6444
    %v6582 = vsel %vm6322, %v4132, %v6444
    %v6583 = vsel %vm6323, %v4132, %v6444
    %v6584 = vsel %vm6324, %v4132, %v6444
    %v6585 = vsel %vm6325, %v4132, %v6444
    %v6586 = vsel %vm6326, %v4132, %v6444
    %v6587 = vsel %vm6327, %v4132, %v6444
    %v6588 = vsel %vm6328, %v4132, %v6444
    %v6589 = vsel %vm6329, %v4132, %v6444
    %v6590 = vsel %vm6330, %v4132, %v6444
    %v6591 = vsel %vm6331, %v4132, %v6444
    %v6592 = vsel %vm6332, %v4132, %v6444
    %v6593 = vsel %vm6333, %v4132, %v6444
    %v6594 = vsel %vm6334, %v4132, %v6444
    %v6595 = vsel %vm6335, %v4132, %v6444
    %v6596 = vsel %vm6336, %v4132, %v6444
    %v6597 = vsel %vm6337, %v4132, %v6444
    %v6598 = vsel %vm6338, %v4132, %v6444
    %v6599 = vsel %vm6339, %v4132, %v6444
    %v6600 = vsel %vm6340, %v4132, %v6444
    %v6601 = vsel %vm6341, %v4132, %v6444
    %v6602 = vsel %vm6342, %v4132, %v6444
    %v6603 = vsel %vm6343, %v4132, %v6444
    %v6604 = vsel %vm6344, %v4132, %v6444
    %v6605 = vsel %vm6345, %v4132, %v6444
    %v6606 = vsel %vm6346, %v4132, %v6444
    %v6607 = vsel %vm6347, %v4132, %v6444
    %v6608 = vsel %vm6348, %v4132, %v6444
    %v6609 = vsel %vm6349, %v4132, %v6444
    %v6610 = vsel %vm6350, %v4132, %v6444
    %v6611 = vsel %vm6351, %v4132, %v6444
    %v6612 = vsel %vm6352, %v4132, %v6444
    %v6613 = vsel %vm6353, %v4132, %v6444
    %v6614 = vsel %vm6354, %v4132, %v6444
    %v6615 = vsel %vm6355, %v4132, %v6444
    %v6616 = vsel %vm6356, %v4132, %v6444
    %v6617 = vsel %vm6357, %v4132, %v6444
    %v6618 = vsel %vm6358, %v4132, %v6444
    %v6619 = vsel %vm6359, %v4132, %v6444
    %v6620 = vsel %vm6360, %v4132, %v6444
    %v6621 = vsel %vm6361, %v4132, %v6444
    %v6622 = vsel %vm6362, %v4132, %v6444
    %v6623 = vsel %vm6363, %v4132, %v6444
    %v6624 = vsel %vm6364, %v4132, %v6444
    %v6625 = vsel %vm6365, %v4132, %v6444
    %v6626 = vsel %vm6366, %v4132, %v6444
    %v6627 = vsel %vm6367, %v4132, %v6444
    %v6628 = vsel %vm6368, %v4132, %v6444
    %v6629 = vsel %vm6369, %v4132, %v6444
    %v6630 = vsel %vm6370, %v4132, %v6444
    %v6631 = vsel %vm6371, %v4132, %v6444
    %v6632 = vsel %vm6372, %v4132, %v6444
    %v6633 = vsel %vm6373, %v4132, %v6444
    %v6634 = vsel %vm6374, %v4132, %v6444
    %v6635 = vsel %vm6375, %v4132, %v6444
    %v6636 = vsel %vm6376, %v4132, %v6444
    %v6637 = vsel %vm6377, %v4132, %v6444
    %v6638 = vsel %vm6378, %v4132, %v6444
    %v6639 = vsel %vm6379, %v4132, %v6444
    %v6640 = vsel %vm6380, %v4132, %v6444
    %v6641 = vsel %vm6381, %v4132, %v6444
    %v6642 = vsel %vm6382, %v4132, %v6444
    %v6643 = vsel %vm6383, %v4132, %v6444
    %v6644 = vsel %vm6384, %v4132, %v6444
    %v6645 = vsel %vm6385, %v4132, %v6444
    %v6646 = vsel %vm6386, %v4132, %v6444
    %v6647 = vsel %vm6387, %v4132, %v6444
    %v6648 = vsel %vm6388, %v4132, %v6444
    %v6649 = vsel %vm6389, %v4132, %v6444
    %v6650 = vsel %vm6390, %v4132, %v6444
    %v6651 = vsel %vm6391, %v4132, %v6444
    %v6652 = vsel %vm6392, %v4132, %v6444
    %v6653 = vsel %vm6393, %v4132, %v6444
    %v6654 = vsel %vm6394, %v4132, %v6444
    %v6655 = vsel %vm6395, %v4132, %v6444
    %v6656 = vsel %vm6396, %v4132, %v6444
    %v6657 = vsel %vm6397, %v4132, %v6444
    %v6658 = vsel %vm6398, %v4132, %v6444
    %v6659 = vsel %vm6399, %v4132, %v6444
    %v6660 = vsel %vm6400, %v4132, %v6444
    %v6661 = vsel %vm6401, %v4132, %v6444
    %v6662 = vsel %vm6402, %v4132, %v6444
    %v6663 = vsel %vm6403, %v4132, %v6444
    %v6664 = vsel %vm6404, %v4132, %v6444
    %v6665 = vsel %vm6405, %v4132, %v6444
    %v6666 = vsel %vm6406, %v4132, %v6444
    %v6667 = vsel %vm6407, %v4132, %v6444
    %v6668 = vsel %vm6408, %v4132, %v6444
    %v6669 = vsel %vm6409, %v4132, %v6444
    %v6670 = vsel %vm6410, %v4132, %v6444
    %v6671 = vsel %vm6411, %v4132, %v6444
    %v6672 = vsel %vm6412, %v4132, %v6444
    %v6673 = vsel %vm6413, %v4132, %v6444
    %v6674 = vsel %vm6414, %v4132, %v6444
    %v6675 = vsel %vm6415, %v4132, %v6444
    %v6676 = vsel %vm6416, %v4132, %v6444
    %v6677 = vsel %vm6417, %v4132, %v6444
    %v6678 = vsel %vm6418, %v4132, %v6444
    %v6679 = vsel %vm6419, %v4132, %v6444
    %v6680 = vsel %vm6420, %v4132, %v6444
    %v6681 = vsel %vm6421, %v4132, %v6444
    %v6682 = vsel %vm6422, %v4132, %v6444
    %v6683 = vsel %vm6423, %v4132, %v6444
    %v6684 = vsel %vm6424, %v4132, %v6444
    %v6685 = vsel %vm6425, %v4132, %v6444
    %v6686 = vsel %vm6426, %v4132, %v6444
    %v6687 = vsel %vm6427, %v4132, %v6444
    %v6688 = vsel %vm6428, %v4132, %v6444
    %v6689 = vsel %vm6429, %v4132, %v6444
    %v6690 = vsel %vm6430, %v4132, %v6444
    %v6691 = vsel %vm6431, %v4132, %v6444
    %v6692 = vsel %vm6432, %v4132, %v6444
    %v6693 = vsel %vm6433, %v4132, %v6444
    %v6694 = vsel %vm6434, %v4132, %v6444
    %v6695 = vsel %vm6435, %v4132, %v6444
    %v6696 = vsel %vm6436, %v4132, %v6444
    %v6697 = vsel %vm6437, %v4132, %v6444
    %v6698 = vsel %vm6438, %v4132, %v6444
    %v6699 = vsel %vm6439, %v4132, %v6444
    %v6700 = vsel %vm6440, %v4132, %v6444
    %vm6701 = vcmp.eq.s32.totalorder %v1551, 2
    %vm6702 = vcmp.eq.s32.totalorder %v1552, 2
    %vm6703 = vcmp.eq.s32.totalorder %v1553, 2
    %vm6704 = vcmp.eq.s32.totalorder %v1554, 2
    %vm6705 = vcmp.eq.s32.totalorder %v1555, 2
    %vm6706 = vcmp.eq.s32.totalorder %v1556, 2
    %vm6707 = vcmp.eq.s32.totalorder %v1557, 2
    %vm6708 = vcmp.eq.s32.totalorder %v1558, 2
    %vm6709 = vcmp.eq.s32.totalorder %v1559, 2
    %vm6710 = vcmp.eq.s32.totalorder %v1560, 2
    %vm6711 = vcmp.eq.s32.totalorder %v1561, 2
    %vm6712 = vcmp.eq.s32.totalorder %v1562, 2
    %vm6713 = vcmp.eq.s32.totalorder %v1563, 2
    %vm6714 = vcmp.eq.s32.totalorder %v1564, 2
    %vm6715 = vcmp.eq.s32.totalorder %v1565, 2
    %vm6716 = vcmp.eq.s32.totalorder %v1566, 2
    %vm6717 = vcmp.eq.s32.totalorder %v1567, 2
    %vm6718 = vcmp.eq.s32.totalorder %v1568, 2
    %vm6719 = vcmp.eq.s32.totalorder %v1569, 2
    %vm6720 = vcmp.eq.s32.totalorder %v1570, 2
    %vm6721 = vcmp.eq.s32.totalorder %v1571, 2
    %vm6722 = vcmp.eq.s32.totalorder %v1572, 2
    %vm6723 = vcmp.eq.s32.totalorder %v1573, 2
    %vm6724 = vcmp.eq.s32.totalorder %v1574, 2
    %vm6725 = vcmp.eq.s32.totalorder %v1575, 2
    %vm6726 = vcmp.eq.s32.totalorder %v1576, 2
    %vm6727 = vcmp.eq.s32.totalorder %v1577, 2
    %vm6728 = vcmp.eq.s32.totalorder %v1578, 2
    %vm6729 = vcmp.eq.s32.totalorder %v1579, 2
    %vm6730 = vcmp.eq.s32.totalorder %v1580, 2
    %vm6731 = vcmp.eq.s32.totalorder %v1581, 2
    %vm6732 = vcmp.eq.s32.totalorder %v1582, 2
    %vm6733 = vcmp.eq.s32.totalorder %v1583, 2
    %vm6734 = vcmp.eq.s32.totalorder %v1584, 2
    %vm6735 = vcmp.eq.s32.totalorder %v1585, 2
    %vm6736 = vcmp.eq.s32.totalorder %v1586, 2
    %vm6737 = vcmp.eq.s32.totalorder %v1587, 2
    %vm6738 = vcmp.eq.s32.totalorder %v1588, 2
    %vm6739 = vcmp.eq.s32.totalorder %v1589, 2
    %vm6740 = vcmp.eq.s32.totalorder %v1590, 2
    %vm6741 = vcmp.eq.s32.totalorder %v1591, 2
    %vm6742 = vcmp.eq.s32.totalorder %v1592, 2
    %vm6743 = vcmp.eq.s32.totalorder %v1593, 2
    %vm6744 = vcmp.eq.s32.totalorder %v1594, 2
    %vm6745 = vcmp.eq.s32.totalorder %v1595, 2
    %vm6746 = vcmp.eq.s32.totalorder %v1596, 2
    %vm6747 = vcmp.eq.s32.totalorder %v1597, 2
    %vm6748 = vcmp.eq.s32.totalorder %v1598, 2
    %vm6749 = vcmp.eq.s32.totalorder %v1599, 2
    %vm6750 = vcmp.eq.s32.totalorder %v1600, 2
    %vm6751 = vcmp.eq.s32.totalorder %v1601, 2
    %vm6752 = vcmp.eq.s32.totalorder %v1602, 2
    %vm6753 = vcmp.eq.s32.totalorder %v1603, 2
    %vm6754 = vcmp.eq.s32.totalorder %v1604, 2
    %vm6755 = vcmp.eq.s32.totalorder %v1605, 2
    %vm6756 = vcmp.eq.s32.totalorder %v1606, 2
    %vm6757 = vcmp.eq.s32.totalorder %v1607, 2
    %vm6758 = vcmp.eq.s32.totalorder %v1608, 2
    %vm6759 = vcmp.eq.s32.totalorder %v1609, 2
    %vm6760 = vcmp.eq.s32.totalorder %v1610, 2
    %vm6761 = vcmp.eq.s32.totalorder %v1611, 2
    %vm6762 = vcmp.eq.s32.totalorder %v1612, 2
    %vm6763 = vcmp.eq.s32.totalorder %v1613, 2
    %vm6764 = vcmp.eq.s32.totalorder %v1614, 2
    %vm6765 = vcmp.eq.s32.totalorder %v1615, 2
    %vm6766 = vcmp.eq.s32.totalorder %v1616, 2
    %vm6767 = vcmp.eq.s32.totalorder %v1617, 2
    %vm6768 = vcmp.eq.s32.totalorder %v1618, 2
    %vm6769 = vcmp.eq.s32.totalorder %v1619, 2
    %vm6770 = vcmp.eq.s32.totalorder %v1620, 2
    %vm6771 = vcmp.eq.s32.totalorder %v1621, 2
    %vm6772 = vcmp.eq.s32.totalorder %v1622, 2
    %vm6773 = vcmp.eq.s32.totalorder %v1623, 2
    %vm6774 = vcmp.eq.s32.totalorder %v1624, 2
    %vm6775 = vcmp.eq.s32.totalorder %v1625, 2
    %vm6776 = vcmp.eq.s32.totalorder %v1626, 2
    %vm6777 = vcmp.eq.s32.totalorder %v1627, 2
    %vm6778 = vcmp.eq.s32.totalorder %v1628, 2
    %vm6779 = vcmp.eq.s32.totalorder %v1629, 2
    %vm6780 = vcmp.eq.s32.totalorder %v1630, 2
    %vm6781 = vcmp.eq.s32.totalorder %v1631, 2
    %vm6782 = vcmp.eq.s32.totalorder %v1632, 2
    %vm6783 = vcmp.eq.s32.totalorder %v1633, 2
    %vm6784 = vcmp.eq.s32.totalorder %v1634, 2
    %vm6785 = vcmp.eq.s32.totalorder %v1635, 2
    %vm6786 = vcmp.eq.s32.totalorder %v1636, 2
    %vm6787 = vcmp.eq.s32.totalorder %v1637, 2
    %vm6788 = vcmp.eq.s32.totalorder %v1638, 2
    %vm6789 = vcmp.eq.s32.totalorder %v1639, 2
    %vm6790 = vcmp.eq.s32.totalorder %v1640, 2
    %vm6791 = vcmp.eq.s32.totalorder %v1641, 2
    %vm6792 = vcmp.eq.s32.totalorder %v1642, 2
    %vm6793 = vcmp.eq.s32.totalorder %v1643, 2
    %vm6794 = vcmp.eq.s32.totalorder %v1644, 2
    %vm6795 = vcmp.eq.s32.totalorder %v1645, 2
    %vm6796 = vcmp.eq.s32.totalorder %v1646, 2
    %vm6797 = vcmp.eq.s32.totalorder %v1647, 2
    %vm6798 = vcmp.eq.s32.totalorder %v1648, 2
    %vm6799 = vcmp.eq.s32.totalorder %v1649, 2
    %vm6800 = vcmp.eq.s32.totalorder %v1650, 2
    %vm6801 = vcmp.eq.s32.totalorder %v1651, 2
    %vm6802 = vcmp.eq.s32.totalorder %v1652, 2
    %vm6803 = vcmp.eq.s32.totalorder %v1653, 2
    %vm6804 = vcmp.eq.s32.totalorder %v1654, 2
    %vm6805 = vcmp.eq.s32.totalorder %v1655, 2
    %vm6806 = vcmp.eq.s32.totalorder %v1656, 2
    %vm6807 = vcmp.eq.s32.totalorder %v1657, 2
    %vm6808 = vcmp.eq.s32.totalorder %v1658, 2
    %vm6809 = vcmp.eq.s32.totalorder %v1659, 2
    %vm6810 = vcmp.eq.s32.totalorder %v1660, 2
    %vm6811 = vcmp.eq.s32.totalorder %v1661, 2
    %vm6812 = vcmp.eq.s32.totalorder %v1662, 2
    %vm6813 = vcmp.eq.s32.totalorder %v1663, 2
    %vm6814 = vcmp.eq.s32.totalorder %v1664, 2
    %vm6815 = vcmp.eq.s32.totalorder %v1665, 2
    %vm6816 = vcmp.eq.s32.totalorder %v1666, 2
    %vm6817 = vcmp.eq.s32.totalorder %v1667, 2
    %vm6818 = vcmp.eq.s32.totalorder %v1668, 2
    %vm6819 = vcmp.eq.s32.totalorder %v1669, 2
    %vm6820 = vcmp.eq.s32.totalorder %v1670, 2
    %vm6821 = vcmp.eq.s32.totalorder %v1671, 2
    %vm6822 = vcmp.eq.s32.totalorder %v1672, 2
    %vm6823 = vcmp.eq.s32.totalorder %v1673, 2
    %vm6824 = vcmp.eq.s32.totalorder %v1674, 2
    %vm6825 = vcmp.eq.s32.totalorder %v1675, 2
    %vm6826 = vcmp.eq.s32.totalorder %v1676, 2
    %vm6827 = vcmp.eq.s32.totalorder %v1677, 2
    %vm6828 = vcmp.eq.s32.totalorder %v1678, 2
    %vm6829 = vcmp.eq.s32.totalorder %v1679, 2
    %vm6830 = vcmp.eq.s32.totalorder %v1680, 2
    %vm6831 = vcmp.eq.s32.totalorder %v1681, 2
    %vm6832 = vcmp.eq.s32.totalorder %v1682, 2
    %vm6833 = vcmp.eq.s32.totalorder %v1683, 2
    %vm6834 = vcmp.eq.s32.totalorder %v1684, 2
    %vm6835 = vcmp.eq.s32.totalorder %v1685, 2
    %vm6836 = vcmp.eq.s32.totalorder %v1686, 2
    %vm6837 = vcmp.eq.s32.totalorder %v1687, 2
    %vm6838 = vcmp.eq.s32.totalorder %v1688, 2
    %vm6839 = vcmp.eq.s32.totalorder %v1689, 2
    %vm6840 = vcmp.eq.s32.totalorder %v1690, 2
    %vm6841 = vcmp.eq.s32.totalorder %v1691, 2
    %vm6842 = vcmp.eq.s32.totalorder %v1692, 2
    %vm6843 = vcmp.eq.s32.totalorder %v1693, 2
    %vm6844 = vcmp.eq.s32.totalorder %v1694, 2
    %vm6845 = vcmp.eq.s32.totalorder %v1695, 2
    %vm6846 = vcmp.eq.s32.totalorder %v1696, 2
    %vm6847 = vcmp.eq.s32.totalorder %v1697, 2
    %vm6848 = vcmp.eq.s32.totalorder %v1698, 2
    %vm6849 = vcmp.eq.s32.totalorder %v1699, 2
    %vm6850 = vcmp.eq.s32.totalorder %v1700, 2
    %vm6851 = vcmp.eq.s32.totalorder %v1701, 2
    %vm6852 = vcmp.eq.s32.totalorder %v1702, 2
    %vm6853 = vcmp.eq.s32.totalorder %v1703, 2
    %vm6854 = vcmp.eq.s32.totalorder %v1704, 2
    %vm6855 = vcmp.eq.s32.totalorder %v1705, 2
    %vm6856 = vcmp.eq.s32.totalorder %v1706, 2
    %vm6857 = vcmp.eq.s32.totalorder %v1707, 2
    %vm6858 = vcmp.eq.s32.totalorder %v1708, 2
    %vm6859 = vcmp.eq.s32.totalorder %v1709, 2
    %vm6860 = vcmp.eq.s32.totalorder %v1710, 2
    %vm6861 = vcmp.eq.s32.totalorder %v1711, 2
    %vm6862 = vcmp.eq.s32.totalorder %v1712, 2
    %vm6863 = vcmp.eq.s32.totalorder %v1713, 2
    %vm6864 = vcmp.eq.s32.totalorder %v1714, 2
    %vm6865 = vcmp.eq.s32.totalorder %v1715, 2
    %vm6866 = vcmp.eq.s32.totalorder %v1716, 2
    %vm6867 = vcmp.eq.s32.totalorder %v1717, 2
    %vm6868 = vcmp.eq.s32.totalorder %v1718, 2
    %vm6869 = vcmp.eq.s32.totalorder %v1719, 2
    %vm6870 = vcmp.eq.s32.totalorder %v1720, 2
    %vm6871 = vcmp.eq.s32.totalorder %v1721, 2
    %vm6872 = vcmp.eq.s32.totalorder %v1722, 2
    %vm6873 = vcmp.eq.s32.totalorder %v1723, 2
    %vm6874 = vcmp.eq.s32.totalorder %v1724, 2
    %vm6875 = vcmp.eq.s32.totalorder %v1725, 2
    %vm6876 = vcmp.eq.s32.totalorder %v1726, 2
    %vm6877 = vcmp.eq.s32.totalorder %v1727, 2
    %vm6878 = vcmp.eq.s32.totalorder %v1728, 2
    %vm6879 = vcmp.eq.s32.totalorder %v1729, 2
    %vm6880 = vcmp.eq.s32.totalorder %v1730, 2
    %vm6881 = vcmp.eq.s32.totalorder %v1731, 2
    %vm6882 = vcmp.eq.s32.totalorder %v1732, 2
    %vm6883 = vcmp.eq.s32.totalorder %v1733, 2
    %vm6884 = vcmp.eq.s32.totalorder %v1734, 2
    %vm6885 = vcmp.eq.s32.totalorder %v1735, 2
    %vm6886 = vcmp.eq.s32.totalorder %v1736, 2
    %vm6887 = vcmp.eq.s32.totalorder %v1737, 2
    %vm6888 = vcmp.eq.s32.totalorder %v1738, 2
    %vm6889 = vcmp.eq.s32.totalorder %v1739, 2
    %vm6890 = vcmp.eq.s32.totalorder %v1740, 2
    %vm6891 = vcmp.eq.s32.totalorder %v1741, 2
    %vm6892 = vcmp.eq.s32.totalorder %v1742, 2
    %vm6893 = vcmp.eq.s32.totalorder %v1743, 2
    %vm6894 = vcmp.eq.s32.totalorder %v1744, 2
    %vm6895 = vcmp.eq.s32.totalorder %v1745, 2
    %vm6896 = vcmp.eq.s32.totalorder %v1746, 2
    %vm6897 = vcmp.eq.s32.totalorder %v1747, 2
    %vm6898 = vcmp.eq.s32.totalorder %v1748, 2
    %vm6899 = vcmp.eq.s32.totalorder %v1749, 2
    %vm6900 = vcmp.eq.s32.totalorder %v1750, 2
    %vm6901 = vcmp.eq.s32.totalorder %v1751, 2
    %vm6902 = vcmp.eq.s32.totalorder %v1752, 2
    %vm6903 = vcmp.eq.s32.totalorder %v1753, 2
    %vm6904 = vcmp.eq.s32.totalorder %v1754, 2
    %vm6905 = vcmp.eq.s32.totalorder %v1755, 2
    %vm6906 = vcmp.eq.s32.totalorder %v1756, 2
    %vm6907 = vcmp.eq.s32.totalorder %v1757, 2
    %vm6908 = vcmp.eq.s32.totalorder %v1758, 2
    %vm6909 = vcmp.eq.s32.totalorder %v1759, 2
    %vm6910 = vcmp.eq.s32.totalorder %v1760, 2
    %vm6911 = vcmp.eq.s32.totalorder %v1761, 2
    %vm6912 = vcmp.eq.s32.totalorder %v1762, 2
    %vm6913 = vcmp.eq.s32.totalorder %v1763, 2
    %vm6914 = vcmp.eq.s32.totalorder %v1764, 2
    %vm6915 = vcmp.eq.s32.totalorder %v1765, 2
    %vm6916 = vcmp.eq.s32.totalorder %v1766, 2
    %vm6917 = vcmp.eq.s32.totalorder %v1767, 2
    %vm6918 = vcmp.eq.s32.totalorder %v1768, 2
    %vm6919 = vcmp.eq.s32.totalorder %v1769, 2
    %vm6920 = vcmp.eq.s32.totalorder %v1770, 2
    %vm6921 = vcmp.eq.s32.totalorder %v1771, 2
    %vm6922 = vcmp.eq.s32.totalorder %v1772, 2
    %vm6923 = vcmp.eq.s32.totalorder %v1773, 2
    %vm6924 = vcmp.eq.s32.totalorder %v1774, 2
    %vm6925 = vcmp.eq.s32.totalorder %v1775, 2
    %vm6926 = vcmp.eq.s32.totalorder %v1776, 2
    %vm6927 = vcmp.eq.s32.totalorder %v1777, 2
    %vm6928 = vcmp.eq.s32.totalorder %v1778, 2
    %vm6929 = vcmp.eq.s32.totalorder %v1779, 2
    %vm6930 = vcmp.eq.s32.totalorder %v1780, 2
    %vm6931 = vcmp.eq.s32.totalorder %v1781, 2
    %vm6932 = vcmp.eq.s32.totalorder %v1782, 2
    %vm6933 = vcmp.eq.s32.totalorder %v1783, 2
    %vm6934 = vcmp.eq.s32.totalorder %v1784, 2
    %vm6935 = vcmp.eq.s32.totalorder %v1785, 2
    %vm6936 = vcmp.eq.s32.totalorder %v1786, 2
    %vm6937 = vcmp.eq.s32.totalorder %v1787, 2
    %vm6938 = vcmp.eq.s32.totalorder %v1788, 2
    %vm6939 = vcmp.eq.s32.totalorder %v1789, 2
    %vm6940 = vcmp.eq.s32.totalorder %v1790, 2
    %vm6941 = vcmp.eq.s32.totalorder %v1791, 2
    %vm6942 = vcmp.eq.s32.totalorder %v1792, 2
    %vm6943 = vcmp.eq.s32.totalorder %v1793, 2
    %vm6944 = vcmp.eq.s32.totalorder %v1794, 2
    %vm6945 = vcmp.eq.s32.totalorder %v1795, 2
    %vm6946 = vcmp.eq.s32.totalorder %v1796, 2
    %vm6947 = vcmp.eq.s32.totalorder %v1797, 2
    %vm6948 = vcmp.eq.s32.totalorder %v1798, 2
    %vm6949 = vcmp.eq.s32.totalorder %v1799, 2
    %vm6950 = vcmp.eq.s32.totalorder %v1800, 2
    %vm6951 = vcmp.eq.s32.totalorder %v1801, 2
    %vm6952 = vcmp.eq.s32.totalorder %v1802, 2
    %vm6953 = vcmp.eq.s32.totalorder %v1803, 2
    %vm6954 = vcmp.eq.s32.totalorder %v1804, 2
    %vm6955 = vcmp.eq.s32.totalorder %v1805, 2
    %vm6956 = vcmp.eq.s32.totalorder %v1806, 2
    %v6957 = vsel %vm6701, 1, 0
    %v6958 = vsel %vm6702, 1, 0
    %v6959 = vsel %vm6703, 1, 0
    %v6960 = vsel %vm6704, 1, 0
    %v6961 = vsel %vm6705, 1, 0
    %v6962 = vsel %vm6706, 1, 0
    %v6963 = vsel %vm6707, 1, 0
    %v6964 = vsel %vm6708, 1, 0
    %v6965 = vsel %vm6709, 1, 0
    %v6966 = vsel %vm6710, 1, 0
    %v6967 = vsel %vm6711, 1, 0
    %v6968 = vsel %vm6712, 1, 0
    %v6969 = vsel %vm6713, 1, 0
    %v6970 = vsel %vm6714, 1, 0
    %v6971 = vsel %vm6715, 1, 0
    %v6972 = vsel %vm6716, 1, 0
    %v6973 = vsel %vm6717, 1, 0
    %v6974 = vsel %vm6718, 1, 0
    %v6975 = vsel %vm6719, 1, 0
    %v6976 = vsel %vm6720, 1, 0
    %v6977 = vsel %vm6721, 1, 0
    %v6978 = vsel %vm6722, 1, 0
    %v6979 = vsel %vm6723, 1, 0
    %v6980 = vsel %vm6724, 1, 0
    %v6981 = vsel %vm6725, 1, 0
    %v6982 = vsel %vm6726, 1, 0
    %v6983 = vsel %vm6727, 1, 0
    %v6984 = vsel %vm6728, 1, 0
    %v6985 = vsel %vm6729, 1, 0
    %v6986 = vsel %vm6730, 1, 0
    %v6987 = vsel %vm6731, 1, 0
    %v6988 = vsel %vm6732, 1, 0
    %v6989 = vsel %vm6733, 1, 0
    %v6990 = vsel %vm6734, 1, 0
    %v6991 = vsel %vm6735, 1, 0
    %v6992 = vsel %vm6736, 1, 0
    %v6993 = vsel %vm6737, 1, 0
    %v6994 = vsel %vm6738, 1, 0
    %v6995 = vsel %vm6739, 1, 0
    %v6996 = vsel %vm6740, 1, 0
    %v6997 = vsel %vm6741, 1, 0
    %v6998 = vsel %vm6742, 1, 0
    %v6999 = vsel %vm6743, 1, 0
    %v7000 = vsel %vm6744, 1, 0
    %v7001 = vsel %vm6745, 1, 0
    %v7002 = vsel %vm6746, 1, 0
    %v7003 = vsel %vm6747, 1, 0
    %v7004 = vsel %vm6748, 1, 0
    %v7005 = vsel %vm6749, 1, 0
    %v7006 = vsel %vm6750, 1, 0
    %v7007 = vsel %vm6751, 1, 0
    %v7008 = vsel %vm6752, 1, 0
    %v7009 = vsel %vm6753, 1, 0
    %v7010 = vsel %vm6754, 1, 0
    %v7011 = vsel %vm6755, 1, 0
    %v7012 = vsel %vm6756, 1, 0
    %v7013 = vsel %vm6757, 1, 0
    %v7014 = vsel %vm6758, 1, 0
    %v7015 = vsel %vm6759, 1, 0
    %v7016 = vsel %vm6760, 1, 0
    %v7017 = vsel %vm6761, 1, 0
    %v7018 = vsel %vm6762, 1, 0
    %v7019 = vsel %vm6763, 1, 0
    %v7020 = vsel %vm6764, 1, 0
    %v7021 = vsel %vm6765, 1, 0
    %v7022 = vsel %vm6766, 1, 0
    %v7023 = vsel %vm6767, 1, 0
    %v7024 = vsel %vm6768, 1, 0
    %v7025 = vsel %vm6769, 1, 0
    %v7026 = vsel %vm6770, 1, 0
    %v7027 = vsel %vm6771, 1, 0
    %v7028 = vsel %vm6772, 1, 0
    %v7029 = vsel %vm6773, 1, 0
    %v7030 = vsel %vm6774, 1, 0
    %v7031 = vsel %vm6775, 1, 0
    %v7032 = vsel %vm6776, 1, 0
    %v7033 = vsel %vm6777, 1, 0
    %v7034 = vsel %vm6778, 1, 0
    %v7035 = vsel %vm6779, 1, 0
    %v7036 = vsel %vm6780, 1, 0
    %v7037 = vsel %vm6781, 1, 0
    %v7038 = vsel %vm6782, 1, 0
    %v7039 = vsel %vm6783, 1, 0
    %v7040 = vsel %vm6784, 1, 0
    %v7041 = vsel %vm6785, 1, 0
    %v7042 = vsel %vm6786, 1, 0
    %v7043 = vsel %vm6787, 1, 0
    %v7044 = vsel %vm6788, 1, 0
    %v7045 = vsel %vm6789, 1, 0
    %v7046 = vsel %vm6790, 1, 0
    %v7047 = vsel %vm6791, 1, 0
    %v7048 = vsel %vm6792, 1, 0
    %v7049 = vsel %vm6793, 1, 0
    %v7050 = vsel %vm6794, 1, 0
    %v7051 = vsel %vm6795, 1, 0
    %v7052 = vsel %vm6796, 1, 0
    %v7053 = vsel %vm6797, 1, 0
    %v7054 = vsel %vm6798, 1, 0
    %v7055 = vsel %vm6799, 1, 0
    %v7056 = vsel %vm6800, 1, 0
    %v7057 = vsel %vm6801, 1, 0
    %v7058 = vsel %vm6802, 1, 0
    %v7059 = vsel %vm6803, 1, 0
    %v7060 = vsel %vm6804, 1, 0
    %v7061 = vsel %vm6805, 1, 0
    %v7062 = vsel %vm6806, 1, 0
    %v7063 = vsel %vm6807, 1, 0
    %v7064 = vsel %vm6808, 1, 0
    %v7065 = vsel %vm6809, 1, 0
    %v7066 = vsel %vm6810, 1, 0
    %v7067 = vsel %vm6811, 1, 0
    %v7068 = vsel %vm6812, 1, 0
    %v7069 = vsel %vm6813, 1, 0
    %v7070 = vsel %vm6814, 1, 0
    %v7071 = vsel %vm6815, 1, 0
    %v7072 = vsel %vm6816, 1, 0
    %v7073 = vsel %vm6817, 1, 0
    %v7074 = vsel %vm6818, 1, 0
    %v7075 = vsel %vm6819, 1, 0
    %v7076 = vsel %vm6820, 1, 0
    %v7077 = vsel %vm6821, 1, 0
    %v7078 = vsel %vm6822, 1, 0
    %v7079 = vsel %vm6823, 1, 0
    %v7080 = vsel %vm6824, 1, 0
    %v7081 = vsel %vm6825, 1, 0
    %v7082 = vsel %vm6826, 1, 0
    %v7083 = vsel %vm6827, 1, 0
    %v7084 = vsel %vm6828, 1, 0
    %v7085 = vsel %vm6829, 1, 0
    %v7086 = vsel %vm6830, 1, 0
    %v7087 = vsel %vm6831, 1, 0
    %v7088 = vsel %vm6832, 1, 0
    %v7089 = vsel %vm6833, 1, 0
    %v7090 = vsel %vm6834, 1, 0
    %v7091 = vsel %vm6835, 1, 0
    %v7092 = vsel %vm6836, 1, 0
    %v7093 = vsel %vm6837, 1, 0
    %v7094 = vsel %vm6838, 1, 0
    %v7095 = vsel %vm6839, 1, 0
    %v7096 = vsel %vm6840, 1, 0
    %v7097 = vsel %vm6841, 1, 0
    %v7098 = vsel %vm6842, 1, 0
    %v7099 = vsel %vm6843, 1, 0
    %v7100 = vsel %vm6844, 1, 0
    %v7101 = vsel %vm6845, 1, 0
    %v7102 = vsel %vm6846, 1, 0
    %v7103 = vsel %vm6847, 1, 0
    %v7104 = vsel %vm6848, 1, 0
    %v7105 = vsel %vm6849, 1, 0
    %v7106 = vsel %vm6850, 1, 0
    %v7107 = vsel %vm6851, 1, 0
    %v7108 = vsel %vm6852, 1, 0
    %v7109 = vsel %vm6853, 1, 0
    %v7110 = vsel %vm6854, 1, 0
    %v7111 = vsel %vm6855, 1, 0
    %v7112 = vsel %vm6856, 1, 0
    %v7113 = vsel %vm6857, 1, 0
    %v7114 = vsel %vm6858, 1, 0
    %v7115 = vsel %vm6859, 1, 0
    %v7116 = vsel %vm6860, 1, 0
    %v7117 = vsel %vm6861, 1, 0
    %v7118 = vsel %vm6862, 1, 0
    %v7119 = vsel %vm6863, 1, 0
    %v7120 = vsel %vm6864, 1, 0
    %v7121 = vsel %vm6865, 1, 0
    %v7122 = vsel %vm6866, 1, 0
    %v7123 = vsel %vm6867, 1, 0
    %v7124 = vsel %vm6868, 1, 0
    %v7125 = vsel %vm6869, 1, 0
    %v7126 = vsel %vm6870, 1, 0
    %v7127 = vsel %vm6871, 1, 0
    %v7128 = vsel %vm6872, 1, 0
    %v7129 = vsel %vm6873, 1, 0
    %v7130 = vsel %vm6874, 1, 0
    %v7131 = vsel %vm6875, 1, 0
    %v7132 = vsel %vm6876, 1, 0
    %v7133 = vsel %vm6877, 1, 0
    %v7134 = vsel %vm6878, 1, 0
    %v7135 = vsel %vm6879, 1, 0
    %v7136 = vsel %vm6880, 1, 0
    %v7137 = vsel %vm6881, 1, 0
    %v7138 = vsel %vm6882, 1, 0
    %v7139 = vsel %vm6883, 1, 0
    %v7140 = vsel %vm6884, 1, 0
    %v7141 = vsel %vm6885, 1, 0
    %v7142 = vsel %vm6886, 1, 0
    %v7143 = vsel %vm6887, 1, 0
    %v7144 = vsel %vm6888, 1, 0
    %v7145 = vsel %vm6889, 1, 0
    %v7146 = vsel %vm6890, 1, 0
    %v7147 = vsel %vm6891, 1, 0
    %v7148 = vsel %vm6892, 1, 0
    %v7149 = vsel %vm6893, 1, 0
    %v7150 = vsel %vm6894, 1, 0
    %v7151 = vsel %vm6895, 1, 0
    %v7152 = vsel %vm6896, 1, 0
    %v7153 = vsel %vm6897, 1, 0
    %v7154 = vsel %vm6898, 1, 0
    %v7155 = vsel %vm6899, 1, 0
    %v7156 = vsel %vm6900, 1, 0
    %v7157 = vsel %vm6901, 1, 0
    %v7158 = vsel %vm6902, 1, 0
    %v7159 = vsel %vm6903, 1, 0
    %v7160 = vsel %vm6904, 1, 0
    %v7161 = vsel %vm6905, 1, 0
    %v7162 = vsel %vm6906, 1, 0
    %v7163 = vsel %vm6907, 1, 0
    %v7164 = vsel %vm6908, 1, 0
    %v7165 = vsel %vm6909, 1, 0
    %v7166 = vsel %vm6910, 1, 0
    %v7167 = vsel %vm6911, 1, 0
    %v7168 = vsel %vm6912, 1, 0
    %v7169 = vsel %vm6913, 1, 0
    %v7170 = vsel %vm6914, 1, 0
    %v7171 = vsel %vm6915, 1, 0
    %v7172 = vsel %vm6916, 1, 0
    %v7173 = vsel %vm6917, 1, 0
    %v7174 = vsel %vm6918, 1, 0
    %v7175 = vsel %vm6919, 1, 0
    %v7176 = vsel %vm6920, 1, 0
    %v7177 = vsel %vm6921, 1, 0
    %v7178 = vsel %vm6922, 1, 0
    %v7179 = vsel %vm6923, 1, 0
    %v7180 = vsel %vm6924, 1, 0
    %v7181 = vsel %vm6925, 1, 0
    %v7182 = vsel %vm6926, 1, 0
    %v7183 = vsel %vm6927, 1, 0
    %v7184 = vsel %vm6928, 1, 0
    %v7185 = vsel %vm6929, 1, 0
    %v7186 = vsel %vm6930, 1, 0
    %v7187 = vsel %vm6931, 1, 0
    %v7188 = vsel %vm6932, 1, 0
    %v7189 = vsel %vm6933, 1, 0
    %v7190 = vsel %vm6934, 1, 0
    %v7191 = vsel %vm6935, 1, 0
    %v7192 = vsel %vm6936, 1, 0
    %v7193 = vsel %vm6937, 1, 0
    %v7194 = vsel %vm6938, 1, 0
    %v7195 = vsel %vm6939, 1, 0
    %v7196 = vsel %vm6940, 1, 0
    %v7197 = vsel %vm6941, 1, 0
    %v7198 = vsel %vm6942, 1, 0
    %v7199 = vsel %vm6943, 1, 0
    %v7200 = vsel %vm6944, 1, 0
    %v7201 = vsel %vm6945, 1, 0
    %v7202 = vsel %vm6946, 1, 0
    %v7203 = vsel %vm6947, 1, 0
    %v7204 = vsel %vm6948, 1, 0
    %v7205 = vsel %vm6949, 1, 0
    %v7206 = vsel %vm6950, 1, 0
    %v7207 = vsel %vm6951, 1, 0
    %v7208 = vsel %vm6952, 1, 0
    %v7209 = vsel %vm6953, 1, 0
    %v7210 = vsel %vm6954, 1, 0
    %v7211 = vsel %vm6955, 1, 0
    %v7212 = vsel %vm6956, 1, 0
    %7213 = vset.pattern.permute.xlu0 0
    %7214 = vperm.xlu0 %7213, %v6957
    %v7215 = vpop.permute.xlu0 %7214
    %7216 = vset.pattern.permute.xlu0 0
    %7217 = vperm.xlu0 %7216, %v6958
    %v7218 = vpop.permute.xlu0 %7217
    %7219 = vset.pattern.permute.xlu0 0
    %7220 = vperm.xlu0 %7219, %v6959
    %v7221 = vpop.permute.xlu0 %7220
    %7222 = vset.pattern.permute.xlu0 0
    %7223 = vperm.xlu0 %7222, %v6960
    %v7224 = vpop.permute.xlu0 %7223
    %7225 = vset.pattern.permute.xlu0 0
    %7226 = vperm.xlu0 %7225, %v6961
    %v7227 = vpop.permute.xlu0 %7226
    %7228 = vset.pattern.permute.xlu0 0
    %7229 = vperm.xlu0 %7228, %v6962
    %v7230 = vpop.permute.xlu0 %7229
    %7231 = vset.pattern.permute.xlu0 0
    %7232 = vperm.xlu0 %7231, %v6963
    %v7233 = vpop.permute.xlu0 %7232
    %7234 = vset.pattern.permute.xlu0 0
    %7235 = vperm.xlu0 %7234, %v6964
    %v7236 = vpop.permute.xlu0 %7235
    %7237 = vset.pattern.permute.xlu0 0
    %7238 = vperm.xlu0 %7237, %v6965
    %v7239 = vpop.permute.xlu0 %7238
    %7240 = vset.pattern.permute.xlu0 0
    %7241 = vperm.xlu0 %7240, %v6966
    %v7242 = vpop.permute.xlu0 %7241
    %7243 = vset.pattern.permute.xlu0 0
    %7244 = vperm.xlu0 %7243, %v6967
    %v7245 = vpop.permute.xlu0 %7244
    %7246 = vset.pattern.permute.xlu0 0
    %7247 = vperm.xlu0 %7246, %v6968
    %v7248 = vpop.permute.xlu0 %7247
    %7249 = vset.pattern.permute.xlu0 0
    %7250 = vperm.xlu0 %7249, %v6969
    %v7251 = vpop.permute.xlu0 %7250
    %7252 = vset.pattern.permute.xlu0 0
    %7253 = vperm.xlu0 %7252, %v6970
    %v7254 = vpop.permute.xlu0 %7253
    %7255 = vset.pattern.permute.xlu0 0
    %7256 = vperm.xlu0 %7255, %v6971
    %v7257 = vpop.permute.xlu0 %7256
    %7258 = vset.pattern.permute.xlu0 0
    %7259 = vperm.xlu0 %7258, %v6972
    %v7260 = vpop.permute.xlu0 %7259
    %7261 = vset.pattern.permute.xlu0 0
    %7262 = vperm.xlu0 %7261, %v6973
    %v7263 = vpop.permute.xlu0 %7262
    %7264 = vset.pattern.permute.xlu0 0
    %7265 = vperm.xlu0 %7264, %v6974
    %v7266 = vpop.permute.xlu0 %7265
    %7267 = vset.pattern.permute.xlu0 0
    %7268 = vperm.xlu0 %7267, %v6975
    %v7269 = vpop.permute.xlu0 %7268
    %7270 = vset.pattern.permute.xlu0 0
    %7271 = vperm.xlu0 %7270, %v6976
    %v7272 = vpop.permute.xlu0 %7271
    %7273 = vset.pattern.permute.xlu0 0
    %7274 = vperm.xlu0 %7273, %v6977
    %v7275 = vpop.permute.xlu0 %7274
    %7276 = vset.pattern.permute.xlu0 0
    %7277 = vperm.xlu0 %7276, %v6978
    %v7278 = vpop.permute.xlu0 %7277
    %7279 = vset.pattern.permute.xlu0 0
    %7280 = vperm.xlu0 %7279, %v6979
    %v7281 = vpop.permute.xlu0 %7280
    %7282 = vset.pattern.permute.xlu0 0
    %7283 = vperm.xlu0 %7282, %v6980
    %v7284 = vpop.permute.xlu0 %7283
    %7285 = vset.pattern.permute.xlu0 0
    %7286 = vperm.xlu0 %7285, %v6981
    %v7287 = vpop.permute.xlu0 %7286
    %7288 = vset.pattern.permute.xlu0 0
    %7289 = vperm.xlu0 %7288, %v6982
    %v7290 = vpop.permute.xlu0 %7289
    %7291 = vset.pattern.permute.xlu0 0
    %7292 = vperm.xlu0 %7291, %v6983
    %v7293 = vpop.permute.xlu0 %7292
    %7294 = vset.pattern.permute.xlu0 0
    %7295 = vperm.xlu0 %7294, %v6984
    %v7296 = vpop.permute.xlu0 %7295
    %7297 = vset.pattern.permute.xlu0 0
    %7298 = vperm.xlu0 %7297, %v6985
    %v7299 = vpop.permute.xlu0 %7298
    %7300 = vset.pattern.permute.xlu0 0
    %7301 = vperm.xlu0 %7300, %v6986
    %v7302 = vpop.permute.xlu0 %7301
    %7303 = vset.pattern.permute.xlu0 0
    %7304 = vperm.xlu0 %7303, %v6987
    %v7305 = vpop.permute.xlu0 %7304
    %7306 = vset.pattern.permute.xlu0 0
    %7307 = vperm.xlu0 %7306, %v6988
    %v7308 = vpop.permute.xlu0 %7307
    %7309 = vset.pattern.permute.xlu0 0
    %7310 = vperm.xlu0 %7309, %v6989
    %v7311 = vpop.permute.xlu0 %7310
    %7312 = vset.pattern.permute.xlu0 0
    %7313 = vperm.xlu0 %7312, %v6990
    %v7314 = vpop.permute.xlu0 %7313
    %7315 = vset.pattern.permute.xlu0 0
    %7316 = vperm.xlu0 %7315, %v6991
    %v7317 = vpop.permute.xlu0 %7316
    %7318 = vset.pattern.permute.xlu0 0
    %7319 = vperm.xlu0 %7318, %v6992
    %v7320 = vpop.permute.xlu0 %7319
    %7321 = vset.pattern.permute.xlu0 0
    %7322 = vperm.xlu0 %7321, %v6993
    %v7323 = vpop.permute.xlu0 %7322
    %7324 = vset.pattern.permute.xlu0 0
    %7325 = vperm.xlu0 %7324, %v6994
    %v7326 = vpop.permute.xlu0 %7325
    %7327 = vset.pattern.permute.xlu0 0
    %7328 = vperm.xlu0 %7327, %v6995
    %v7329 = vpop.permute.xlu0 %7328
    %7330 = vset.pattern.permute.xlu0 0
    %7331 = vperm.xlu0 %7330, %v6996
    %v7332 = vpop.permute.xlu0 %7331
    %7333 = vset.pattern.permute.xlu0 0
    %7334 = vperm.xlu0 %7333, %v6997
    %v7335 = vpop.permute.xlu0 %7334
    %7336 = vset.pattern.permute.xlu0 0
    %7337 = vperm.xlu0 %7336, %v6998
    %v7338 = vpop.permute.xlu0 %7337
    %7339 = vset.pattern.permute.xlu0 0
    %7340 = vperm.xlu0 %7339, %v6999
    %v7341 = vpop.permute.xlu0 %7340
    %7342 = vset.pattern.permute.xlu0 0
    %7343 = vperm.xlu0 %7342, %v7000
    %v7344 = vpop.permute.xlu0 %7343
    %7345 = vset.pattern.permute.xlu0 0
    %7346 = vperm.xlu0 %7345, %v7001
    %v7347 = vpop.permute.xlu0 %7346
    %7348 = vset.pattern.permute.xlu0 0
    %7349 = vperm.xlu0 %7348, %v7002
    %v7350 = vpop.permute.xlu0 %7349
    %7351 = vset.pattern.permute.xlu0 0
    %7352 = vperm.xlu0 %7351, %v7003
    %v7353 = vpop.permute.xlu0 %7352
    %7354 = vset.pattern.permute.xlu0 0
    %7355 = vperm.xlu0 %7354, %v7004
    %v7356 = vpop.permute.xlu0 %7355
    %7357 = vset.pattern.permute.xlu0 0
    %7358 = vperm.xlu0 %7357, %v7005
    %v7359 = vpop.permute.xlu0 %7358
    %7360 = vset.pattern.permute.xlu0 0
    %7361 = vperm.xlu0 %7360, %v7006
    %v7362 = vpop.permute.xlu0 %7361
    %7363 = vset.pattern.permute.xlu0 0
    %7364 = vperm.xlu0 %7363, %v7007
    %v7365 = vpop.permute.xlu0 %7364
    %7366 = vset.pattern.permute.xlu0 0
    %7367 = vperm.xlu0 %7366, %v7008
    %v7368 = vpop.permute.xlu0 %7367
    %7369 = vset.pattern.permute.xlu0 0
    %7370 = vperm.xlu0 %7369, %v7009
    %v7371 = vpop.permute.xlu0 %7370
    %7372 = vset.pattern.permute.xlu0 0
    %7373 = vperm.xlu0 %7372, %v7010
    %v7374 = vpop.permute.xlu0 %7373
    %7375 = vset.pattern.permute.xlu0 0
    %7376 = vperm.xlu0 %7375, %v7011
    %v7377 = vpop.permute.xlu0 %7376
    %7378 = vset.pattern.permute.xlu0 0
    %7379 = vperm.xlu0 %7378, %v7012
    %v7380 = vpop.permute.xlu0 %7379
    %7381 = vset.pattern.permute.xlu0 0
    %7382 = vperm.xlu0 %7381, %v7013
    %v7383 = vpop.permute.xlu0 %7382
    %7384 = vset.pattern.permute.xlu0 0
    %7385 = vperm.xlu0 %7384, %v7014
    %v7386 = vpop.permute.xlu0 %7385
    %7387 = vset.pattern.permute.xlu0 0
    %7388 = vperm.xlu0 %7387, %v7015
    %v7389 = vpop.permute.xlu0 %7388
    %7390 = vset.pattern.permute.xlu0 0
    %7391 = vperm.xlu0 %7390, %v7016
    %v7392 = vpop.permute.xlu0 %7391
    %7393 = vset.pattern.permute.xlu0 0
    %7394 = vperm.xlu0 %7393, %v7017
    %v7395 = vpop.permute.xlu0 %7394
    %7396 = vset.pattern.permute.xlu0 0
    %7397 = vperm.xlu0 %7396, %v7018
    %v7398 = vpop.permute.xlu0 %7397
    %7399 = vset.pattern.permute.xlu0 0
    %7400 = vperm.xlu0 %7399, %v7019
    %v7401 = vpop.permute.xlu0 %7400
    %7402 = vset.pattern.permute.xlu0 0
    %7403 = vperm.xlu0 %7402, %v7020
    %v7404 = vpop.permute.xlu0 %7403
    %7405 = vset.pattern.permute.xlu0 0
    %7406 = vperm.xlu0 %7405, %v7021
    %v7407 = vpop.permute.xlu0 %7406
    %7408 = vset.pattern.permute.xlu0 0
    %7409 = vperm.xlu0 %7408, %v7022
    %v7410 = vpop.permute.xlu0 %7409
    %7411 = vset.pattern.permute.xlu0 0
    %7412 = vperm.xlu0 %7411, %v7023
    %v7413 = vpop.permute.xlu0 %7412
    %7414 = vset.pattern.permute.xlu0 0
    %7415 = vperm.xlu0 %7414, %v7024
    %v7416 = vpop.permute.xlu0 %7415
    %7417 = vset.pattern.permute.xlu0 0
    %7418 = vperm.xlu0 %7417, %v7025
    %v7419 = vpop.permute.xlu0 %7418
    %7420 = vset.pattern.permute.xlu0 0
    %7421 = vperm.xlu0 %7420, %v7026
    %v7422 = vpop.permute.xlu0 %7421
    %7423 = vset.pattern.permute.xlu0 0
    %7424 = vperm.xlu0 %7423, %v7027
    %v7425 = vpop.permute.xlu0 %7424
    %7426 = vset.pattern.permute.xlu0 0
    %7427 = vperm.xlu0 %7426, %v7028
    %v7428 = vpop.permute.xlu0 %7427
    %7429 = vset.pattern.permute.xlu0 0
    %7430 = vperm.xlu0 %7429, %v7029
    %v7431 = vpop.permute.xlu0 %7430
    %7432 = vset.pattern.permute.xlu0 0
    %7433 = vperm.xlu0 %7432, %v7030
    %v7434 = vpop.permute.xlu0 %7433
    %7435 = vset.pattern.permute.xlu0 0
    %7436 = vperm.xlu0 %7435, %v7031
    %v7437 = vpop.permute.xlu0 %7436
    %7438 = vset.pattern.permute.xlu0 0
    %7439 = vperm.xlu0 %7438, %v7032
    %v7440 = vpop.permute.xlu0 %7439
    %7441 = vset.pattern.permute.xlu0 0
    %7442 = vperm.xlu0 %7441, %v7033
    %v7443 = vpop.permute.xlu0 %7442
    %7444 = vset.pattern.permute.xlu0 0
    %7445 = vperm.xlu0 %7444, %v7034
    %v7446 = vpop.permute.xlu0 %7445
    %7447 = vset.pattern.permute.xlu0 0
    %7448 = vperm.xlu0 %7447, %v7035
    %v7449 = vpop.permute.xlu0 %7448
    %7450 = vset.pattern.permute.xlu0 0
    %7451 = vperm.xlu0 %7450, %v7036
    %v7452 = vpop.permute.xlu0 %7451
    %7453 = vset.pattern.permute.xlu0 0
    %7454 = vperm.xlu0 %7453, %v7037
    %v7455 = vpop.permute.xlu0 %7454
    %7456 = vset.pattern.permute.xlu0 0
    %7457 = vperm.xlu0 %7456, %v7038
    %v7458 = vpop.permute.xlu0 %7457
    %7459 = vset.pattern.permute.xlu0 0
    %7460 = vperm.xlu0 %7459, %v7039
    %v7461 = vpop.permute.xlu0 %7460
    %7462 = vset.pattern.permute.xlu0 0
    %7463 = vperm.xlu0 %7462, %v7040
    %v7464 = vpop.permute.xlu0 %7463
    %7465 = vset.pattern.permute.xlu0 0
    %7466 = vperm.xlu0 %7465, %v7041
    %v7467 = vpop.permute.xlu0 %7466
    %7468 = vset.pattern.permute.xlu0 0
    %7469 = vperm.xlu0 %7468, %v7042
    %v7470 = vpop.permute.xlu0 %7469
    %7471 = vset.pattern.permute.xlu0 0
    %7472 = vperm.xlu0 %7471, %v7043
    %v7473 = vpop.permute.xlu0 %7472
    %7474 = vset.pattern.permute.xlu0 0
    %7475 = vperm.xlu0 %7474, %v7044
    %v7476 = vpop.permute.xlu0 %7475
    %7477 = vset.pattern.permute.xlu0 0
    %7478 = vperm.xlu0 %7477, %v7045
    %v7479 = vpop.permute.xlu0 %7478
    %7480 = vset.pattern.permute.xlu0 0
    %7481 = vperm.xlu0 %7480, %v7046
    %v7482 = vpop.permute.xlu0 %7481
    %7483 = vset.pattern.permute.xlu0 0
    %7484 = vperm.xlu0 %7483, %v7047
    %v7485 = vpop.permute.xlu0 %7484
    %7486 = vset.pattern.permute.xlu0 0
    %7487 = vperm.xlu0 %7486, %v7048
    %v7488 = vpop.permute.xlu0 %7487
    %7489 = vset.pattern.permute.xlu0 0
    %7490 = vperm.xlu0 %7489, %v7049
    %v7491 = vpop.permute.xlu0 %7490
    %7492 = vset.pattern.permute.xlu0 0
    %7493 = vperm.xlu0 %7492, %v7050
    %v7494 = vpop.permute.xlu0 %7493
    %7495 = vset.pattern.permute.xlu0 0
    %7496 = vperm.xlu0 %7495, %v7051
    %v7497 = vpop.permute.xlu0 %7496
    %7498 = vset.pattern.permute.xlu0 0
    %7499 = vperm.xlu0 %7498, %v7052
    %v7500 = vpop.permute.xlu0 %7499
    %7501 = vset.pattern.permute.xlu0 0
    %7502 = vperm.xlu0 %7501, %v7053
    %v7503 = vpop.permute.xlu0 %7502
    %7504 = vset.pattern.permute.xlu0 0
    %7505 = vperm.xlu0 %7504, %v7054
    %v7506 = vpop.permute.xlu0 %7505
    %7507 = vset.pattern.permute.xlu0 0
    %7508 = vperm.xlu0 %7507, %v7055
    %v7509 = vpop.permute.xlu0 %7508
    %7510 = vset.pattern.permute.xlu0 0
    %7511 = vperm.xlu0 %7510, %v7056
    %v7512 = vpop.permute.xlu0 %7511
    %7513 = vset.pattern.permute.xlu0 0
    %7514 = vperm.xlu0 %7513, %v7057
    %v7515 = vpop.permute.xlu0 %7514
    %7516 = vset.pattern.permute.xlu0 0
    %7517 = vperm.xlu0 %7516, %v7058
    %v7518 = vpop.permute.xlu0 %7517
    %7519 = vset.pattern.permute.xlu0 0
    %7520 = vperm.xlu0 %7519, %v7059
    %v7521 = vpop.permute.xlu0 %7520
    %7522 = vset.pattern.permute.xlu0 0
    %7523 = vperm.xlu0 %7522, %v7060
    %v7524 = vpop.permute.xlu0 %7523
    %7525 = vset.pattern.permute.xlu0 0
    %7526 = vperm.xlu0 %7525, %v7061
    %v7527 = vpop.permute.xlu0 %7526
    %7528 = vset.pattern.permute.xlu0 0
    %7529 = vperm.xlu0 %7528, %v7062
    %v7530 = vpop.permute.xlu0 %7529
    %7531 = vset.pattern.permute.xlu0 0
    %7532 = vperm.xlu0 %7531, %v7063
    %v7533 = vpop.permute.xlu0 %7532
    %7534 = vset.pattern.permute.xlu0 0
    %7535 = vperm.xlu0 %7534, %v7064
    %v7536 = vpop.permute.xlu0 %7535
    %7537 = vset.pattern.permute.xlu0 0
    %7538 = vperm.xlu0 %7537, %v7065
    %v7539 = vpop.permute.xlu0 %7538
    %7540 = vset.pattern.permute.xlu0 0
    %7541 = vperm.xlu0 %7540, %v7066
    %v7542 = vpop.permute.xlu0 %7541
    %7543 = vset.pattern.permute.xlu0 0
    %7544 = vperm.xlu0 %7543, %v7067
    %v7545 = vpop.permute.xlu0 %7544
    %7546 = vset.pattern.permute.xlu0 0
    %7547 = vperm.xlu0 %7546, %v7068
    %v7548 = vpop.permute.xlu0 %7547
    %7549 = vset.pattern.permute.xlu0 0
    %7550 = vperm.xlu0 %7549, %v7069
    %v7551 = vpop.permute.xlu0 %7550
    %7552 = vset.pattern.permute.xlu0 0
    %7553 = vperm.xlu0 %7552, %v7070
    %v7554 = vpop.permute.xlu0 %7553
    %7555 = vset.pattern.permute.xlu0 0
    %7556 = vperm.xlu0 %7555, %v7071
    %v7557 = vpop.permute.xlu0 %7556
    %7558 = vset.pattern.permute.xlu0 0
    %7559 = vperm.xlu0 %7558, %v7072
    %v7560 = vpop.permute.xlu0 %7559
    %7561 = vset.pattern.permute.xlu0 0
    %7562 = vperm.xlu0 %7561, %v7073
    %v7563 = vpop.permute.xlu0 %7562
    %7564 = vset.pattern.permute.xlu0 0
    %7565 = vperm.xlu0 %7564, %v7074
    %v7566 = vpop.permute.xlu0 %7565
    %7567 = vset.pattern.permute.xlu0 0
    %7568 = vperm.xlu0 %7567, %v7075
    %v7569 = vpop.permute.xlu0 %7568
    %7570 = vset.pattern.permute.xlu0 0
    %7571 = vperm.xlu0 %7570, %v7076
    %v7572 = vpop.permute.xlu0 %7571
    %7573 = vset.pattern.permute.xlu0 0
    %7574 = vperm.xlu0 %7573, %v7077
    %v7575 = vpop.permute.xlu0 %7574
    %7576 = vset.pattern.permute.xlu0 0
    %7577 = vperm.xlu0 %7576, %v7078
    %v7578 = vpop.permute.xlu0 %7577
    %7579 = vset.pattern.permute.xlu0 0
    %7580 = vperm.xlu0 %7579, %v7079
    %v7581 = vpop.permute.xlu0 %7580
    %7582 = vset.pattern.permute.xlu0 0
    %7583 = vperm.xlu0 %7582, %v7080
    %v7584 = vpop.permute.xlu0 %7583
    %7585 = vset.pattern.permute.xlu0 0
    %7586 = vperm.xlu0 %7585, %v7081
    %v7587 = vpop.permute.xlu0 %7586
    %7588 = vset.pattern.permute.xlu0 0
    %7589 = vperm.xlu0 %7588, %v7082
    %v7590 = vpop.permute.xlu0 %7589
    %7591 = vset.pattern.permute.xlu0 0
    %7592 = vperm.xlu0 %7591, %v7083
    %v7593 = vpop.permute.xlu0 %7592
    %7594 = vset.pattern.permute.xlu0 0
    %7595 = vperm.xlu0 %7594, %v7084
    %v7596 = vpop.permute.xlu0 %7595
    %7597 = vset.pattern.permute.xlu0 0
    %7598 = vperm.xlu0 %7597, %v7085
    %v7599 = vpop.permute.xlu0 %7598
    %7600 = vset.pattern.permute.xlu0 0
    %7601 = vperm.xlu0 %7600, %v7086
    %v7602 = vpop.permute.xlu0 %7601
    %7603 = vset.pattern.permute.xlu0 0
    %7604 = vperm.xlu0 %7603, %v7087
    %v7605 = vpop.permute.xlu0 %7604
    %7606 = vset.pattern.permute.xlu0 0
    %7607 = vperm.xlu0 %7606, %v7088
    %v7608 = vpop.permute.xlu0 %7607
    %7609 = vset.pattern.permute.xlu0 0
    %7610 = vperm.xlu0 %7609, %v7089
    %v7611 = vpop.permute.xlu0 %7610
    %7612 = vset.pattern.permute.xlu0 0
    %7613 = vperm.xlu0 %7612, %v7090
    %v7614 = vpop.permute.xlu0 %7613
    %7615 = vset.pattern.permute.xlu0 0
    %7616 = vperm.xlu0 %7615, %v7091
    %v7617 = vpop.permute.xlu0 %7616
    %7618 = vset.pattern.permute.xlu0 0
    %7619 = vperm.xlu0 %7618, %v7092
    %v7620 = vpop.permute.xlu0 %7619
    %7621 = vset.pattern.permute.xlu0 0
    %7622 = vperm.xlu0 %7621, %v7093
    %v7623 = vpop.permute.xlu0 %7622
    %7624 = vset.pattern.permute.xlu0 0
    %7625 = vperm.xlu0 %7624, %v7094
    %v7626 = vpop.permute.xlu0 %7625
    %7627 = vset.pattern.permute.xlu0 0
    %7628 = vperm.xlu0 %7627, %v7095
    %v7629 = vpop.permute.xlu0 %7628
    %7630 = vset.pattern.permute.xlu0 0
    %7631 = vperm.xlu0 %7630, %v7096
    %v7632 = vpop.permute.xlu0 %7631
    %7633 = vset.pattern.permute.xlu0 0
    %7634 = vperm.xlu0 %7633, %v7097
    %v7635 = vpop.permute.xlu0 %7634
    %7636 = vset.pattern.permute.xlu0 0
    %7637 = vperm.xlu0 %7636, %v7098
    %v7638 = vpop.permute.xlu0 %7637
    %7639 = vset.pattern.permute.xlu0 0
    %7640 = vperm.xlu0 %7639, %v7099
    %v7641 = vpop.permute.xlu0 %7640
    %7642 = vset.pattern.permute.xlu0 0
    %7643 = vperm.xlu0 %7642, %v7100
    %v7644 = vpop.permute.xlu0 %7643
    %7645 = vset.pattern.permute.xlu0 0
    %7646 = vperm.xlu0 %7645, %v7101
    %v7647 = vpop.permute.xlu0 %7646
    %7648 = vset.pattern.permute.xlu0 0
    %7649 = vperm.xlu0 %7648, %v7102
    %v7650 = vpop.permute.xlu0 %7649
    %7651 = vset.pattern.permute.xlu0 0
    %7652 = vperm.xlu0 %7651, %v7103
    %v7653 = vpop.permute.xlu0 %7652
    %7654 = vset.pattern.permute.xlu0 0
    %7655 = vperm.xlu0 %7654, %v7104
    %v7656 = vpop.permute.xlu0 %7655
    %7657 = vset.pattern.permute.xlu0 0
    %7658 = vperm.xlu0 %7657, %v7105
    %v7659 = vpop.permute.xlu0 %7658
    %7660 = vset.pattern.permute.xlu0 0
    %7661 = vperm.xlu0 %7660, %v7106
    %v7662 = vpop.permute.xlu0 %7661
    %7663 = vset.pattern.permute.xlu0 0
    %7664 = vperm.xlu0 %7663, %v7107
    %v7665 = vpop.permute.xlu0 %7664
    %7666 = vset.pattern.permute.xlu0 0
    %7667 = vperm.xlu0 %7666, %v7108
    %v7668 = vpop.permute.xlu0 %7667
    %7669 = vset.pattern.permute.xlu0 0
    %7670 = vperm.xlu0 %7669, %v7109
    %v7671 = vpop.permute.xlu0 %7670
    %7672 = vset.pattern.permute.xlu0 0
    %7673 = vperm.xlu0 %7672, %v7110
    %v7674 = vpop.permute.xlu0 %7673
    %7675 = vset.pattern.permute.xlu0 0
    %7676 = vperm.xlu0 %7675, %v7111
    %v7677 = vpop.permute.xlu0 %7676
    %7678 = vset.pattern.permute.xlu0 0
    %7679 = vperm.xlu0 %7678, %v7112
    %v7680 = vpop.permute.xlu0 %7679
    %7681 = vset.pattern.permute.xlu0 0
    %7682 = vperm.xlu0 %7681, %v7113
    %v7683 = vpop.permute.xlu0 %7682
    %7684 = vset.pattern.permute.xlu0 0
    %7685 = vperm.xlu0 %7684, %v7114
    %v7686 = vpop.permute.xlu0 %7685
    %7687 = vset.pattern.permute.xlu0 0
    %7688 = vperm.xlu0 %7687, %v7115
    %v7689 = vpop.permute.xlu0 %7688
    %7690 = vset.pattern.permute.xlu0 0
    %7691 = vperm.xlu0 %7690, %v7116
    %v7692 = vpop.permute.xlu0 %7691
    %7693 = vset.pattern.permute.xlu0 0
    %7694 = vperm.xlu0 %7693, %v7117
    %v7695 = vpop.permute.xlu0 %7694
    %7696 = vset.pattern.permute.xlu0 0
    %7697 = vperm.xlu0 %7696, %v7118
    %v7698 = vpop.permute.xlu0 %7697
    %7699 = vset.pattern.permute.xlu0 0
    %7700 = vperm.xlu0 %7699, %v7119
    %v7701 = vpop.permute.xlu0 %7700
    %7702 = vset.pattern.permute.xlu0 0
    %7703 = vperm.xlu0 %7702, %v7120
    %v7704 = vpop.permute.xlu0 %7703
    %7705 = vset.pattern.permute.xlu0 0
    %7706 = vperm.xlu0 %7705, %v7121
    %v7707 = vpop.permute.xlu0 %7706
    %7708 = vset.pattern.permute.xlu0 0
    %7709 = vperm.xlu0 %7708, %v7122
    %v7710 = vpop.permute.xlu0 %7709
    %7711 = vset.pattern.permute.xlu0 0
    %7712 = vperm.xlu0 %7711, %v7123
    %v7713 = vpop.permute.xlu0 %7712
    %7714 = vset.pattern.permute.xlu0 0
    %7715 = vperm.xlu0 %7714, %v7124
    %v7716 = vpop.permute.xlu0 %7715
    %7717 = vset.pattern.permute.xlu0 0
    %7718 = vperm.xlu0 %7717, %v7125
    %v7719 = vpop.permute.xlu0 %7718
    %7720 = vset.pattern.permute.xlu0 0
    %7721 = vperm.xlu0 %7720, %v7126
    %v7722 = vpop.permute.xlu0 %7721
    %7723 = vset.pattern.permute.xlu0 0
    %7724 = vperm.xlu0 %7723, %v7127
    %v7725 = vpop.permute.xlu0 %7724
    %7726 = vset.pattern.permute.xlu0 0
    %7727 = vperm.xlu0 %7726, %v7128
    %v7728 = vpop.permute.xlu0 %7727
    %7729 = vset.pattern.permute.xlu0 0
    %7730 = vperm.xlu0 %7729, %v7129
    %v7731 = vpop.permute.xlu0 %7730
    %7732 = vset.pattern.permute.xlu0 0
    %7733 = vperm.xlu0 %7732, %v7130
    %v7734 = vpop.permute.xlu0 %7733
    %7735 = vset.pattern.permute.xlu0 0
    %7736 = vperm.xlu0 %7735, %v7131
    %v7737 = vpop.permute.xlu0 %7736
    %7738 = vset.pattern.permute.xlu0 0
    %7739 = vperm.xlu0 %7738, %v7132
    %v7740 = vpop.permute.xlu0 %7739
    %7741 = vset.pattern.permute.xlu0 0
    %7742 = vperm.xlu0 %7741, %v7133
    %v7743 = vpop.permute.xlu0 %7742
    %7744 = vset.pattern.permute.xlu0 0
    %7745 = vperm.xlu0 %7744, %v7134
    %v7746 = vpop.permute.xlu0 %7745
    %7747 = vset.pattern.permute.xlu0 0
    %7748 = vperm.xlu0 %7747, %v7135
    %v7749 = vpop.permute.xlu0 %7748
    %7750 = vset.pattern.permute.xlu0 0
    %7751 = vperm.xlu0 %7750, %v7136
    %v7752 = vpop.permute.xlu0 %7751
    %7753 = vset.pattern.permute.xlu0 0
    %7754 = vperm.xlu0 %7753, %v7137
    %v7755 = vpop.permute.xlu0 %7754
    %7756 = vset.pattern.permute.xlu0 0
    %7757 = vperm.xlu0 %7756, %v7138
    %v7758 = vpop.permute.xlu0 %7757
    %7759 = vset.pattern.permute.xlu0 0
    %7760 = vperm.xlu0 %7759, %v7139
    %v7761 = vpop.permute.xlu0 %7760
    %7762 = vset.pattern.permute.xlu0 0
    %7763 = vperm.xlu0 %7762, %v7140
    %v7764 = vpop.permute.xlu0 %7763
    %7765 = vset.pattern.permute.xlu0 0
    %7766 = vperm.xlu0 %7765, %v7141
    %v7767 = vpop.permute.xlu0 %7766
    %7768 = vset.pattern.permute.xlu0 0
    %7769 = vperm.xlu0 %7768, %v7142
    %v7770 = vpop.permute.xlu0 %7769
    %7771 = vset.pattern.permute.xlu0 0
    %7772 = vperm.xlu0 %7771, %v7143
    %v7773 = vpop.permute.xlu0 %7772
    %7774 = vset.pattern.permute.xlu0 0
    %7775 = vperm.xlu0 %7774, %v7144
    %v7776 = vpop.permute.xlu0 %7775
    %7777 = vset.pattern.permute.xlu0 0
    %7778 = vperm.xlu0 %7777, %v7145
    %v7779 = vpop.permute.xlu0 %7778
    %7780 = vset.pattern.permute.xlu0 0
    %7781 = vperm.xlu0 %7780, %v7146
    %v7782 = vpop.permute.xlu0 %7781
    %7783 = vset.pattern.permute.xlu0 0
    %7784 = vperm.xlu0 %7783, %v7147
    %v7785 = vpop.permute.xlu0 %7784
    %7786 = vset.pattern.permute.xlu0 0
    %7787 = vperm.xlu0 %7786, %v7148
    %v7788 = vpop.permute.xlu0 %7787
    %7789 = vset.pattern.permute.xlu0 0
    %7790 = vperm.xlu0 %7789, %v7149
    %v7791 = vpop.permute.xlu0 %7790
    %7792 = vset.pattern.permute.xlu0 0
    %7793 = vperm.xlu0 %7792, %v7150
    %v7794 = vpop.permute.xlu0 %7793
    %7795 = vset.pattern.permute.xlu0 0
    %7796 = vperm.xlu0 %7795, %v7151
    %v7797 = vpop.permute.xlu0 %7796
    %7798 = vset.pattern.permute.xlu0 0
    %7799 = vperm.xlu0 %7798, %v7152
    %v7800 = vpop.permute.xlu0 %7799
    %7801 = vset.pattern.permute.xlu0 0
    %7802 = vperm.xlu0 %7801, %v7153
    %v7803 = vpop.permute.xlu0 %7802
    %7804 = vset.pattern.permute.xlu0 0
    %7805 = vperm.xlu0 %7804, %v7154
    %v7806 = vpop.permute.xlu0 %7805
    %7807 = vset.pattern.permute.xlu0 0
    %7808 = vperm.xlu0 %7807, %v7155
    %v7809 = vpop.permute.xlu0 %7808
    %7810 = vset.pattern.permute.xlu0 0
    %7811 = vperm.xlu0 %7810, %v7156
    %v7812 = vpop.permute.xlu0 %7811
    %7813 = vset.pattern.permute.xlu0 0
    %7814 = vperm.xlu0 %7813, %v7157
    %v7815 = vpop.permute.xlu0 %7814
    %7816 = vset.pattern.permute.xlu0 0
    %7817 = vperm.xlu0 %7816, %v7158
    %v7818 = vpop.permute.xlu0 %7817
    %7819 = vset.pattern.permute.xlu0 0
    %7820 = vperm.xlu0 %7819, %v7159
    %v7821 = vpop.permute.xlu0 %7820
    %7822 = vset.pattern.permute.xlu0 0
    %7823 = vperm.xlu0 %7822, %v7160
    %v7824 = vpop.permute.xlu0 %7823
    %7825 = vset.pattern.permute.xlu0 0
    %7826 = vperm.xlu0 %7825, %v7161
    %v7827 = vpop.permute.xlu0 %7826
    %7828 = vset.pattern.permute.xlu0 0
    %7829 = vperm.xlu0 %7828, %v7162
    %v7830 = vpop.permute.xlu0 %7829
    %7831 = vset.pattern.permute.xlu0 0
    %7832 = vperm.xlu0 %7831, %v7163
    %v7833 = vpop.permute.xlu0 %7832
    %7834 = vset.pattern.permute.xlu0 0
    %7835 = vperm.xlu0 %7834, %v7164
    %v7836 = vpop.permute.xlu0 %7835
    %7837 = vset.pattern.permute.xlu0 0
    %7838 = vperm.xlu0 %7837, %v7165
    %v7839 = vpop.permute.xlu0 %7838
    %7840 = vset.pattern.permute.xlu0 0
    %7841 = vperm.xlu0 %7840, %v7166
    %v7842 = vpop.permute.xlu0 %7841
    %7843 = vset.pattern.permute.xlu0 0
    %7844 = vperm.xlu0 %7843, %v7167
    %v7845 = vpop.permute.xlu0 %7844
    %7846 = vset.pattern.permute.xlu0 0
    %7847 = vperm.xlu0 %7846, %v7168
    %v7848 = vpop.permute.xlu0 %7847
    %7849 = vset.pattern.permute.xlu0 0
    %7850 = vperm.xlu0 %7849, %v7169
    %v7851 = vpop.permute.xlu0 %7850
    %7852 = vset.pattern.permute.xlu0 0
    %7853 = vperm.xlu0 %7852, %v7170
    %v7854 = vpop.permute.xlu0 %7853
    %7855 = vset.pattern.permute.xlu0 0
    %7856 = vperm.xlu0 %7855, %v7171
    %v7857 = vpop.permute.xlu0 %7856
    %7858 = vset.pattern.permute.xlu0 0
    %7859 = vperm.xlu0 %7858, %v7172
    %v7860 = vpop.permute.xlu0 %7859
    %7861 = vset.pattern.permute.xlu0 0
    %7862 = vperm.xlu0 %7861, %v7173
    %v7863 = vpop.permute.xlu0 %7862
    %7864 = vset.pattern.permute.xlu0 0
    %7865 = vperm.xlu0 %7864, %v7174
    %v7866 = vpop.permute.xlu0 %7865
    %7867 = vset.pattern.permute.xlu0 0
    %7868 = vperm.xlu0 %7867, %v7175
    %v7869 = vpop.permute.xlu0 %7868
    %7870 = vset.pattern.permute.xlu0 0
    %7871 = vperm.xlu0 %7870, %v7176
    %v7872 = vpop.permute.xlu0 %7871
    %7873 = vset.pattern.permute.xlu0 0
    %7874 = vperm.xlu0 %7873, %v7177
    %v7875 = vpop.permute.xlu0 %7874
    %7876 = vset.pattern.permute.xlu0 0
    %7877 = vperm.xlu0 %7876, %v7178
    %v7878 = vpop.permute.xlu0 %7877
    %7879 = vset.pattern.permute.xlu0 0
    %7880 = vperm.xlu0 %7879, %v7179
    %v7881 = vpop.permute.xlu0 %7880
    %7882 = vset.pattern.permute.xlu0 0
    %7883 = vperm.xlu0 %7882, %v7180
    %v7884 = vpop.permute.xlu0 %7883
    %7885 = vset.pattern.permute.xlu0 0
    %7886 = vperm.xlu0 %7885, %v7181
    %v7887 = vpop.permute.xlu0 %7886
    %7888 = vset.pattern.permute.xlu0 0
    %7889 = vperm.xlu0 %7888, %v7182
    %v7890 = vpop.permute.xlu0 %7889
    %7891 = vset.pattern.permute.xlu0 0
    %7892 = vperm.xlu0 %7891, %v7183
    %v7893 = vpop.permute.xlu0 %7892
    %7894 = vset.pattern.permute.xlu0 0
    %7895 = vperm.xlu0 %7894, %v7184
    %v7896 = vpop.permute.xlu0 %7895
    %7897 = vset.pattern.permute.xlu0 0
    %7898 = vperm.xlu0 %7897, %v7185
    %v7899 = vpop.permute.xlu0 %7898
    %7900 = vset.pattern.permute.xlu0 0
    %7901 = vperm.xlu0 %7900, %v7186
    %v7902 = vpop.permute.xlu0 %7901
    %7903 = vset.pattern.permute.xlu0 0
    %7904 = vperm.xlu0 %7903, %v7187
    %v7905 = vpop.permute.xlu0 %7904
    %7906 = vset.pattern.permute.xlu0 0
    %7907 = vperm.xlu0 %7906, %v7188
    %v7908 = vpop.permute.xlu0 %7907
    %7909 = vset.pattern.permute.xlu0 0
    %7910 = vperm.xlu0 %7909, %v7189
    %v7911 = vpop.permute.xlu0 %7910
    %7912 = vset.pattern.permute.xlu0 0
    %7913 = vperm.xlu0 %7912, %v7190
    %v7914 = vpop.permute.xlu0 %7913
    %7915 = vset.pattern.permute.xlu0 0
    %7916 = vperm.xlu0 %7915, %v7191
    %v7917 = vpop.permute.xlu0 %7916
    %7918 = vset.pattern.permute.xlu0 0
    %7919 = vperm.xlu0 %7918, %v7192
    %v7920 = vpop.permute.xlu0 %7919
    %7921 = vset.pattern.permute.xlu0 0
    %7922 = vperm.xlu0 %7921, %v7193
    %v7923 = vpop.permute.xlu0 %7922
    %7924 = vset.pattern.permute.xlu0 0
    %7925 = vperm.xlu0 %7924, %v7194
    %v7926 = vpop.permute.xlu0 %7925
    %7927 = vset.pattern.permute.xlu0 0
    %7928 = vperm.xlu0 %7927, %v7195
    %v7929 = vpop.permute.xlu0 %7928
    %7930 = vset.pattern.permute.xlu0 0
    %7931 = vperm.xlu0 %7930, %v7196
    %v7932 = vpop.permute.xlu0 %7931
    %7933 = vset.pattern.permute.xlu0 0
    %7934 = vperm.xlu0 %7933, %v7197
    %v7935 = vpop.permute.xlu0 %7934
    %7936 = vset.pattern.permute.xlu0 0
    %7937 = vperm.xlu0 %7936, %v7198
    %v7938 = vpop.permute.xlu0 %7937
    %7939 = vset.pattern.permute.xlu0 0
    %7940 = vperm.xlu0 %7939, %v7199
    %v7941 = vpop.permute.xlu0 %7940
    %7942 = vset.pattern.permute.xlu0 0
    %7943 = vperm.xlu0 %7942, %v7200
    %v7944 = vpop.permute.xlu0 %7943
    %7945 = vset.pattern.permute.xlu0 0
    %7946 = vperm.xlu0 %7945, %v7201
    %v7947 = vpop.permute.xlu0 %7946
    %7948 = vset.pattern.permute.xlu0 0
    %7949 = vperm.xlu0 %7948, %v7202
    %v7950 = vpop.permute.xlu0 %7949
    %7951 = vset.pattern.permute.xlu0 0
    %7952 = vperm.xlu0 %7951, %v7203
    %v7953 = vpop.permute.xlu0 %7952
    %7954 = vset.pattern.permute.xlu0 0
    %7955 = vperm.xlu0 %7954, %v7204
    %v7956 = vpop.permute.xlu0 %7955
    %7957 = vset.pattern.permute.xlu0 0
    %7958 = vperm.xlu0 %7957, %v7205
    %v7959 = vpop.permute.xlu0 %7958
    %7960 = vset.pattern.permute.xlu0 0
    %7961 = vperm.xlu0 %7960, %v7206
    %v7962 = vpop.permute.xlu0 %7961
    %7963 = vset.pattern.permute.xlu0 0
    %7964 = vperm.xlu0 %7963, %v7207
    %v7965 = vpop.permute.xlu0 %7964
    %7966 = vset.pattern.permute.xlu0 0
    %7967 = vperm.xlu0 %7966, %v7208
    %v7968 = vpop.permute.xlu0 %7967
    %7969 = vset.pattern.permute.xlu0 0
    %7970 = vperm.xlu0 %7969, %v7209
    %v7971 = vpop.permute.xlu0 %7970
    %7972 = vset.pattern.permute.xlu0 0
    %7973 = vperm.xlu0 %7972, %v7210
    %v7974 = vpop.permute.xlu0 %7973
    %7975 = vset.pattern.permute.xlu0 0
    %7976 = vperm.xlu0 %7975, %v7211
    %v7977 = vpop.permute.xlu0 %7976
    %7978 = vset.pattern.permute.xlu0 0
    %7979 = vperm.xlu0 %7978, %v7212
    %v7980 = vpop.permute.xlu0 %7979
    %vm7981 = vcmp.eq.s32.totalorder %v7215, 1
    %vm7982 = vcmp.eq.s32.totalorder %v7218, 1
    %vm7983 = vcmp.eq.s32.totalorder %v7221, 1
    %vm7984 = vcmp.eq.s32.totalorder %v7224, 1
    %vm7985 = vcmp.eq.s32.totalorder %v7227, 1
    %vm7986 = vcmp.eq.s32.totalorder %v7230, 1
    %vm7987 = vcmp.eq.s32.totalorder %v7233, 1
    %vm7988 = vcmp.eq.s32.totalorder %v7236, 1
    %vm7989 = vcmp.eq.s32.totalorder %v7239, 1
    %vm7990 = vcmp.eq.s32.totalorder %v7242, 1
    %vm7991 = vcmp.eq.s32.totalorder %v7245, 1
    %vm7992 = vcmp.eq.s32.totalorder %v7248, 1
    %vm7993 = vcmp.eq.s32.totalorder %v7251, 1
    %vm7994 = vcmp.eq.s32.totalorder %v7254, 1
    %vm7995 = vcmp.eq.s32.totalorder %v7257, 1
    %vm7996 = vcmp.eq.s32.totalorder %v7260, 1
    %vm7997 = vcmp.eq.s32.totalorder %v7263, 1
    %vm7998 = vcmp.eq.s32.totalorder %v7266, 1
    %vm7999 = vcmp.eq.s32.totalorder %v7269, 1
    %vm8000 = vcmp.eq.s32.totalorder %v7272, 1
    %vm8001 = vcmp.eq.s32.totalorder %v7275, 1
    %vm8002 = vcmp.eq.s32.totalorder %v7278, 1
    %vm8003 = vcmp.eq.s32.totalorder %v7281, 1
    %vm8004 = vcmp.eq.s32.totalorder %v7284, 1
    %vm8005 = vcmp.eq.s32.totalorder %v7287, 1
    %vm8006 = vcmp.eq.s32.totalorder %v7290, 1
    %vm8007 = vcmp.eq.s32.totalorder %v7293, 1
    %vm8008 = vcmp.eq.s32.totalorder %v7296, 1
    %vm8009 = vcmp.eq.s32.totalorder %v7299, 1
    %vm8010 = vcmp.eq.s32.totalorder %v7302, 1
    %vm8011 = vcmp.eq.s32.totalorder %v7305, 1
    %vm8012 = vcmp.eq.s32.totalorder %v7308, 1
    %vm8013 = vcmp.eq.s32.totalorder %v7311, 1
    %vm8014 = vcmp.eq.s32.totalorder %v7314, 1
    %vm8015 = vcmp.eq.s32.totalorder %v7317, 1
    %vm8016 = vcmp.eq.s32.totalorder %v7320, 1
    %vm8017 = vcmp.eq.s32.totalorder %v7323, 1
    %vm8018 = vcmp.eq.s32.totalorder %v7326, 1
    %vm8019 = vcmp.eq.s32.totalorder %v7329, 1
    %vm8020 = vcmp.eq.s32.totalorder %v7332, 1
    %vm8021 = vcmp.eq.s32.totalorder %v7335, 1
    %vm8022 = vcmp.eq.s32.totalorder %v7338, 1
    %vm8023 = vcmp.eq.s32.totalorder %v7341, 1
    %vm8024 = vcmp.eq.s32.totalorder %v7344, 1
    %vm8025 = vcmp.eq.s32.totalorder %v7347, 1
    %vm8026 = vcmp.eq.s32.totalorder %v7350, 1
    %vm8027 = vcmp.eq.s32.totalorder %v7353, 1
    %vm8028 = vcmp.eq.s32.totalorder %v7356, 1
    %vm8029 = vcmp.eq.s32.totalorder %v7359, 1
    %vm8030 = vcmp.eq.s32.totalorder %v7362, 1
    %vm8031 = vcmp.eq.s32.totalorder %v7365, 1
    %vm8032 = vcmp.eq.s32.totalorder %v7368, 1
    %vm8033 = vcmp.eq.s32.totalorder %v7371, 1
    %vm8034 = vcmp.eq.s32.totalorder %v7374, 1
    %vm8035 = vcmp.eq.s32.totalorder %v7377, 1
    %vm8036 = vcmp.eq.s32.totalorder %v7380, 1
    %vm8037 = vcmp.eq.s32.totalorder %v7383, 1
    %vm8038 = vcmp.eq.s32.totalorder %v7386, 1
    %vm8039 = vcmp.eq.s32.totalorder %v7389, 1
    %vm8040 = vcmp.eq.s32.totalorder %v7392, 1
    %vm8041 = vcmp.eq.s32.totalorder %v7395, 1
    %vm8042 = vcmp.eq.s32.totalorder %v7398, 1
    %vm8043 = vcmp.eq.s32.totalorder %v7401, 1
    %vm8044 = vcmp.eq.s32.totalorder %v7404, 1
    %vm8045 = vcmp.eq.s32.totalorder %v7407, 1
    %vm8046 = vcmp.eq.s32.totalorder %v7410, 1
    %vm8047 = vcmp.eq.s32.totalorder %v7413, 1
    %vm8048 = vcmp.eq.s32.totalorder %v7416, 1
    %vm8049 = vcmp.eq.s32.totalorder %v7419, 1
    %vm8050 = vcmp.eq.s32.totalorder %v7422, 1
    %vm8051 = vcmp.eq.s32.totalorder %v7425, 1
    %vm8052 = vcmp.eq.s32.totalorder %v7428, 1
    %vm8053 = vcmp.eq.s32.totalorder %v7431, 1
    %vm8054 = vcmp.eq.s32.totalorder %v7434, 1
    %vm8055 = vcmp.eq.s32.totalorder %v7437, 1
    %vm8056 = vcmp.eq.s32.totalorder %v7440, 1
    %vm8057 = vcmp.eq.s32.totalorder %v7443, 1
    %vm8058 = vcmp.eq.s32.totalorder %v7446, 1
    %vm8059 = vcmp.eq.s32.totalorder %v7449, 1
    %vm8060 = vcmp.eq.s32.totalorder %v7452, 1
    %vm8061 = vcmp.eq.s32.totalorder %v7455, 1
    %vm8062 = vcmp.eq.s32.totalorder %v7458, 1
    %vm8063 = vcmp.eq.s32.totalorder %v7461, 1
    %vm8064 = vcmp.eq.s32.totalorder %v7464, 1
    %vm8065 = vcmp.eq.s32.totalorder %v7467, 1
    %vm8066 = vcmp.eq.s32.totalorder %v7470, 1
    %vm8067 = vcmp.eq.s32.totalorder %v7473, 1
    %vm8068 = vcmp.eq.s32.totalorder %v7476, 1
    %vm8069 = vcmp.eq.s32.totalorder %v7479, 1
    %vm8070 = vcmp.eq.s32.totalorder %v7482, 1
    %vm8071 = vcmp.eq.s32.totalorder %v7485, 1
    %vm8072 = vcmp.eq.s32.totalorder %v7488, 1
    %vm8073 = vcmp.eq.s32.totalorder %v7491, 1
    %vm8074 = vcmp.eq.s32.totalorder %v7494, 1
    %vm8075 = vcmp.eq.s32.totalorder %v7497, 1
    %vm8076 = vcmp.eq.s32.totalorder %v7500, 1
    %vm8077 = vcmp.eq.s32.totalorder %v7503, 1
    %vm8078 = vcmp.eq.s32.totalorder %v7506, 1
    %vm8079 = vcmp.eq.s32.totalorder %v7509, 1
    %vm8080 = vcmp.eq.s32.totalorder %v7512, 1
    %vm8081 = vcmp.eq.s32.totalorder %v7515, 1
    %vm8082 = vcmp.eq.s32.totalorder %v7518, 1
    %vm8083 = vcmp.eq.s32.totalorder %v7521, 1
    %vm8084 = vcmp.eq.s32.totalorder %v7524, 1
    %vm8085 = vcmp.eq.s32.totalorder %v7527, 1
    %vm8086 = vcmp.eq.s32.totalorder %v7530, 1
    %vm8087 = vcmp.eq.s32.totalorder %v7533, 1
    %vm8088 = vcmp.eq.s32.totalorder %v7536, 1
    %vm8089 = vcmp.eq.s32.totalorder %v7539, 1
    %vm8090 = vcmp.eq.s32.totalorder %v7542, 1
    %vm8091 = vcmp.eq.s32.totalorder %v7545, 1
    %vm8092 = vcmp.eq.s32.totalorder %v7548, 1
    %vm8093 = vcmp.eq.s32.totalorder %v7551, 1
    %vm8094 = vcmp.eq.s32.totalorder %v7554, 1
    %vm8095 = vcmp.eq.s32.totalorder %v7557, 1
    %vm8096 = vcmp.eq.s32.totalorder %v7560, 1
    %vm8097 = vcmp.eq.s32.totalorder %v7563, 1
    %vm8098 = vcmp.eq.s32.totalorder %v7566, 1
    %vm8099 = vcmp.eq.s32.totalorder %v7569, 1
    %vm8100 = vcmp.eq.s32.totalorder %v7572, 1
    %vm8101 = vcmp.eq.s32.totalorder %v7575, 1
    %vm8102 = vcmp.eq.s32.totalorder %v7578, 1
    %vm8103 = vcmp.eq.s32.totalorder %v7581, 1
    %vm8104 = vcmp.eq.s32.totalorder %v7584, 1
    %vm8105 = vcmp.eq.s32.totalorder %v7587, 1
    %vm8106 = vcmp.eq.s32.totalorder %v7590, 1
    %vm8107 = vcmp.eq.s32.totalorder %v7593, 1
    %vm8108 = vcmp.eq.s32.totalorder %v7596, 1
    %vm8109 = vcmp.eq.s32.totalorder %v7599, 1
    %vm8110 = vcmp.eq.s32.totalorder %v7602, 1
    %vm8111 = vcmp.eq.s32.totalorder %v7605, 1
    %vm8112 = vcmp.eq.s32.totalorder %v7608, 1
    %vm8113 = vcmp.eq.s32.totalorder %v7611, 1
    %vm8114 = vcmp.eq.s32.totalorder %v7614, 1
    %vm8115 = vcmp.eq.s32.totalorder %v7617, 1
    %vm8116 = vcmp.eq.s32.totalorder %v7620, 1
    %vm8117 = vcmp.eq.s32.totalorder %v7623, 1
    %vm8118 = vcmp.eq.s32.totalorder %v7626, 1
    %vm8119 = vcmp.eq.s32.totalorder %v7629, 1
    %vm8120 = vcmp.eq.s32.totalorder %v7632, 1
    %vm8121 = vcmp.eq.s32.totalorder %v7635, 1
    %vm8122 = vcmp.eq.s32.totalorder %v7638, 1
    %vm8123 = vcmp.eq.s32.totalorder %v7641, 1
    %vm8124 = vcmp.eq.s32.totalorder %v7644, 1
    %vm8125 = vcmp.eq.s32.totalorder %v7647, 1
    %vm8126 = vcmp.eq.s32.totalorder %v7650, 1
    %vm8127 = vcmp.eq.s32.totalorder %v7653, 1
    %vm8128 = vcmp.eq.s32.totalorder %v7656, 1
    %vm8129 = vcmp.eq.s32.totalorder %v7659, 1
    %vm8130 = vcmp.eq.s32.totalorder %v7662, 1
    %vm8131 = vcmp.eq.s32.totalorder %v7665, 1
    %vm8132 = vcmp.eq.s32.totalorder %v7668, 1
    %vm8133 = vcmp.eq.s32.totalorder %v7671, 1
    %vm8134 = vcmp.eq.s32.totalorder %v7674, 1
    %vm8135 = vcmp.eq.s32.totalorder %v7677, 1
    %vm8136 = vcmp.eq.s32.totalorder %v7680, 1
    %vm8137 = vcmp.eq.s32.totalorder %v7683, 1
    %vm8138 = vcmp.eq.s32.totalorder %v7686, 1
    %vm8139 = vcmp.eq.s32.totalorder %v7689, 1
    %vm8140 = vcmp.eq.s32.totalorder %v7692, 1
    %vm8141 = vcmp.eq.s32.totalorder %v7695, 1
    %vm8142 = vcmp.eq.s32.totalorder %v7698, 1
    %vm8143 = vcmp.eq.s32.totalorder %v7701, 1
    %vm8144 = vcmp.eq.s32.totalorder %v7704, 1
    %vm8145 = vcmp.eq.s32.totalorder %v7707, 1
    %vm8146 = vcmp.eq.s32.totalorder %v7710, 1
    %vm8147 = vcmp.eq.s32.totalorder %v7713, 1
    %vm8148 = vcmp.eq.s32.totalorder %v7716, 1
    %vm8149 = vcmp.eq.s32.totalorder %v7719, 1
    %vm8150 = vcmp.eq.s32.totalorder %v7722, 1
    %vm8151 = vcmp.eq.s32.totalorder %v7725, 1
    %vm8152 = vcmp.eq.s32.totalorder %v7728, 1
    %vm8153 = vcmp.eq.s32.totalorder %v7731, 1
    %vm8154 = vcmp.eq.s32.totalorder %v7734, 1
    %vm8155 = vcmp.eq.s32.totalorder %v7737, 1
    %vm8156 = vcmp.eq.s32.totalorder %v7740, 1
    %vm8157 = vcmp.eq.s32.totalorder %v7743, 1
    %vm8158 = vcmp.eq.s32.totalorder %v7746, 1
    %vm8159 = vcmp.eq.s32.totalorder %v7749, 1
    %vm8160 = vcmp.eq.s32.totalorder %v7752, 1
    %vm8161 = vcmp.eq.s32.totalorder %v7755, 1
    %vm8162 = vcmp.eq.s32.totalorder %v7758, 1
    %vm8163 = vcmp.eq.s32.totalorder %v7761, 1
    %vm8164 = vcmp.eq.s32.totalorder %v7764, 1
    %vm8165 = vcmp.eq.s32.totalorder %v7767, 1
    %vm8166 = vcmp.eq.s32.totalorder %v7770, 1
    %vm8167 = vcmp.eq.s32.totalorder %v7773, 1
    %vm8168 = vcmp.eq.s32.totalorder %v7776, 1
    %vm8169 = vcmp.eq.s32.totalorder %v7779, 1
    %vm8170 = vcmp.eq.s32.totalorder %v7782, 1
    %vm8171 = vcmp.eq.s32.totalorder %v7785, 1
    %vm8172 = vcmp.eq.s32.totalorder %v7788, 1
    %vm8173 = vcmp.eq.s32.totalorder %v7791, 1
    %vm8174 = vcmp.eq.s32.totalorder %v7794, 1
    %vm8175 = vcmp.eq.s32.totalorder %v7797, 1
    %vm8176 = vcmp.eq.s32.totalorder %v7800, 1
    %vm8177 = vcmp.eq.s32.totalorder %v7803, 1
    %vm8178 = vcmp.eq.s32.totalorder %v7806, 1
    %vm8179 = vcmp.eq.s32.totalorder %v7809, 1
    %vm8180 = vcmp.eq.s32.totalorder %v7812, 1
    %vm8181 = vcmp.eq.s32.totalorder %v7815, 1
    %vm8182 = vcmp.eq.s32.totalorder %v7818, 1
    %vm8183 = vcmp.eq.s32.totalorder %v7821, 1
    %vm8184 = vcmp.eq.s32.totalorder %v7824, 1
    %vm8185 = vcmp.eq.s32.totalorder %v7827, 1
    %vm8186 = vcmp.eq.s32.totalorder %v7830, 1
    %vm8187 = vcmp.eq.s32.totalorder %v7833, 1
    %vm8188 = vcmp.eq.s32.totalorder %v7836, 1
    %vm8189 = vcmp.eq.s32.totalorder %v7839, 1
    %vm8190 = vcmp.eq.s32.totalorder %v7842, 1
    %vm8191 = vcmp.eq.s32.totalorder %v7845, 1
    %vm8192 = vcmp.eq.s32.totalorder %v7848, 1
    %vm8193 = vcmp.eq.s32.totalorder %v7851, 1
    %vm8194 = vcmp.eq.s32.totalorder %v7854, 1
    %vm8195 = vcmp.eq.s32.totalorder %v7857, 1
    %vm8196 = vcmp.eq.s32.totalorder %v7860, 1
    %vm8197 = vcmp.eq.s32.totalorder %v7863, 1
    %vm8198 = vcmp.eq.s32.totalorder %v7866, 1
    %vm8199 = vcmp.eq.s32.totalorder %v7869, 1
    %vm8200 = vcmp.eq.s32.totalorder %v7872, 1
    %vm8201 = vcmp.eq.s32.totalorder %v7875, 1
    %vm8202 = vcmp.eq.s32.totalorder %v7878, 1
    %vm8203 = vcmp.eq.s32.totalorder %v7881, 1
    %vm8204 = vcmp.eq.s32.totalorder %v7884, 1
    %vm8205 = vcmp.eq.s32.totalorder %v7887, 1
    %vm8206 = vcmp.eq.s32.totalorder %v7890, 1
    %vm8207 = vcmp.eq.s32.totalorder %v7893, 1
    %vm8208 = vcmp.eq.s32.totalorder %v7896, 1
    %vm8209 = vcmp.eq.s32.totalorder %v7899, 1
    %vm8210 = vcmp.eq.s32.totalorder %v7902, 1
    %vm8211 = vcmp.eq.s32.totalorder %v7905, 1
    %vm8212 = vcmp.eq.s32.totalorder %v7908, 1
    %vm8213 = vcmp.eq.s32.totalorder %v7911, 1
    %vm8214 = vcmp.eq.s32.totalorder %v7914, 1
    %vm8215 = vcmp.eq.s32.totalorder %v7917, 1
    %vm8216 = vcmp.eq.s32.totalorder %v7920, 1
    %vm8217 = vcmp.eq.s32.totalorder %v7923, 1
    %vm8218 = vcmp.eq.s32.totalorder %v7926, 1
    %vm8219 = vcmp.eq.s32.totalorder %v7929, 1
    %vm8220 = vcmp.eq.s32.totalorder %v7932, 1
    %vm8221 = vcmp.eq.s32.totalorder %v7935, 1
    %vm8222 = vcmp.eq.s32.totalorder %v7938, 1
    %vm8223 = vcmp.eq.s32.totalorder %v7941, 1
    %vm8224 = vcmp.eq.s32.totalorder %v7944, 1
    %vm8225 = vcmp.eq.s32.totalorder %v7947, 1
    %vm8226 = vcmp.eq.s32.totalorder %v7950, 1
    %vm8227 = vcmp.eq.s32.totalorder %v7953, 1
    %vm8228 = vcmp.eq.s32.totalorder %v7956, 1
    %vm8229 = vcmp.eq.s32.totalorder %v7959, 1
    %vm8230 = vcmp.eq.s32.totalorder %v7962, 1
    %vm8231 = vcmp.eq.s32.totalorder %v7965, 1
    %vm8232 = vcmp.eq.s32.totalorder %v7968, 1
    %vm8233 = vcmp.eq.s32.totalorder %v7971, 1
    %vm8234 = vcmp.eq.s32.totalorder %v7974, 1
    %vm8235 = vcmp.eq.s32.totalorder %v7977, 1
    %vm8236 = vcmp.eq.s32.totalorder %v7980, 1
    %v8237 = vsel %vm7981, %v6445, %v5925
    %v8238 = vsel %vm7982, %v6446, %v5926
    %v8239 = vsel %vm7983, %v6447, %v5927
    %v8240 = vsel %vm7984, %v6448, %v5928
    %v8241 = vsel %vm7985, %v6449, %v5929
    %v8242 = vsel %vm7986, %v6450, %v5930
    %v8243 = vsel %vm7987, %v6451, %v5931
    %v8244 = vsel %vm7988, %v6452, %v5932
    %v8245 = vsel %vm7989, %v6453, %v5933
    %v8246 = vsel %vm7990, %v6454, %v5934
    %v8247 = vsel %vm7991, %v6455, %v5935
    %v8248 = vsel %vm7992, %v6456, %v5936
    %v8249 = vsel %vm7993, %v6457, %v5937
    %v8250 = vsel %vm7994, %v6458, %v5938
    %v8251 = vsel %vm7995, %v6459, %v5939
    %v8252 = vsel %vm7996, %v6460, %v5940
    %v8253 = vsel %vm7997, %v6461, %v5941
    %v8254 = vsel %vm7998, %v6462, %v5942
    %v8255 = vsel %vm7999, %v6463, %v5943
    %v8256 = vsel %vm8000, %v6464, %v5944
    %v8257 = vsel %vm8001, %v6465, %v5945
    %v8258 = vsel %vm8002, %v6466, %v5946
    %v8259 = vsel %vm8003, %v6467, %v5947
    %v8260 = vsel %vm8004, %v6468, %v5948
    %v8261 = vsel %vm8005, %v6469, %v5949
    %v8262 = vsel %vm8006, %v6470, %v5950
    %v8263 = vsel %vm8007, %v6471, %v5951
    %v8264 = vsel %vm8008, %v6472, %v5952
    %v8265 = vsel %vm8009, %v6473, %v5953
    %v8266 = vsel %vm8010, %v6474, %v5954
    %v8267 = vsel %vm8011, %v6475, %v5955
    %v8268 = vsel %vm8012, %v6476, %v5956
    %v8269 = vsel %vm8013, %v6477, %v5957
    %v8270 = vsel %vm8014, %v6478, %v5958
    %v8271 = vsel %vm8015, %v6479, %v5959
    %v8272 = vsel %vm8016, %v6480, %v5960
    %v8273 = vsel %vm8017, %v6481, %v5961
    %v8274 = vsel %vm8018, %v6482, %v5962
    %v8275 = vsel %vm8019, %v6483, %v5963
    %v8276 = vsel %vm8020, %v6484, %v5964
    %v8277 = vsel %vm8021, %v6485, %v5965
    %v8278 = vsel %vm8022, %v6486, %v5966
    %v8279 = vsel %vm8023, %v6487, %v5967
    %v8280 = vsel %vm8024, %v6488, %v5968
    %v8281 = vsel %vm8025, %v6489, %v5969
    %v8282 = vsel %vm8026, %v6490, %v5970
    %v8283 = vsel %vm8027, %v6491, %v5971
    %v8284 = vsel %vm8028, %v6492, %v5972
    %v8285 = vsel %vm8029, %v6493, %v5973
    %v8286 = vsel %vm8030, %v6494, %v5974
    %v8287 = vsel %vm8031, %v6495, %v5975
    %v8288 = vsel %vm8032, %v6496, %v5976
    %v8289 = vsel %vm8033, %v6497, %v5977
    %v8290 = vsel %vm8034, %v6498, %v5978
    %v8291 = vsel %vm8035, %v6499, %v5979
    %v8292 = vsel %vm8036, %v6500, %v5980
    %v8293 = vsel %vm8037, %v6501, %v5981
    %v8294 = vsel %vm8038, %v6502, %v5982
    %v8295 = vsel %vm8039, %v6503, %v5983
    %v8296 = vsel %vm8040, %v6504, %v5984
    %v8297 = vsel %vm8041, %v6505, %v5985
    %v8298 = vsel %vm8042, %v6506, %v5986
    %v8299 = vsel %vm8043, %v6507, %v5987
    %v8300 = vsel %vm8044, %v6508, %v5988
    %v8301 = vsel %vm8045, %v6509, %v5989
    %v8302 = vsel %vm8046, %v6510, %v5990
    %v8303 = vsel %vm8047, %v6511, %v5991
    %v8304 = vsel %vm8048, %v6512, %v5992
    %v8305 = vsel %vm8049, %v6513, %v5993
    %v8306 = vsel %vm8050, %v6514, %v5994
    %v8307 = vsel %vm8051, %v6515, %v5995
    %v8308 = vsel %vm8052, %v6516, %v5996
    %v8309 = vsel %vm8053, %v6517, %v5997
    %v8310 = vsel %vm8054, %v6518, %v5998
    %v8311 = vsel %vm8055, %v6519, %v5999
    %v8312 = vsel %vm8056, %v6520, %v6000
    %v8313 = vsel %vm8057, %v6521, %v6001
    %v8314 = vsel %vm8058, %v6522, %v6002
    %v8315 = vsel %vm8059, %v6523, %v6003
    %v8316 = vsel %vm8060, %v6524, %v6004
    %v8317 = vsel %vm8061, %v6525, %v6005
    %v8318 = vsel %vm8062, %v6526, %v6006
    %v8319 = vsel %vm8063, %v6527, %v6007
    %v8320 = vsel %vm8064, %v6528, %v6008
    %v8321 = vsel %vm8065, %v6529, %v6009
    %v8322 = vsel %vm8066, %v6530, %v6010
    %v8323 = vsel %vm8067, %v6531, %v6011
    %v8324 = vsel %vm8068, %v6532, %v6012
    %v8325 = vsel %vm8069, %v6533, %v6013
    %v8326 = vsel %vm8070, %v6534, %v6014
    %v8327 = vsel %vm8071, %v6535, %v6015
    %v8328 = vsel %vm8072, %v6536, %v6016
    %v8329 = vsel %vm8073, %v6537, %v6017
    %v8330 = vsel %vm8074, %v6538, %v6018
    %v8331 = vsel %vm8075, %v6539, %v6019
    %v8332 = vsel %vm8076, %v6540, %v6020
    %v8333 = vsel %vm8077, %v6541, %v6021
    %v8334 = vsel %vm8078, %v6542, %v6022
    %v8335 = vsel %vm8079, %v6543, %v6023
    %v8336 = vsel %vm8080, %v6544, %v6024
    %v8337 = vsel %vm8081, %v6545, %v6025
    %v8338 = vsel %vm8082, %v6546, %v6026
    %v8339 = vsel %vm8083, %v6547, %v6027
    %v8340 = vsel %vm8084, %v6548, %v6028
    %v8341 = vsel %vm8085, %v6549, %v6029
    %v8342 = vsel %vm8086, %v6550, %v6030
    %v8343 = vsel %vm8087, %v6551, %v6031
    %v8344 = vsel %vm8088, %v6552, %v6032
    %v8345 = vsel %vm8089, %v6553, %v6033
    %v8346 = vsel %vm8090, %v6554, %v6034
    %v8347 = vsel %vm8091, %v6555, %v6035
    %v8348 = vsel %vm8092, %v6556, %v6036
    %v8349 = vsel %vm8093, %v6557, %v6037
    %v8350 = vsel %vm8094, %v6558, %v6038
    %v8351 = vsel %vm8095, %v6559, %v6039
    %v8352 = vsel %vm8096, %v6560, %v6040
    %v8353 = vsel %vm8097, %v6561, %v6041
    %v8354 = vsel %vm8098, %v6562, %v6042
    %v8355 = vsel %vm8099, %v6563, %v6043
    %v8356 = vsel %vm8100, %v6564, %v6044
    %v8357 = vsel %vm8101, %v6565, %v6045
    %v8358 = vsel %vm8102, %v6566, %v6046
    %v8359 = vsel %vm8103, %v6567, %v6047
    %v8360 = vsel %vm8104, %v6568, %v6048
    %v8361 = vsel %vm8105, %v6569, %v6049
    %v8362 = vsel %vm8106, %v6570, %v6050
    %v8363 = vsel %vm8107, %v6571, %v6051
    %v8364 = vsel %vm8108, %v6572, %v6052
    %v8365 = vsel %vm8109, %v6573, %v6053
    %v8366 = vsel %vm8110, %v6574, %v6054
    %v8367 = vsel %vm8111, %v6575, %v6055
    %v8368 = vsel %vm8112, %v6576, %v6056
    %v8369 = vsel %vm8113, %v6577, %v6057
    %v8370 = vsel %vm8114, %v6578, %v6058
    %v8371 = vsel %vm8115, %v6579, %v6059
    %v8372 = vsel %vm8116, %v6580, %v6060
    %v8373 = vsel %vm8117, %v6581, %v6061
    %v8374 = vsel %vm8118, %v6582, %v6062
    %v8375 = vsel %vm8119, %v6583, %v6063
    %v8376 = vsel %vm8120, %v6584, %v6064
    %v8377 = vsel %vm8121, %v6585, %v6065
    %v8378 = vsel %vm8122, %v6586, %v6066
    %v8379 = vsel %vm8123, %v6587, %v6067
    %v8380 = vsel %vm8124, %v6588, %v6068
    %v8381 = vsel %vm8125, %v6589, %v6069
    %v8382 = vsel %vm8126, %v6590, %v6070
    %v8383 = vsel %vm8127, %v6591, %v6071
    %v8384 = vsel %vm8128, %v6592, %v6072
    %v8385 = vsel %vm8129, %v6593, %v6073
    %v8386 = vsel %vm8130, %v6594, %v6074
    %v8387 = vsel %vm8131, %v6595, %v6075
    %v8388 = vsel %vm8132, %v6596, %v6076
    %v8389 = vsel %vm8133, %v6597, %v6077
    %v8390 = vsel %vm8134, %v6598, %v6078
    %v8391 = vsel %vm8135, %v6599, %v6079
    %v8392 = vsel %vm8136, %v6600, %v6080
    %v8393 = vsel %vm8137, %v6601, %v6081
    %v8394 = vsel %vm8138, %v6602, %v6082
    %v8395 = vsel %vm8139, %v6603, %v6083
    %v8396 = vsel %vm8140, %v6604, %v6084
    %v8397 = vsel %vm8141, %v6605, %v6085
    %v8398 = vsel %vm8142, %v6606, %v6086
    %v8399 = vsel %vm8143, %v6607, %v6087
    %v8400 = vsel %vm8144, %v6608, %v6088
    %v8401 = vsel %vm8145, %v6609, %v6089
    %v8402 = vsel %vm8146, %v6610, %v6090
    %v8403 = vsel %vm8147, %v6611, %v6091
    %v8404 = vsel %vm8148, %v6612, %v6092
    %v8405 = vsel %vm8149, %v6613, %v6093
    %v8406 = vsel %vm8150, %v6614, %v6094
    %v8407 = vsel %vm8151, %v6615, %v6095
    %v8408 = vsel %vm8152, %v6616, %v6096
    %v8409 = vsel %vm8153, %v6617, %v6097
    %v8410 = vsel %vm8154, %v6618, %v6098
    %v8411 = vsel %vm8155, %v6619, %v6099
    %v8412 = vsel %vm8156, %v6620, %v6100
    %v8413 = vsel %vm8157, %v6621, %v6101
    %v8414 = vsel %vm8158, %v6622, %v6102
    %v8415 = vsel %vm8159, %v6623, %v6103
    %v8416 = vsel %vm8160, %v6624, %v6104
    %v8417 = vsel %vm8161, %v6625, %v6105
    %v8418 = vsel %vm8162, %v6626, %v6106
    %v8419 = vsel %vm8163, %v6627, %v6107
    %v8420 = vsel %vm8164, %v6628, %v6108
    %v8421 = vsel %vm8165, %v6629, %v6109
    %v8422 = vsel %vm8166, %v6630, %v6110
    %v8423 = vsel %vm8167, %v6631, %v6111
    %v8424 = vsel %vm8168, %v6632, %v6112
    %v8425 = vsel %vm8169, %v6633, %v6113
    %v8426 = vsel %vm8170, %v6634, %v6114
    %v8427 = vsel %vm8171, %v6635, %v6115
    %v8428 = vsel %vm8172, %v6636, %v6116
    %v8429 = vsel %vm8173, %v6637, %v6117
    %v8430 = vsel %vm8174, %v6638, %v6118
    %v8431 = vsel %vm8175, %v6639, %v6119
    %v8432 = vsel %vm8176, %v6640, %v6120
    %v8433 = vsel %vm8177, %v6641, %v6121
    %v8434 = vsel %vm8178, %v6642, %v6122
    %v8435 = vsel %vm8179, %v6643, %v6123
    %v8436 = vsel %vm8180, %v6644, %v6124
    %v8437 = vsel %vm8181, %v6645, %v6125
    %v8438 = vsel %vm8182, %v6646, %v6126
    %v8439 = vsel %vm8183, %v6647, %v6127
    %v8440 = vsel %vm8184, %v6648, %v6128
    %v8441 = vsel %vm8185, %v6649, %v6129
    %v8442 = vsel %vm8186, %v6650, %v6130
    %v8443 = vsel %vm8187, %v6651, %v6131
    %v8444 = vsel %vm8188, %v6652, %v6132
    %v8445 = vsel %vm8189, %v6653, %v6133
    %v8446 = vsel %vm8190, %v6654, %v6134
    %v8447 = vsel %vm8191, %v6655, %v6135
    %v8448 = vsel %vm8192, %v6656, %v6136
    %v8449 = vsel %vm8193, %v6657, %v6137
    %v8450 = vsel %vm8194, %v6658, %v6138
    %v8451 = vsel %vm8195, %v6659, %v6139
    %v8452 = vsel %vm8196, %v6660, %v6140
    %v8453 = vsel %vm8197, %v6661, %v6141
    %v8454 = vsel %vm8198, %v6662, %v6142
    %v8455 = vsel %vm8199, %v6663, %v6143
    %v8456 = vsel %vm8200, %v6664, %v6144
    %v8457 = vsel %vm8201, %v6665, %v6145
    %v8458 = vsel %vm8202, %v6666, %v6146
    %v8459 = vsel %vm8203, %v6667, %v6147
    %v8460 = vsel %vm8204, %v6668, %v6148
    %v8461 = vsel %vm8205, %v6669, %v6149
    %v8462 = vsel %vm8206, %v6670, %v6150
    %v8463 = vsel %vm8207, %v6671, %v6151
    %v8464 = vsel %vm8208, %v6672, %v6152
    %v8465 = vsel %vm8209, %v6673, %v6153
    %v8466 = vsel %vm8210, %v6674, %v6154
    %v8467 = vsel %vm8211, %v6675, %v6155
    %v8468 = vsel %vm8212, %v6676, %v6156
    %v8469 = vsel %vm8213, %v6677, %v6157
    %v8470 = vsel %vm8214, %v6678, %v6158
    %v8471 = vsel %vm8215, %v6679, %v6159
    %v8472 = vsel %vm8216, %v6680, %v6160
    %v8473 = vsel %vm8217, %v6681, %v6161
    %v8474 = vsel %vm8218, %v6682, %v6162
    %v8475 = vsel %vm8219, %v6683, %v6163
    %v8476 = vsel %vm8220, %v6684, %v6164
    %v8477 = vsel %vm8221, %v6685, %v6165
    %v8478 = vsel %vm8222, %v6686, %v6166
    %v8479 = vsel %vm8223, %v6687, %v6167
    %v8480 = vsel %vm8224, %v6688, %v6168
    %v8481 = vsel %vm8225, %v6689, %v6169
    %v8482 = vsel %vm8226, %v6690, %v6170
    %v8483 = vsel %vm8227, %v6691, %v6171
    %v8484 = vsel %vm8228, %v6692, %v6172
    %v8485 = vsel %vm8229, %v6693, %v6173
    %v8486 = vsel %vm8230, %v6694, %v6174
    %v8487 = vsel %vm8231, %v6695, %v6175
    %v8488 = vsel %vm8232, %v6696, %v6176
    %v8489 = vsel %vm8233, %v6697, %v6177
    %v8490 = vsel %vm8234, %v6698, %v6178
    %v8491 = vsel %vm8235, %v6699, %v6179
    %v8492 = vsel %vm8236, %v6700, %v6180
    %v8493 = vpack.c.bf16 %v8238, %v8237
    %v8494 = vpack.c.bf16 %v8240, %v8239
    %v8495 = vpack.c.bf16 %v8242, %v8241
    %v8496 = vpack.c.bf16 %v8244, %v8243
    %v8497 = vpack.c.bf16 %v8246, %v8245
    %v8498 = vpack.c.bf16 %v8248, %v8247
    %v8499 = vpack.c.bf16 %v8250, %v8249
    %v8500 = vpack.c.bf16 %v8252, %v8251
    %v8501 = vpack.c.bf16 %v8254, %v8253
    %v8502 = vpack.c.bf16 %v8256, %v8255
    %v8503 = vpack.c.bf16 %v8258, %v8257
    %v8504 = vpack.c.bf16 %v8260, %v8259
    %v8505 = vpack.c.bf16 %v8262, %v8261
    %v8506 = vpack.c.bf16 %v8264, %v8263
    %v8507 = vpack.c.bf16 %v8266, %v8265
    %v8508 = vpack.c.bf16 %v8268, %v8267
    %v8509 = vpack.c.bf16 %v8270, %v8269
    %v8510 = vpack.c.bf16 %v8272, %v8271
    %v8511 = vpack.c.bf16 %v8274, %v8273
    %v8512 = vpack.c.bf16 %v8276, %v8275
    %v8513 = vpack.c.bf16 %v8278, %v8277
    %v8514 = vpack.c.bf16 %v8280, %v8279
    %v8515 = vpack.c.bf16 %v8282, %v8281
    %v8516 = vpack.c.bf16 %v8284, %v8283
    %v8517 = vpack.c.bf16 %v8286, %v8285
    %v8518 = vpack.c.bf16 %v8288, %v8287
    %v8519 = vpack.c.bf16 %v8290, %v8289
    %v8520 = vpack.c.bf16 %v8292, %v8291
    %v8521 = vpack.c.bf16 %v8294, %v8293
    %v8522 = vpack.c.bf16 %v8296, %v8295
    %v8523 = vpack.c.bf16 %v8298, %v8297
    %v8524 = vpack.c.bf16 %v8300, %v8299
    %v8525 = vpack.c.bf16 %v8302, %v8301
    %v8526 = vpack.c.bf16 %v8304, %v8303
    %v8527 = vpack.c.bf16 %v8306, %v8305
    %v8528 = vpack.c.bf16 %v8308, %v8307
    %v8529 = vpack.c.bf16 %v8310, %v8309
    %v8530 = vpack.c.bf16 %v8312, %v8311
    %v8531 = vpack.c.bf16 %v8314, %v8313
    %v8532 = vpack.c.bf16 %v8316, %v8315
    %v8533 = vpack.c.bf16 %v8318, %v8317
    %v8534 = vpack.c.bf16 %v8320, %v8319
    %v8535 = vpack.c.bf16 %v8322, %v8321
    %v8536 = vpack.c.bf16 %v8324, %v8323
    %v8537 = vpack.c.bf16 %v8326, %v8325
    %v8538 = vpack.c.bf16 %v8328, %v8327
    %v8539 = vpack.c.bf16 %v8330, %v8329
    %v8540 = vpack.c.bf16 %v8332, %v8331
    %v8541 = vpack.c.bf16 %v8334, %v8333
    %v8542 = vpack.c.bf16 %v8336, %v8335
    %v8543 = vpack.c.bf16 %v8338, %v8337
    %v8544 = vpack.c.bf16 %v8340, %v8339
    %v8545 = vpack.c.bf16 %v8342, %v8341
    %v8546 = vpack.c.bf16 %v8344, %v8343
    %v8547 = vpack.c.bf16 %v8346, %v8345
    %v8548 = vpack.c.bf16 %v8348, %v8347
    %v8549 = vpack.c.bf16 %v8350, %v8349
    %v8550 = vpack.c.bf16 %v8352, %v8351
    %v8551 = vpack.c.bf16 %v8354, %v8353
    %v8552 = vpack.c.bf16 %v8356, %v8355
    %v8553 = vpack.c.bf16 %v8358, %v8357
    %v8554 = vpack.c.bf16 %v8360, %v8359
    %v8555 = vpack.c.bf16 %v8362, %v8361
    %v8556 = vpack.c.bf16 %v8364, %v8363
    %v8557 = vpack.c.bf16 %v8366, %v8365
    %v8558 = vpack.c.bf16 %v8368, %v8367
    %v8559 = vpack.c.bf16 %v8370, %v8369
    %v8560 = vpack.c.bf16 %v8372, %v8371
    %v8561 = vpack.c.bf16 %v8374, %v8373
    %v8562 = vpack.c.bf16 %v8376, %v8375
    %v8563 = vpack.c.bf16 %v8378, %v8377
    %v8564 = vpack.c.bf16 %v8380, %v8379
    %v8565 = vpack.c.bf16 %v8382, %v8381
    %v8566 = vpack.c.bf16 %v8384, %v8383
    %v8567 = vpack.c.bf16 %v8386, %v8385
    %v8568 = vpack.c.bf16 %v8388, %v8387
    %v8569 = vpack.c.bf16 %v8390, %v8389
    %v8570 = vpack.c.bf16 %v8392, %v8391
    %v8571 = vpack.c.bf16 %v8394, %v8393
    %v8572 = vpack.c.bf16 %v8396, %v8395
    %v8573 = vpack.c.bf16 %v8398, %v8397
    %v8574 = vpack.c.bf16 %v8400, %v8399
    %v8575 = vpack.c.bf16 %v8402, %v8401
    %v8576 = vpack.c.bf16 %v8404, %v8403
    %v8577 = vpack.c.bf16 %v8406, %v8405
    %v8578 = vpack.c.bf16 %v8408, %v8407
    %v8579 = vpack.c.bf16 %v8410, %v8409
    %v8580 = vpack.c.bf16 %v8412, %v8411
    %v8581 = vpack.c.bf16 %v8414, %v8413
    %v8582 = vpack.c.bf16 %v8416, %v8415
    %v8583 = vpack.c.bf16 %v8418, %v8417
    %v8584 = vpack.c.bf16 %v8420, %v8419
    %v8585 = vpack.c.bf16 %v8422, %v8421
    %v8586 = vpack.c.bf16 %v8424, %v8423
    %v8587 = vpack.c.bf16 %v8426, %v8425
    %v8588 = vpack.c.bf16 %v8428, %v8427
    %v8589 = vpack.c.bf16 %v8430, %v8429
    %v8590 = vpack.c.bf16 %v8432, %v8431
    %v8591 = vpack.c.bf16 %v8434, %v8433
    %v8592 = vpack.c.bf16 %v8436, %v8435
    %v8593 = vpack.c.bf16 %v8438, %v8437
    %v8594 = vpack.c.bf16 %v8440, %v8439
    %v8595 = vpack.c.bf16 %v8442, %v8441
    %v8596 = vpack.c.bf16 %v8444, %v8443
    %v8597 = vpack.c.bf16 %v8446, %v8445
    %v8598 = vpack.c.bf16 %v8448, %v8447
    %v8599 = vpack.c.bf16 %v8450, %v8449
    %v8600 = vpack.c.bf16 %v8452, %v8451
    %v8601 = vpack.c.bf16 %v8454, %v8453
    %v8602 = vpack.c.bf16 %v8456, %v8455
    %v8603 = vpack.c.bf16 %v8458, %v8457
    %v8604 = vpack.c.bf16 %v8460, %v8459
    %v8605 = vpack.c.bf16 %v8462, %v8461
    %v8606 = vpack.c.bf16 %v8464, %v8463
    %v8607 = vpack.c.bf16 %v8466, %v8465
    %v8608 = vpack.c.bf16 %v8468, %v8467
    %v8609 = vpack.c.bf16 %v8470, %v8469
    %v8610 = vpack.c.bf16 %v8472, %v8471
    %v8611 = vpack.c.bf16 %v8474, %v8473
    %v8612 = vpack.c.bf16 %v8476, %v8475
    %v8613 = vpack.c.bf16 %v8478, %v8477
    %v8614 = vpack.c.bf16 %v8480, %v8479
    %v8615 = vpack.c.bf16 %v8482, %v8481
    %v8616 = vpack.c.bf16 %v8484, %v8483
    %v8617 = vpack.c.bf16 %v8486, %v8485
    %v8618 = vpack.c.bf16 %v8488, %v8487
    %v8619 = vpack.c.bf16 %v8490, %v8489
    %v8620 = vpack.c.bf16 %v8492, %v8491
    %v8749 = vunpack.c.l.b16 %v8493
    %v8750 = vunpack.c.h.b16 %v8493
    %v8751 = vunpack.c.l.b16 %v8494
    %v8752 = vunpack.c.h.b16 %v8494
    %v8753 = vunpack.c.l.b16 %v8495
    %v8754 = vunpack.c.h.b16 %v8495
    %v8755 = vunpack.c.l.b16 %v8496
    %v8756 = vunpack.c.h.b16 %v8496
    %v8757 = vunpack.c.l.b16 %v8497
    %v8758 = vunpack.c.h.b16 %v8497
    %v8759 = vunpack.c.l.b16 %v8498
    %v8760 = vunpack.c.h.b16 %v8498
    %v8761 = vunpack.c.l.b16 %v8499
    %v8762 = vunpack.c.h.b16 %v8499
    %v8763 = vunpack.c.l.b16 %v8500
    %v8764 = vunpack.c.h.b16 %v8500
    %v8765 = vunpack.c.l.b16 %v8501
    %v8766 = vunpack.c.h.b16 %v8501
    %v8767 = vunpack.c.l.b16 %v8502
    %v8768 = vunpack.c.h.b16 %v8502
    %v8769 = vunpack.c.l.b16 %v8503
    %v8770 = vunpack.c.h.b16 %v8503
    %v8771 = vunpack.c.l.b16 %v8504
    %v8772 = vunpack.c.h.b16 %v8504
    %v8773 = vunpack.c.l.b16 %v8505
    %v8774 = vunpack.c.h.b16 %v8505
    %v8775 = vunpack.c.l.b16 %v8506
    %v8776 = vunpack.c.h.b16 %v8506
    %v8777 = vunpack.c.l.b16 %v8507
    %v8778 = vunpack.c.h.b16 %v8507
    %v8779 = vunpack.c.l.b16 %v8508
    %v8780 = vunpack.c.h.b16 %v8508
    %v8781 = vunpack.c.l.b16 %v8509
    %v8782 = vunpack.c.h.b16 %v8509
    %v8783 = vunpack.c.l.b16 %v8510
    %v8784 = vunpack.c.h.b16 %v8510
    %v8785 = vunpack.c.l.b16 %v8511
    %v8786 = vunpack.c.h.b16 %v8511
    %v8787 = vunpack.c.l.b16 %v8512
    %v8788 = vunpack.c.h.b16 %v8512
    %v8789 = vunpack.c.l.b16 %v8513
    %v8790 = vunpack.c.h.b16 %v8513
    %v8791 = vunpack.c.l.b16 %v8514
    %v8792 = vunpack.c.h.b16 %v8514
    %v8793 = vunpack.c.l.b16 %v8515
    %v8794 = vunpack.c.h.b16 %v8515
    %v8795 = vunpack.c.l.b16 %v8516
    %v8796 = vunpack.c.h.b16 %v8516
    %v8797 = vunpack.c.l.b16 %v8517
    %v8798 = vunpack.c.h.b16 %v8517
    %v8799 = vunpack.c.l.b16 %v8518
    %v8800 = vunpack.c.h.b16 %v8518
    %v8801 = vunpack.c.l.b16 %v8519
    %v8802 = vunpack.c.h.b16 %v8519
    %v8803 = vunpack.c.l.b16 %v8520
    %v8804 = vunpack.c.h.b16 %v8520
    %v8805 = vunpack.c.l.b16 %v8521
    %v8806 = vunpack.c.h.b16 %v8521
    %v8807 = vunpack.c.l.b16 %v8522
    %v8808 = vunpack.c.h.b16 %v8522
    %v8809 = vunpack.c.l.b16 %v8523
    %v8810 = vunpack.c.h.b16 %v8523
    %v8811 = vunpack.c.l.b16 %v8524
    %v8812 = vunpack.c.h.b16 %v8524
    %v8813 = vunpack.c.l.b16 %v8525
    %v8814 = vunpack.c.h.b16 %v8525
    %v8815 = vunpack.c.l.b16 %v8526
    %v8816 = vunpack.c.h.b16 %v8526
    %v8817 = vunpack.c.l.b16 %v8527
    %v8818 = vunpack.c.h.b16 %v8527
    %v8819 = vunpack.c.l.b16 %v8528
    %v8820 = vunpack.c.h.b16 %v8528
    %v8821 = vunpack.c.l.b16 %v8529
    %v8822 = vunpack.c.h.b16 %v8529
    %v8823 = vunpack.c.l.b16 %v8530
    %v8824 = vunpack.c.h.b16 %v8530
    %v8825 = vunpack.c.l.b16 %v8531
    %v8826 = vunpack.c.h.b16 %v8531
    %v8827 = vunpack.c.l.b16 %v8532
    %v8828 = vunpack.c.h.b16 %v8532
    %v8829 = vunpack.c.l.b16 %v8533
    %v8830 = vunpack.c.h.b16 %v8533
    %v8831 = vunpack.c.l.b16 %v8534
    %v8832 = vunpack.c.h.b16 %v8534
    %v8833 = vunpack.c.l.b16 %v8535
    %v8834 = vunpack.c.h.b16 %v8535
    %v8835 = vunpack.c.l.b16 %v8536
    %v8836 = vunpack.c.h.b16 %v8536
    %v8837 = vunpack.c.l.b16 %v8537
    %v8838 = vunpack.c.h.b16 %v8537
    %v8839 = vunpack.c.l.b16 %v8538
    %v8840 = vunpack.c.h.b16 %v8538
    %v8841 = vunpack.c.l.b16 %v8539
    %v8842 = vunpack.c.h.b16 %v8539
    %v8843 = vunpack.c.l.b16 %v8540
    %v8844 = vunpack.c.h.b16 %v8540
    %v8845 = vunpack.c.l.b16 %v8541
    %v8846 = vunpack.c.h.b16 %v8541
    %v8847 = vunpack.c.l.b16 %v8542
    %v8848 = vunpack.c.h.b16 %v8542
    %v8849 = vunpack.c.l.b16 %v8543
    %v8850 = vunpack.c.h.b16 %v8543
    %v8851 = vunpack.c.l.b16 %v8544
    %v8852 = vunpack.c.h.b16 %v8544
    %v8853 = vunpack.c.l.b16 %v8545
    %v8854 = vunpack.c.h.b16 %v8545
    %v8855 = vunpack.c.l.b16 %v8546
    %v8856 = vunpack.c.h.b16 %v8546
    %v8857 = vunpack.c.l.b16 %v8547
    %v8858 = vunpack.c.h.b16 %v8547
    %v8859 = vunpack.c.l.b16 %v8548
    %v8860 = vunpack.c.h.b16 %v8548
    %v8861 = vunpack.c.l.b16 %v8549
    %v8862 = vunpack.c.h.b16 %v8549
    %v8863 = vunpack.c.l.b16 %v8550
    %v8864 = vunpack.c.h.b16 %v8550
    %v8865 = vunpack.c.l.b16 %v8551
    %v8866 = vunpack.c.h.b16 %v8551
    %v8867 = vunpack.c.l.b16 %v8552
    %v8868 = vunpack.c.h.b16 %v8552
    %v8869 = vunpack.c.l.b16 %v8553
    %v8870 = vunpack.c.h.b16 %v8553
    %v8871 = vunpack.c.l.b16 %v8554
    %v8872 = vunpack.c.h.b16 %v8554
    %v8873 = vunpack.c.l.b16 %v8555
    %v8874 = vunpack.c.h.b16 %v8555
    %v8875 = vunpack.c.l.b16 %v8556
    %v8876 = vunpack.c.h.b16 %v8556
    %v8877 = vunpack.c.l.b16 %v8557
    %v8878 = vunpack.c.h.b16 %v8557
    %v8879 = vunpack.c.l.b16 %v8558
    %v8880 = vunpack.c.h.b16 %v8558
    %v8881 = vunpack.c.l.b16 %v8559
    %v8882 = vunpack.c.h.b16 %v8559
    %v8883 = vunpack.c.l.b16 %v8560
    %v8884 = vunpack.c.h.b16 %v8560
    %v8885 = vunpack.c.l.b16 %v8561
    %v8886 = vunpack.c.h.b16 %v8561
    %v8887 = vunpack.c.l.b16 %v8562
    %v8888 = vunpack.c.h.b16 %v8562
    %v8889 = vunpack.c.l.b16 %v8563
    %v8890 = vunpack.c.h.b16 %v8563
    %v8891 = vunpack.c.l.b16 %v8564
    %v8892 = vunpack.c.h.b16 %v8564
    %v8893 = vunpack.c.l.b16 %v8565
    %v8894 = vunpack.c.h.b16 %v8565
    %v8895 = vunpack.c.l.b16 %v8566
    %v8896 = vunpack.c.h.b16 %v8566
    %v8897 = vunpack.c.l.b16 %v8567
    %v8898 = vunpack.c.h.b16 %v8567
    %v8899 = vunpack.c.l.b16 %v8568
    %v8900 = vunpack.c.h.b16 %v8568
    %v8901 = vunpack.c.l.b16 %v8569
    %v8902 = vunpack.c.h.b16 %v8569
    %v8903 = vunpack.c.l.b16 %v8570
    %v8904 = vunpack.c.h.b16 %v8570
    %v8905 = vunpack.c.l.b16 %v8571
    %v8906 = vunpack.c.h.b16 %v8571
    %v8907 = vunpack.c.l.b16 %v8572
    %v8908 = vunpack.c.h.b16 %v8572
    %v8909 = vunpack.c.l.b16 %v8573
    %v8910 = vunpack.c.h.b16 %v8573
    %v8911 = vunpack.c.l.b16 %v8574
    %v8912 = vunpack.c.h.b16 %v8574
    %v8913 = vunpack.c.l.b16 %v8575
    %v8914 = vunpack.c.h.b16 %v8575
    %v8915 = vunpack.c.l.b16 %v8576
    %v8916 = vunpack.c.h.b16 %v8576
    %v8917 = vunpack.c.l.b16 %v8577
    %v8918 = vunpack.c.h.b16 %v8577
    %v8919 = vunpack.c.l.b16 %v8578
    %v8920 = vunpack.c.h.b16 %v8578
    %v8921 = vunpack.c.l.b16 %v8579
    %v8922 = vunpack.c.h.b16 %v8579
    %v8923 = vunpack.c.l.b16 %v8580
    %v8924 = vunpack.c.h.b16 %v8580
    %v8925 = vunpack.c.l.b16 %v8581
    %v8926 = vunpack.c.h.b16 %v8581
    %v8927 = vunpack.c.l.b16 %v8582
    %v8928 = vunpack.c.h.b16 %v8582
    %v8929 = vunpack.c.l.b16 %v8583
    %v8930 = vunpack.c.h.b16 %v8583
    %v8931 = vunpack.c.l.b16 %v8584
    %v8932 = vunpack.c.h.b16 %v8584
    %v8933 = vunpack.c.l.b16 %v8585
    %v8934 = vunpack.c.h.b16 %v8585
    %v8935 = vunpack.c.l.b16 %v8586
    %v8936 = vunpack.c.h.b16 %v8586
    %v8937 = vunpack.c.l.b16 %v8587
    %v8938 = vunpack.c.h.b16 %v8587
    %v8939 = vunpack.c.l.b16 %v8588
    %v8940 = vunpack.c.h.b16 %v8588
    %v8941 = vunpack.c.l.b16 %v8589
    %v8942 = vunpack.c.h.b16 %v8589
    %v8943 = vunpack.c.l.b16 %v8590
    %v8944 = vunpack.c.h.b16 %v8590
    %v8945 = vunpack.c.l.b16 %v8591
    %v8946 = vunpack.c.h.b16 %v8591
    %v8947 = vunpack.c.l.b16 %v8592
    %v8948 = vunpack.c.h.b16 %v8592
    %v8949 = vunpack.c.l.b16 %v8593
    %v8950 = vunpack.c.h.b16 %v8593
    %v8951 = vunpack.c.l.b16 %v8594
    %v8952 = vunpack.c.h.b16 %v8594
    %v8953 = vunpack.c.l.b16 %v8595
    %v8954 = vunpack.c.h.b16 %v8595
    %v8955 = vunpack.c.l.b16 %v8596
    %v8956 = vunpack.c.h.b16 %v8596
    %v8957 = vunpack.c.l.b16 %v8597
    %v8958 = vunpack.c.h.b16 %v8597
    %v8959 = vunpack.c.l.b16 %v8598
    %v8960 = vunpack.c.h.b16 %v8598
    %v8961 = vunpack.c.l.b16 %v8599
    %v8962 = vunpack.c.h.b16 %v8599
    %v8963 = vunpack.c.l.b16 %v8600
    %v8964 = vunpack.c.h.b16 %v8600
    %v8965 = vunpack.c.l.b16 %v8601
    %v8966 = vunpack.c.h.b16 %v8601
    %v8967 = vunpack.c.l.b16 %v8602
    %v8968 = vunpack.c.h.b16 %v8602
    %v8969 = vunpack.c.l.b16 %v8603
    %v8970 = vunpack.c.h.b16 %v8603
    %v8971 = vunpack.c.l.b16 %v8604
    %v8972 = vunpack.c.h.b16 %v8604
    %v8973 = vunpack.c.l.b16 %v8605
    %v8974 = vunpack.c.h.b16 %v8605
    %v8975 = vunpack.c.l.b16 %v8606
    %v8976 = vunpack.c.h.b16 %v8606
    %v8977 = vunpack.c.l.b16 %v8607
    %v8978 = vunpack.c.h.b16 %v8607
    %v8979 = vunpack.c.l.b16 %v8608
    %v8980 = vunpack.c.h.b16 %v8608
    %v8981 = vunpack.c.l.b16 %v8609
    %v8982 = vunpack.c.h.b16 %v8609
    %v8983 = vunpack.c.l.b16 %v8610
    %v8984 = vunpack.c.h.b16 %v8610
    %v8985 = vunpack.c.l.b16 %v8611
    %v8986 = vunpack.c.h.b16 %v8611
    %v8987 = vunpack.c.l.b16 %v8612
    %v8988 = vunpack.c.h.b16 %v8612
    %v8989 = vunpack.c.l.b16 %v8613
    %v8990 = vunpack.c.h.b16 %v8613
    %v8991 = vunpack.c.l.b16 %v8614
    %v8992 = vunpack.c.h.b16 %v8614
    %v8993 = vunpack.c.l.b16 %v8615
    %v8994 = vunpack.c.h.b16 %v8615
    %v8995 = vunpack.c.l.b16 %v8616
    %v8996 = vunpack.c.h.b16 %v8616
    %v8997 = vunpack.c.l.b16 %v8617
    %v8998 = vunpack.c.h.b16 %v8617
    %v8999 = vunpack.c.l.b16 %v8618
    %v9000 = vunpack.c.h.b16 %v8618
    %v9001 = vunpack.c.l.b16 %v8619
    %v9002 = vunpack.c.h.b16 %v8619
    %v9003 = vunpack.c.l.b16 %v8620
    %v9004 = vunpack.c.h.b16 %v8620
    %v9005 = vpack.c.b16 %v8749, %v8749
    %v9006 = vpack.c.b16 %v8750, %v8750
    %v9007 = vpack.c.b16 %v8751, %v8751
    %v9008 = vpack.c.b16 %v8752, %v8752
    %v9009 = vpack.c.b16 %v8753, %v8753
    %v9010 = vpack.c.b16 %v8754, %v8754
    %v9011 = vpack.c.b16 %v8755, %v8755
    %v9012 = vpack.c.b16 %v8756, %v8756
    %v9013 = vpack.c.b16 %v8757, %v8757
    %v9014 = vpack.c.b16 %v8758, %v8758
    %v9015 = vpack.c.b16 %v8759, %v8759
    %v9016 = vpack.c.b16 %v8760, %v8760
    %v9017 = vpack.c.b16 %v8761, %v8761
    %v9018 = vpack.c.b16 %v8762, %v8762
    %v9019 = vpack.c.b16 %v8763, %v8763
    %v9020 = vpack.c.b16 %v8764, %v8764
    %v9021 = vpack.c.b16 %v8765, %v8765
    %v9022 = vpack.c.b16 %v8766, %v8766
    %v9023 = vpack.c.b16 %v8767, %v8767
    %v9024 = vpack.c.b16 %v8768, %v8768
    %v9025 = vpack.c.b16 %v8769, %v8769
    %v9026 = vpack.c.b16 %v8770, %v8770
    %v9027 = vpack.c.b16 %v8771, %v8771
    %v9028 = vpack.c.b16 %v8772, %v8772
    %v9029 = vpack.c.b16 %v8773, %v8773
    %v9030 = vpack.c.b16 %v8774, %v8774
    %v9031 = vpack.c.b16 %v8775, %v8775
    %v9032 = vpack.c.b16 %v8776, %v8776
    %v9033 = vpack.c.b16 %v8777, %v8777
    %v9034 = vpack.c.b16 %v8778, %v8778
    %v9035 = vpack.c.b16 %v8779, %v8779
    %v9036 = vpack.c.b16 %v8780, %v8780
    %v9037 = vpack.c.b16 %v8781, %v8781
    %v9038 = vpack.c.b16 %v8782, %v8782
    %v9039 = vpack.c.b16 %v8783, %v8783
    %v9040 = vpack.c.b16 %v8784, %v8784
    %v9041 = vpack.c.b16 %v8785, %v8785
    %v9042 = vpack.c.b16 %v8786, %v8786
    %v9043 = vpack.c.b16 %v8787, %v8787
    %v9044 = vpack.c.b16 %v8788, %v8788
    %v9045 = vpack.c.b16 %v8789, %v8789
    %v9046 = vpack.c.b16 %v8790, %v8790
    %v9047 = vpack.c.b16 %v8791, %v8791
    %v9048 = vpack.c.b16 %v8792, %v8792
    %v9049 = vpack.c.b16 %v8793, %v8793
    %v9050 = vpack.c.b16 %v8794, %v8794
    %v9051 = vpack.c.b16 %v8795, %v8795
    %v9052 = vpack.c.b16 %v8796, %v8796
    %v9053 = vpack.c.b16 %v8797, %v8797
    %v9054 = vpack.c.b16 %v8798, %v8798
    %v9055 = vpack.c.b16 %v8799, %v8799
    %v9056 = vpack.c.b16 %v8800, %v8800
    %v9057 = vpack.c.b16 %v8801, %v8801
    %v9058 = vpack.c.b16 %v8802, %v8802
    %v9059 = vpack.c.b16 %v8803, %v8803
    %v9060 = vpack.c.b16 %v8804, %v8804
    %v9061 = vpack.c.b16 %v8805, %v8805
    %v9062 = vpack.c.b16 %v8806, %v8806
    %v9063 = vpack.c.b16 %v8807, %v8807
    %v9064 = vpack.c.b16 %v8808, %v8808
    %v9065 = vpack.c.b16 %v8809, %v8809
    %v9066 = vpack.c.b16 %v8810, %v8810
    %v9067 = vpack.c.b16 %v8811, %v8811
    %v9068 = vpack.c.b16 %v8812, %v8812
    %v9069 = vpack.c.b16 %v8813, %v8813
    %v9070 = vpack.c.b16 %v8814, %v8814
    %v9071 = vpack.c.b16 %v8815, %v8815
    %v9072 = vpack.c.b16 %v8816, %v8816
    %v9073 = vpack.c.b16 %v8817, %v8817
    %v9074 = vpack.c.b16 %v8818, %v8818
    %v9075 = vpack.c.b16 %v8819, %v8819
    %v9076 = vpack.c.b16 %v8820, %v8820
    %v9077 = vpack.c.b16 %v8821, %v8821
    %v9078 = vpack.c.b16 %v8822, %v8822
    %v9079 = vpack.c.b16 %v8823, %v8823
    %v9080 = vpack.c.b16 %v8824, %v8824
    %v9081 = vpack.c.b16 %v8825, %v8825
    %v9082 = vpack.c.b16 %v8826, %v8826
    %v9083 = vpack.c.b16 %v8827, %v8827
    %v9084 = vpack.c.b16 %v8828, %v8828
    %v9085 = vpack.c.b16 %v8829, %v8829
    %v9086 = vpack.c.b16 %v8830, %v8830
    %v9087 = vpack.c.b16 %v8831, %v8831
    %v9088 = vpack.c.b16 %v8832, %v8832
    %v9089 = vpack.c.b16 %v8833, %v8833
    %v9090 = vpack.c.b16 %v8834, %v8834
    %v9091 = vpack.c.b16 %v8835, %v8835
    %v9092 = vpack.c.b16 %v8836, %v8836
    %v9093 = vpack.c.b16 %v8837, %v8837
    %v9094 = vpack.c.b16 %v8838, %v8838
    %v9095 = vpack.c.b16 %v8839, %v8839
    %v9096 = vpack.c.b16 %v8840, %v8840
    %v9097 = vpack.c.b16 %v8841, %v8841
    %v9098 = vpack.c.b16 %v8842, %v8842
    %v9099 = vpack.c.b16 %v8843, %v8843
    %v9100 = vpack.c.b16 %v8844, %v8844
    %v9101 = vpack.c.b16 %v8845, %v8845
    %v9102 = vpack.c.b16 %v8846, %v8846
    %v9103 = vpack.c.b16 %v8847, %v8847
    %v9104 = vpack.c.b16 %v8848, %v8848
    %v9105 = vpack.c.b16 %v8849, %v8849
    %v9106 = vpack.c.b16 %v8850, %v8850
    %v9107 = vpack.c.b16 %v8851, %v8851
    %v9108 = vpack.c.b16 %v8852, %v8852
    %v9109 = vpack.c.b16 %v8853, %v8853
    %v9110 = vpack.c.b16 %v8854, %v8854
    %v9111 = vpack.c.b16 %v8855, %v8855
    %v9112 = vpack.c.b16 %v8856, %v8856
    %v9113 = vpack.c.b16 %v8857, %v8857
    %v9114 = vpack.c.b16 %v8858, %v8858
    %v9115 = vpack.c.b16 %v8859, %v8859
    %v9116 = vpack.c.b16 %v8860, %v8860
    %v9117 = vpack.c.b16 %v8861, %v8861
    %v9118 = vpack.c.b16 %v8862, %v8862
    %v9119 = vpack.c.b16 %v8863, %v8863
    %v9120 = vpack.c.b16 %v8864, %v8864
    %v9121 = vpack.c.b16 %v8865, %v8865
    %v9122 = vpack.c.b16 %v8866, %v8866
    %v9123 = vpack.c.b16 %v8867, %v8867
    %v9124 = vpack.c.b16 %v8868, %v8868
    %v9125 = vpack.c.b16 %v8869, %v8869
    %v9126 = vpack.c.b16 %v8870, %v8870
    %v9127 = vpack.c.b16 %v8871, %v8871
    %v9128 = vpack.c.b16 %v8872, %v8872
    %v9129 = vpack.c.b16 %v8873, %v8873
    %v9130 = vpack.c.b16 %v8874, %v8874
    %v9131 = vpack.c.b16 %v8875, %v8875
    %v9132 = vpack.c.b16 %v8876, %v8876
    %v9133 = vpack.c.b16 %v8877, %v8877
    %v9134 = vpack.c.b16 %v8878, %v8878
    %v9135 = vpack.c.b16 %v8879, %v8879
    %v9136 = vpack.c.b16 %v8880, %v8880
    %v9137 = vpack.c.b16 %v8881, %v8881
    %v9138 = vpack.c.b16 %v8882, %v8882
    %v9139 = vpack.c.b16 %v8883, %v8883
    %v9140 = vpack.c.b16 %v8884, %v8884
    %v9141 = vpack.c.b16 %v8885, %v8885
    %v9142 = vpack.c.b16 %v8886, %v8886
    %v9143 = vpack.c.b16 %v8887, %v8887
    %v9144 = vpack.c.b16 %v8888, %v8888
    %v9145 = vpack.c.b16 %v8889, %v8889
    %v9146 = vpack.c.b16 %v8890, %v8890
    %v9147 = vpack.c.b16 %v8891, %v8891
    %v9148 = vpack.c.b16 %v8892, %v8892
    %v9149 = vpack.c.b16 %v8893, %v8893
    %v9150 = vpack.c.b16 %v8894, %v8894
    %v9151 = vpack.c.b16 %v8895, %v8895
    %v9152 = vpack.c.b16 %v8896, %v8896
    %v9153 = vpack.c.b16 %v8897, %v8897
    %v9154 = vpack.c.b16 %v8898, %v8898
    %v9155 = vpack.c.b16 %v8899, %v8899
    %v9156 = vpack.c.b16 %v8900, %v8900
    %v9157 = vpack.c.b16 %v8901, %v8901
    %v9158 = vpack.c.b16 %v8902, %v8902
    %v9159 = vpack.c.b16 %v8903, %v8903
    %v9160 = vpack.c.b16 %v8904, %v8904
    %v9161 = vpack.c.b16 %v8905, %v8905
    %v9162 = vpack.c.b16 %v8906, %v8906
    %v9163 = vpack.c.b16 %v8907, %v8907
    %v9164 = vpack.c.b16 %v8908, %v8908
    %v9165 = vpack.c.b16 %v8909, %v8909
    %v9166 = vpack.c.b16 %v8910, %v8910
    %v9167 = vpack.c.b16 %v8911, %v8911
    %v9168 = vpack.c.b16 %v8912, %v8912
    %v9169 = vpack.c.b16 %v8913, %v8913
    %v9170 = vpack.c.b16 %v8914, %v8914
    %v9171 = vpack.c.b16 %v8915, %v8915
    %v9172 = vpack.c.b16 %v8916, %v8916
    %v9173 = vpack.c.b16 %v8917, %v8917
    %v9174 = vpack.c.b16 %v8918, %v8918
    %v9175 = vpack.c.b16 %v8919, %v8919
    %v9176 = vpack.c.b16 %v8920, %v8920
    %v9177 = vpack.c.b16 %v8921, %v8921
    %v9178 = vpack.c.b16 %v8922, %v8922
    %v9179 = vpack.c.b16 %v8923, %v8923
    %v9180 = vpack.c.b16 %v8924, %v8924
    %v9181 = vpack.c.b16 %v8925, %v8925
    %v9182 = vpack.c.b16 %v8926, %v8926
    %v9183 = vpack.c.b16 %v8927, %v8927
    %v9184 = vpack.c.b16 %v8928, %v8928
    %v9185 = vpack.c.b16 %v8929, %v8929
    %v9186 = vpack.c.b16 %v8930, %v8930
    %v9187 = vpack.c.b16 %v8931, %v8931
    %v9188 = vpack.c.b16 %v8932, %v8932
    %v9189 = vpack.c.b16 %v8933, %v8933
    %v9190 = vpack.c.b16 %v8934, %v8934
    %v9191 = vpack.c.b16 %v8935, %v8935
    %v9192 = vpack.c.b16 %v8936, %v8936
    %v9193 = vpack.c.b16 %v8937, %v8937
    %v9194 = vpack.c.b16 %v8938, %v8938
    %v9195 = vpack.c.b16 %v8939, %v8939
    %v9196 = vpack.c.b16 %v8940, %v8940
    %v9197 = vpack.c.b16 %v8941, %v8941
    %v9198 = vpack.c.b16 %v8942, %v8942
    %v9199 = vpack.c.b16 %v8943, %v8943
    %v9200 = vpack.c.b16 %v8944, %v8944
    %v9201 = vpack.c.b16 %v8945, %v8945
    %v9202 = vpack.c.b16 %v8946, %v8946
    %v9203 = vpack.c.b16 %v8947, %v8947
    %v9204 = vpack.c.b16 %v8948, %v8948
    %v9205 = vpack.c.b16 %v8949, %v8949
    %v9206 = vpack.c.b16 %v8950, %v8950
    %v9207 = vpack.c.b16 %v8951, %v8951
    %v9208 = vpack.c.b16 %v8952, %v8952
    %v9209 = vpack.c.b16 %v8953, %v8953
    %v9210 = vpack.c.b16 %v8954, %v8954
    %v9211 = vpack.c.b16 %v8955, %v8955
    %v9212 = vpack.c.b16 %v8956, %v8956
    %v9213 = vpack.c.b16 %v8957, %v8957
    %v9214 = vpack.c.b16 %v8958, %v8958
    %v9215 = vpack.c.b16 %v8959, %v8959
    %v9216 = vpack.c.b16 %v8960, %v8960
    %v9217 = vpack.c.b16 %v8961, %v8961
    %v9218 = vpack.c.b16 %v8962, %v8962
    %v9219 = vpack.c.b16 %v8963, %v8963
    %v9220 = vpack.c.b16 %v8964, %v8964
    %v9221 = vpack.c.b16 %v8965, %v8965
    %v9222 = vpack.c.b16 %v8966, %v8966
    %v9223 = vpack.c.b16 %v8967, %v8967
    %v9224 = vpack.c.b16 %v8968, %v8968
    %v9225 = vpack.c.b16 %v8969, %v8969
    %v9226 = vpack.c.b16 %v8970, %v8970
    %v9227 = vpack.c.b16 %v8971, %v8971
    %v9228 = vpack.c.b16 %v8972, %v8972
    %v9229 = vpack.c.b16 %v8973, %v8973
    %v9230 = vpack.c.b16 %v8974, %v8974
    %v9231 = vpack.c.b16 %v8975, %v8975
    %v9232 = vpack.c.b16 %v8976, %v8976
    %v9233 = vpack.c.b16 %v8977, %v8977
    %v9234 = vpack.c.b16 %v8978, %v8978
    %v9235 = vpack.c.b16 %v8979, %v8979
    %v9236 = vpack.c.b16 %v8980, %v8980
    %v9237 = vpack.c.b16 %v8981, %v8981
    %v9238 = vpack.c.b16 %v8982, %v8982
    %v9239 = vpack.c.b16 %v8983, %v8983
    %v9240 = vpack.c.b16 %v8984, %v8984
    %v9241 = vpack.c.b16 %v8985, %v8985
    %v9242 = vpack.c.b16 %v8986, %v8986
    %v9243 = vpack.c.b16 %v8987, %v8987
    %v9244 = vpack.c.b16 %v8988, %v8988
    %v9245 = vpack.c.b16 %v8989, %v8989
    %v9246 = vpack.c.b16 %v8990, %v8990
    %v9247 = vpack.c.b16 %v8991, %v8991
    %v9248 = vpack.c.b16 %v8992, %v8992
    %v9249 = vpack.c.b16 %v8993, %v8993
    %v9250 = vpack.c.b16 %v8994, %v8994
    %v9251 = vpack.c.b16 %v8995, %v8995
    %v9252 = vpack.c.b16 %v8996, %v8996
    %v9253 = vpack.c.b16 %v8997, %v8997
    %v9254 = vpack.c.b16 %v8998, %v8998
    %v9255 = vpack.c.b16 %v8999, %v8999
    %v9256 = vpack.c.b16 %v9000, %v9000
    %v9257 = vpack.c.b16 %v9001, %v9001
    %v9258 = vpack.c.b16 %v9002, %v9002
    %v9259 = vpack.c.b16 %v9003, %v9003
    %v9260 = vpack.c.b16 %v9004, %v9004
    %9517 = vst [vmem:[#allocation2] sm:$0xf] %v9005
    %9518 = vst [vmem:[#allocation2 + $0x4] sm:$0xf] %v9006
    %9519 = vst [vmem:[#allocation2 + $0x8] sm:$0xf] %v9007
    %9520 = vst [vmem:[#allocation2 + $0xc] sm:$0xf] %v9008
    %9521 = vst [vmem:[#allocation2 + $0x10] sm:$0xf] %v9009
    %9522 = vst [vmem:[#allocation2 + $0x14] sm:$0xf] %v9010
    %9523 = vst [vmem:[#allocation2 + $0x18] sm:$0xf] %v9011
    %9524 = vst [vmem:[#allocation2 + $0x1c] sm:$0xf] %v9012
    %9525 = vst [vmem:[#allocation2 + $0x20] sm:$0xf] %v9013
    %9526 = vst [vmem:[#allocation2 + $0x24] sm:$0xf] %v9014
    %9527 = vst [vmem:[#allocation2 + $0x28] sm:$0xf] %v9015
    %9528 = vst [vmem:[#allocation2 + $0x2c] sm:$0xf] %v9016
    %9529 = vst [vmem:[#allocation2 + $0x30] sm:$0xf] %v9017
    %9530 = vst [vmem:[#allocation2 + $0x34] sm:$0xf] %v9018
    %9531 = vst [vmem:[#allocation2 + $0x38] sm:$0xf] %v9019
    %9532 = vst [vmem:[#allocation2 + $0x3c] sm:$0xf] %v9020
    %9533 = vst [vmem:[#allocation2 + $0x40] sm:$0xf] %v9021
    %9534 = vst [vmem:[#allocation2 + $0x44] sm:$0xf] %v9022
    %9535 = vst [vmem:[#allocation2 + $0x48] sm:$0xf] %v9023
    %9536 = vst [vmem:[#allocation2 + $0x4c] sm:$0xf] %v9024
    %9537 = vst [vmem:[#allocation2 + $0x50] sm:$0xf] %v9025
    %9538 = vst [vmem:[#allocation2 + $0x54] sm:$0xf] %v9026
    %9539 = vst [vmem:[#allocation2 + $0x58] sm:$0xf] %v9027
    %9540 = vst [vmem:[#allocation2 + $0x5c] sm:$0xf] %v9028
    %9541 = vst [vmem:[#allocation2 + $0x60] sm:$0xf] %v9029
    %9542 = vst [vmem:[#allocation2 + $0x64] sm:$0xf] %v9030
    %9543 = vst [vmem:[#allocation2 + $0x68] sm:$0xf] %v9031
    %9544 = vst [vmem:[#allocation2 + $0x6c] sm:$0xf] %v9032
    %9545 = vst [vmem:[#allocation2 + $0x70] sm:$0xf] %v9033
    %9546 = vst [vmem:[#allocation2 + $0x74] sm:$0xf] %v9034
    %9547 = vst [vmem:[#allocation2 + $0x78] sm:$0xf] %v9035
    %9548 = vst [vmem:[#allocation2 + $0x7c] sm:$0xf] %v9036
    %9549 = vst [vmem:[#allocation2 + $0x80] sm:$0xf] %v9037
    %9550 = vst [vmem:[#allocation2 + $0x84] sm:$0xf] %v9038
    %9551 = vst [vmem:[#allocation2 + $0x88] sm:$0xf] %v9039
    %9552 = vst [vmem:[#allocation2 + $0x8c] sm:$0xf] %v9040
    %9553 = vst [vmem:[#allocation2 + $0x90] sm:$0xf] %v9041
    %9554 = vst [vmem:[#allocation2 + $0x94] sm:$0xf] %v9042
    %9555 = vst [vmem:[#allocation2 + $0x98] sm:$0xf] %v9043
    %9556 = vst [vmem:[#allocation2 + $0x9c] sm:$0xf] %v9044
    %9557 = vst [vmem:[#allocation2 + $0xa0] sm:$0xf] %v9045
    %9558 = vst [vmem:[#allocation2 + $0xa4] sm:$0xf] %v9046
    %9559 = vst [vmem:[#allocation2 + $0xa8] sm:$0xf] %v9047
    %9560 = vst [vmem:[#allocation2 + $0xac] sm:$0xf] %v9048
    %9561 = vst [vmem:[#allocation2 + $0xb0] sm:$0xf] %v9049
    %9562 = vst [vmem:[#allocation2 + $0xb4] sm:$0xf] %v9050
    %9563 = vst [vmem:[#allocation2 + $0xb8] sm:$0xf] %v9051
    %9564 = vst [vmem:[#allocation2 + $0xbc] sm:$0xf] %v9052
    %9565 = vst [vmem:[#allocation2 + $0xc0] sm:$0xf] %v9053
    %9566 = vst [vmem:[#allocation2 + $0xc4] sm:$0xf] %v9054
    %9567 = vst [vmem:[#allocation2 + $0xc8] sm:$0xf] %v9055
    %9568 = vst [vmem:[#allocation2 + $0xcc] sm:$0xf] %v9056
    %9569 = vst [vmem:[#allocation2 + $0xd0] sm:$0xf] %v9057
    %9570 = vst [vmem:[#allocation2 + $0xd4] sm:$0xf] %v9058
    %9571 = vst [vmem:[#allocation2 + $0xd8] sm:$0xf] %v9059
    %9572 = vst [vmem:[#allocation2 + $0xdc] sm:$0xf] %v9060
    %9573 = vst [vmem:[#allocation2 + $0xe0] sm:$0xf] %v9061
    %9574 = vst [vmem:[#allocation2 + $0xe4] sm:$0xf] %v9062
    %9575 = vst [vmem:[#allocation2 + $0xe8] sm:$0xf] %v9063
    %9576 = vst [vmem:[#allocation2 + $0xec] sm:$0xf] %v9064
    %9577 = vst [vmem:[#allocation2 + $0xf0] sm:$0xf] %v9065
    %9578 = vst [vmem:[#allocation2 + $0xf4] sm:$0xf] %v9066
    %9579 = vst [vmem:[#allocation2 + $0xf8] sm:$0xf] %v9067
    %9580 = vst [vmem:[#allocation2 + $0xfc] sm:$0xf] %v9068
    %9581 = vst [vmem:[#allocation2 + $0x100] sm:$0xf] %v9069
    %9582 = vst [vmem:[#allocation2 + $0x104] sm:$0xf] %v9070
    %9583 = vst [vmem:[#allocation2 + $0x108] sm:$0xf] %v9071
    %9584 = vst [vmem:[#allocation2 + $0x10c] sm:$0xf] %v9072
    %9585 = vst [vmem:[#allocation2 + $0x110] sm:$0xf] %v9073
    %9586 = vst [vmem:[#allocation2 + $0x114] sm:$0xf] %v9074
    %9587 = vst [vmem:[#allocation2 + $0x118] sm:$0xf] %v9075
    %9588 = vst [vmem:[#allocation2 + $0x11c] sm:$0xf] %v9076
    %9589 = vst [vmem:[#allocation2 + $0x120] sm:$0xf] %v9077
    %9590 = vst [vmem:[#allocation2 + $0x124] sm:$0xf] %v9078
    %9591 = vst [vmem:[#allocation2 + $0x128] sm:$0xf] %v9079
    %9592 = vst [vmem:[#allocation2 + $0x12c] sm:$0xf] %v9080
    %9593 = vst [vmem:[#allocation2 + $0x130] sm:$0xf] %v9081
    %9594 = vst [vmem:[#allocation2 + $0x134] sm:$0xf] %v9082
    %9595 = vst [vmem:[#allocation2 + $0x138] sm:$0xf] %v9083
    %9596 = vst [vmem:[#allocation2 + $0x13c] sm:$0xf] %v9084
    %9597 = vst [vmem:[#allocation2 + $0x140] sm:$0xf] %v9085
    %9598 = vst [vmem:[#allocation2 + $0x144] sm:$0xf] %v9086
    %9599 = vst [vmem:[#allocation2 + $0x148] sm:$0xf] %v9087
    %9600 = vst [vmem:[#allocation2 + $0x14c] sm:$0xf] %v9088
    %9601 = vst [vmem:[#allocation2 + $0x150] sm:$0xf] %v9089
    %9602 = vst [vmem:[#allocation2 + $0x154] sm:$0xf] %v9090
    %9603 = vst [vmem:[#allocation2 + $0x158] sm:$0xf] %v9091
    %9604 = vst [vmem:[#allocation2 + $0x15c] sm:$0xf] %v9092
    %9605 = vst [vmem:[#allocation2 + $0x160] sm:$0xf] %v9093
    %9606 = vst [vmem:[#allocation2 + $0x164] sm:$0xf] %v9094
    %9607 = vst [vmem:[#allocation2 + $0x168] sm:$0xf] %v9095
    %9608 = vst [vmem:[#allocation2 + $0x16c] sm:$0xf] %v9096
    %9609 = vst [vmem:[#allocation2 + $0x170] sm:$0xf] %v9097
    %9610 = vst [vmem:[#allocation2 + $0x174] sm:$0xf] %v9098
    %9611 = vst [vmem:[#allocation2 + $0x178] sm:$0xf] %v9099
    %9612 = vst [vmem:[#allocation2 + $0x17c] sm:$0xf] %v9100
    %9613 = vst [vmem:[#allocation2 + $0x180] sm:$0xf] %v9101
    %9614 = vst [vmem:[#allocation2 + $0x184] sm:$0xf] %v9102
    %9615 = vst [vmem:[#allocation2 + $0x188] sm:$0xf] %v9103
    %9616 = vst [vmem:[#allocation2 + $0x18c] sm:$0xf] %v9104
    %9617 = vst [vmem:[#allocation2 + $0x190] sm:$0xf] %v9105
    %9618 = vst [vmem:[#allocation2 + $0x194] sm:$0xf] %v9106
    %9619 = vst [vmem:[#allocation2 + $0x198] sm:$0xf] %v9107
    %9620 = vst [vmem:[#allocation2 + $0x19c] sm:$0xf] %v9108
    %9621 = vst [vmem:[#allocation2 + $0x1a0] sm:$0xf] %v9109
    %9622 = vst [vmem:[#allocation2 + $0x1a4] sm:$0xf] %v9110
    %9623 = vst [vmem:[#allocation2 + $0x1a8] sm:$0xf] %v9111
    %9624 = vst [vmem:[#allocation2 + $0x1ac] sm:$0xf] %v9112
    %9625 = vst [vmem:[#allocation2 + $0x1b0] sm:$0xf] %v9113
    %9626 = vst [vmem:[#allocation2 + $0x1b4] sm:$0xf] %v9114
    %9627 = vst [vmem:[#allocation2 + $0x1b8] sm:$0xf] %v9115
    %9628 = vst [vmem:[#allocation2 + $0x1bc] sm:$0xf] %v9116
    %9629 = vst [vmem:[#allocation2 + $0x1c0] sm:$0xf] %v9117
    %9630 = vst [vmem:[#allocation2 + $0x1c4] sm:$0xf] %v9118
    %9631 = vst [vmem:[#allocation2 + $0x1c8] sm:$0xf] %v9119
    %9632 = vst [vmem:[#allocation2 + $0x1cc] sm:$0xf] %v9120
    %9633 = vst [vmem:[#allocation2 + $0x1d0] sm:$0xf] %v9121
    %9634 = vst [vmem:[#allocation2 + $0x1d4] sm:$0xf] %v9122
    %9635 = vst [vmem:[#allocation2 + $0x1d8] sm:$0xf] %v9123
    %9636 = vst [vmem:[#allocation2 + $0x1dc] sm:$0xf] %v9124
    %9637 = vst [vmem:[#allocation2 + $0x1e0] sm:$0xf] %v9125
    %9638 = vst [vmem:[#allocation2 + $0x1e4] sm:$0xf] %v9126
    %9639 = vst [vmem:[#allocation2 + $0x1e8] sm:$0xf] %v9127
    %9640 = vst [vmem:[#allocation2 + $0x1ec] sm:$0xf] %v9128
    %9641 = vst [vmem:[#allocation2 + $0x1f0] sm:$0xf] %v9129
    %9642 = vst [vmem:[#allocation2 + $0x1f4] sm:$0xf] %v9130
    %9643 = vst [vmem:[#allocation2 + $0x1f8] sm:$0xf] %v9131
    %9644 = vst [vmem:[#allocation2 + $0x1fc] sm:$0xf] %v9132
    %9645 = vst [vmem:[#allocation2 + $0x200] sm:$0xf] %v9133
    %9646 = vst [vmem:[#allocation2 + $0x204] sm:$0xf] %v9134
    %9647 = vst [vmem:[#allocation2 + $0x208] sm:$0xf] %v9135
    %9648 = vst [vmem:[#allocation2 + $0x20c] sm:$0xf] %v9136
    %9649 = vst [vmem:[#allocation2 + $0x210] sm:$0xf] %v9137
    %9650 = vst [vmem:[#allocation2 + $0x214] sm:$0xf] %v9138
    %9651 = vst [vmem:[#allocation2 + $0x218] sm:$0xf] %v9139
    %9652 = vst [vmem:[#allocation2 + $0x21c] sm:$0xf] %v9140
    %9653 = vst [vmem:[#allocation2 + $0x220] sm:$0xf] %v9141
    %9654 = vst [vmem:[#allocation2 + $0x224] sm:$0xf] %v9142
    %9655 = vst [vmem:[#allocation2 + $0x228] sm:$0xf] %v9143
    %9656 = vst [vmem:[#allocation2 + $0x22c] sm:$0xf] %v9144
    %9657 = vst [vmem:[#allocation2 + $0x230] sm:$0xf] %v9145
    %9658 = vst [vmem:[#allocation2 + $0x234] sm:$0xf] %v9146
    %9659 = vst [vmem:[#allocation2 + $0x238] sm:$0xf] %v9147
    %9660 = vst [vmem:[#allocation2 + $0x23c] sm:$0xf] %v9148
    %9661 = vst [vmem:[#allocation2 + $0x240] sm:$0xf] %v9149
    %9662 = vst [vmem:[#allocation2 + $0x244] sm:$0xf] %v9150
    %9663 = vst [vmem:[#allocation2 + $0x248] sm:$0xf] %v9151
    %9664 = vst [vmem:[#allocation2 + $0x24c] sm:$0xf] %v9152
    %9665 = vst [vmem:[#allocation2 + $0x250] sm:$0xf] %v9153
    %9666 = vst [vmem:[#allocation2 + $0x254] sm:$0xf] %v9154
    %9667 = vst [vmem:[#allocation2 + $0x258] sm:$0xf] %v9155
    %9668 = vst [vmem:[#allocation2 + $0x25c] sm:$0xf] %v9156
    %9669 = vst [vmem:[#allocation2 + $0x260] sm:$0xf] %v9157
    %9670 = vst [vmem:[#allocation2 + $0x264] sm:$0xf] %v9158
    %9671 = vst [vmem:[#allocation2 + $0x268] sm:$0xf] %v9159
    %9672 = vst [vmem:[#allocation2 + $0x26c] sm:$0xf] %v9160
    %9673 = vst [vmem:[#allocation2 + $0x270] sm:$0xf] %v9161
    %9674 = vst [vmem:[#allocation2 + $0x274] sm:$0xf] %v9162
    %9675 = vst [vmem:[#allocation2 + $0x278] sm:$0xf] %v9163
    %9676 = vst [vmem:[#allocation2 + $0x27c] sm:$0xf] %v9164
    %9677 = vst [vmem:[#allocation2 + $0x280] sm:$0xf] %v9165
    %9678 = vst [vmem:[#allocation2 + $0x284] sm:$0xf] %v9166
    %9679 = vst [vmem:[#allocation2 + $0x288] sm:$0xf] %v9167
    %9680 = vst [vmem:[#allocation2 + $0x28c] sm:$0xf] %v9168
    %9681 = vst [vmem:[#allocation2 + $0x290] sm:$0xf] %v9169
    %9682 = vst [vmem:[#allocation2 + $0x294] sm:$0xf] %v9170
    %9683 = vst [vmem:[#allocation2 + $0x298] sm:$0xf] %v9171
    %9684 = vst [vmem:[#allocation2 + $0x29c] sm:$0xf] %v9172
    %9685 = vst [vmem:[#allocation2 + $0x2a0] sm:$0xf] %v9173
    %9686 = vst [vmem:[#allocation2 + $0x2a4] sm:$0xf] %v9174
    %9687 = vst [vmem:[#allocation2 + $0x2a8] sm:$0xf] %v9175
    %9688 = vst [vmem:[#allocation2 + $0x2ac] sm:$0xf] %v9176
    %9689 = vst [vmem:[#allocation2 + $0x2b0] sm:$0xf] %v9177
    %9690 = vst [vmem:[#allocation2 + $0x2b4] sm:$0xf] %v9178
    %9691 = vst [vmem:[#allocation2 + $0x2b8] sm:$0xf] %v9179
    %9692 = vst [vmem:[#allocation2 + $0x2bc] sm:$0xf] %v9180
    %9693 = vst [vmem:[#allocation2 + $0x2c0] sm:$0xf] %v9181
    %9694 = vst [vmem:[#allocation2 + $0x2c4] sm:$0xf] %v9182
    %9695 = vst [vmem:[#allocation2 + $0x2c8] sm:$0xf] %v9183
    %9696 = vst [vmem:[#allocation2 + $0x2cc] sm:$0xf] %v9184
    %9697 = vst [vmem:[#allocation2 + $0x2d0] sm:$0xf] %v9185
    %9698 = vst [vmem:[#allocation2 + $0x2d4] sm:$0xf] %v9186
    %9699 = vst [vmem:[#allocation2 + $0x2d8] sm:$0xf] %v9187
    %9700 = vst [vmem:[#allocation2 + $0x2dc] sm:$0xf] %v9188
    %9701 = vst [vmem:[#allocation2 + $0x2e0] sm:$0xf] %v9189
    %9702 = vst [vmem:[#allocation2 + $0x2e4] sm:$0xf] %v9190
    %9703 = vst [vmem:[#allocation2 + $0x2e8] sm:$0xf] %v9191
    %9704 = vst [vmem:[#allocation2 + $0x2ec] sm:$0xf] %v9192
    %9705 = vst [vmem:[#allocation2 + $0x2f0] sm:$0xf] %v9193
    %9706 = vst [vmem:[#allocation2 + $0x2f4] sm:$0xf] %v9194
    %9707 = vst [vmem:[#allocation2 + $0x2f8] sm:$0xf] %v9195
    %9708 = vst [vmem:[#allocation2 + $0x2fc] sm:$0xf] %v9196
    %9709 = vst [vmem:[#allocation2 + $0x300] sm:$0xf] %v9197
    %9710 = vst [vmem:[#allocation2 + $0x304] sm:$0xf] %v9198
    %9711 = vst [vmem:[#allocation2 + $0x308] sm:$0xf] %v9199
    %9712 = vst [vmem:[#allocation2 + $0x30c] sm:$0xf] %v9200
    %9713 = vst [vmem:[#allocation2 + $0x310] sm:$0xf] %v9201
    %9714 = vst [vmem:[#allocation2 + $0x314] sm:$0xf] %v9202
    %9715 = vst [vmem:[#allocation2 + $0x318] sm:$0xf] %v9203
    %9716 = vst [vmem:[#allocation2 + $0x31c] sm:$0xf] %v9204
    %9717 = vst [vmem:[#allocation2 + $0x320] sm:$0xf] %v9205
    %9718 = vst [vmem:[#allocation2 + $0x324] sm:$0xf] %v9206
    %9719 = vst [vmem:[#allocation2 + $0x328] sm:$0xf] %v9207
    %9720 = vst [vmem:[#allocation2 + $0x32c] sm:$0xf] %v9208
    %9721 = vst [vmem:[#allocation2 + $0x330] sm:$0xf] %v9209
    %9722 = vst [vmem:[#allocation2 + $0x334] sm:$0xf] %v9210
    %9723 = vst [vmem:[#allocation2 + $0x338] sm:$0xf] %v9211
    %9724 = vst [vmem:[#allocation2 + $0x33c] sm:$0xf] %v9212
    %9725 = vst [vmem:[#allocation2 + $0x340] sm:$0xf] %v9213
    %9726 = vst [vmem:[#allocation2 + $0x344] sm:$0xf] %v9214
    %9727 = vst [vmem:[#allocation2 + $0x348] sm:$0xf] %v9215
    %9728 = vst [vmem:[#allocation2 + $0x34c] sm:$0xf] %v9216
    %9729 = vst [vmem:[#allocation2 + $0x350] sm:$0xf] %v9217
    %9730 = vst [vmem:[#allocation2 + $0x354] sm:$0xf] %v9218
    %9731 = vst [vmem:[#allocation2 + $0x358] sm:$0xf] %v9219
    %9732 = vst [vmem:[#allocation2 + $0x35c] sm:$0xf] %v9220
    %9733 = vst [vmem:[#allocation2 + $0x360] sm:$0xf] %v9221
    %9734 = vst [vmem:[#allocation2 + $0x364] sm:$0xf] %v9222
    %9735 = vst [vmem:[#allocation2 + $0x368] sm:$0xf] %v9223
    %9736 = vst [vmem:[#allocation2 + $0x36c] sm:$0xf] %v9224
    %9737 = vst [vmem:[#allocation2 + $0x370] sm:$0xf] %v9225
    %9738 = vst [vmem:[#allocation2 + $0x374] sm:$0xf] %v9226
    %9739 = vst [vmem:[#allocation2 + $0x378] sm:$0xf] %v9227
    %9740 = vst [vmem:[#allocation2 + $0x37c] sm:$0xf] %v9228
    %9741 = vst [vmem:[#allocation2 + $0x380] sm:$0xf] %v9229
    %9742 = vst [vmem:[#allocation2 + $0x384] sm:$0xf] %v9230
    %9743 = vst [vmem:[#allocation2 + $0x388] sm:$0xf] %v9231
    %9744 = vst [vmem:[#allocation2 + $0x38c] sm:$0xf] %v9232
    %9745 = vst [vmem:[#allocation2 + $0x390] sm:$0xf] %v9233
    %9746 = vst [vmem:[#allocation2 + $0x394] sm:$0xf] %v9234
    %9747 = vst [vmem:[#allocation2 + $0x398] sm:$0xf] %v9235
    %9748 = vst [vmem:[#allocation2 + $0x39c] sm:$0xf] %v9236
    %9749 = vst [vmem:[#allocation2 + $0x3a0] sm:$0xf] %v9237
    %9750 = vst [vmem:[#allocation2 + $0x3a4] sm:$0xf] %v9238
    %9751 = vst [vmem:[#allocation2 + $0x3a8] sm:$0xf] %v9239
    %9752 = vst [vmem:[#allocation2 + $0x3ac] sm:$0xf] %v9240
    %9753 = vst [vmem:[#allocation2 + $0x3b0] sm:$0xf] %v9241
    %9754 = vst [vmem:[#allocation2 + $0x3b4] sm:$0xf] %v9242
    %9755 = vst [vmem:[#allocation2 + $0x3b8] sm:$0xf] %v9243
    %9756 = vst [vmem:[#allocation2 + $0x3bc] sm:$0xf] %v9244
    %9757 = vst [vmem:[#allocation2 + $0x3c0] sm:$0xf] %v9245
    %9758 = vst [vmem:[#allocation2 + $0x3c4] sm:$0xf] %v9246
    %9759 = vst [vmem:[#allocation2 + $0x3c8] sm:$0xf] %v9247
    %9760 = vst [vmem:[#allocation2 + $0x3cc] sm:$0xf] %v9248
    %9761 = vst [vmem:[#allocation2 + $0x3d0] sm:$0xf] %v9249
    %9762 = vst [vmem:[#allocation2 + $0x3d4] sm:$0xf] %v9250
    %9763 = vst [vmem:[#allocation2 + $0x3d8] sm:$0xf] %v9251
    %9764 = vst [vmem:[#allocation2 + $0x3dc] sm:$0xf] %v9252
    %9765 = vst [vmem:[#allocation2 + $0x3e0] sm:$0xf] %v9253
    %9766 = vst [vmem:[#allocation2 + $0x3e4] sm:$0xf] %v9254
    %9767 = vst [vmem:[#allocation2 + $0x3e8] sm:$0xf] %v9255
    %9768 = vst [vmem:[#allocation2 + $0x3ec] sm:$0xf] %v9256
    %9769 = vst [vmem:[#allocation2 + $0x3f0] sm:$0xf] %v9257
    %9770 = vst [vmem:[#allocation2 + $0x3f4] sm:$0xf] %v9258
    %9771 = vst [vmem:[#allocation2 + $0x3f8] sm:$0xf] %v9259
    %9772 = vst [vmem:[#allocation2 + $0x3fc] sm:$0xf] %v9260
    // Predicated region
    $region14: #{tpu_custom_call.1} parent=1 // pred_check
      _
    $region15: #{tpu_custom_call.1} parent=1 // pred_check_branch
      %9774 = sbr.rel (0) target = $region17
    $region16: #{tpu_custom_call.1} parent=1 // pred_region
      %s9776 = ssub.s32 16384, 16384
      %9777 = vsyncadd [#allocation3], %s9776
      %s9778 = sshll.u32 [#allocation2], 4
      %s9779 = int_to_ptr.vmem [resolvable:$true] %s9778
      %9784 = dma.vmem_to_hbm [thread:$0]  %s9779, 16384, %s3, [#allocation3], 64, 64, 4
    $region17: #{tpu_custom_call.1} parent=1 // pred_fallthru
      _
    // Predicated region
    $region18: #{tpu_custom_call.1} parent=1 // pred_check
      _
    $region19: #{tpu_custom_call.1} parent=1 // pred_check_branch
      %9786 = sbr.rel (0) target = $region21
    $region20: #{tpu_custom_call.1} parent=1 // pred_region
      %9787 = dma.done [#allocation3], 16384
    $region21: #{tpu_custom_call.1} parent=1 // pred_fallthru
      _
    %9788 = vsyncpa [#allocation3], 1

</llo_original>
